<compile_context>
chip_gen: v7x
topology: tpu7x:2x2x1
jax: 0.10.0
libtpu: 0.0.40
codegen_flags: <defaults>
</compile_context>

<pallas_src>
import jax
import jax.numpy as jnp
from jax import lax
from jax.experimental import pallas as pl
from jax.experimental.pallas import tpu as pltpu


_VMEM = pl.BlockSpec(memory_space=pltpu.MemorySpace.VMEM)
_SMEM = pl.BlockSpec(memory_space=pltpu.MemorySpace.SMEM)


# ----------------------------- in-kernel helpers ---------------------------- #

def _residual(x, ths):
    """x - sign(x)*max(|x|-ths, 0)  ==  clip(x, -ths, ths)   (exact for ths >= 0)."""
    return jnp.minimum(jnp.maximum(x, -ths), ths)


def _small_spd_inverse(a):
    """Unrolled Gauss-Jordan inverse of a tiny SPD (r, r) tile (r static).

    No pivoting needed: arguments are Gram matrices V^T V / U^T U (SPD).
    Built only from static slices / broadcasts / selects so it lowers cleanly.
    """
    r = a.shape[0]
    row_ids = lax.broadcasted_iota(jnp.int32, (r, r), 0)
    col_ids = lax.broadcasted_iota(jnp.int32, (r, r), 1)
    inv = (row_ids == col_ids).astype(a.dtype)          # identity
    w = a
    for k in range(r):
        piv = w[k:k + 1, k:k + 1]                        # (1, 1)
        inv_piv = 1.0 / piv
        w_row = w[k:k + 1, :] * inv_piv                  # (1, r)
        i_row = inv[k:k + 1, :] * inv_piv                # (1, r)
        col = w[:, k:k + 1]                              # (r, 1)
        w_elim = w - col * w_row
        i_elim = inv - col * i_row
        is_k = row_ids == k
        w = jnp.where(is_k, jnp.broadcast_to(w_row, (r, r)), w_elim)
        inv = jnp.where(is_k, jnp.broadcast_to(i_row, (r, r)), i_elim)
    return inv


# ------------------------------ Pallas kernels ------------------------------ #

def _fused_layers_kernel(ths_ref, step_ref, y_ref, x0_ref, u0_ref, v0_ref,
                         loss_ref, u_sc, v_sc):
    """One grid step == one LRPCA layer (t = program_id + 1); loss on last step.

    U/V live in VMEM scratch across the whole grid; Y0/X0/U0/V0 are VMEM-resident
    (constant block index => DMA'd once).
    """
    i = pl.program_id(0)
    t = i + 1

    @pl.when(i == 0)
    def _():
        u_sc[...] = u0_ref[...]
        v_sc[...] = v0_ref[...]

    ths = ths_ref[t]
    step = step_ref[t]

    y = y_ref[...]
    u = u_sc[...]
    v = v_sc[...]

    uvt = lax.dot_general(u, v, (((1,), (1,)), ((), ())),
                          preferred_element_type=jnp.float32)       # U V^T  (M, N)
    e = _residual(y - uvt, ths)                                     # YmUV - thre(YmUV)

    ev = jnp.dot(e, v, preferred_element_type=jnp.float32)          # E V      (M, r)
    etu = lax.dot_general(e, u, (((0,), (0,)), ((), ())),
                          preferred_element_type=jnp.float32)       # (U^T E)^T (N, r)
    vtv = lax.dot_general(v, v, (((0,), (0,)), ((), ())),
                          preferred_element_type=jnp.float32)       # V^T V    (r, r)
    utu = lax.dot_general(u, u, (((0,), (0,)), ((), ())),
                          preferred_element_type=jnp.float32)       # U^T U    (r, r)

    u_new = u + step * jnp.dot(ev, _small_spd_inverse(vtv),
                               preferred_element_type=jnp.float32)
    v_new = v + step * jnp.dot(etu, _small_spd_inverse(utu),
                               preferred_element_type=jnp.float32)
    u_sc[...] = u_new
    v_sc[...] = v_new

    @pl.when(i == pl.num_programs(0) - 1)
    def _():
        diff = lax.dot_general(u_new, v_new, (((1,), (1,)), ((), ())),
                               preferred_element_type=jnp.float32) - x0_ref[...]
        loss_ref[...] = jnp.sqrt(jnp.sum(diff * diff, keepdims=True))


def _d_mm_kernel(ths_ref, y_ref, b_ref, o_ref):
    """(Y - thre(Y, ths)) @ B — residual computed on the fly, never stored."""
    o_ref[...] = jnp.dot(_residual(y_ref[...], ths_ref[0]), b_ref[...],
                         preferred_element_type=jnp.float32)


def _d_tmm_kernel(ths_ref, y_ref, b_ref, o_ref):
    """(Y - thre(Y, ths))^T @ B — contracts dim 0 in-kernel (no XLA transpose)."""
    o_ref[...] = lax.dot_general(_residual(y_ref[...], ths_ref[0]), b_ref[...],
                                 (((0,), (0,)), ((), ())),
                                 preferred_element_type=jnp.float32)


def _mm_nt_kernel(a_ref, b_ref, o_ref):
    """A @ B^T — contracts dim 1 of both operands (no XLA transpose)."""
    o_ref[...] = lax.dot_general(a_ref[...], b_ref[...],
                                 (((1,), (1,)), ((), ())),
                                 preferred_element_type=jnp.float32)


def _loss_kernel(u_ref, v_ref, x_ref, o_ref):
    """|| U V^T - X0 ||_F  ->  (1, 1) scalar (only used when num_l == 1)."""
    diff = lax.dot_general(u_ref[...], v_ref[...], (((1,), (1,)), ((), ())),
                           preferred_element_type=jnp.float32) - x_ref[...]
    o_ref[...] = jnp.sqrt(jnp.sum(diff * diff, keepdims=True))


# ------------------------------ kernel wrappers ------------------------------ #

def fused_layers_and_loss(y, x0, u0, v0, ths_arr, step_arr):
    m, n = y.shape
    r = u0.shape[1]
    num_l = ths_arr.shape[0]
    const = lambda i: (0, 0)
    out = pl.pallas_call(
        _fused_layers_kernel,
        out_shape=jax.ShapeDtypeStruct((1, 1), jnp.float32),
        grid=(num_l - 1,),
        in_specs=[
            _SMEM,                           # ths_v  (num_l,) — whole array in SMEM
            _SMEM,                           # steps  (num_l,) — whole array in SMEM
            pl.BlockSpec((m, n), const),     # Y0 — VMEM-resident across all layers
            pl.BlockSpec((m, n), const),     # X0 — only read on the last step
            pl.BlockSpec((m, r), const),     # U0 — read once at step 0
            pl.BlockSpec((n, r), const),     # V0 — read once at step 0
        ],
        out_specs=pl.BlockSpec((1, 1), const),
        scratch_shapes=[pltpu.VMEM((m, r), jnp.float32),    # U carried across steps
                        pltpu.VMEM((n, r), jnp.float32)],   # V carried across steps
        compiler_params=pltpu.CompilerParams(
            dimension_semantics=("arbitrary",),   # state carried in scratch
            vmem_limit_bytes=32 * 1024 * 1024),
    )(ths_arr, step_arr, y, x0, u0, v0)
    return out[0, 0]


def d_matmul(y, ths, b, *, transpose_d=False):
    """D @ B  or  D^T @ B with D = Y - thre(Y, ths) computed inside the kernel."""
    m, n = y.shape
    rows = n if transpose_d else m
    ths_arr = jnp.asarray(ths, jnp.float32).reshape(1)
    kernel = _d_tmm_kernel if transpose_d else _d_mm_kernel
    return pl.pallas_call(
        kernel,
        out_shape=jax.ShapeDtypeStruct((rows, b.shape[1]), jnp.float32),
        in_specs=[_SMEM, _VMEM, _VMEM],
        out_specs=_VMEM,
    )(ths_arr, y, b)


def matmul_nt(a, b):
    """A @ B^T via Pallas (used for Q @ Ub with Ub = Zh^T)."""
    return pl.pallas_call(
        _mm_nt_kernel,
        out_shape=jax.ShapeDtypeStruct((a.shape[0], b.shape[0]), jnp.float32),
        in_specs=[_VMEM, _VMEM],
        out_specs=_VMEM,
    )(a, b)


def frob_loss(u, v, x0):
    out = pl.pallas_call(
        _loss_kernel,
        out_shape=jax.ShapeDtypeStruct((1, 1), jnp.float32),
        in_specs=[_VMEM, _VMEM, _VMEM],
        out_specs=_VMEM,
    )(u, v, x0)
    return out[0, 0]


# -------------------------- randomized low-rank SVD -------------------------- #

def svd_lowrank_of_residual(y, ths, q, niter, key):
    """Mirror of torch.svd_lowrank(Y - thre(Y, ths), q=q, niter=niter).

    The (M,N)-sized matmuls run in Pallas with the clipped residual fused in;
    QR and the tall-skinny SVD stay in jnp.linalg (no Pallas equivalent).
    """
    n = y.shape[1]
    omega = jax.random.normal(key, (n, q), dtype=y.dtype)
    qmat = jnp.linalg.qr(d_matmul(y, ths, omega))[0]                          # (M, q)
    for _ in range(niter):
        qmat = jnp.linalg.qr(d_matmul(y, ths, qmat, transpose_d=True))[0]     # (N, q)
        qmat = jnp.linalg.qr(d_matmul(y, ths, qmat))[0]                       # (M, q)
    bt = d_matmul(y, ths, qmat, transpose_d=True)        # (N, q) == (Q^T A)^T
    # TODO(synk): tall-skinny SVD has no Pallas lowering; tiny jnp.linalg glue.
    w, s, zh = jnp.linalg.svd(bt, full_matrices=False)   # B^T = W diag(s) Zh
    u = matmul_nt(qmat, zh)                              # Q @ Ub with Ub = Zh^T
    return u, s, w                                       # L, Sigma, R


# ------------------------------ MatNet.forward ------------------------------- #

def _matnet_forward(y0, r, x0, num_l, ths_v, steps, svd_key):
    # Layer 0: S = thre(Y0, ths_0); randomized rank-r SVD of Y0 - S (residual
    # computed on the fly inside every Pallas matmul — never written to HBM).
    l, sigma, rmat = svd_lowrank_of_residual(y0, ths_v[0], q=r, niter=4, key=svd_key)
    sig_sqrt = jnp.sqrt(sigma)
    u0 = l * sig_sqrt[None, :]        # L @ diag(sqrt(Sigma))
    v0 = rmat * sig_sqrt[None, :]     # R @ diag(sqrt(Sigma))

    if num_l <= 1:
        return frob_loss(u0, v0, x0)

    # Layers 1 .. num_l-1 + final loss: one fused pallas_call.
    ths_arr = jnp.stack([jnp.asarray(t, jnp.float32) for t in ths_v[:num_l]])
    step_arr = jnp.stack([jnp.asarray(s, jnp.float32) for s in steps[:num_l]])
    return fused_layers_and_loss(y0, x0, u0, v0, ths_arr, step_arr)


matnet_forward = jax.jit(_matnet_forward, static_argnums=(1, 3))


# ------------------------------------ main ----------------------------------- #

if __name__ == "__main__":
    M = N = 128
    r = 5
    maxIt = 15
    ths_initial = 0.001
    step_initial = 0.5

    key = jax.random.PRNGKey(0)
    k1, k2, k3, k4, k_svd = jax.random.split(key, 5)

    # Synthetic low-rank background + sparse corruption (stand-ins for bg / Y0_t).
    L0 = jax.random.normal(k1, (M, r), dtype=jnp.float32) / jnp.sqrt(float(M))
    R0 = jax.random.normal(k2, (N, r), dtype=jnp.float32) / jnp.sqrt(float(N))
    X0_t = L0 @ R0.T
    sparse_mask = (jax.random.uniform(k3, (M, N)) < 0.1).astype(jnp.float32)
    sparse_vals = jax.random.uniform(k4, (M, N), minval=-0.5, maxval=0.5,
                                     dtype=jnp.float32)
    Y0_t = X0_t + sparse_mask * sparse_vals

    # Deterministic parameters, same shapes as the PyTorch module's __init__.
    ths_v = [jnp.float32(ths_initial) for _ in range(maxIt)]
    steps = [jnp.float32(step_initial) for _ in range(maxIt)]

    loss = matnet_forward(Y0_t, r, X0_t, maxIt, ths_v, steps, k_svd)
    loss = jax.block_until_ready(loss)
    assert jnp.isfinite(loss)
    print("KERNEL_OK")
</pallas_src>

<mosaic_0001>
module attributes {stable_mosaic.version = 11 : i64} {
  func.func @_d_mm_kernel(%arg0: memref<1xf32, #tpu.memory_space<smem>>, %arg1: memref<128x128xf32, #tpu.memory_space<vmem>>, %arg2: memref<128x5xf32, #tpu.memory_space<vmem>>, %arg3: memref<128x5xf32, #tpu.memory_space<vmem>>) attributes {dimension_semantics = [], scalar_prefetch = 0 : i64, scratch_operands = 0 : i64, tpu.core_type = #tpu.core_type<tc>} {
    %c0 = arith.constant 0 : index
    %c0_0 = arith.constant 0 : index
    %0 = vector.load %arg1[%c0, %c0_0] : memref<128x128xf32, #tpu.memory_space<vmem>>, vector<128x128xf32>
    %c0_1 = arith.constant 0 : index
    %1 = memref.load %arg0[%c0_1] : memref<1xf32, #tpu.memory_space<smem>>
    %cst = arith.constant 0.000000e+00 : f32
    %2 = arith.subf %cst, %1 : f32
    %3 = vector.broadcast %2 : f32 to vector<128x128xf32>
    %4 = arith.maximumf %0, %3 : vector<128x128xf32>
    %5 = vector.broadcast %1 : f32 to vector<128x128xf32>
    %6 = arith.minimumf %4, %5 : vector<128x128xf32>
    %c0_2 = arith.constant 0 : index
    %c0_3 = arith.constant 0 : index
    %7 = vector.load %arg2[%c0_2, %c0_3] : memref<128x5xf32, #tpu.memory_space<vmem>>, vector<128x5xf32>
    %cst_4 = arith.constant dense<0.000000e+00> : vector<128x5xf32>
    %8 = tpu.matmul %6, %7, %cst_4 {dimension_numbers = #tpu.dot_dimension_numbers<[1], [0], [0], [1], [0, 0, 1, 1], [], []>} : vector<128x128xf32>, vector<128x5xf32>, vector<128x5xf32> -> vector<128x5xf32>
    %c0_5 = arith.constant 0 : index
    %c0_6 = arith.constant 0 : index
    %9 = vector.load %arg3[%c0_5, %c0_6] : memref<128x5xf32, #tpu.memory_space<vmem>>, vector<128x5xf32>
    tpu.vector_store %arg3[%c0_5, %c0_6], %8 {strides = array<i32>} : memref<128x5xf32, #tpu.memory_space<vmem>>, vector<128x5xf32>,
    return
  }
}

module attributes {stable_mosaic.version = 11 : i64} {
  func.func @_d_tmm_kernel(%arg0: memref<1xf32, #tpu.memory_space<smem>>, %arg1: memref<128x128xf32, #tpu.memory_space<vmem>>, %arg2: memref<128x5xf32, #tpu.memory_space<vmem>>, %arg3: memref<128x5xf32, #tpu.memory_space<vmem>>) attributes {dimension_semantics = [], scalar_prefetch = 0 : i64, scratch_operands = 0 : i64, tpu.core_type = #tpu.core_type<tc>} {
    %c0 = arith.constant 0 : index
    %c0_0 = arith.constant 0 : index
    %0 = vector.load %arg1[%c0, %c0_0] : memref<128x128xf32, #tpu.memory_space<vmem>>, vector<128x128xf32>
    %c0_1 = arith.constant 0 : index
    %1 = memref.load %arg0[%c0_1] : memref<1xf32, #tpu.memory_space<smem>>
    %cst = arith.constant 0.000000e+00 : f32
    %2 = arith.subf %cst, %1 : f32
    %3 = vector.broadcast %2 : f32 to vector<128x128xf32>
    %4 = arith.maximumf %0, %3 : vector<128x128xf32>
    %5 = vector.broadcast %1 : f32 to vector<128x128xf32>
    %6 = arith.minimumf %4, %5 : vector<128x128xf32>
    %c0_2 = arith.constant 0 : index
    %c0_3 = arith.constant 0 : index
    %7 = vector.load %arg2[%c0_2, %c0_3] : memref<128x5xf32, #tpu.memory_space<vmem>>, vector<128x5xf32>
    %cst_4 = arith.constant dense<0.000000e+00> : vector<128x5xf32>
    %8 = tpu.matmul %6, %7, %cst_4 {dimension_numbers = #tpu.dot_dimension_numbers<[0], [0], [1], [1], [0, 1, 1, 1], [], []>} : vector<128x128xf32>, vector<128x5xf32>, vector<128x5xf32> -> vector<128x5xf32>
    %c0_5 = arith.constant 0 : index
    %c0_6 = arith.constant 0 : index
    %9 = vector.load %arg3[%c0_5, %c0_6] : memref<128x5xf32, #tpu.memory_space<vmem>>, vector<128x5xf32>
    tpu.vector_store %arg3[%c0_5, %c0_6], %8 {strides = array<i32>} : memref<128x5xf32, #tpu.memory_space<vmem>>, vector<128x5xf32>,
    return
  }
}

module attributes {stable_mosaic.version = 11 : i64} {
  func.func @_mm_nt_kernel(%arg0: memref<128x5xf32, #tpu.memory_space<vmem>>, %arg1: memref<5x5xf32, #tpu.memory_space<vmem>>, %arg2: memref<128x5xf32, #tpu.memory_space<vmem>>) attributes {dimension_semantics = [], scalar_prefetch = 0 : i64, scratch_operands = 0 : i64, tpu.core_type = #tpu.core_type<tc>} {
    %c0 = arith.constant 0 : index
    %c0_0 = arith.constant 0 : index
    %0 = vector.load %arg0[%c0, %c0_0] : memref<128x5xf32, #tpu.memory_space<vmem>>, vector<128x5xf32>
    %c0_1 = arith.constant 0 : index
    %c0_2 = arith.constant 0 : index
    %1 = vector.load %arg1[%c0_1, %c0_2] : memref<5x5xf32, #tpu.memory_space<vmem>>, vector<5x5xf32>
    %cst = arith.constant dense<0.000000e+00> : vector<128x5xf32>
    %2 = tpu.matmul %0, %1, %cst {dimension_numbers = #tpu.dot_dimension_numbers<[1], [1], [0], [0], [0, 0, 1, 0], [], []>} : vector<128x5xf32>, vector<5x5xf32>, vector<128x5xf32> -> vector<128x5xf32>
    %c0_3 = arith.constant 0 : index
    %c0_4 = arith.constant 0 : index
    %3 = vector.load %arg2[%c0_3, %c0_4] : memref<128x5xf32, #tpu.memory_space<vmem>>, vector<128x5xf32>
    tpu.vector_store %arg2[%c0_3, %c0_4], %2 {strides = array<i32>} : memref<128x5xf32, #tpu.memory_space<vmem>>, vector<128x5xf32>,
    return
  }
}

module attributes {stable_mosaic.version = 11 : i64} {
  func.func @_fused_layers_kernel(%arg0: i32, %arg1: memref<15xf32, #tpu.memory_space<smem>>, %arg2: memref<15xf32, #tpu.memory_space<smem>>, %arg3: memref<128x128xf32, #tpu.memory_space<vmem>>, %arg4: memref<128x128xf32, #tpu.memory_space<vmem>>, %arg5: memref<128x5xf32, #tpu.memory_space<vmem>>, %arg6: memref<128x5xf32, #tpu.memory_space<vmem>>, %arg7: memref<1x1xf32, #tpu.memory_space<vmem>>, %arg8: memref<128x5xf32, #tpu.memory_space<vmem>>, %arg9: memref<128x5xf32, #tpu.memory_space<vmem>>) attributes {dimension_semantics = [#tpu.dimension_semantics<arbitrary>], iteration_bounds = array<i64: 14>, scalar_prefetch = 0 : i64, scratch_operands = 2 : i64, tpu.core_type = #tpu.core_type<tc>, window_params = [{transform_indices = @transform_0, window_bounds = array<i64: 15>}, {transform_indices = @transform_1, window_bounds = array<i64: 15>}, {pipeline_mode = #tpu.pipeline_mode<synchronous>, transform_indices = @transform_2, window_bounds = array<i64: 128, 128>}, {pipeline_mode = #tpu.pipeline_mode<synchronous>, transform_indices = @transform_3, window_bounds = array<i64: 128, 128>}, {pipeline_mode = #tpu.pipeline_mode<synchronous>, transform_indices = @transform_4, window_bounds = array<i64: 128, 5>}, {pipeline_mode = #tpu.pipeline_mode<synchronous>, transform_indices = @transform_5, window_bounds = array<i64: 128, 5>}, {pipeline_mode = #tpu.pipeline_mode<synchronous>, transform_indices = @transform_6, window_bounds = array<i64: 1, 1>}]} {
    %c1_i32 = arith.constant 1 : i32
    %0 = arith.addi %arg0, %c1_i32 : i32
    %c0_i32 = arith.constant 0 : i32
    %1 = arith.cmpi eq, %arg0, %c0_i32 : i32
    %2 = arith.extui %1 : i1 to i32
    %c0_i32_0 = arith.constant 0 : i32
    %3 = arith.cmpi ne, %2, %c0_i32_0 : i32
    scf.if %3 {
      %c0_35 = arith.constant 0 : index
      %c0_36 = arith.constant 0 : index
      %285 = vector.load %arg5[%c0_35, %c0_36] : memref<128x5xf32, #tpu.memory_space<vmem>>, vector<128x5xf32>
      %c0_37 = arith.constant 0 : index
      %c0_38 = arith.constant 0 : index
      %286 = vector.load %arg8[%c0_37, %c0_38] : memref<128x5xf32, #tpu.memory_space<vmem>>, vector<128x5xf32>
      tpu.vector_store %arg8[%c0_37, %c0_38], %285 {strides = array<i32>} : memref<128x5xf32, #tpu.memory_space<vmem>>, vector<128x5xf32>,
      %c0_39 = arith.constant 0 : index
      %c0_40 = arith.constant 0 : index
      %287 = vector.load %arg6[%c0_39, %c0_40] : memref<128x5xf32, #tpu.memory_space<vmem>>, vector<128x5xf32>
      %c0_41 = arith.constant 0 : index
      %c0_42 = arith.constant 0 : index
      %288 = vector.load %arg9[%c0_41, %c0_42] : memref<128x5xf32, #tpu.memory_space<vmem>>, vector<128x5xf32>
      tpu.vector_store %arg9[%c0_41, %c0_42], %287 {strides = array<i32>} : memref<128x5xf32, #tpu.memory_space<vmem>>, vector<128x5xf32>,
    } else {
    }
    %4 = arith.index_cast %0 : i32 to index
    %5 = memref.load %arg1[%4] : memref<15xf32, #tpu.memory_space<smem>>
    %6 = arith.index_cast %0 : i32 to index
    %7 = memref.load %arg2[%6] : memref<15xf32, #tpu.memory_space<smem>>
    %c0 = arith.constant 0 : index
    %c0_1 = arith.constant 0 : index
    %8 = vector.load %arg3[%c0, %c0_1] : memref<128x128xf32, #tpu.memory_space<vmem>>, vector<128x128xf32>
    %c0_2 = arith.constant 0 : index
    %c0_3 = arith.constant 0 : index
    %9 = vector.load %arg8[%c0_2, %c0_3] : memref<128x5xf32, #tpu.memory_space<vmem>>, vector<128x5xf32>
    %c0_4 = arith.constant 0 : index
    %c0_5 = arith.constant 0 : index
    %10 = vector.load %arg9[%c0_4, %c0_5] : memref<128x5xf32, #tpu.memory_space<vmem>>, vector<128x5xf32>
    %cst = arith.constant dense<0.000000e+00> : vector<128x128xf32>
    %11 = tpu.matmul %9, %10, %cst {dimension_numbers = #tpu.dot_dimension_numbers<[1], [1], [0], [0], [0, 0, 1, 0], [], []>} : vector<128x5xf32>, vector<128x5xf32>, vector<128x128xf32> -> vector<128x128xf32>
    %12 = arith.subf %8, %11 : vector<128x128xf32>
    %cst_6 = arith.constant 0.000000e+00 : f32
    %13 = arith.subf %cst_6, %5 : f32
    %14 = vector.broadcast %13 : f32 to vector<128x128xf32>
    %15 = arith.maximumf %12, %14 : vector<128x128xf32>
    %16 = vector.broadcast %5 : f32 to vector<128x128xf32>
    %17 = arith.minimumf %15, %16 : vector<128x128xf32>
    %cst_7 = arith.constant dense<0.000000e+00> : vector<128x5xf32>
    %18 = tpu.matmul %17, %10, %cst_7 {dimension_numbers = #tpu.dot_dimension_numbers<[1], [0], [0], [1], [0, 0, 1, 1], [], []>} : vector<128x128xf32>, vector<128x5xf32>, vector<128x5xf32> -> vector<128x5xf32>
    %cst_8 = arith.constant dense<0.000000e+00> : vector<128x5xf32>
    %19 = tpu.matmul %17, %9, %cst_8 {dimension_numbers = #tpu.dot_dimension_numbers<[0], [0], [1], [1], [0, 1, 1, 1], [], []>} : vector<128x128xf32>, vector<128x5xf32>, vector<128x5xf32> -> vector<128x5xf32>
    %cst_9 = arith.constant dense<0.000000e+00> : vector<5x5xf32>
    %20 = tpu.matmul %10, %10, %cst_9 {dimension_numbers = #tpu.dot_dimension_numbers<[0], [0], [1], [1], [0, 1, 1, 1], [], []>} : vector<128x5xf32>, vector<128x5xf32>, vector<5x5xf32> -> vector<5x5xf32>
    %cst_10 = arith.constant dense<0.000000e+00> : vector<5x5xf32>
    %21 = tpu.matmul %9, %9, %cst_10 {dimension_numbers = #tpu.dot_dimension_numbers<[0], [0], [1], [1], [0, 1, 1, 1], [], []>} : vector<128x5xf32>, vector<128x5xf32>, vector<5x5xf32> -> vector<5x5xf32>
    %22 = tpu.iota {dimensions = array<i32: 0>} : vector<5x5xi32>
    %23 = tpu.iota {dimensions = array<i32: 1>} : vector<5x5xi32>
    %24 = arith.cmpi eq, %22, %23 : vector<5x5xi32>
    %25 = arith.extui %24 : vector<5x5xi1> to vector<5x5xi32>
    %26 = arith.sitofp %25 : vector<5x5xi32> to vector<5x5xf32>
    %27 = vector.extract_strided_slice %20 {offsets = [0, 0], sizes = [1, 1], strides = [1, 1]} : vector<5x5xf32> to vector<1x1xf32>
    %cst_11 = arith.constant 1.000000e+00 : f32
    %28 = vector.broadcast %cst_11 : f32 to vector<1x1xf32>
    %29 = arith.divf %28, %27 : vector<1x1xf32>
    %30 = vector.extract_strided_slice %20 {offsets = [0, 0], sizes = [1, 5], strides = [1, 1]} : vector<5x5xf32> to vector<1x5xf32>
    %31 = vector.broadcast %29 : vector<1x1xf32> to vector<1x5xf32>
    %32 = arith.mulf %30, %31 : vector<1x5xf32>
    %33 = vector.extract_strided_slice %26 {offsets = [0, 0], sizes = [1, 5], strides = [1, 1]} : vector<5x5xf32> to vector<1x5xf32>
    %34 = vector.broadcast %29 : vector<1x1xf32> to vector<1x5xf32>
    %35 = arith.mulf %33, %34 : vector<1x5xf32>
    %36 = vector.extract_strided_slice %20 {offsets = [0, 0], sizes = [5, 1], strides = [1, 1]} : vector<5x5xf32> to vector<5x1xf32>
    %37 = vector.broadcast %36 : vector<5x1xf32> to vector<5x5xf32>
    %38 = vector.broadcast %32 : vector<1x5xf32> to vector<5x5xf32>
    %39 = arith.mulf %37, %38 : vector<5x5xf32>
    %40 = arith.subf %20, %39 : vector<5x5xf32>
    %41 = vector.broadcast %36 : vector<5x1xf32> to vector<5x5xf32>
    %42 = vector.broadcast %35 : vector<1x5xf32> to vector<5x5xf32>
    %43 = arith.mulf %41, %42 : vector<5x5xf32>
    %44 = arith.subf %26, %43 : vector<5x5xf32>
    %c0_i32_12 = arith.constant 0 : i32
    %45 = vector.broadcast %c0_i32_12 : i32 to vector<5x5xi32>
    %46 = arith.cmpi eq, %22, %45 : vector<5x5xi32>
    %47 = vector.shape_cast %32 : vector<1x5xf32> to vector<1x5xf32>
    %48 = vector.broadcast %47 : vector<1x5xf32> to vector<5x5xf32>
    %49 = arith.select %46, %48, %40 : vector<5x5xi1>, vector<5x5xf32>
    %50 = vector.shape_cast %35 : vector<1x5xf32> to vector<1x5xf32>
    %51 = vector.broadcast %50 : vector<1x5xf32> to vector<5x5xf32>
    %52 = arith.select %46, %51, %44 : vector<5x5xi1>, vector<5x5xf32>
    %53 = vector.extract_strided_slice %49 {offsets = [1, 1], sizes = [1, 1], strides = [1, 1]} : vector<5x5xf32> to vector<1x1xf32>
    %cst_13 = arith.constant 1.000000e+00 : f32
    %54 = vector.broadcast %cst_13 : f32 to vector<1x1xf32>
    %55 = arith.divf %54, %53 : vector<1x1xf32>
    %56 = vector.extract_strided_slice %49 {offsets = [1, 0], sizes = [1, 5], strides = [1, 1]} : vector<5x5xf32> to vector<1x5xf32>
    %57 = vector.broadcast %55 : vector<1x1xf32> to vector<1x5xf32>
    %58 = arith.mulf %56, %57 : vector<1x5xf32>
    %59 = vector.extract_strided_slice %52 {offsets = [1, 0], sizes = [1, 5], strides = [1, 1]} : vector<5x5xf32> to vector<1x5xf32>
    %60 = vector.broadcast %55 : vector<1x1xf32> to vector<1x5xf32>
    %61 = arith.mulf %59, %60 : vector<1x5xf32>
    %62 = vector.extract_strided_slice %49 {offsets = [0, 1], sizes = [5, 1], strides = [1, 1]} : vector<5x5xf32> to vector<5x1xf32>
    %63 = vector.broadcast %62 : vector<5x1xf32> to vector<5x5xf32>
    %64 = vector.broadcast %58 : vector<1x5xf32> to vector<5x5xf32>
    %65 = arith.mulf %63, %64 : vector<5x5xf32>
    %66 = arith.subf %49, %65 : vector<5x5xf32>
    %67 = vector.broadcast %62 : vector<5x1xf32> to vector<5x5xf32>
    %68 = vector.broadcast %61 : vector<1x5xf32> to vector<5x5xf32>
    %69 = arith.mulf %67, %68 : vector<5x5xf32>
    %70 = arith.subf %52, %69 : vector<5x5xf32>
    %c1_i32_14 = arith.constant 1 : i32
    %71 = vector.broadcast %c1_i32_14 : i32 to vector<5x5xi32>
    %72 = arith.cmpi eq, %22, %71 : vector<5x5xi32>
    %73 = vector.shape_cast %58 : vector<1x5xf32> to vector<1x5xf32>
    %74 = vector.broadcast %73 : vector<1x5xf32> to vector<5x5xf32>
    %75 = arith.select %72, %74, %66 : vector<5x5xi1>, vector<5x5xf32>
    %76 = vector.shape_cast %61 : vector<1x5xf32> to vector<1x5xf32>
    %77 = vector.broadcast %76 : vector<1x5xf32> to vector<5x5xf32>
    %78 = arith.select %72, %77, %70 : vector<5x5xi1>, vector<5x5xf32>
    %79 = vector.extract_strided_slice %75 {offsets = [2, 2], sizes = [1, 1], strides = [1, 1]} : vector<5x5xf32> to vector<1x1xf32>
    %cst_15 = arith.constant 1.000000e+00 : f32
    %80 = vector.broadcast %cst_15 : f32 to vector<1x1xf32>
    %81 = arith.divf %80, %79 : vector<1x1xf32>
    %82 = vector.extract_strided_slice %75 {offsets = [2, 0], sizes = [1, 5], strides = [1, 1]} : vector<5x5xf32> to vector<1x5xf32>
    %83 = vector.broadcast %81 : vector<1x1xf32> to vector<1x5xf32>
    %84 = arith.mulf %82, %83 : vector<1x5xf32>
    %85 = vector.extract_strided_slice %78 {offsets = [2, 0], sizes = [1, 5], strides = [1, 1]} : vector<5x5xf32> to vector<1x5xf32>
    %86 = vector.broadcast %81 : vector<1x1xf32> to vector<1x5xf32>
    %87 = arith.mulf %85, %86 : vector<1x5xf32>
    %88 = vector.extract_strided_slice %75 {offsets = [0, 2], sizes = [5, 1], strides = [1, 1]} : vector<5x5xf32> to vector<5x1xf32>
    %89 = vector.broadcast %88 : vector<5x1xf32> to vector<5x5xf32>
    %90 = vector.broadcast %84 : vector<1x5xf32> to vector<5x5xf32>
    %91 = arith.mulf %89, %90 : vector<5x5xf32>
    %92 = arith.subf %75, %91 : vector<5x5xf32>
    %93 = vector.broadcast %88 : vector<5x1xf32> to vector<5x5xf32>
    %94 = vector.broadcast %87 : vector<1x5xf32> to vector<5x5xf32>
    %95 = arith.mulf %93, %94 : vector<5x5xf32>
    %96 = arith.subf %78, %95 : vector<5x5xf32>
    %c2_i32 = arith.constant 2 : i32
    %97 = vector.broadcast %c2_i32 : i32 to vector<5x5xi32>
    %98 = arith.cmpi eq, %22, %97 : vector<5x5xi32>
    %99 = vector.shape_cast %84 : vector<1x5xf32> to vector<1x5xf32>
    %100 = vector.broadcast %99 : vector<1x5xf32> to vector<5x5xf32>
    %101 = arith.select %98, %100, %92 : vector<5x5xi1>, vector<5x5xf32>
    %102 = vector.shape_cast %87 : vector<1x5xf32> to vector<1x5xf32>
    %103 = vector.broadcast %102 : vector<1x5xf32> to vector<5x5xf32>
    %104 = arith.select %98, %103, %96 : vector<5x5xi1>, vector<5x5xf32>
    %105 = vector.extract_strided_slice %101 {offsets = [3, 3], sizes = [1, 1], strides = [1, 1]} : vector<5x5xf32> to vector<1x1xf32>
    %cst_16 = arith.constant 1.000000e+00 : f32
    %106 = vector.broadcast %cst_16 : f32 to vector<1x1xf32>
    %107 = arith.divf %106, %105 : vector<1x1xf32>
    %108 = vector.extract_strided_slice %101 {offsets = [3, 0], sizes = [1, 5], strides = [1, 1]} : vector<5x5xf32> to vector<1x5xf32>
    %109 = vector.broadcast %107 : vector<1x1xf32> to vector<1x5xf32>
    %110 = arith.mulf %108, %109 : vector<1x5xf32>
    %111 = vector.extract_strided_slice %104 {offsets = [3, 0], sizes = [1, 5], strides = [1, 1]} : vector<5x5xf32> to vector<1x5xf32>
    %112 = vector.broadcast %107 : vector<1x1xf32> to vector<1x5xf32>
    %113 = arith.mulf %111, %112 : vector<1x5xf32>
    %114 = vector.extract_strided_slice %101 {offsets = [0, 3], sizes = [5, 1], strides = [1, 1]} : vector<5x5xf32> to vector<5x1xf32>
    %115 = vector.broadcast %114 : vector<5x1xf32> to vector<5x5xf32>
    %116 = vector.broadcast %110 : vector<1x5xf32> to vector<5x5xf32>
    %117 = arith.mulf %115, %116 : vector<5x5xf32>
    %118 = arith.subf %101, %117 : vector<5x5xf32>
    %119 = vector.broadcast %114 : vector<5x1xf32> to vector<5x5xf32>
    %120 = vector.broadcast %113 : vector<1x5xf32> to vector<5x5xf32>
    %121 = arith.mulf %119, %120 : vector<5x5xf32>
    %122 = arith.subf %104, %121 : vector<5x5xf32>
    %c3_i32 = arith.constant 3 : i32
    %123 = vector.broadcast %c3_i32 : i32 to vector<5x5xi32>
    %124 = arith.cmpi eq, %22, %123 : vector<5x5xi32>
    %125 = vector.shape_cast %110 : vector<1x5xf32> to vector<1x5xf32>
    %126 = vector.broadcast %125 : vector<1x5xf32> to vector<5x5xf32>
    %127 = arith.select %124, %126, %118 : vector<5x5xi1>, vector<5x5xf32>
    %128 = vector.shape_cast %113 : vector<1x5xf32> to vector<1x5xf32>
    %129 = vector.broadcast %128 : vector<1x5xf32> to vector<5x5xf32>
    %130 = arith.select %124, %129, %122 : vector<5x5xi1>, vector<5x5xf32>
    %131 = vector.extract_strided_slice %127 {offsets = [4, 4], sizes = [1, 1], strides = [1, 1]} : vector<5x5xf32> to vector<1x1xf32>
    %cst_17 = arith.constant 1.000000e+00 : f32
    %132 = vector.broadcast %cst_17 : f32 to vector<1x1xf32>
    %133 = arith.divf %132, %131 : vector<1x1xf32>
    %134 = vector.extract_strided_slice %130 {offsets = [4, 0], sizes = [1, 5], strides = [1, 1]} : vector<5x5xf32> to vector<1x5xf32>
    %135 = vector.broadcast %133 : vector<1x1xf32> to vector<1x5xf32>
    %136 = arith.mulf %134, %135 : vector<1x5xf32>
    %137 = vector.extract_strided_slice %127 {offsets = [0, 4], sizes = [5, 1], strides = [1, 1]} : vector<5x5xf32> to vector<5x1xf32>
    %138 = vector.broadcast %137 : vector<5x1xf32> to vector<5x5xf32>
    %139 = vector.broadcast %136 : vector<1x5xf32> to vector<5x5xf32>
    %140 = arith.mulf %138, %139 : vector<5x5xf32>
    %141 = arith.subf %130, %140 : vector<5x5xf32>
    %c4_i32 = arith.constant 4 : i32
    %142 = vector.broadcast %c4_i32 : i32 to vector<5x5xi32>
    %143 = arith.cmpi eq, %22, %142 : vector<5x5xi32>
    %144 = vector.shape_cast %136 : vector<1x5xf32> to vector<1x5xf32>
    %145 = vector.broadcast %144 : vector<1x5xf32> to vector<5x5xf32>
    %146 = arith.select %143, %145, %141 : vector<5x5xi1>, vector<5x5xf32>
    %cst_18 = arith.constant dense<0.000000e+00> : vector<128x5xf32>
    %147 = tpu.matmul %18, %146, %cst_18 {dimension_numbers = #tpu.dot_dimension_numbers<[1], [0], [0], [1], [0, 0, 1, 1], [], []>} : vector<128x5xf32>, vector<5x5xf32>, vector<128x5xf32> -> vector<128x5xf32>
    %148 = vector.broadcast %7 : f32 to vector<128x5xf32>
    %149 = arith.mulf %148, %147 : vector<128x5xf32>
    %150 = arith.addf %9, %149 : vector<128x5xf32>
    %151 = tpu.iota {dimensions = array<i32: 0>} : vector<5x5xi32>
    %152 = tpu.iota {dimensions = array<i32: 1>} : vector<5x5xi32>
    %153 = arith.cmpi eq, %151, %152 : vector<5x5xi32>
    %154 = arith.extui %153 : vector<5x5xi1> to vector<5x5xi32>
    %155 = arith.sitofp %154 : vector<5x5xi32> to vector<5x5xf32>
    %156 = vector.extract_strided_slice %21 {offsets = [0, 0], sizes = [1, 1], strides = [1, 1]} : vector<5x5xf32> to vector<1x1xf32>
    %cst_19 = arith.constant 1.000000e+00 : f32
    %157 = vector.broadcast %cst_19 : f32 to vector<1x1xf32>
    %158 = arith.divf %157, %156 : vector<1x1xf32>
    %159 = vector.extract_strided_slice %21 {offsets = [0, 0], sizes = [1, 5], strides = [1, 1]} : vector<5x5xf32> to vector<1x5xf32>
    %160 = vector.broadcast %158 : vector<1x1xf32> to vector<1x5xf32>
    %161 = arith.mulf %159, %160 : vector<1x5xf32>
    %162 = vector.extract_strided_slice %155 {offsets = [0, 0], sizes = [1, 5], strides = [1, 1]} : vector<5x5xf32> to vector<1x5xf32>
    %163 = vector.broadcast %158 : vector<1x1xf32> to vector<1x5xf32>
    %164 = arith.mulf %162, %163 : vector<1x5xf32>
    %165 = vector.extract_strided_slice %21 {offsets = [0, 0], sizes = [5, 1], strides = [1, 1]} : vector<5x5xf32> to vector<5x1xf32>
    %166 = vector.broadcast %165 : vector<5x1xf32> to vector<5x5xf32>
    %167 = vector.broadcast %161 : vector<1x5xf32> to vector<5x5xf32>
    %168 = arith.mulf %166, %167 : vector<5x5xf32>
    %169 = arith.subf %21, %168 : vector<5x5xf32>
    %170 = vector.broadcast %165 : vector<5x1xf32> to vector<5x5xf32>
    %171 = vector.broadcast %164 : vector<1x5xf32> to vector<5x5xf32>
    %172 = arith.mulf %170, %171 : vector<5x5xf32>
    %173 = arith.subf %155, %172 : vector<5x5xf32>
    %c0_i32_20 = arith.constant 0 : i32
    %174 = vector.broadcast %c0_i32_20 : i32 to vector<5x5xi32>
    %175 = arith.cmpi eq, %151, %174 : vector<5x5xi32>
    %176 = vector.shape_cast %161 : vector<1x5xf32> to vector<1x5xf32>
    %177 = vector.broadcast %176 : vector<1x5xf32> to vector<5x5xf32>
    %178 = arith.select %175, %177, %169 : vector<5x5xi1>, vector<5x5xf32>
    %179 = vector.shape_cast %164 : vector<1x5xf32> to vector<1x5xf32>
    %180 = vector.broadcast %179 : vector<1x5xf32> to vector<5x5xf32>
    %181 = arith.select %175, %180, %173 : vector<5x5xi1>, vector<5x5xf32>
    %182 = vector.extract_strided_slice %178 {offsets = [1, 1], sizes = [1, 1], strides = [1, 1]} : vector<5x5xf32> to vector<1x1xf32>
    %cst_21 = arith.constant 1.000000e+00 : f32
    %183 = vector.broadcast %cst_21 : f32 to vector<1x1xf32>
    %184 = arith.divf %183, %182 : vector<1x1xf32>
    %185 = vector.extract_strided_slice %178 {offsets = [1, 0], sizes = [1, 5], strides = [1, 1]} : vector<5x5xf32> to vector<1x5xf32>
    %186 = vector.broadcast %184 : vector<1x1xf32> to vector<1x5xf32>
    %187 = arith.mulf %185, %186 : vector<1x5xf32>
    %188 = vector.extract_strided_slice %181 {offsets = [1, 0], sizes = [1, 5], strides = [1, 1]} : vector<5x5xf32> to vector<1x5xf32>
    %189 = vector.broadcast %184 : vector<1x1xf32> to vector<1x5xf32>
    %190 = arith.mulf %188, %189 : vector<1x5xf32>
    %191 = vector.extract_strided_slice %178 {offsets = [0, 1], sizes = [5, 1], strides = [1, 1]} : vector<5x5xf32> to vector<5x1xf32>
    %192 = vector.broadcast %191 : vector<5x1xf32> to vector<5x5xf32>
    %193 = vector.broadcast %187 : vector<1x5xf32> to vector<5x5xf32>
    %194 = arith.mulf %192, %193 : vector<5x5xf32>
    %195 = arith.subf %178, %194 : vector<5x5xf32>
    %196 = vector.broadcast %191 : vector<5x1xf32> to vector<5x5xf32>
    %197 = vector.broadcast %190 : vector<1x5xf32> to vector<5x5xf32>
    %198 = arith.mulf %196, %197 : vector<5x5xf32>
    %199 = arith.subf %181, %198 : vector<5x5xf32>
    %c1_i32_22 = arith.constant 1 : i32
    %200 = vector.broadcast %c1_i32_22 : i32 to vector<5x5xi32>
    %201 = arith.cmpi eq, %151, %200 : vector<5x5xi32>
    %202 = vector.shape_cast %187 : vector<1x5xf32> to vector<1x5xf32>
    %203 = vector.broadcast %202 : vector<1x5xf32> to vector<5x5xf32>
    %204 = arith.select %201, %203, %195 : vector<5x5xi1>, vector<5x5xf32>
    %205 = vector.shape_cast %190 : vector<1x5xf32> to vector<1x5xf32>
    %206 = vector.broadcast %205 : vector<1x5xf32> to vector<5x5xf32>
    %207 = arith.select %201, %206, %199 : vector<5x5xi1>, vector<5x5xf32>
    %208 = vector.extract_strided_slice %204 {offsets = [2, 2], sizes = [1, 1], strides = [1, 1]} : vector<5x5xf32> to vector<1x1xf32>
    %cst_23 = arith.constant 1.000000e+00 : f32
    %209 = vector.broadcast %cst_23 : f32 to vector<1x1xf32>
    %210 = arith.divf %209, %208 : vector<1x1xf32>
    %211 = vector.extract_strided_slice %204 {offsets = [2, 0], sizes = [1, 5], strides = [1, 1]} : vector<5x5xf32> to vector<1x5xf32>
    %212 = vector.broadcast %210 : vector<1x1xf32> to vector<1x5xf32>
    %213 = arith.mulf %211, %212 : vector<1x5xf32>
    %214 = vector.extract_strided_slice %207 {offsets = [2, 0], sizes = [1, 5], strides = [1, 1]} : vector<5x5xf32> to vector<1x5xf32>
    %215 = vector.broadcast %210 : vector<1x1xf32> to vector<1x5xf32>
    %216 = arith.mulf %214, %215 : vector<1x5xf32>
    %217 = vector.extract_strided_slice %204 {offsets = [0, 2], sizes = [5, 1], strides = [1, 1]} : vector<5x5xf32> to vector<5x1xf32>
    %218 = vector.broadcast %217 : vector<5x1xf32> to vector<5x5xf32>
    %219 = vector.broadcast %213 : vector<1x5xf32> to vector<5x5xf32>
    %220 = arith.mulf %218, %219 : vector<5x5xf32>
    %221 = arith.subf %204, %220 : vector<5x5xf32>
    %222 = vector.broadcast %217 : vector<5x1xf32> to vector<5x5xf32>
    %223 = vector.broadcast %216 : vector<1x5xf32> to vector<5x5xf32>
    %224 = arith.mulf %222, %223 : vector<5x5xf32>
    %225 = arith.subf %207, %224 : vector<5x5xf32>
    %c2_i32_24 = arith.constant 2 : i32
    %226 = vector.broadcast %c2_i32_24 : i32 to vector<5x5xi32>
    %227 = arith.cmpi eq, %151, %226 : vector<5x5xi32>
    %228 = vector.shape_cast %213 : vector<1x5xf32> to vector<1x5xf32>
    %229 = vector.broadcast %228 : vector<1x5xf32> to vector<5x5xf32>
    %230 = arith.select %227, %229, %221 : vector<5x5xi1>, vector<5x5xf32>
    %231 = vector.shape_cast %216 : vector<1x5xf32> to vector<1x5xf32>
    %232 = vector.broadcast %231 : vector<1x5xf32> to vector<5x5xf32>
    %233 = arith.select %227, %232, %225 : vector<5x5xi1>, vector<5x5xf32>
    %234 = vector.extract_strided_slice %230 {offsets = [3, 3], sizes = [1, 1], strides = [1, 1]} : vector<5x5xf32> to vector<1x1xf32>
    %cst_25 = arith.constant 1.000000e+00 : f32
    %235 = vector.broadcast %cst_25 : f32 to vector<1x1xf32>
    %236 = arith.divf %235, %234 : vector<1x1xf32>
    %237 = vector.extract_strided_slice %230 {offsets = [3, 0], sizes = [1, 5], strides = [1, 1]} : vector<5x5xf32> to vector<1x5xf32>
    %238 = vector.broadcast %236 : vector<1x1xf32> to vector<1x5xf32>
    %239 = arith.mulf %237, %238 : vector<1x5xf32>
    %240 = vector.extract_strided_slice %233 {offsets = [3, 0], sizes = [1, 5], strides = [1, 1]} : vector<5x5xf32> to vector<1x5xf32>
    %241 = vector.broadcast %236 : vector<1x1xf32> to vector<1x5xf32>
    %242 = arith.mulf %240, %241 : vector<1x5xf32>
    %243 = vector.extract_strided_slice %230 {offsets = [0, 3], sizes = [5, 1], strides = [1, 1]} : vector<5x5xf32> to vector<5x1xf32>
    %244 = vector.broadcast %243 : vector<5x1xf32> to vector<5x5xf32>
    %245 = vector.broadcast %239 : vector<1x5xf32> to vector<5x5xf32>
    %246 = arith.mulf %244, %245 : vector<5x5xf32>
    %247 = arith.subf %230, %246 : vector<5x5xf32>
    %248 = vector.broadcast %243 : vector<5x1xf32> to vector<5x5xf32>
    %249 = vector.broadcast %242 : vector<1x5xf32> to vector<5x5xf32>
    %250 = arith.mulf %248, %249 : vector<5x5xf32>
    %251 = arith.subf %233, %250 : vector<5x5xf32>
    %c3_i32_26 = arith.constant 3 : i32
    %252 = vector.broadcast %c3_i32_26 : i32 to vector<5x5xi32>
    %253 = arith.cmpi eq, %151, %252 : vector<5x5xi32>
    %254 = vector.shape_cast %239 : vector<1x5xf32> to vector<1x5xf32>
    %255 = vector.broadcast %254 : vector<1x5xf32> to vector<5x5xf32>
    %256 = arith.select %253, %255, %247 : vector<5x5xi1>, vector<5x5xf32>
    %257 = vector.shape_cast %242 : vector<1x5xf32> to vector<1x5xf32>
    %258 = vector.broadcast %257 : vector<1x5xf32> to vector<5x5xf32>
    %259 = arith.select %253, %258, %251 : vector<5x5xi1>, vector<5x5xf32>
    %260 = vector.extract_strided_slice %256 {offsets = [4, 4], sizes = [1, 1], strides = [1, 1]} : vector<5x5xf32> to vector<1x1xf32>
    %cst_27 = arith.constant 1.000000e+00 : f32
    %261 = vector.broadcast %cst_27 : f32 to vector<1x1xf32>
    %262 = arith.divf %261, %260 : vector<1x1xf32>
    %263 = vector.extract_strided_slice %259 {offsets = [4, 0], sizes = [1, 5], strides = [1, 1]} : vector<5x5xf32> to vector<1x5xf32>
    %264 = vector.broadcast %262 : vector<1x1xf32> to vector<1x5xf32>
    %265 = arith.mulf %263, %264 : vector<1x5xf32>
    %266 = vector.extract_strided_slice %256 {offsets = [0, 4], sizes = [5, 1], strides = [1, 1]} : vector<5x5xf32> to vector<5x1xf32>
    %267 = vector.broadcast %266 : vector<5x1xf32> to vector<5x5xf32>
    %268 = vector.broadcast %265 : vector<1x5xf32> to vector<5x5xf32>
    %269 = arith.mulf %267, %268 : vector<5x5xf32>
    %270 = arith.subf %259, %269 : vector<5x5xf32>
    %c4_i32_28 = arith.constant 4 : i32
    %271 = vector.broadcast %c4_i32_28 : i32 to vector<5x5xi32>
    %272 = arith.cmpi eq, %151, %271 : vector<5x5xi32>
    %273 = vector.shape_cast %265 : vector<1x5xf32> to vector<1x5xf32>
    %274 = vector.broadcast %273 : vector<1x5xf32> to vector<5x5xf32>
    %275 = arith.select %272, %274, %270 : vector<5x5xi1>, vector<5x5xf32>
    %cst_29 = arith.constant dense<0.000000e+00> : vector<128x5xf32>
    %276 = tpu.matmul %19, %275, %cst_29 {dimension_numbers = #tpu.dot_dimension_numbers<[1], [0], [0], [1], [0, 0, 1, 1], [], []>} : vector<128x5xf32>, vector<5x5xf32>, vector<128x5xf32> -> vector<128x5xf32>
    %277 = vector.broadcast %7 : f32 to vector<128x5xf32>
    %278 = arith.mulf %277, %276 : vector<128x5xf32>
    %279 = arith.addf %10, %278 : vector<128x5xf32>
    %c0_30 = arith.constant 0 : index
    %c0_31 = arith.constant 0 : index
    %280 = vector.load %arg8[%c0_30, %c0_31] : memref<128x5xf32, #tpu.memory_space<vmem>>, vector<128x5xf32>
    tpu.vector_store %arg8[%c0_30, %c0_31], %150 {strides = array<i32>} : memref<128x5xf32, #tpu.memory_space<vmem>>, vector<128x5xf32>,
    %c0_32 = arith.constant 0 : index
    %c0_33 = arith.constant 0 : index
    %281 = vector.load %arg9[%c0_32, %c0_33] : memref<128x5xf32, #tpu.memory_space<vmem>>, vector<128x5xf32>
    tpu.vector_store %arg9[%c0_32, %c0_33], %279 {strides = array<i32>} : memref<128x5xf32, #tpu.memory_space<vmem>>, vector<128x5xf32>,
    %c13_i32 = arith.constant 13 : i32
    %282 = arith.cmpi eq, %arg0, %c13_i32 : i32
    %283 = arith.extui %282 : i1 to i32
    %c0_i32_34 = arith.constant 0 : i32
    %284 = arith.cmpi ne, %283, %c0_i32_34 : i32
    scf.if %284 {
      %cst_35 = arith.constant dense<0.000000e+00> : vector<128x128xf32>
      %285 = tpu.matmul %150, %279, %cst_35 {dimension_numbers = #tpu.dot_dimension_numbers<[1], [1], [0], [0], [0, 0, 1, 0], [], []>} : vector<128x5xf32>, vector<128x5xf32>, vector<128x128xf32> -> vector<128x128xf32>
      %c0_36 = arith.constant 0 : index
      %c0_37 = arith.constant 0 : index
      %286 = vector.load %arg4[%c0_36, %c0_37] : memref<128x128xf32, #tpu.memory_space<vmem>>, vector<128x128xf32>
      %287 = arith.subf %285, %286 : vector<128x128xf32>
      %288 = arith.mulf %287, %287 : vector<128x128xf32>
      %289 = vector.shape_cast %288 : vector<128x128xf32> to vector<1x128x128xf32>
      %cst_38 = arith.constant dense<0.000000e+00> : vector<1xf32>
      %290 = vector.multi_reduction <add>, %289, %cst_38 [1, 2] : vector<1x128x128xf32> to vector<1xf32>
      %291 = vector.shape_cast %290 : vector<1xf32> to vector<1x1x1xf32>
      %292 = vector.extract %291[0, 0, 0] : f32 from vector<1x1x1xf32>
      %293 = vector.broadcast %292 : f32 to vector<1x1xf32>
      %294 = math.sqrt %293 : vector<1x1xf32>
      %c0_39 = arith.constant 0 : index
      %c0_40 = arith.constant 0 : index
      %295 = vector.load %arg7[%c0_39, %c0_40] : memref<1x1xf32, #tpu.memory_space<vmem>>, vector<1x1xf32>
      tpu.vector_store %arg7[%c0_39, %c0_40], %294 {strides = array<i32>} : memref<1x1xf32, #tpu.memory_space<vmem>>, vector<1x1xf32>,
    } else {
    }
    return
  }
  func.func @transform_0(%arg0: i32) -> i32 {
    %c0_i32 = arith.constant 0 : i32
    %c0_i32_0 = arith.constant 0 : i32
    return %c0_i32 : i32
  }
  func.func @transform_1(%arg0: i32) -> i32 {
    %c0_i32 = arith.constant 0 : i32
    %c0_i32_0 = arith.constant 0 : i32
    return %c0_i32 : i32
  }
  func.func @transform_2(%arg0: i32) -> (i32, i32) {
    %c0_i32 = arith.constant 0 : i32
    %c0_i32_0 = arith.constant 0 : i32
    %c0_i32_1 = arith.constant 0 : i32
    return %c0_i32, %c0_i32_0 : i32, i32
  }
  func.func @transform_3(%arg0: i32) -> (i32, i32) {
    %c0_i32 = arith.constant 0 : i32
    %c0_i32_0 = arith.constant 0 : i32
    %c0_i32_1 = arith.constant 0 : i32
    return %c0_i32, %c0_i32_0 : i32, i32
  }
  func.func @transform_4(%arg0: i32) -> (i32, i32) {
    %c0_i32 = arith.constant 0 : i32
    %c0_i32_0 = arith.constant 0 : i32
    %c0_i32_1 = arith.constant 0 : i32
    return %c0_i32, %c0_i32_0 : i32, i32
  }
  func.func @transform_5(%arg0: i32) -> (i32, i32) {
    %c0_i32 = arith.constant 0 : i32
    %c0_i32_0 = arith.constant 0 : i32
    %c0_i32_1 = arith.constant 0 : i32
    return %c0_i32, %c0_i32_0 : i32, i32
  }
  func.func @transform_6(%arg0: i32) -> (i32, i32) {
    %c0_i32 = arith.constant 0 : i32
    %c0_i32_0 = arith.constant 0 : i32
    %c0_i32_1 = arith.constant 0 : i32
    return %c0_i32, %c0_i32_0 : i32, i32
  }
}

</mosaic_0001>

<llo_original>
// kernel: custom-call.54
$region0: #{custom-call.54}
  %s0 = inlined_call_operand.vmem [shape: f32[128,5], index: 0, kind: input, shape index: {}]
  %s1 = inlined_call_operand.vmem [shape: f32[128,5], index: 1, kind: output, shape index: {0}]
  %s2 = inlined_call_operand.vmem [shape: f32[5], index: 2, kind: output, shape index: {1}]
  %3 = xla_tuple %s1, %s2
  $region1: #{custom-call.54} parent=0
    #allocation0 [shape = 'u8[65536]{0}', space=vmem, size = 0x10000, scoped, tag = 'operand span for operand 0']
    #allocation1 [shape = 'u8[65536]{0}', space=vmem, size = 0x10000, scoped, tag = 'operand span for operand 1']
    #allocation2 [shape = 'u8[4096]{0}', space=vmem, size = 0x1000, scoped, tag = 'operand span for operand 2']
    #allocation3 [shape = 'u8[512]{0}', space=vmem, size = 0x400, scoped, tag = 'packed  for operand 2']
    #allocation4 [shape = 'f32[128,128]{1,0}', space=vmem, size = 0x10000, scoped, tag = 'scratch for Householder reflectors']
    // Predicated region
    $region2: #{custom-call.54} parent=1 // pred_check
      _
    $region3: #{custom-call.54} parent=1 // pred_check_branch
      %5 = sbr.rel (0) target = $region5
    $region4: #{custom-call.54} parent=1 // pred_region
      // Predicated region
      $region6: #{custom-call.54} parent=4 // pred_check
        _
      $region7: #{custom-call.54} parent=4 // pred_check_branch
        %7 = sbr.rel (0) target = $region9
      $region8: #{custom-call.54} parent=4 // pred_region
        // Predicated region
        $region21: #{custom-call.54} parent=8 // pred_check
          _
        $region22: #{custom-call.54} parent=8 // pred_check_branch
          %52 = sbr.rel (0) target = $region24
        $region23: #{custom-call.54} parent=8 // pred_region
          loop: start=0, step=1, limit=1
          $region25: #{custom-call.54} parent=23 // loop_pre_header
            _
          $region26: #{custom-call.54} parent=23 // loop_header
            %s54 = sphi 0, %s58
            %p55 = scmp.ge.s32.totalorder %s54, 1
            %s59 = sphi %s0, %s0
            %s60 = sphi [#allocation0], [#allocation0]
          $region27: #{custom-call.54} parent=23 // loop_header_branch
            %57 = sbr.rel (%p55) target = $region31
          $region28: #{custom-call.54} parent=23 // loop_body
            %v61 = vld [vmem:[%s59] sm:$0xff]
            %62 = vst [vmem:[%s60] sm:$0xff] %v61
            %v63 = vld [vmem:[%s59 + $0x8] sm:$0xff]
            %64 = vst [vmem:[%s60 + $0x8] sm:$0xff] %v63
            %v65 = vld [vmem:[%s59 + $0x10] sm:$0xff]
            %66 = vst [vmem:[%s60 + $0x10] sm:$0xff] %v65
            %v67 = vld [vmem:[%s59 + $0x18] sm:$0xff]
            %68 = vst [vmem:[%s60 + $0x18] sm:$0xff] %v67
            %v69 = vld [vmem:[%s59 + $0x20] sm:$0xff]
            %70 = vst [vmem:[%s60 + $0x20] sm:$0xff] %v69
            %v71 = vld [vmem:[%s59 + $0x28] sm:$0xff]
            %72 = vst [vmem:[%s60 + $0x28] sm:$0xff] %v71
            %v73 = vld [vmem:[%s59 + $0x30] sm:$0xff]
            %74 = vst [vmem:[%s60 + $0x30] sm:$0xff] %v73
            %v75 = vld [vmem:[%s59 + $0x38] sm:$0xff]
            %76 = vst [vmem:[%s60 + $0x38] sm:$0xff] %v75
            %v77 = vld [vmem:[%s59 + $0x40] sm:$0xff]
            %78 = vst [vmem:[%s60 + $0x40] sm:$0xff] %v77
            %v79 = vld [vmem:[%s59 + $0x48] sm:$0xff]
            %80 = vst [vmem:[%s60 + $0x48] sm:$0xff] %v79
            %v81 = vld [vmem:[%s59 + $0x50] sm:$0xff]
            %82 = vst [vmem:[%s60 + $0x50] sm:$0xff] %v81
            %v83 = vld [vmem:[%s59 + $0x58] sm:$0xff]
            %84 = vst [vmem:[%s60 + $0x58] sm:$0xff] %v83
            %v85 = vld [vmem:[%s59 + $0x60] sm:$0xff]
            %86 = vst [vmem:[%s60 + $0x60] sm:$0xff] %v85
            %v87 = vld [vmem:[%s59 + $0x68] sm:$0xff]
            %88 = vst [vmem:[%s60 + $0x68] sm:$0xff] %v87
            %v89 = vld [vmem:[%s59 + $0x70] sm:$0xff]
            %90 = vst [vmem:[%s60 + $0x70] sm:$0xff] %v89
            %v91 = vld [vmem:[%s59 + $0x78] sm:$0xff]
            %92 = vst [vmem:[%s60 + $0x78] sm:$0xff] %v91
          $region29: #{custom-call.54} parent=23 // loop_footer
            %s58 = sadd.s32 1, %s54
          $region30: #{custom-call.54} parent=23 // loop_footer_branch
            %53 = sbr.rel target = $region26
          $region31: #{custom-call.54} parent=23 // loop_exit
            _
        $region24: #{custom-call.54} parent=8 // pred_fallthru
          _
        // Predicated region
        $region32: #{custom-call.54} parent=8 // pred_check
          _
        $region33: #{custom-call.54} parent=8 // pred_check_branch
          %94 = sbr.rel target = $region35
        $region34: #{custom-call.54} parent=8 // pred_region
          _
        $region35: #{custom-call.54} parent=8 // pred_fallthru
          _
      $region9: #{custom-call.54} parent=4 // pred_fallthru
        _
      // Predicated region
      $region10: #{custom-call.54} parent=4 // pred_check
        _
      $region11: #{custom-call.54} parent=4 // pred_check_branch
        %9 = sbr.rel target = $region13
      $region12: #{custom-call.54} parent=4 // pred_region
        loop: start=0, step=1, limit=1
        $region14: #{custom-call.54} parent=12 // loop_pre_header
          _
        $region15: #{custom-call.54} parent=12 // loop_header
          %s12 = sphi 0, %s16
          %p13 = scmp.ge.s32.totalorder %s12, 1
          %s17 = sphi %s0, %s0
          %s18 = sphi [#allocation0], [#allocation0]
        $region16: #{custom-call.54} parent=12 // loop_header_branch
          %15 = sbr.rel (%p13) target = $region20
        $region17: #{custom-call.54} parent=12 // loop_body
          %v19 = vld [vmem:[%s17] sm:$0xff]
          %20 = vst [vmem:[%s18] sm:$0xff] %v19
          %v21 = vld [vmem:[%s17 + $0x8] sm:$0xff]
          %22 = vst [vmem:[%s18 + $0x8] sm:$0xff] %v21
          %v23 = vld [vmem:[%s17 + $0x10] sm:$0xff]
          %24 = vst [vmem:[%s18 + $0x10] sm:$0xff] %v23
          %v25 = vld [vmem:[%s17 + $0x18] sm:$0xff]
          %26 = vst [vmem:[%s18 + $0x18] sm:$0xff] %v25
          %v27 = vld [vmem:[%s17 + $0x20] sm:$0xff]
          %28 = vst [vmem:[%s18 + $0x20] sm:$0xff] %v27
          %v29 = vld [vmem:[%s17 + $0x28] sm:$0xff]
          %30 = vst [vmem:[%s18 + $0x28] sm:$0xff] %v29
          %v31 = vld [vmem:[%s17 + $0x30] sm:$0xff]
          %32 = vst [vmem:[%s18 + $0x30] sm:$0xff] %v31
          %v33 = vld [vmem:[%s17 + $0x38] sm:$0xff]
          %34 = vst [vmem:[%s18 + $0x38] sm:$0xff] %v33
          %v35 = vld [vmem:[%s17 + $0x40] sm:$0xff]
          %36 = vst [vmem:[%s18 + $0x40] sm:$0xff] %v35
          %v37 = vld [vmem:[%s17 + $0x48] sm:$0xff]
          %38 = vst [vmem:[%s18 + $0x48] sm:$0xff] %v37
          %v39 = vld [vmem:[%s17 + $0x50] sm:$0xff]
          %40 = vst [vmem:[%s18 + $0x50] sm:$0xff] %v39
          %v41 = vld [vmem:[%s17 + $0x58] sm:$0xff]
          %42 = vst [vmem:[%s18 + $0x58] sm:$0xff] %v41
          %v43 = vld [vmem:[%s17 + $0x60] sm:$0xff]
          %44 = vst [vmem:[%s18 + $0x60] sm:$0xff] %v43
          %v45 = vld [vmem:[%s17 + $0x68] sm:$0xff]
          %46 = vst [vmem:[%s18 + $0x68] sm:$0xff] %v45
          %v47 = vld [vmem:[%s17 + $0x70] sm:$0xff]
          %48 = vst [vmem:[%s18 + $0x70] sm:$0xff] %v47
          %v49 = vld [vmem:[%s17 + $0x78] sm:$0xff]
          %50 = vst [vmem:[%s18 + $0x78] sm:$0xff] %v49
        $region18: #{custom-call.54} parent=12 // loop_footer
          %s16 = sadd.s32 1, %s12
        $region19: #{custom-call.54} parent=12 // loop_footer_branch
          %11 = sbr.rel target = $region15
        $region20: #{custom-call.54} parent=12 // loop_exit
          _
      $region13: #{custom-call.54} parent=4 // pred_fallthru
        _
    $region5: #{custom-call.54} parent=1 // pred_fallthru
      _
    %95 = vnop
    %v96 = vld [vmem:[#allocation0] sm:$0xff]
    %97 = vst [vmem:[#allocation1] sm:$0xff] %v96
    %s98 = scalar_lea.vmem [#allocation1], 8
    %s99 = scalar_lea.vmem [#allocation0], 8
    %v100 = vld [vmem:[%s99] sm:$0xff]
    %101 = vst [vmem:[%s98] sm:$0xff] %v100
    %s102 = scalar_lea.vmem [#allocation1], 16
    %s103 = scalar_lea.vmem [#allocation0], 16
    %v104 = vld [vmem:[%s103] sm:$0xff]
    %105 = vst [vmem:[%s102] sm:$0xff] %v104
    %s106 = scalar_lea.vmem [#allocation1], 24
    %s107 = scalar_lea.vmem [#allocation0], 24
    %v108 = vld [vmem:[%s107] sm:$0xff]
    %109 = vst [vmem:[%s106] sm:$0xff] %v108
    %s110 = scalar_lea.vmem [#allocation1], 32
    %s111 = scalar_lea.vmem [#allocation0], 32
    %v112 = vld [vmem:[%s111] sm:$0xff]
    %113 = vst [vmem:[%s110] sm:$0xff] %v112
    %s114 = scalar_lea.vmem [#allocation1], 40
    %s115 = scalar_lea.vmem [#allocation0], 40
    %v116 = vld [vmem:[%s115] sm:$0xff]
    %117 = vst [vmem:[%s114] sm:$0xff] %v116
    %s118 = scalar_lea.vmem [#allocation1], 48
    %s119 = scalar_lea.vmem [#allocation0], 48
    %v120 = vld [vmem:[%s119] sm:$0xff]
    %121 = vst [vmem:[%s118] sm:$0xff] %v120
    %s122 = scalar_lea.vmem [#allocation1], 56
    %s123 = scalar_lea.vmem [#allocation0], 56
    %v124 = vld [vmem:[%s123] sm:$0xff]
    %125 = vst [vmem:[%s122] sm:$0xff] %v124
    %s126 = scalar_lea.vmem [#allocation1], 64
    %s127 = scalar_lea.vmem [#allocation0], 64
    %v128 = vld [vmem:[%s127] sm:$0xff]
    %129 = vst [vmem:[%s126] sm:$0xff] %v128
    %s130 = scalar_lea.vmem [#allocation1], 72
    %s131 = scalar_lea.vmem [#allocation0], 72
    %v132 = vld [vmem:[%s131] sm:$0xff]
    %133 = vst [vmem:[%s130] sm:$0xff] %v132
    %s134 = scalar_lea.vmem [#allocation1], 80
    %s135 = scalar_lea.vmem [#allocation0], 80
    %v136 = vld [vmem:[%s135] sm:$0xff]
    %137 = vst [vmem:[%s134] sm:$0xff] %v136
    %s138 = scalar_lea.vmem [#allocation1], 88
    %s139 = scalar_lea.vmem [#allocation0], 88
    %v140 = vld [vmem:[%s139] sm:$0xff]
    %141 = vst [vmem:[%s138] sm:$0xff] %v140
    %s142 = scalar_lea.vmem [#allocation1], 96
    %s143 = scalar_lea.vmem [#allocation0], 96
    %v144 = vld [vmem:[%s143] sm:$0xff]
    %145 = vst [vmem:[%s142] sm:$0xff] %v144
    %s146 = scalar_lea.vmem [#allocation1], 104
    %s147 = scalar_lea.vmem [#allocation0], 104
    %v148 = vld [vmem:[%s147] sm:$0xff]
    %149 = vst [vmem:[%s146] sm:$0xff] %v148
    %s150 = scalar_lea.vmem [#allocation1], 112
    %s151 = scalar_lea.vmem [#allocation0], 112
    %v152 = vld [vmem:[%s151] sm:$0xff]
    %153 = vst [vmem:[%s150] sm:$0xff] %v152
    %s154 = scalar_lea.vmem [#allocation1], 120
    %s155 = scalar_lea.vmem [#allocation0], 120
    %v156 = vld [vmem:[%s155] sm:$0xff]
    %157 = vst [vmem:[%s154] sm:$0xff] %v156
    %158 = vst [vmem:[#allocation2] sm:$0x1] 0.0
    loop: start=0, step=1, limit=5
    $region36: #{custom-call.54} parent=1 // loop_pre_header
      _
    $region37: #{custom-call.54} parent=1 // loop_header
      %s160 = sphi 0, %s164
      %p161 = scmp.ge.s32.totalorder %s160, 5
    $region38: #{custom-call.54} parent=1 // loop_header_branch
      %163 = sbr.rel (%p161) target = $region42
    $region39: #{custom-call.54} parent=1 // loop_body
      %v165 = vld [vmem:[#allocation1] sm:$0xff]
      %v166 = vlaneseq
      %v167 = vshrl.u32 %v166, 7
      %v169 = vstv %s160
      %vm170 = vcmp.gt.s32.totalorder %v167, %v169
      %v171 = vsel %vm170, %v165, 0.0
      %v172 = vmul.f32 %v171, %v171
      %s173 = scalar_lea.vmem [#allocation1], 8
      %v174 = vld [vmem:[%s173] sm:$0xff]
      %v175 = vlaneseq
      %v176 = vshrl.u32 %v175, 7
      %v177 = vadd.s32 %v176, 8
      %v178 = vstv %s160
      %vm179 = vcmp.gt.s32.totalorder %v177, %v178
      %v180 = vsel %vm179, %v174, 0.0
      %v181 = vmul.f32 %v180, %v180
      %v182 = vadd.f32 %v172, %v181
      %s183 = scalar_lea.vmem [#allocation1], 16
      %v184 = vld [vmem:[%s183] sm:$0xff]
      %v185 = vlaneseq
      %v186 = vshrl.u32 %v185, 7
      %v187 = vadd.s32 %v186, 16
      %v188 = vstv %s160
      %vm189 = vcmp.gt.s32.totalorder %v187, %v188
      %v190 = vsel %vm189, %v184, 0.0
      %v191 = vmul.f32 %v190, %v190
      %v192 = vadd.f32 %v182, %v191
      %s193 = scalar_lea.vmem [#allocation1], 24
      %v194 = vld [vmem:[%s193] sm:$0xff]
      %v195 = vlaneseq
      %v196 = vshrl.u32 %v195, 7
      %v197 = vadd.s32 %v196, 24
      %v198 = vstv %s160
      %vm199 = vcmp.gt.s32.totalorder %v197, %v198
      %v200 = vsel %vm199, %v194, 0.0
      %v201 = vmul.f32 %v200, %v200
      %v202 = vadd.f32 %v192, %v201
      %s203 = scalar_lea.vmem [#allocation1], 32
      %v204 = vld [vmem:[%s203] sm:$0xff]
      %v205 = vlaneseq
      %v206 = vshrl.u32 %v205, 7
      %v207 = vadd.s32 %v206, 32
      %v208 = vstv %s160
      %vm209 = vcmp.gt.s32.totalorder %v207, %v208
      %v210 = vsel %vm209, %v204, 0.0
      %v211 = vmul.f32 %v210, %v210
      %v212 = vadd.f32 %v202, %v211
      %s213 = scalar_lea.vmem [#allocation1], 40
      %v214 = vld [vmem:[%s213] sm:$0xff]
      %v215 = vlaneseq
      %v216 = vshrl.u32 %v215, 7
      %v217 = vadd.s32 %v216, 40
      %v218 = vstv %s160
      %vm219 = vcmp.gt.s32.totalorder %v217, %v218
      %v220 = vsel %vm219, %v214, 0.0
      %v221 = vmul.f32 %v220, %v220
      %v222 = vadd.f32 %v212, %v221
      %s223 = scalar_lea.vmem [#allocation1], 48
      %v224 = vld [vmem:[%s223] sm:$0xff]
      %v225 = vlaneseq
      %v226 = vshrl.u32 %v225, 7
      %v227 = vadd.s32 %v226, 48
      %v228 = vstv %s160
      %vm229 = vcmp.gt.s32.totalorder %v227, %v228
      %v230 = vsel %vm229, %v224, 0.0
      %v231 = vmul.f32 %v230, %v230
      %v232 = vadd.f32 %v222, %v231
      %s233 = scalar_lea.vmem [#allocation1], 56
      %v234 = vld [vmem:[%s233] sm:$0xff]
      %v235 = vlaneseq
      %v236 = vshrl.u32 %v235, 7
      %v237 = vadd.s32 %v236, 56
      %v238 = vstv %s160
      %vm239 = vcmp.gt.s32.totalorder %v237, %v238
      %v240 = vsel %vm239, %v234, 0.0
      %v241 = vmul.f32 %v240, %v240
      %v242 = vadd.f32 %v232, %v241
      %s243 = scalar_lea.vmem [#allocation1], 64
      %v244 = vld [vmem:[%s243] sm:$0xff]
      %v245 = vlaneseq
      %v246 = vshrl.u32 %v245, 7
      %v247 = vadd.s32 %v246, 64
      %v248 = vstv %s160
      %vm249 = vcmp.gt.s32.totalorder %v247, %v248
      %v250 = vsel %vm249, %v244, 0.0
      %v251 = vmul.f32 %v250, %v250
      %v252 = vadd.f32 %v242, %v251
      %s253 = scalar_lea.vmem [#allocation1], 72
      %v254 = vld [vmem:[%s253] sm:$0xff]
      %v255 = vlaneseq
      %v256 = vshrl.u32 %v255, 7
      %v257 = vadd.s32 %v256, 72
      %v258 = vstv %s160
      %vm259 = vcmp.gt.s32.totalorder %v257, %v258
      %v260 = vsel %vm259, %v254, 0.0
      %v261 = vmul.f32 %v260, %v260
      %v262 = vadd.f32 %v252, %v261
      %s263 = scalar_lea.vmem [#allocation1], 80
      %v264 = vld [vmem:[%s263] sm:$0xff]
      %v265 = vlaneseq
      %v266 = vshrl.u32 %v265, 7
      %v267 = vadd.s32 %v266, 80
      %v268 = vstv %s160
      %vm269 = vcmp.gt.s32.totalorder %v267, %v268
      %v270 = vsel %vm269, %v264, 0.0
      %v271 = vmul.f32 %v270, %v270
      %v272 = vadd.f32 %v262, %v271
      %s273 = scalar_lea.vmem [#allocation1], 88
      %v274 = vld [vmem:[%s273] sm:$0xff]
      %v275 = vlaneseq
      %v276 = vshrl.u32 %v275, 7
      %v277 = vadd.s32 %v276, 88
      %v278 = vstv %s160
      %vm279 = vcmp.gt.s32.totalorder %v277, %v278
      %v280 = vsel %vm279, %v274, 0.0
      %v281 = vmul.f32 %v280, %v280
      %v282 = vadd.f32 %v272, %v281
      %s283 = scalar_lea.vmem [#allocation1], 96
      %v284 = vld [vmem:[%s283] sm:$0xff]
      %v285 = vlaneseq
      %v286 = vshrl.u32 %v285, 7
      %v287 = vadd.s32 %v286, 96
      %v288 = vstv %s160
      %vm289 = vcmp.gt.s32.totalorder %v287, %v288
      %v290 = vsel %vm289, %v284, 0.0
      %v291 = vmul.f32 %v290, %v290
      %v292 = vadd.f32 %v282, %v291
      %s293 = scalar_lea.vmem [#allocation1], 104
      %v294 = vld [vmem:[%s293] sm:$0xff]
      %v295 = vlaneseq
      %v296 = vshrl.u32 %v295, 7
      %v297 = vadd.s32 %v296, 104
      %v298 = vstv %s160
      %vm299 = vcmp.gt.s32.totalorder %v297, %v298
      %v300 = vsel %vm299, %v294, 0.0
      %v301 = vmul.f32 %v300, %v300
      %v302 = vadd.f32 %v292, %v301
      %s303 = scalar_lea.vmem [#allocation1], 112
      %v304 = vld [vmem:[%s303] sm:$0xff]
      %v305 = vlaneseq
      %v306 = vshrl.u32 %v305, 7
      %v307 = vadd.s32 %v306, 112
      %v308 = vstv %s160
      %vm309 = vcmp.gt.s32.totalorder %v307, %v308
      %v310 = vsel %vm309, %v304, 0.0
      %v311 = vmul.f32 %v310, %v310
      %v312 = vadd.f32 %v302, %v311
      %s313 = scalar_lea.vmem [#allocation1], 120
      %v314 = vld [vmem:[%s313] sm:$0xff]
      %v315 = vlaneseq
      %v316 = vshrl.u32 %v315, 7
      %v317 = vadd.s32 %v316, 120
      %v318 = vstv %s160
      %vm319 = vcmp.gt.s32.totalorder %v317, %v318
      %vm320 = vcmp.lt.s32.totalorder %v317, 128
      %vm321 = vmand %vm319, %vm320
      %v322 = vsel %vm321, %v314, 0.0
      %v323 = vmul.f32 %v322, %v322
      %v324 = vadd.f32 %v312, %v323
      %v325 = vrot.slane %v324, 4
      %v326 = vadd.f32 %v324, %v325
      %v327 = vrot.slane %v326, 2
      %v328 = vadd.f32 %v326, %v327
      %v329 = vrot.slane %v328, 1
      %v330 = vadd.f32 %v328, %v329
      %v331 = vrsqrt.pop %v330
      %v332 = vmul.f32 %v330, %v331
      %vm333 = vcmp.eq.f32.partialorder %v330, inf
      %v334 = vsel %vm333, %v330, %v332
      %vm335 = vcmp.eq.f32.partialorder %v330, 0.0
      %v336 = vand.u32 %v330, 2147483648
      %v337 = vsel %vm335, %v336, %v334
      %vm338 = vcmp.eq.f32.partialorder %v330, 0.0
      %s339 = sshrl.u32 %s160, 3
      %s340 = sand.u32 %s160, 7
      %s341 = smul.addr %s339, 8
      %s342 = sadd.s32 %s340, %s341
      %s343 = scalar_lea.vmem [#allocation1], %s342
      %v344 = vld [vmem:[%s343] ss:$0 sm:$0xff]
      %v345 = vand.u32 2147483647, %v344
      %v346 = vmax.f32 %v345, 0.0
      %v347 = vand.u32 2147483647, %v337
      %v348 = vmax.f32 %v346, %v347
      %v349 = vrcp.pop %v348
      %v350 = vmul.f32 %v345, %v349
      %v351 = vmul.f32 %v350, %v350
      %v352 = vrcp.pop %v348
      %v353 = vmul.f32 0.0, %v352
      %v354 = vmul.f32 %v353, %v353
      %v355 = vadd.f32 %v351, %v354
      %v356 = vrcp.pop %v348
      %v357 = vmul.f32 %v347, %v356
      %v358 = vmul.f32 %v357, %v357
      %v359 = vadd.f32 %v355, %v358
      %vm360 = vcmp.eq.f32.partialorder %v348, 0.0
      %v361 = vrsqrt.pop %v359
      %v362 = vmul.f32 %v359, %v361
      %vm363 = vcmp.eq.f32.partialorder %v359, inf
      %v364 = vsel %vm363, %v359, %v362
      %vm365 = vcmp.eq.f32.partialorder %v359, 0.0
      %v366 = vand.u32 %v359, 2147483648
      %v367 = vsel %vm365, %v366, %v364
      %v368 = vmul.f32 %v348, %v367
      %v369 = vsel %vm360, 0.0, %v368
      %vm370 = vcmp.lt.f32.partialorder %v344, 0.0
      %v371 = vxor.u32 %v369, 2147483648
      %v372 = vsel %vm370, %v369, %v371
      %v373 = vsub.f32 %v372, %v344
      %v374 = vrcp.pop %v372
      %v375 = vmul.f32 %v373, %v374
      %v376 = vsel %vm338, %v344, %v372
      %v377 = vsel %vm338, 0.0, %v375
      %v378 = vsub.f32 %v344, %v376
      %s379 = smov [#allocation1]
      %v380 = vlaneseq
      %v381 = vshrl.u32 %v380, 7
      %v382 = vmov %v381
      %v383 = vld [vmem:[%s379] sm:$0xff]
      %v385 = vstv %s160
      %vm386 = vcmp.gt.s32.totalorder %v382, %v385
      %v387 = vsel %vm386, %v383, 0.0
      %v388 = vrcp.pop %v378
      %v389 = vmul.f32 %v387, %v388
      %v390 = vsel %vm338, 0.0, %v389
      %v391 = vstv %s160
      %v392 = vlaneseq
      %v393 = vand.u32 %v392, 127
      %vm394 = vcmp.eq.s32.totalorder %v393, %v391
      %v395 = vsel %vm394, %v390, 0.0
      %396 = vadd.xlane.f32.xlu0 %v395
      %v397 = vpop.xlane.xlu0 %396
      %398 = vst [vmem:[#allocation4] sm:$0xff] %v397
      %s399 = scalar_lea.vmem %s379, 8
      %v400 = vld [vmem:[%s399] sm:$0xff]
      %v401 = vadd.s32 %v382, 8
      %v402 = vstv %s160
      %vm403 = vcmp.gt.s32.totalorder %v401, %v402
      %v404 = vsel %vm403, %v400, 0.0
      %v405 = vrcp.pop %v378
      %v406 = vmul.f32 %v404, %v405
      %v407 = vsel %vm338, 0.0, %v406
      %v408 = vstv %s160
      %v409 = vlaneseq
      %v410 = vand.u32 %v409, 127
      %vm411 = vcmp.eq.s32.totalorder %v410, %v408
      %v412 = vsel %vm411, %v407, 0.0
      %413 = vadd.xlane.f32.xlu0 %v412
      %v414 = vpop.xlane.xlu0 %413
      %s415 = scalar_lea.vmem [#allocation4], 8
      %416 = vst [vmem:[%s415] sm:$0xff] %v414
      %s417 = scalar_lea.vmem %s379, 16
      %v418 = vld [vmem:[%s417] sm:$0xff]
      %v419 = vadd.s32 %v382, 16
      %v420 = vstv %s160
      %vm421 = vcmp.gt.s32.totalorder %v419, %v420
      %v422 = vsel %vm421, %v418, 0.0
      %v423 = vrcp.pop %v378
      %v424 = vmul.f32 %v422, %v423
      %v425 = vsel %vm338, 0.0, %v424
      %v426 = vstv %s160
      %v427 = vlaneseq
      %v428 = vand.u32 %v427, 127
      %vm429 = vcmp.eq.s32.totalorder %v428, %v426
      %v430 = vsel %vm429, %v425, 0.0
      %431 = vadd.xlane.f32.xlu0 %v430
      %v432 = vpop.xlane.xlu0 %431
      %s433 = scalar_lea.vmem [#allocation4], 16
      %434 = vst [vmem:[%s433] sm:$0xff] %v432
      %s435 = scalar_lea.vmem %s379, 24
      %v436 = vld [vmem:[%s435] sm:$0xff]
      %v437 = vadd.s32 %v382, 24
      %v438 = vstv %s160
      %vm439 = vcmp.gt.s32.totalorder %v437, %v438
      %v440 = vsel %vm439, %v436, 0.0
      %v441 = vrcp.pop %v378
      %v442 = vmul.f32 %v440, %v441
      %v443 = vsel %vm338, 0.0, %v442
      %v444 = vstv %s160
      %v445 = vlaneseq
      %v446 = vand.u32 %v445, 127
      %vm447 = vcmp.eq.s32.totalorder %v446, %v444
      %v448 = vsel %vm447, %v443, 0.0
      %449 = vadd.xlane.f32.xlu0 %v448
      %v450 = vpop.xlane.xlu0 %449
      %s451 = scalar_lea.vmem [#allocation4], 24
      %452 = vst [vmem:[%s451] sm:$0xff] %v450
      %s453 = scalar_lea.vmem %s379, 32
      %v454 = vld [vmem:[%s453] sm:$0xff]
      %v455 = vadd.s32 %v382, 32
      %v456 = vstv %s160
      %vm457 = vcmp.gt.s32.totalorder %v455, %v456
      %v458 = vsel %vm457, %v454, 0.0
      %v459 = vrcp.pop %v378
      %v460 = vmul.f32 %v458, %v459
      %v461 = vsel %vm338, 0.0, %v460
      %v462 = vstv %s160
      %v463 = vlaneseq
      %v464 = vand.u32 %v463, 127
      %vm465 = vcmp.eq.s32.totalorder %v464, %v462
      %v466 = vsel %vm465, %v461, 0.0
      %467 = vadd.xlane.f32.xlu0 %v466
      %v468 = vpop.xlane.xlu0 %467
      %s469 = scalar_lea.vmem [#allocation4], 32
      %470 = vst [vmem:[%s469] sm:$0xff] %v468
      %s471 = scalar_lea.vmem %s379, 40
      %v472 = vld [vmem:[%s471] sm:$0xff]
      %v473 = vadd.s32 %v382, 40
      %v474 = vstv %s160
      %vm475 = vcmp.gt.s32.totalorder %v473, %v474
      %v476 = vsel %vm475, %v472, 0.0
      %v477 = vrcp.pop %v378
      %v478 = vmul.f32 %v476, %v477
      %v479 = vsel %vm338, 0.0, %v478
      %v480 = vstv %s160
      %v481 = vlaneseq
      %v482 = vand.u32 %v481, 127
      %vm483 = vcmp.eq.s32.totalorder %v482, %v480
      %v484 = vsel %vm483, %v479, 0.0
      %485 = vadd.xlane.f32.xlu0 %v484
      %v486 = vpop.xlane.xlu0 %485
      %s487 = scalar_lea.vmem [#allocation4], 40
      %488 = vst [vmem:[%s487] sm:$0xff] %v486
      %s489 = scalar_lea.vmem %s379, 48
      %v490 = vld [vmem:[%s489] sm:$0xff]
      %v491 = vadd.s32 %v382, 48
      %v492 = vstv %s160
      %vm493 = vcmp.gt.s32.totalorder %v491, %v492
      %v494 = vsel %vm493, %v490, 0.0
      %v495 = vrcp.pop %v378
      %v496 = vmul.f32 %v494, %v495
      %v497 = vsel %vm338, 0.0, %v496
      %v498 = vstv %s160
      %v499 = vlaneseq
      %v500 = vand.u32 %v499, 127
      %vm501 = vcmp.eq.s32.totalorder %v500, %v498
      %v502 = vsel %vm501, %v497, 0.0
      %503 = vadd.xlane.f32.xlu0 %v502
      %v504 = vpop.xlane.xlu0 %503
      %s505 = scalar_lea.vmem [#allocation4], 48
      %506 = vst [vmem:[%s505] sm:$0xff] %v504
      %s507 = scalar_lea.vmem %s379, 56
      %v508 = vld [vmem:[%s507] sm:$0xff]
      %v509 = vadd.s32 %v382, 56
      %v510 = vstv %s160
      %vm511 = vcmp.gt.s32.totalorder %v509, %v510
      %v512 = vsel %vm511, %v508, 0.0
      %v513 = vrcp.pop %v378
      %v514 = vmul.f32 %v512, %v513
      %v515 = vsel %vm338, 0.0, %v514
      %v516 = vstv %s160
      %v517 = vlaneseq
      %v518 = vand.u32 %v517, 127
      %vm519 = vcmp.eq.s32.totalorder %v518, %v516
      %v520 = vsel %vm519, %v515, 0.0
      %521 = vadd.xlane.f32.xlu0 %v520
      %v522 = vpop.xlane.xlu0 %521
      %s523 = scalar_lea.vmem [#allocation4], 56
      %524 = vst [vmem:[%s523] sm:$0xff] %v522
      %s525 = scalar_lea.vmem %s379, 64
      %v526 = vld [vmem:[%s525] sm:$0xff]
      %v527 = vadd.s32 %v382, 64
      %v528 = vstv %s160
      %vm529 = vcmp.gt.s32.totalorder %v527, %v528
      %v530 = vsel %vm529, %v526, 0.0
      %v531 = vrcp.pop %v378
      %v532 = vmul.f32 %v530, %v531
      %v533 = vsel %vm338, 0.0, %v532
      %v534 = vstv %s160
      %v535 = vlaneseq
      %v536 = vand.u32 %v535, 127
      %vm537 = vcmp.eq.s32.totalorder %v536, %v534
      %v538 = vsel %vm537, %v533, 0.0
      %539 = vadd.xlane.f32.xlu0 %v538
      %v540 = vpop.xlane.xlu0 %539
      %s541 = scalar_lea.vmem [#allocation4], 64
      %542 = vst [vmem:[%s541] sm:$0xff] %v540
      %s543 = scalar_lea.vmem %s379, 72
      %v544 = vld [vmem:[%s543] sm:$0xff]
      %v545 = vadd.s32 %v382, 72
      %v546 = vstv %s160
      %vm547 = vcmp.gt.s32.totalorder %v545, %v546
      %v548 = vsel %vm547, %v544, 0.0
      %v549 = vrcp.pop %v378
      %v550 = vmul.f32 %v548, %v549
      %v551 = vsel %vm338, 0.0, %v550
      %v552 = vstv %s160
      %v553 = vlaneseq
      %v554 = vand.u32 %v553, 127
      %vm555 = vcmp.eq.s32.totalorder %v554, %v552
      %v556 = vsel %vm555, %v551, 0.0
      %557 = vadd.xlane.f32.xlu0 %v556
      %v558 = vpop.xlane.xlu0 %557
      %s559 = scalar_lea.vmem [#allocation4], 72
      %560 = vst [vmem:[%s559] sm:$0xff] %v558
      %s561 = scalar_lea.vmem %s379, 80
      %v562 = vld [vmem:[%s561] sm:$0xff]
      %v563 = vadd.s32 %v382, 80
      %v564 = vstv %s160
      %vm565 = vcmp.gt.s32.totalorder %v563, %v564
      %v566 = vsel %vm565, %v562, 0.0
      %v567 = vrcp.pop %v378
      %v568 = vmul.f32 %v566, %v567
      %v569 = vsel %vm338, 0.0, %v568
      %v570 = vstv %s160
      %v571 = vlaneseq
      %v572 = vand.u32 %v571, 127
      %vm573 = vcmp.eq.s32.totalorder %v572, %v570
      %v574 = vsel %vm573, %v569, 0.0
      %575 = vadd.xlane.f32.xlu0 %v574
      %v576 = vpop.xlane.xlu0 %575
      %s577 = scalar_lea.vmem [#allocation4], 80
      %578 = vst [vmem:[%s577] sm:$0xff] %v576
      %s579 = scalar_lea.vmem %s379, 88
      %v580 = vld [vmem:[%s579] sm:$0xff]
      %v581 = vadd.s32 %v382, 88
      %v582 = vstv %s160
      %vm583 = vcmp.gt.s32.totalorder %v581, %v582
      %v584 = vsel %vm583, %v580, 0.0
      %v585 = vrcp.pop %v378
      %v586 = vmul.f32 %v584, %v585
      %v587 = vsel %vm338, 0.0, %v586
      %v588 = vstv %s160
      %v589 = vlaneseq
      %v590 = vand.u32 %v589, 127
      %vm591 = vcmp.eq.s32.totalorder %v590, %v588
      %v592 = vsel %vm591, %v587, 0.0
      %593 = vadd.xlane.f32.xlu0 %v592
      %v594 = vpop.xlane.xlu0 %593
      %s595 = scalar_lea.vmem [#allocation4], 88
      %596 = vst [vmem:[%s595] sm:$0xff] %v594
      %s597 = scalar_lea.vmem %s379, 96
      %v598 = vld [vmem:[%s597] sm:$0xff]
      %v599 = vadd.s32 %v382, 96
      %v600 = vstv %s160
      %vm601 = vcmp.gt.s32.totalorder %v599, %v600
      %v602 = vsel %vm601, %v598, 0.0
      %v603 = vrcp.pop %v378
      %v604 = vmul.f32 %v602, %v603
      %v605 = vsel %vm338, 0.0, %v604
      %v606 = vstv %s160
      %v607 = vlaneseq
      %v608 = vand.u32 %v607, 127
      %vm609 = vcmp.eq.s32.totalorder %v608, %v606
      %v610 = vsel %vm609, %v605, 0.0
      %611 = vadd.xlane.f32.xlu0 %v610
      %v612 = vpop.xlane.xlu0 %611
      %s613 = scalar_lea.vmem [#allocation4], 96
      %614 = vst [vmem:[%s613] sm:$0xff] %v612
      %s615 = scalar_lea.vmem %s379, 104
      %v616 = vld [vmem:[%s615] sm:$0xff]
      %v617 = vadd.s32 %v382, 104
      %v618 = vstv %s160
      %vm619 = vcmp.gt.s32.totalorder %v617, %v618
      %v620 = vsel %vm619, %v616, 0.0
      %v621 = vrcp.pop %v378
      %v622 = vmul.f32 %v620, %v621
      %v623 = vsel %vm338, 0.0, %v622
      %v624 = vstv %s160
      %v625 = vlaneseq
      %v626 = vand.u32 %v625, 127
      %vm627 = vcmp.eq.s32.totalorder %v626, %v624
      %v628 = vsel %vm627, %v623, 0.0
      %629 = vadd.xlane.f32.xlu0 %v628
      %v630 = vpop.xlane.xlu0 %629
      %s631 = scalar_lea.vmem [#allocation4], 104
      %632 = vst [vmem:[%s631] sm:$0xff] %v630
      %s633 = scalar_lea.vmem %s379, 112
      %v634 = vld [vmem:[%s633] sm:$0xff]
      %v635 = vadd.s32 %v382, 112
      %v636 = vstv %s160
      %vm637 = vcmp.gt.s32.totalorder %v635, %v636
      %v638 = vsel %vm637, %v634, 0.0
      %v639 = vrcp.pop %v378
      %v640 = vmul.f32 %v638, %v639
      %v641 = vsel %vm338, 0.0, %v640
      %v642 = vstv %s160
      %v643 = vlaneseq
      %v644 = vand.u32 %v643, 127
      %vm645 = vcmp.eq.s32.totalorder %v644, %v642
      %v646 = vsel %vm645, %v641, 0.0
      %647 = vadd.xlane.f32.xlu0 %v646
      %v648 = vpop.xlane.xlu0 %647
      %s649 = scalar_lea.vmem [#allocation4], 112
      %650 = vst [vmem:[%s649] sm:$0xff] %v648
      %s651 = scalar_lea.vmem %s379, 120
      %v652 = vld [vmem:[%s651] sm:$0xff]
      %v653 = vadd.s32 %v382, 120
      %v654 = vstv %s160
      %vm655 = vcmp.gt.s32.totalorder %v653, %v654
      %vm656 = vcmp.lt.s32.totalorder %v653, 128
      %vm657 = vmand %vm655, %vm656
      %v658 = vsel %vm657, %v652, 0.0
      %v659 = vrcp.pop %v378
      %v660 = vmul.f32 %v658, %v659
      %v661 = vsel %vm338, 0.0, %v660
      %v662 = vstv %s160
      %v663 = vlaneseq
      %v664 = vand.u32 %v663, 127
      %vm665 = vcmp.eq.s32.totalorder %v664, %v662
      %v666 = vsel %vm665, %v661, 0.0
      %667 = vadd.xlane.f32.xlu0 %v666
      %v668 = vpop.xlane.xlu0 %667
      %s669 = scalar_lea.vmem [#allocation4], 120
      %670 = vst [vmem:[%s669] sm:$0xff] %v668
      %s671 = scalar_lea.vmem [#allocation4], %s160
      %672 = vst [vmem:[%s671] sm:$0x1] 1.0
      %v673 = vstv %s160
      %v674 = vlaneseq
      %v675 = vand.u32 %v674, 127
      %vm676 = vcmp.eq.s32.totalorder %v675, %v673
      %v677 = vsel %vm676, %v377, 0.0
      %678 = vadd.xlane.f32.xlu0 %v677
      %v679 = vpop.xlane.xlu0 %678
      %v680 = vstv %s160
      %v681 = vlaneseq
      %v682 = vand.u32 %v681, 127
      %vm683 = vcmp.eq.s32.totalorder %v682, %v680
      %v684 = vld [vmem:[#allocation2] ss:$0 sm:$0xff]
      %v685 = vsel %vm683, %v679, %v684
      %686 = vst [vmem:[#allocation2] sm:$0x1] %v685
      %s687 = smov [#allocation1]
      %s688 = smov [#allocation4]
      %v689 = vlaneseq
      %v690 = vshrl.u32 %v689, 7
      %v691 = vmov %v690
      %v693 = vld [vmem:[%s688] sm:$0xff]
      %v694 = vld [vmem:[%s687] sm:$0xff]
      %v695 = vmul.f32 %v693, %v694
      %v696 = vadd.s32 %v691, 8
      %s697 = scalar_lea.vmem %s688, 8
      %v698 = vld [vmem:[%s697] sm:$0xff]
      %s699 = scalar_lea.vmem %s687, 8
      %v700 = vld [vmem:[%s699] sm:$0xff]
      %v701 = vmul.f32 %v698, %v700
      %v702 = vadd.f32 %v695, %v701
      %v703 = vadd.s32 %v691, 16
      %s704 = scalar_lea.vmem %s688, 16
      %v705 = vld [vmem:[%s704] sm:$0xff]
      %s706 = scalar_lea.vmem %s687, 16
      %v707 = vld [vmem:[%s706] sm:$0xff]
      %v708 = vmul.f32 %v705, %v707
      %v709 = vadd.f32 %v702, %v708
      %v710 = vadd.s32 %v691, 24
      %s711 = scalar_lea.vmem %s688, 24
      %v712 = vld [vmem:[%s711] sm:$0xff]
      %s713 = scalar_lea.vmem %s687, 24
      %v714 = vld [vmem:[%s713] sm:$0xff]
      %v715 = vmul.f32 %v712, %v714
      %v716 = vadd.f32 %v709, %v715
      %v717 = vadd.s32 %v691, 32
      %s718 = scalar_lea.vmem %s688, 32
      %v719 = vld [vmem:[%s718] sm:$0xff]
      %s720 = scalar_lea.vmem %s687, 32
      %v721 = vld [vmem:[%s720] sm:$0xff]
      %v722 = vmul.f32 %v719, %v721
      %v723 = vadd.f32 %v716, %v722
      %v724 = vadd.s32 %v691, 40
      %s725 = scalar_lea.vmem %s688, 40
      %v726 = vld [vmem:[%s725] sm:$0xff]
      %s727 = scalar_lea.vmem %s687, 40
      %v728 = vld [vmem:[%s727] sm:$0xff]
      %v729 = vmul.f32 %v726, %v728
      %v730 = vadd.f32 %v723, %v729
      %v731 = vadd.s32 %v691, 48
      %s732 = scalar_lea.vmem %s688, 48
      %v733 = vld [vmem:[%s732] sm:$0xff]
      %s734 = scalar_lea.vmem %s687, 48
      %v735 = vld [vmem:[%s734] sm:$0xff]
      %v736 = vmul.f32 %v733, %v735
      %v737 = vadd.f32 %v730, %v736
      %v738 = vadd.s32 %v691, 56
      %s739 = scalar_lea.vmem %s688, 56
      %v740 = vld [vmem:[%s739] sm:$0xff]
      %s741 = scalar_lea.vmem %s687, 56
      %v742 = vld [vmem:[%s741] sm:$0xff]
      %v743 = vmul.f32 %v740, %v742
      %v744 = vadd.f32 %v737, %v743
      %v745 = vadd.s32 %v691, 64
      %s746 = scalar_lea.vmem %s688, 64
      %v747 = vld [vmem:[%s746] sm:$0xff]
      %s748 = scalar_lea.vmem %s687, 64
      %v749 = vld [vmem:[%s748] sm:$0xff]
      %v750 = vmul.f32 %v747, %v749
      %v751 = vadd.f32 %v744, %v750
      %v752 = vadd.s32 %v691, 72
      %s753 = scalar_lea.vmem %s688, 72
      %v754 = vld [vmem:[%s753] sm:$0xff]
      %s755 = scalar_lea.vmem %s687, 72
      %v756 = vld [vmem:[%s755] sm:$0xff]
      %v757 = vmul.f32 %v754, %v756
      %v758 = vadd.f32 %v751, %v757
      %v759 = vadd.s32 %v691, 80
      %s760 = scalar_lea.vmem %s688, 80
      %v761 = vld [vmem:[%s760] sm:$0xff]
      %s762 = scalar_lea.vmem %s687, 80
      %v763 = vld [vmem:[%s762] sm:$0xff]
      %v764 = vmul.f32 %v761, %v763
      %v765 = vadd.f32 %v758, %v764
      %v766 = vadd.s32 %v691, 88
      %s767 = scalar_lea.vmem %s688, 88
      %v768 = vld [vmem:[%s767] sm:$0xff]
      %s769 = scalar_lea.vmem %s687, 88
      %v770 = vld [vmem:[%s769] sm:$0xff]
      %v771 = vmul.f32 %v768, %v770
      %v772 = vadd.f32 %v765, %v771
      %v773 = vadd.s32 %v691, 96
      %s774 = scalar_lea.vmem %s688, 96
      %v775 = vld [vmem:[%s774] sm:$0xff]
      %s776 = scalar_lea.vmem %s687, 96
      %v777 = vld [vmem:[%s776] sm:$0xff]
      %v778 = vmul.f32 %v775, %v777
      %v779 = vadd.f32 %v772, %v778
      %v780 = vadd.s32 %v691, 104
      %s781 = scalar_lea.vmem %s688, 104
      %v782 = vld [vmem:[%s781] sm:$0xff]
      %s783 = scalar_lea.vmem %s687, 104
      %v784 = vld [vmem:[%s783] sm:$0xff]
      %v785 = vmul.f32 %v782, %v784
      %v786 = vadd.f32 %v779, %v785
      %v787 = vadd.s32 %v691, 112
      %s788 = scalar_lea.vmem %s688, 112
      %v789 = vld [vmem:[%s788] sm:$0xff]
      %s790 = scalar_lea.vmem %s687, 112
      %v791 = vld [vmem:[%s790] sm:$0xff]
      %v792 = vmul.f32 %v789, %v791
      %v793 = vadd.f32 %v786, %v792
      %v794 = vadd.s32 %v691, 120
      %s795 = scalar_lea.vmem %s688, 120
      %v796 = vld [vmem:[%s795] sm:$0xff]
      %s797 = scalar_lea.vmem %s687, 120
      %v798 = vld [vmem:[%s797] sm:$0xff]
      %v799 = vmul.f32 %v796, %v798
      %vm800 = vcmp.lt.s32.totalorder %v794, 128
      %v801 = vsel %vm800, %v799, 0.0
      %v802 = vadd.f32 %v793, %v801
      %v803 = vrot.slane %v802, 4
      %v804 = vadd.f32 %v802, %v803
      %v805 = vrot.slane %v804, 2
      %v806 = vadd.f32 %v804, %v805
      %v807 = vrot.slane %v806, 1
      %v808 = vadd.f32 %v806, %v807
      %s809 = smov %s687
      %s810 = smov %s688
      %v811 = vlaneseq
      %v812 = vshrl.u32 %v811, 7
      %v813 = vmov %v812
      %v814 = vmul.f32 %v808, %v679
      %v816 = vlaneseq
      %v817 = vand.u32 %v816, 127
      %v818 = vld [vmem:[%s810] sm:$0xff]
      %v819 = vmul.f32 %v818, %v814
      %v820 = vld [vmem:[%s809] sm:$0xff]
      %v821 = vstv %s160
      %vm822 = vcmp.gt.s32.totalorder %v817, %v821
      %v823 = vsub.f32 %v820, %v819
      %v824 = vsel %vm822, %v823, %v820
      %v825 = vstv %s160
      %v826 = vlaneseq
      %v827 = vand.u32 %v826, 127
      %vm828 = vcmp.eq.s32.totalorder %v827, %v825
      %v829 = vstv %s160
      %vm830 = vcmp.ge.s32.totalorder %v813, %v829
      %vm831 = vmand %vm828, %vm830
      %v832 = vsel %vm831, %v818, %v824
      %833 = vst [vmem:[%s809] sm:$0xff] %v832
      %v834 = vadd.s32 %v813, 8
      %v835 = vlaneseq
      %v836 = vand.u32 %v835, 127
      %s837 = scalar_lea.vmem %s810, 8
      %v838 = vld [vmem:[%s837] sm:$0xff]
      %v839 = vmul.f32 %v838, %v814
      %s840 = scalar_lea.vmem %s809, 8
      %v841 = vld [vmem:[%s840] sm:$0xff]
      %v842 = vstv %s160
      %vm843 = vcmp.gt.s32.totalorder %v836, %v842
      %v844 = vsub.f32 %v841, %v839
      %v845 = vsel %vm843, %v844, %v841
      %v846 = vstv %s160
      %v847 = vlaneseq
      %v848 = vand.u32 %v847, 127
      %vm849 = vcmp.eq.s32.totalorder %v848, %v846
      %v850 = vstv %s160
      %vm851 = vcmp.ge.s32.totalorder %v834, %v850
      %vm852 = vmand %vm849, %vm851
      %v853 = vsel %vm852, %v838, %v845
      %854 = vst [vmem:[%s840] sm:$0xff] %v853
      %v855 = vadd.s32 %v813, 16
      %v856 = vlaneseq
      %v857 = vand.u32 %v856, 127
      %s858 = scalar_lea.vmem %s810, 16
      %v859 = vld [vmem:[%s858] sm:$0xff]
      %v860 = vmul.f32 %v859, %v814
      %s861 = scalar_lea.vmem %s809, 16
      %v862 = vld [vmem:[%s861] sm:$0xff]
      %v863 = vstv %s160
      %vm864 = vcmp.gt.s32.totalorder %v857, %v863
      %v865 = vsub.f32 %v862, %v860
      %v866 = vsel %vm864, %v865, %v862
      %v867 = vstv %s160
      %v868 = vlaneseq
      %v869 = vand.u32 %v868, 127
      %vm870 = vcmp.eq.s32.totalorder %v869, %v867
      %v871 = vstv %s160
      %vm872 = vcmp.ge.s32.totalorder %v855, %v871
      %vm873 = vmand %vm870, %vm872
      %v874 = vsel %vm873, %v859, %v866
      %875 = vst [vmem:[%s861] sm:$0xff] %v874
      %v876 = vadd.s32 %v813, 24
      %v877 = vlaneseq
      %v878 = vand.u32 %v877, 127
      %s879 = scalar_lea.vmem %s810, 24
      %v880 = vld [vmem:[%s879] sm:$0xff]
      %v881 = vmul.f32 %v880, %v814
      %s882 = scalar_lea.vmem %s809, 24
      %v883 = vld [vmem:[%s882] sm:$0xff]
      %v884 = vstv %s160
      %vm885 = vcmp.gt.s32.totalorder %v878, %v884
      %v886 = vsub.f32 %v883, %v881
      %v887 = vsel %vm885, %v886, %v883
      %v888 = vstv %s160
      %v889 = vlaneseq
      %v890 = vand.u32 %v889, 127
      %vm891 = vcmp.eq.s32.totalorder %v890, %v888
      %v892 = vstv %s160
      %vm893 = vcmp.ge.s32.totalorder %v876, %v892
      %vm894 = vmand %vm891, %vm893
      %v895 = vsel %vm894, %v880, %v887
      %896 = vst [vmem:[%s882] sm:$0xff] %v895
      %v897 = vadd.s32 %v813, 32
      %v898 = vlaneseq
      %v899 = vand.u32 %v898, 127
      %s900 = scalar_lea.vmem %s810, 32
      %v901 = vld [vmem:[%s900] sm:$0xff]
      %v902 = vmul.f32 %v901, %v814
      %s903 = scalar_lea.vmem %s809, 32
      %v904 = vld [vmem:[%s903] sm:$0xff]
      %v905 = vstv %s160
      %vm906 = vcmp.gt.s32.totalorder %v899, %v905
      %v907 = vsub.f32 %v904, %v902
      %v908 = vsel %vm906, %v907, %v904
      %v909 = vstv %s160
      %v910 = vlaneseq
      %v911 = vand.u32 %v910, 127
      %vm912 = vcmp.eq.s32.totalorder %v911, %v909
      %v913 = vstv %s160
      %vm914 = vcmp.ge.s32.totalorder %v897, %v913
      %vm915 = vmand %vm912, %vm914
      %v916 = vsel %vm915, %v901, %v908
      %917 = vst [vmem:[%s903] sm:$0xff] %v916
      %v918 = vadd.s32 %v813, 40
      %v919 = vlaneseq
      %v920 = vand.u32 %v919, 127
      %s921 = scalar_lea.vmem %s810, 40
      %v922 = vld [vmem:[%s921] sm:$0xff]
      %v923 = vmul.f32 %v922, %v814
      %s924 = scalar_lea.vmem %s809, 40
      %v925 = vld [vmem:[%s924] sm:$0xff]
      %v926 = vstv %s160
      %vm927 = vcmp.gt.s32.totalorder %v920, %v926
      %v928 = vsub.f32 %v925, %v923
      %v929 = vsel %vm927, %v928, %v925
      %v930 = vstv %s160
      %v931 = vlaneseq
      %v932 = vand.u32 %v931, 127
      %vm933 = vcmp.eq.s32.totalorder %v932, %v930
      %v934 = vstv %s160
      %vm935 = vcmp.ge.s32.totalorder %v918, %v934
      %vm936 = vmand %vm933, %vm935
      %v937 = vsel %vm936, %v922, %v929
      %938 = vst [vmem:[%s924] sm:$0xff] %v937
      %v939 = vadd.s32 %v813, 48
      %v940 = vlaneseq
      %v941 = vand.u32 %v940, 127
      %s942 = scalar_lea.vmem %s810, 48
      %v943 = vld [vmem:[%s942] sm:$0xff]
      %v944 = vmul.f32 %v943, %v814
      %s945 = scalar_lea.vmem %s809, 48
      %v946 = vld [vmem:[%s945] sm:$0xff]
      %v947 = vstv %s160
      %vm948 = vcmp.gt.s32.totalorder %v941, %v947
      %v949 = vsub.f32 %v946, %v944
      %v950 = vsel %vm948, %v949, %v946
      %v951 = vstv %s160
      %v952 = vlaneseq
      %v953 = vand.u32 %v952, 127
      %vm954 = vcmp.eq.s32.totalorder %v953, %v951
      %v955 = vstv %s160
      %vm956 = vcmp.ge.s32.totalorder %v939, %v955
      %vm957 = vmand %vm954, %vm956
      %v958 = vsel %vm957, %v943, %v950
      %959 = vst [vmem:[%s945] sm:$0xff] %v958
      %v960 = vadd.s32 %v813, 56
      %v961 = vlaneseq
      %v962 = vand.u32 %v961, 127
      %s963 = scalar_lea.vmem %s810, 56
      %v964 = vld [vmem:[%s963] sm:$0xff]
      %v965 = vmul.f32 %v964, %v814
      %s966 = scalar_lea.vmem %s809, 56
      %v967 = vld [vmem:[%s966] sm:$0xff]
      %v968 = vstv %s160
      %vm969 = vcmp.gt.s32.totalorder %v962, %v968
      %v970 = vsub.f32 %v967, %v965
      %v971 = vsel %vm969, %v970, %v967
      %v972 = vstv %s160
      %v973 = vlaneseq
      %v974 = vand.u32 %v973, 127
      %vm975 = vcmp.eq.s32.totalorder %v974, %v972
      %v976 = vstv %s160
      %vm977 = vcmp.ge.s32.totalorder %v960, %v976
      %vm978 = vmand %vm975, %vm977
      %v979 = vsel %vm978, %v964, %v971
      %980 = vst [vmem:[%s966] sm:$0xff] %v979
      %v981 = vadd.s32 %v813, 64
      %v982 = vlaneseq
      %v983 = vand.u32 %v982, 127
      %s984 = scalar_lea.vmem %s810, 64
      %v985 = vld [vmem:[%s984] sm:$0xff]
      %v986 = vmul.f32 %v985, %v814
      %s987 = scalar_lea.vmem %s809, 64
      %v988 = vld [vmem:[%s987] sm:$0xff]
      %v989 = vstv %s160
      %vm990 = vcmp.gt.s32.totalorder %v983, %v989
      %v991 = vsub.f32 %v988, %v986
      %v992 = vsel %vm990, %v991, %v988
      %v993 = vstv %s160
      %v994 = vlaneseq
      %v995 = vand.u32 %v994, 127
      %vm996 = vcmp.eq.s32.totalorder %v995, %v993
      %v997 = vstv %s160
      %vm998 = vcmp.ge.s32.totalorder %v981, %v997
      %vm999 = vmand %vm996, %vm998
      %v1000 = vsel %vm999, %v985, %v992
      %1001 = vst [vmem:[%s987] sm:$0xff] %v1000
      %v1002 = vadd.s32 %v813, 72
      %v1003 = vlaneseq
      %v1004 = vand.u32 %v1003, 127
      %s1005 = scalar_lea.vmem %s810, 72
      %v1006 = vld [vmem:[%s1005] sm:$0xff]
      %v1007 = vmul.f32 %v1006, %v814
      %s1008 = scalar_lea.vmem %s809, 72
      %v1009 = vld [vmem:[%s1008] sm:$0xff]
      %v1010 = vstv %s160
      %vm1011 = vcmp.gt.s32.totalorder %v1004, %v1010
      %v1012 = vsub.f32 %v1009, %v1007
      %v1013 = vsel %vm1011, %v1012, %v1009
      %v1014 = vstv %s160
      %v1015 = vlaneseq
      %v1016 = vand.u32 %v1015, 127
      %vm1017 = vcmp.eq.s32.totalorder %v1016, %v1014
      %v1018 = vstv %s160
      %vm1019 = vcmp.ge.s32.totalorder %v1002, %v1018
      %vm1020 = vmand %vm1017, %vm1019
      %v1021 = vsel %vm1020, %v1006, %v1013
      %1022 = vst [vmem:[%s1008] sm:$0xff] %v1021
      %v1023 = vadd.s32 %v813, 80
      %v1024 = vlaneseq
      %v1025 = vand.u32 %v1024, 127
      %s1026 = scalar_lea.vmem %s810, 80
      %v1027 = vld [vmem:[%s1026] sm:$0xff]
      %v1028 = vmul.f32 %v1027, %v814
      %s1029 = scalar_lea.vmem %s809, 80
      %v1030 = vld [vmem:[%s1029] sm:$0xff]
      %v1031 = vstv %s160
      %vm1032 = vcmp.gt.s32.totalorder %v1025, %v1031
      %v1033 = vsub.f32 %v1030, %v1028
      %v1034 = vsel %vm1032, %v1033, %v1030
      %v1035 = vstv %s160
      %v1036 = vlaneseq
      %v1037 = vand.u32 %v1036, 127
      %vm1038 = vcmp.eq.s32.totalorder %v1037, %v1035
      %v1039 = vstv %s160
      %vm1040 = vcmp.ge.s32.totalorder %v1023, %v1039
      %vm1041 = vmand %vm1038, %vm1040
      %v1042 = vsel %vm1041, %v1027, %v1034
      %1043 = vst [vmem:[%s1029] sm:$0xff] %v1042
      %v1044 = vadd.s32 %v813, 88
      %v1045 = vlaneseq
      %v1046 = vand.u32 %v1045, 127
      %s1047 = scalar_lea.vmem %s810, 88
      %v1048 = vld [vmem:[%s1047] sm:$0xff]
      %v1049 = vmul.f32 %v1048, %v814
      %s1050 = scalar_lea.vmem %s809, 88
      %v1051 = vld [vmem:[%s1050] sm:$0xff]
      %v1052 = vstv %s160
      %vm1053 = vcmp.gt.s32.totalorder %v1046, %v1052
      %v1054 = vsub.f32 %v1051, %v1049
      %v1055 = vsel %vm1053, %v1054, %v1051
      %v1056 = vstv %s160
      %v1057 = vlaneseq
      %v1058 = vand.u32 %v1057, 127
      %vm1059 = vcmp.eq.s32.totalorder %v1058, %v1056
      %v1060 = vstv %s160
      %vm1061 = vcmp.ge.s32.totalorder %v1044, %v1060
      %vm1062 = vmand %vm1059, %vm1061
      %v1063 = vsel %vm1062, %v1048, %v1055
      %1064 = vst [vmem:[%s1050] sm:$0xff] %v1063
      %v1065 = vadd.s32 %v813, 96
      %v1066 = vlaneseq
      %v1067 = vand.u32 %v1066, 127
      %s1068 = scalar_lea.vmem %s810, 96
      %v1069 = vld [vmem:[%s1068] sm:$0xff]
      %v1070 = vmul.f32 %v1069, %v814
      %s1071 = scalar_lea.vmem %s809, 96
      %v1072 = vld [vmem:[%s1071] sm:$0xff]
      %v1073 = vstv %s160
      %vm1074 = vcmp.gt.s32.totalorder %v1067, %v1073
      %v1075 = vsub.f32 %v1072, %v1070
      %v1076 = vsel %vm1074, %v1075, %v1072
      %v1077 = vstv %s160
      %v1078 = vlaneseq
      %v1079 = vand.u32 %v1078, 127
      %vm1080 = vcmp.eq.s32.totalorder %v1079, %v1077
      %v1081 = vstv %s160
      %vm1082 = vcmp.ge.s32.totalorder %v1065, %v1081
      %vm1083 = vmand %vm1080, %vm1082
      %v1084 = vsel %vm1083, %v1069, %v1076
      %1085 = vst [vmem:[%s1071] sm:$0xff] %v1084
      %v1086 = vadd.s32 %v813, 104
      %v1087 = vlaneseq
      %v1088 = vand.u32 %v1087, 127
      %s1089 = scalar_lea.vmem %s810, 104
      %v1090 = vld [vmem:[%s1089] sm:$0xff]
      %v1091 = vmul.f32 %v1090, %v814
      %s1092 = scalar_lea.vmem %s809, 104
      %v1093 = vld [vmem:[%s1092] sm:$0xff]
      %v1094 = vstv %s160
      %vm1095 = vcmp.gt.s32.totalorder %v1088, %v1094
      %v1096 = vsub.f32 %v1093, %v1091
      %v1097 = vsel %vm1095, %v1096, %v1093
      %v1098 = vstv %s160
      %v1099 = vlaneseq
      %v1100 = vand.u32 %v1099, 127
      %vm1101 = vcmp.eq.s32.totalorder %v1100, %v1098
      %v1102 = vstv %s160
      %vm1103 = vcmp.ge.s32.totalorder %v1086, %v1102
      %vm1104 = vmand %vm1101, %vm1103
      %v1105 = vsel %vm1104, %v1090, %v1097
      %1106 = vst [vmem:[%s1092] sm:$0xff] %v1105
      %v1107 = vadd.s32 %v813, 112
      %v1108 = vlaneseq
      %v1109 = vand.u32 %v1108, 127
      %s1110 = scalar_lea.vmem %s810, 112
      %v1111 = vld [vmem:[%s1110] sm:$0xff]
      %v1112 = vmul.f32 %v1111, %v814
      %s1113 = scalar_lea.vmem %s809, 112
      %v1114 = vld [vmem:[%s1113] sm:$0xff]
      %v1115 = vstv %s160
      %vm1116 = vcmp.gt.s32.totalorder %v1109, %v1115
      %v1117 = vsub.f32 %v1114, %v1112
      %v1118 = vsel %vm1116, %v1117, %v1114
      %v1119 = vstv %s160
      %v1120 = vlaneseq
      %v1121 = vand.u32 %v1120, 127
      %vm1122 = vcmp.eq.s32.totalorder %v1121, %v1119
      %v1123 = vstv %s160
      %vm1124 = vcmp.ge.s32.totalorder %v1107, %v1123
      %vm1125 = vmand %vm1122, %vm1124
      %v1126 = vsel %vm1125, %v1111, %v1118
      %1127 = vst [vmem:[%s1113] sm:$0xff] %v1126
      %v1128 = vadd.s32 %v813, 120
      %v1129 = vlaneseq
      %v1130 = vand.u32 %v1129, 127
      %s1131 = scalar_lea.vmem %s810, 120
      %v1132 = vld [vmem:[%s1131] sm:$0xff]
      %v1133 = vmul.f32 %v1132, %v814
      %s1134 = scalar_lea.vmem %s809, 120
      %v1135 = vld [vmem:[%s1134] sm:$0xff]
      %v1136 = vstv %s160
      %vm1137 = vcmp.gt.s32.totalorder %v1130, %v1136
      %v1138 = vsub.f32 %v1135, %v1133
      %v1139 = vsel %vm1137, %v1138, %v1135
      %v1140 = vstv %s160
      %v1141 = vlaneseq
      %v1142 = vand.u32 %v1141, 127
      %vm1143 = vcmp.eq.s32.totalorder %v1142, %v1140
      %v1144 = vstv %s160
      %vm1145 = vcmp.ge.s32.totalorder %v1128, %v1144
      %vm1146 = vmand %vm1143, %vm1145
      %v1147 = vsel %vm1146, %v1132, %v1139
      %1148 = vst [vmem:[%s1134] sm:$0xff] %v1147
      %s1149 = scalar_lea.vmem %s809, %s160
      %v1150 = vld [vmem:[%s1149] ss:$0 sm:$0xff]
      %v1151 = vstv %s160
      %v1152 = vlaneseq
      %v1153 = vand.u32 %v1152, 127
      %vm1154 = vcmp.eq.s32.totalorder %v1153, %v1151
      %v1155 = vsel %vm1154, %v376, %v1150
      %1156 = vst [vmem:[%s1149] sm:$0x1] %v1155
    $region40: #{custom-call.54} parent=1 // loop_footer
      %s164 = sadd.s32 1, %s160
    $region41: #{custom-call.54} parent=1 // loop_footer_branch
      %159 = sbr.rel target = $region37
    $region42: #{custom-call.54} parent=1 // loop_exit
      _
    %s1158 = sshllo.u32 0, 1
    %v1160 = vld [vmem:[#allocation2] sm:%s1158]
    %s1161 = sshllo.u32 0, 1
    %1162 = vst [vmem:[#allocation3] sm:%s1161] %v1160
    // Predicated region
    $region43: #{custom-call.54} parent=1 // pred_check
      _
    $region44: #{custom-call.54} parent=1 // pred_check_branch
      %1164 = sbr.rel (0) target = $region46
    $region45: #{custom-call.54} parent=1 // pred_region
      // Predicated region
      $region47: #{custom-call.54} parent=45 // pred_check
        _
      $region48: #{custom-call.54} parent=45 // pred_check_branch
        %1166 = sbr.rel (0) target = $region50
      $region49: #{custom-call.54} parent=45 // pred_region
        // Predicated region
        $region62: #{custom-call.54} parent=49 // pred_check
          _
        $region63: #{custom-call.54} parent=49 // pred_check_branch
          %1211 = sbr.rel (0) target = $region65
        $region64: #{custom-call.54} parent=49 // pred_region
          loop: start=0, step=1, limit=1
          $region66: #{custom-call.54} parent=64 // loop_pre_header
            _
          $region67: #{custom-call.54} parent=64 // loop_header
            %s1213 = sphi 0, %s1217
            %p1214 = scmp.ge.s32.totalorder %s1213, 1
            %s1218 = sphi [#allocation1], [#allocation1]
            %s1219 = sphi %s1, %s1
          $region68: #{custom-call.54} parent=64 // loop_header_branch
            %1216 = sbr.rel (%p1214) target = $region72
          $region69: #{custom-call.54} parent=64 // loop_body
            %v1220 = vld [vmem:[%s1218] sm:$0xff]
            %1221 = vst [vmem:[%s1219] sm:$0xff] %v1220
            %v1222 = vld [vmem:[%s1218 + $0x8] sm:$0xff]
            %1223 = vst [vmem:[%s1219 + $0x8] sm:$0xff] %v1222
            %v1224 = vld [vmem:[%s1218 + $0x10] sm:$0xff]
            %1225 = vst [vmem:[%s1219 + $0x10] sm:$0xff] %v1224
            %v1226 = vld [vmem:[%s1218 + $0x18] sm:$0xff]
            %1227 = vst [vmem:[%s1219 + $0x18] sm:$0xff] %v1226
            %v1228 = vld [vmem:[%s1218 + $0x20] sm:$0xff]
            %1229 = vst [vmem:[%s1219 + $0x20] sm:$0xff] %v1228
            %v1230 = vld [vmem:[%s1218 + $0x28] sm:$0xff]
            %1231 = vst [vmem:[%s1219 + $0x28] sm:$0xff] %v1230
            %v1232 = vld [vmem:[%s1218 + $0x30] sm:$0xff]
            %1233 = vst [vmem:[%s1219 + $0x30] sm:$0xff] %v1232
            %v1234 = vld [vmem:[%s1218 + $0x38] sm:$0xff]
            %1235 = vst [vmem:[%s1219 + $0x38] sm:$0xff] %v1234
            %v1236 = vld [vmem:[%s1218 + $0x40] sm:$0xff]
            %1237 = vst [vmem:[%s1219 + $0x40] sm:$0xff] %v1236
            %v1238 = vld [vmem:[%s1218 + $0x48] sm:$0xff]
            %1239 = vst [vmem:[%s1219 + $0x48] sm:$0xff] %v1238
            %v1240 = vld [vmem:[%s1218 + $0x50] sm:$0xff]
            %1241 = vst [vmem:[%s1219 + $0x50] sm:$0xff] %v1240
            %v1242 = vld [vmem:[%s1218 + $0x58] sm:$0xff]
            %1243 = vst [vmem:[%s1219 + $0x58] sm:$0xff] %v1242
            %v1244 = vld [vmem:[%s1218 + $0x60] sm:$0xff]
            %1245 = vst [vmem:[%s1219 + $0x60] sm:$0xff] %v1244
            %v1246 = vld [vmem:[%s1218 + $0x68] sm:$0xff]
            %1247 = vst [vmem:[%s1219 + $0x68] sm:$0xff] %v1246
            %v1248 = vld [vmem:[%s1218 + $0x70] sm:$0xff]
            %1249 = vst [vmem:[%s1219 + $0x70] sm:$0xff] %v1248
            %v1250 = vld [vmem:[%s1218 + $0x78] sm:$0xff]
            %1251 = vst [vmem:[%s1219 + $0x78] sm:$0xff] %v1250
          $region70: #{custom-call.54} parent=64 // loop_footer
            %s1217 = sadd.s32 1, %s1213
          $region71: #{custom-call.54} parent=64 // loop_footer_branch
            %1212 = sbr.rel target = $region67
          $region72: #{custom-call.54} parent=64 // loop_exit
            _
        $region65: #{custom-call.54} parent=49 // pred_fallthru
          _
        // Predicated region
        $region73: #{custom-call.54} parent=49 // pred_check
          _
        $region74: #{custom-call.54} parent=49 // pred_check_branch
          %1253 = sbr.rel target = $region76
        $region75: #{custom-call.54} parent=49 // pred_region
          _
        $region76: #{custom-call.54} parent=49 // pred_fallthru
          _
      $region50: #{custom-call.54} parent=45 // pred_fallthru
        _
      // Predicated region
      $region51: #{custom-call.54} parent=45 // pred_check
        _
      $region52: #{custom-call.54} parent=45 // pred_check_branch
        %1168 = sbr.rel target = $region54
      $region53: #{custom-call.54} parent=45 // pred_region
        loop: start=0, step=1, limit=1
        $region55: #{custom-call.54} parent=53 // loop_pre_header
          _
        $region56: #{custom-call.54} parent=53 // loop_header
          %s1171 = sphi 0, %s1175
          %p1172 = scmp.ge.s32.totalorder %s1171, 1
          %s1176 = sphi [#allocation1], [#allocation1]
          %s1177 = sphi %s1, %s1
        $region57: #{custom-call.54} parent=53 // loop_header_branch
          %1174 = sbr.rel (%p1172) target = $region61
        $region58: #{custom-call.54} parent=53 // loop_body
          %v1178 = vld [vmem:[%s1176] sm:$0xff]
          %1179 = vst [vmem:[%s1177] sm:$0xff] %v1178
          %v1180 = vld [vmem:[%s1176 + $0x8] sm:$0xff]
          %1181 = vst [vmem:[%s1177 + $0x8] sm:$0xff] %v1180
          %v1182 = vld [vmem:[%s1176 + $0x10] sm:$0xff]
          %1183 = vst [vmem:[%s1177 + $0x10] sm:$0xff] %v1182
          %v1184 = vld [vmem:[%s1176 + $0x18] sm:$0xff]
          %1185 = vst [vmem:[%s1177 + $0x18] sm:$0xff] %v1184
          %v1186 = vld [vmem:[%s1176 + $0x20] sm:$0xff]
          %1187 = vst [vmem:[%s1177 + $0x20] sm:$0xff] %v1186
          %v1188 = vld [vmem:[%s1176 + $0x28] sm:$0xff]
          %1189 = vst [vmem:[%s1177 + $0x28] sm:$0xff] %v1188
          %v1190 = vld [vmem:[%s1176 + $0x30] sm:$0xff]
          %1191 = vst [vmem:[%s1177 + $0x30] sm:$0xff] %v1190
          %v1192 = vld [vmem:[%s1176 + $0x38] sm:$0xff]
          %1193 = vst [vmem:[%s1177 + $0x38] sm:$0xff] %v1192
          %v1194 = vld [vmem:[%s1176 + $0x40] sm:$0xff]
          %1195 = vst [vmem:[%s1177 + $0x40] sm:$0xff] %v1194
          %v1196 = vld [vmem:[%s1176 + $0x48] sm:$0xff]
          %1197 = vst [vmem:[%s1177 + $0x48] sm:$0xff] %v1196
          %v1198 = vld [vmem:[%s1176 + $0x50] sm:$0xff]
          %1199 = vst [vmem:[%s1177 + $0x50] sm:$0xff] %v1198
          %v1200 = vld [vmem:[%s1176 + $0x58] sm:$0xff]
          %1201 = vst [vmem:[%s1177 + $0x58] sm:$0xff] %v1200
          %v1202 = vld [vmem:[%s1176 + $0x60] sm:$0xff]
          %1203 = vst [vmem:[%s1177 + $0x60] sm:$0xff] %v1202
          %v1204 = vld [vmem:[%s1176 + $0x68] sm:$0xff]
          %1205 = vst [vmem:[%s1177 + $0x68] sm:$0xff] %v1204
          %v1206 = vld [vmem:[%s1176 + $0x70] sm:$0xff]
          %1207 = vst [vmem:[%s1177 + $0x70] sm:$0xff] %v1206
          %v1208 = vld [vmem:[%s1176 + $0x78] sm:$0xff]
          %1209 = vst [vmem:[%s1177 + $0x78] sm:$0xff] %v1208
        $region59: #{custom-call.54} parent=53 // loop_footer
          %s1175 = sadd.s32 1, %s1171
        $region60: #{custom-call.54} parent=53 // loop_footer_branch
          %1170 = sbr.rel target = $region56
        $region61: #{custom-call.54} parent=53 // loop_exit
          _
      $region54: #{custom-call.54} parent=45 // pred_fallthru
        _
    $region46: #{custom-call.54} parent=1 // pred_fallthru
      _
    %1254 = vnop
    // Predicated region
    $region77: #{custom-call.54} parent=1 // pred_check
      _
    $region78: #{custom-call.54} parent=1 // pred_check_branch
      %1256 = sbr.rel (0) target = $region80
    $region79: #{custom-call.54} parent=1 // pred_region
      // Predicated region
      $region81: #{custom-call.54} parent=79 // pred_check
        _
      $region82: #{custom-call.54} parent=79 // pred_check_branch
        %1258 = sbr.rel (0) target = $region84
      $region83: #{custom-call.54} parent=79 // pred_region
        // Predicated region
        $region85: #{custom-call.54} parent=83 // pred_check
          _
        $region86: #{custom-call.54} parent=83 // pred_check_branch
          %1260 = sbr.rel target = $region88
        $region87: #{custom-call.54} parent=83 // pred_region
          // Predicated region
          $region100: #{custom-call.54} parent=87 // pred_check
            _
          $region101: #{custom-call.54} parent=87 // pred_check_branch
            %1275 = sbr.rel (0) target = $region103
          $region102: #{custom-call.54} parent=87 // pred_region
            loop: start=0, step=1, limit=1
            $region104: #{custom-call.54} parent=102 // loop_pre_header
              _
            $region105: #{custom-call.54} parent=102 // loop_header
              %s1278 = sphi 0, %s1282
              %p1279 = scmp.ge.s32.totalorder %s1278, 1
              %s1283 = sphi [#allocation3], [#allocation3]
              %s1284 = sphi %s2, %s2
            $region106: #{custom-call.54} parent=102 // loop_header_branch
              %1281 = sbr.rel (%p1279) target = $region110
            $region107: #{custom-call.54} parent=102 // loop_body
              %v1285 = vld [vmem:[%s1283] sm:$0x1]
              %1286 = vst [vmem:[%s1284] sm:$0x1] %v1285
            $region108: #{custom-call.54} parent=102 // loop_footer
              %s1282 = sadd.s32 1, %s1278
            $region109: #{custom-call.54} parent=102 // loop_footer_branch
              %1277 = sbr.rel target = $region105
            $region110: #{custom-call.54} parent=102 // loop_exit
              _
          $region103: #{custom-call.54} parent=87 // pred_fallthru
            _
        $region88: #{custom-call.54} parent=83 // pred_fallthru
          _
        // Predicated region
        $region89: #{custom-call.54} parent=83 // pred_check
          _
        $region90: #{custom-call.54} parent=83 // pred_check_branch
          %1262 = sbr.rel (0) target = $region92
        $region91: #{custom-call.54} parent=83 // pred_region
          loop: start=0, step=1, limit=1
          $region93: #{custom-call.54} parent=91 // loop_pre_header
            _
          $region94: #{custom-call.54} parent=91 // loop_header
            %s1265 = sphi 0, %s1269
            %p1266 = scmp.ge.s32.totalorder %s1265, 1
            %s1270 = sphi [#allocation3], [#allocation3]
            %s1271 = sphi %s2, %s2
          $region95: #{custom-call.54} parent=91 // loop_header_branch
            %1268 = sbr.rel (%p1266) target = $region99
          $region96: #{custom-call.54} parent=91 // loop_body
            %v1272 = vld [vmem:[%s1270] sm:$0x1]
            %1273 = vst [vmem:[%s1271] sm:$0x1] %v1272
          $region97: #{custom-call.54} parent=91 // loop_footer
            %s1269 = sadd.s32 1, %s1265
          $region98: #{custom-call.54} parent=91 // loop_footer_branch
            %1264 = sbr.rel target = $region94
          $region99: #{custom-call.54} parent=91 // loop_exit
            _
        $region92: #{custom-call.54} parent=83 // pred_fallthru
          _
      $region84: #{custom-call.54} parent=79 // pred_fallthru
        _
      %1287 = vnop
    $region80: #{custom-call.54} parent=1 // pred_fallthru
      _
    // Predicated region
    $region111: #{custom-call.54} parent=1 // pred_check
      _
    $region112: #{custom-call.54} parent=1 // pred_check_branch
      %1289 = sbr.rel (0) target = $region114
    $region113: #{custom-call.54} parent=1 // pred_region
      _
    $region114: #{custom-call.54} parent=1 // pred_fallthru
      _

// kernel: custom-call.55
$region0: #{custom-call.55}
  %s0 = inlined_call_operand.vmem [shape: f32[5,5], index: 0, kind: input, shape index: {}]
  %s1 = inlined_call_operand.vmem [shape: f32[5,5], index: 1, kind: output, shape index: {}]
  $region1: #{custom-call.55} parent=0
    #allocation0 [shape = 'u8[4096]{0}', space=vmem, size = 0x1000, scoped, tag = 'operand span for operand 0']
    #allocation1 [shape = 'u8[4096]{0}', space=vmem, size = 0x1000, scoped, tag = 'operand span for operand 1']
    %p3 = scmp.gt.s32.totalorder 8, 0
    // Predicated region
    $region2: #{custom-call.55} parent=1 // pred_check
      %p4 = pneg %p3
    $region3: #{custom-call.55} parent=1 // pred_check_branch
      %6 = sbr.rel (%p4) target = $region5
    $region4: #{custom-call.55} parent=1 // pred_region
      %s7 = sshra.s32 8, 3
      %p8 = scmp.gt.s32.totalorder %s7, 0
      // Predicated region
      $region6: #{custom-call.55} parent=4 // pred_check
        %p9 = pneg %p8
      $region7: #{custom-call.55} parent=4 // pred_check_branch
        %11 = sbr.rel (%p9) target = $region9
      $region8: #{custom-call.55} parent=4 // pred_region
        %s12 = ssub.s32 %s7, 1
        %s13 = smul.u32 %s12, 128
        %s14 = sshra.s32 %s13, 4
        %s15 = scalar_lea.vmem %s0, %s14
        %v16 = vld [vmem:[%s0] sm:$0xff]
        // While loop
        $region10: #{custom-call.55} parent=8 // loop_pre_header
          _
        $region11: #{custom-call.55} parent=8 // loop_header
          %s17 = sphi %s0, %s39
          %s18 = sphi [#allocation0], %s40
          %v19 = vphi %v16, %v41
          %s20 = ssub.s32 %s15, 64
          %p21 = scmp.gt.s32.totalorder %s17, %s20
        $region12: #{custom-call.55} parent=8 // loop_header_branch
          %23 = sbr.rel (%p21) target = $region16
        $region13: #{custom-call.55} parent=8 // loop_body
          %24 = vst [vmem:[%s18] sm:$0xff] %v19
          %v25 = vld [vmem:[%s17 + $0x8] sm:$0xff]
          %26 = vst [vmem:[%s18 + $0x8] sm:$0xff] %v25
          %v27 = vld [vmem:[%s17 + $0x10] sm:$0xff]
          %28 = vst [vmem:[%s18 + $0x10] sm:$0xff] %v27
          %v29 = vld [vmem:[%s17 + $0x18] sm:$0xff]
          %30 = vst [vmem:[%s18 + $0x18] sm:$0xff] %v29
          %v31 = vld [vmem:[%s17 + $0x20] sm:$0xff]
          %32 = vst [vmem:[%s18 + $0x20] sm:$0xff] %v31
          %v33 = vld [vmem:[%s17 + $0x28] sm:$0xff]
          %34 = vst [vmem:[%s18 + $0x28] sm:$0xff] %v33
          %v35 = vld [vmem:[%s17 + $0x30] sm:$0xff]
          %36 = vst [vmem:[%s18 + $0x30] sm:$0xff] %v35
          %v37 = vld [vmem:[%s17 + $0x38] sm:$0xff]
          %38 = vst [vmem:[%s18 + $0x38] sm:$0xff] %v37
        $region14: #{custom-call.55} parent=8 // loop_footer
          %s39 = scalar_lea.vmem %s17, 64
          %s40 = scalar_lea.vmem %s18, 64
          %v41 = vld [vmem:[%s17 + $0x40] sm:$0xff]
        $region15: #{custom-call.55} parent=8 // loop_footer_branch
          %42 = sbr.rel target = $region11
        $region16: #{custom-call.55} parent=8 // loop_exit
          _
        // While loop
        $region17: #{custom-call.55} parent=8 // loop_pre_header
          _
        $region18: #{custom-call.55} parent=8 // loop_header
          %s43 = sphi %s17, %s51
          %s44 = sphi %s18, %s52
          %v45 = vphi %v19, %v45
          %p46 = scmp.gt.s32.totalorder %s43, %s15
        $region19: #{custom-call.55} parent=8 // loop_header_branch
          %48 = sbr.rel (%p46) target = $region23
        $region20: #{custom-call.55} parent=8 // loop_body
          %v49 = vld [vmem:[%s43] sm:$0xff]
          %50 = vst [vmem:[%s44] sm:$0xff] %v49
        $region21: #{custom-call.55} parent=8 // loop_footer
          %s51 = scalar_lea.vmem %s43, 8
          %s52 = scalar_lea.vmem %s44, 8
        $region22: #{custom-call.55} parent=8 // loop_footer_branch
          %53 = sbr.rel target = $region18
        $region23: #{custom-call.55} parent=8 // loop_exit
          _
      $region9: #{custom-call.55} parent=4 // pred_fallthru
        _
      %s54 = sand.u32 8, 7
      %s55 = sshllo.u32 0, %s54
      %s56 = smul.u32 %s7, 128
      %s57 = sshra.s32 %s56, 4
      %s58 = scalar_lea.vmem [#allocation0], %s57
      %s59 = smul.u32 %s7, 128
      %s60 = sshra.s32 %s59, 4
      %s61 = scalar_lea.vmem %s0, %s60
      %v62 = vld [vmem:[%s61] sm:%s55]
      %63 = vst [vmem:[%s58] sm:%s55] %v62
    $region5: #{custom-call.55} parent=1 // pred_fallthru
      _
    %v64 = vlaneseq
    %v65 = vand.u32 %v64, 127
    %v66 = vlaneseq
    %v67 = vshrl.u32 %v66, 7
    %vm69 = vcmp.eq.s32.totalorder %v65, %v67
    %v70 = vld [vmem:[#allocation0] sm:$0xff]
    %v71 = vlaneseq
    %v72 = vand.u32 %v71, 127
    %vm73 = vcmp.eq.s32.totalorder %v72, 0
    %v74 = vsel %vm73, %v70, 1.0
    %v75 = vsel %vm69, %v74, 0.0
    %s76 = scalar_lea.vmem [#allocation0], 1
    %v77 = vld [vmem:[%s76] ss:$0 sm:$0xff]
    %vm78 = vcmask 39936
    %v79 = vsel %vm78, %v77, 0.0
    %v80 = vlaneseq
    %v81 = vand.u32 %v80, 127
    %vm82 = vcmp.eq.s32.totalorder %v81, 1
    %v83 = vmul.f32 %v79, %v75
    %84 = vadd.xlane.f32.xlu0 %v83
    %v85 = vpop.xlane.xlu0 %84
    %v86 = vsel %vm82, %v85, %v75
    %s87 = scalar_lea.vmem [#allocation0], 2
    %v88 = vld [vmem:[%s87] ss:$0 sm:$0xff]
    %vm89 = vcmask 39936
    %v90 = vsel %vm89, %v88, 0.0
    %v91 = vlaneseq
    %v92 = vand.u32 %v91, 127
    %vm93 = vcmp.eq.s32.totalorder %v92, 2
    %v94 = vmul.f32 %v90, %v86
    %95 = vadd.xlane.f32.xlu0 %v94
    %v96 = vpop.xlane.xlu0 %95
    %v97 = vsel %vm93, %v96, %v86
    %s98 = scalar_lea.vmem [#allocation0], 3
    %v99 = vld [vmem:[%s98] ss:$0 sm:$0xff]
    %vm100 = vcmask 39936
    %v101 = vsel %vm100, %v99, 0.0
    %v102 = vlaneseq
    %v103 = vand.u32 %v102, 127
    %vm104 = vcmp.eq.s32.totalorder %v103, 3
    %v105 = vmul.f32 %v101, %v97
    %106 = vadd.xlane.f32.xlu0 %v105
    %v107 = vpop.xlane.xlu0 %106
    %v108 = vsel %vm104, %v107, %v97
    %s109 = scalar_lea.vmem [#allocation0], 4
    %v110 = vld [vmem:[%s109] ss:$0 sm:$0xff]
    %vm111 = vcmask 39936
    %v112 = vsel %vm111, %v110, 0.0
    %v113 = vlaneseq
    %v114 = vand.u32 %v113, 127
    %vm115 = vcmp.eq.s32.totalorder %v114, 4
    %v116 = vmul.f32 %v112, %v108
    %117 = vadd.xlane.f32.xlu0 %v116
    %v118 = vpop.xlane.xlu0 %117
    %v119 = vsel %vm115, %v118, %v108
    %120 = vst [vmem:[#allocation1] sm:$0xff] %v119
    %p122 = scmp.gt.s32.totalorder 8, 0
    // Predicated region
    $region24: #{custom-call.55} parent=1 // pred_check
      %p123 = pneg %p122
    $region25: #{custom-call.55} parent=1 // pred_check_branch
      %125 = sbr.rel (%p123) target = $region27
    $region26: #{custom-call.55} parent=1 // pred_region
      %s126 = sshra.s32 8, 3
      %p127 = scmp.gt.s32.totalorder %s126, 0
      // Predicated region
      $region28: #{custom-call.55} parent=26 // pred_check
        %p128 = pneg %p127
      $region29: #{custom-call.55} parent=26 // pred_check_branch
        %130 = sbr.rel (%p128) target = $region31
      $region30: #{custom-call.55} parent=26 // pred_region
        %s131 = ssub.s32 %s126, 1
        %s132 = smul.u32 %s131, 128
        %s133 = sshra.s32 %s132, 4
        %s134 = scalar_lea.vmem [#allocation1], %s133
        %v135 = vld [vmem:[#allocation1] sm:$0xff]
        // While loop
        $region32: #{custom-call.55} parent=30 // loop_pre_header
          _
        $region33: #{custom-call.55} parent=30 // loop_header
          %s136 = sphi [#allocation1], %s158
          %s137 = sphi %s1, %s159
          %v138 = vphi %v135, %v160
          %s139 = ssub.s32 %s134, 64
          %p140 = scmp.gt.s32.totalorder %s136, %s139
        $region34: #{custom-call.55} parent=30 // loop_header_branch
          %142 = sbr.rel (%p140) target = $region38
        $region35: #{custom-call.55} parent=30 // loop_body
          %143 = vst [vmem:[%s137] sm:$0xff] %v138
          %v144 = vld [vmem:[%s136 + $0x8] sm:$0xff]
          %145 = vst [vmem:[%s137 + $0x8] sm:$0xff] %v144
          %v146 = vld [vmem:[%s136 + $0x10] sm:$0xff]
          %147 = vst [vmem:[%s137 + $0x10] sm:$0xff] %v146
          %v148 = vld [vmem:[%s136 + $0x18] sm:$0xff]
          %149 = vst [vmem:[%s137 + $0x18] sm:$0xff] %v148
          %v150 = vld [vmem:[%s136 + $0x20] sm:$0xff]
          %151 = vst [vmem:[%s137 + $0x20] sm:$0xff] %v150
          %v152 = vld [vmem:[%s136 + $0x28] sm:$0xff]
          %153 = vst [vmem:[%s137 + $0x28] sm:$0xff] %v152
          %v154 = vld [vmem:[%s136 + $0x30] sm:$0xff]
          %155 = vst [vmem:[%s137 + $0x30] sm:$0xff] %v154
          %v156 = vld [vmem:[%s136 + $0x38] sm:$0xff]
          %157 = vst [vmem:[%s137 + $0x38] sm:$0xff] %v156
        $region36: #{custom-call.55} parent=30 // loop_footer
          %s158 = scalar_lea.vmem %s136, 64
          %s159 = scalar_lea.vmem %s137, 64
          %v160 = vld [vmem:[%s136 + $0x40] sm:$0xff]
        $region37: #{custom-call.55} parent=30 // loop_footer_branch
          %161 = sbr.rel target = $region33
        $region38: #{custom-call.55} parent=30 // loop_exit
          _
        // While loop
        $region39: #{custom-call.55} parent=30 // loop_pre_header
          _
        $region40: #{custom-call.55} parent=30 // loop_header
          %s162 = sphi %s136, %s170
          %s163 = sphi %s137, %s171
          %v164 = vphi %v138, %v164
          %p165 = scmp.gt.s32.totalorder %s162, %s134
        $region41: #{custom-call.55} parent=30 // loop_header_branch
          %167 = sbr.rel (%p165) target = $region45
        $region42: #{custom-call.55} parent=30 // loop_body
          %v168 = vld [vmem:[%s162] sm:$0xff]
          %169 = vst [vmem:[%s163] sm:$0xff] %v168
        $region43: #{custom-call.55} parent=30 // loop_footer
          %s170 = scalar_lea.vmem %s162, 8
          %s171 = scalar_lea.vmem %s163, 8
        $region44: #{custom-call.55} parent=30 // loop_footer_branch
          %172 = sbr.rel target = $region40
        $region45: #{custom-call.55} parent=30 // loop_exit
          _
      $region31: #{custom-call.55} parent=26 // pred_fallthru
        _
      %s173 = sand.u32 8, 7
      %s174 = sshllo.u32 0, %s173
      %s175 = smul.u32 %s126, 128
      %s176 = sshra.s32 %s175, 4
      %s177 = scalar_lea.vmem %s1, %s176
      %s178 = smul.u32 %s126, 128
      %s179 = sshra.s32 %s178, 4
      %s180 = scalar_lea.vmem [#allocation1], %s179
      %v181 = vld [vmem:[%s180] sm:%s174]
      %182 = vst [vmem:[%s177] sm:%s174] %v181
    $region27: #{custom-call.55} parent=1 // pred_fallthru
      _

// kernel: _matnet_forward.12
$region0: #{_matnet_forward.12}
  #allocation0 [shape = 'u32[]', space=smem, size = 0x4, offset = 0x4, fixed_abs, tag = 'smem constant byte address 0x4 - core index']
  #allocation1 [shape = 'u32[144,128]{1,0:T(1,128)}', space=vmem, size = 0x12000, scoped, tag = 'internal scratch']
  #allocation2 [shape = 'f32[1]{0:T(128)S(6)}', space=smem, size = 0x200, scoped, tag = 'scoped memory for _matnet_forward.12']
  %s0 = inlined_call_operand.<no memory space> [shape: f32[1], index: 0, kind: input, shape index: {}]
  %s1 = inlined_call_operand.vmem [shape: f32[128,128], index: 1, kind: input, shape index: {}]
  %s2 = inlined_call_operand.vmem [shape: f32[128,5], index: 2, kind: input, shape index: {}]
  %s3 = inlined_call_operand.vmem [shape: f32[128,5], index: 3, kind: output, shape index: {}]
  %s4 = sld [smem:[#allocation0]]
  $region22: #{_matnet_forward.12} parent=0
    _
  %s6 = ssub.s32 1, %s4
  %s7 = scalar_select 0, %s6, %s4
  %8 = sst [smem:[#allocation2]] %s0
  // Predicated region
  $region2: #{_matnet_forward.12} parent=0 // pred_check
    _
  $region3: #{_matnet_forward.12} parent=0 // pred_check_branch
    %10 = sbr.rel (0) target = $region5
  $region4: #{_matnet_forward.12} parent=0 // pred_region
    _
  $region5: #{_matnet_forward.12} parent=0 // pred_fallthru
    _
  // Predicated region
  $region6: #{_matnet_forward.12} parent=0 // pred_check
    _
  $region7: #{_matnet_forward.12} parent=0 // pred_check_branch
    %12 = sbr.rel (0) target = $region9
  $region8: #{_matnet_forward.12} parent=0 // pred_region
    _
  $region9: #{_matnet_forward.12} parent=0 // pred_fallthru
    _
  // Predicated region
  $region10: #{_matnet_forward.12} parent=0 // pred_check
    _
  $region11: #{_matnet_forward.12} parent=0 // pred_check_branch
    %14 = sbr.rel (0) target = $region13
  $region12: #{_matnet_forward.12} parent=0 // pred_region
    _
  $region13: #{_matnet_forward.12} parent=0 // pred_fallthru
    _
  %v15 = vld [vmem:[%s1] sm:$0xff]
  %v16 = vld [vmem:[%s1 + $0x8] sm:$0xff]
  %v17 = vld [vmem:[%s1 + $0x10] sm:$0xff]
  %v18 = vld [vmem:[%s1 + $0x18] sm:$0xff]
  %v19 = vld [vmem:[%s1 + $0x20] sm:$0xff]
  %v20 = vld [vmem:[%s1 + $0x28] sm:$0xff]
  %v21 = vld [vmem:[%s1 + $0x30] sm:$0xff]
  %v22 = vld [vmem:[%s1 + $0x38] sm:$0xff]
  %v23 = vld [vmem:[%s1 + $0x40] sm:$0xff]
  %v24 = vld [vmem:[%s1 + $0x48] sm:$0xff]
  %v25 = vld [vmem:[%s1 + $0x50] sm:$0xff]
  %v26 = vld [vmem:[%s1 + $0x58] sm:$0xff]
  %v27 = vld [vmem:[%s1 + $0x60] sm:$0xff]
  %v28 = vld [vmem:[%s1 + $0x68] sm:$0xff]
  %v29 = vld [vmem:[%s1 + $0x70] sm:$0xff]
  %v30 = vld [vmem:[%s1 + $0x78] sm:$0xff]
  %s31 = sld [smem:[#allocation2]]
  %s32 = ssub.f32 0.0, %s31
  %v33 = vstv %s32
  %v34 = vmax.f32 %v15, %v33
  %v35 = vmax.f32 %v16, %v33
  %v36 = vmax.f32 %v17, %v33
  %v37 = vmax.f32 %v18, %v33
  %v38 = vmax.f32 %v19, %v33
  %v39 = vmax.f32 %v20, %v33
  %v40 = vmax.f32 %v21, %v33
  %v41 = vmax.f32 %v22, %v33
  %v42 = vmax.f32 %v23, %v33
  %v43 = vmax.f32 %v24, %v33
  %v44 = vmax.f32 %v25, %v33
  %v45 = vmax.f32 %v26, %v33
  %v46 = vmax.f32 %v27, %v33
  %v47 = vmax.f32 %v28, %v33
  %v48 = vmax.f32 %v29, %v33
  %v49 = vmax.f32 %v30, %v33
  %v50 = vstv %s31
  %v51 = vmin.f32 %v34, %v50
  %v52 = vmin.f32 %v35, %v50
  %v53 = vmin.f32 %v36, %v50
  %v54 = vmin.f32 %v37, %v50
  %v55 = vmin.f32 %v38, %v50
  %v56 = vmin.f32 %v39, %v50
  %v57 = vmin.f32 %v40, %v50
  %v58 = vmin.f32 %v41, %v50
  %v59 = vmin.f32 %v42, %v50
  %v60 = vmin.f32 %v43, %v50
  %v61 = vmin.f32 %v44, %v50
  %v62 = vmin.f32 %v45, %v50
  %v63 = vmin.f32 %v46, %v50
  %v64 = vmin.f32 %v47, %v50
  %v65 = vmin.f32 %v48, %v50
  %v66 = vmin.f32 %v49, %v50
  %v67 = vld [vmem:[%s2] sm:$0xff]
  %v68 = vld [vmem:[%s2 + $0x8] sm:$0xff]
  %v69 = vld [vmem:[%s2 + $0x10] sm:$0xff]
  %v70 = vld [vmem:[%s2 + $0x18] sm:$0xff]
  %v71 = vld [vmem:[%s2 + $0x20] sm:$0xff]
  %v72 = vld [vmem:[%s2 + $0x28] sm:$0xff]
  %v73 = vld [vmem:[%s2 + $0x30] sm:$0xff]
  %v74 = vld [vmem:[%s2 + $0x38] sm:$0xff]
  %v75 = vld [vmem:[%s2 + $0x40] sm:$0xff]
  %v76 = vld [vmem:[%s2 + $0x48] sm:$0xff]
  %v77 = vld [vmem:[%s2 + $0x50] sm:$0xff]
  %v78 = vld [vmem:[%s2 + $0x58] sm:$0xff]
  %v79 = vld [vmem:[%s2 + $0x60] sm:$0xff]
  %v80 = vld [vmem:[%s2 + $0x68] sm:$0xff]
  %v81 = vld [vmem:[%s2 + $0x70] sm:$0xff]
  %v82 = vld [vmem:[%s2 + $0x78] sm:$0xff]
  %83 = vmatprep.subr.mxu0 0.0
  %84 = vmatpush1.msra.mxu0 %v67
  %85 = vmatprep.subr.mxu0 0.0
  %86 = vmatpush1.msra.mxu0 %v68
  %87 = vmatprep.subr.mxu0 0.0
  %88 = vmatpush1.msra.mxu0 %v69
  %89 = vmatprep.subr.mxu0 0.0
  %90 = vmatpush1.msra.mxu0 %v70
  %91 = vmatprep.subr.mxu0 0.0
  %92 = vmatpush1.msra.mxu0 %v71
  %93 = vmatprep.subr.mxu0 0.0
  %94 = vmatpush1.msra.mxu0 %v72
  %95 = vmatprep.subr.mxu0 0.0
  %96 = vmatpush1.msra.mxu0 %v73
  %97 = vmatprep.subr.mxu0 0.0
  %98 = vmatpush1.msra.mxu0 %v74
  %99 = vmatprep.subr.mxu0 0.0
  %100 = vmatpush1.msra.mxu0 %v75
  %101 = vmatprep.subr.mxu0 0.0
  %102 = vmatpush1.msra.mxu0 %v76
  %103 = vmatprep.subr.mxu0 0.0
  %104 = vmatpush1.msra.mxu0 %v77
  %105 = vmatprep.subr.mxu0 0.0
  %106 = vmatpush1.msra.mxu0 %v78
  %107 = vmatprep.subr.mxu0 0.0
  %108 = vmatpush1.msra.mxu0 %v79
  %109 = vmatprep.subr.mxu0 0.0
  %110 = vmatpush1.msra.mxu0 %v80
  %111 = vmatprep.subr.mxu0 0.0
  %112 = vmatpush1.msra.mxu0 %v81
  %113 = vmatprep.subr.mxu0 0.0
  %114 = vmatpush1.msra.mxu0 %v82
  %115 = vmatprep.subr.mxu0 0.0
  %116 = vmatpush1.msra.mxu0 0.0
  %117 = vmatprep.subr.mxu0 0.0
  %118 = vmatpush1.msra.mxu0 0.0
  %119 = vmatprep.subr.mxu0 0.0
  %120 = vmatpush1.msra.mxu0 0.0
  %121 = vmatprep.subr.mxu0 0.0
  %122 = vmatpush1.msra.mxu0 0.0
  %123 = vmatprep.subr.mxu0 0.0
  %124 = vmatpush1.msra.mxu0 0.0
  %125 = vmatprep.subr.mxu0 0.0
  %126 = vmatpush1.msra.mxu0 0.0
  %127 = vmatprep.subr.mxu0 0.0
  %128 = vmatpush1.msra.mxu0 0.0
  %129 = vmatprep.subr.mxu0 0.0
  %130 = vmatpush1.msra.mxu0 0.0
  %131 = vmatprep.subr.mxu0 0.0
  %132 = vmatpush1.msra.mxu0 0.0
  %133 = vmatprep.subr.mxu0 0.0
  %134 = vmatpush1.msra.mxu0 0.0
  %135 = vmatprep.subr.mxu0 0.0
  %136 = vmatpush1.msra.mxu0 0.0
  %137 = vmatprep.subr.mxu0 0.0
  %138 = vmatpush1.msra.mxu0 0.0
  %139 = vmatprep.subr.mxu0 0.0
  %140 = vmatpush1.msra.mxu0 0.0
  %141 = vmatprep.subr.mxu0 0.0
  %142 = vmatpush1.msra.mxu0 0.0
  %143 = vmatprep.subr.mxu0 0.0
  %144 = vmatpush1.msra.mxu0 0.0
  %145 = vmatprep.subr.mxu0 0.0
  %146 = vmatpush1.msra.mxu0 0.0
  %147 = vmatprep.mubr.f32.mxu0 0.0
  %148 = vmatmul.mubr.f32.gmra.mrb[0].mxu0 %v51
  %v149 = vpop.f32.mrb[0].mxu0
  %v150 = vadd.f32 0.0, %v149
  %v151 = vpop.f32.mrb[0].mxu0
  %152 = vmatprep.mubr.f32.mxu0 0.0
  %153 = vmatmul.mubr.f32.gmra.mrb[0].mxu0 %v52
  %v154 = vpop.f32.mrb[0].mxu0
  %v155 = vadd.f32 0.0, %v154
  %v156 = vpop.f32.mrb[0].mxu0
  %157 = vmatprep.mubr.f32.mxu0 0.0
  %158 = vmatmul.mubr.f32.gmra.mrb[0].mxu0 %v53
  %v159 = vpop.f32.mrb[0].mxu0
  %v160 = vadd.f32 0.0, %v159
  %v161 = vpop.f32.mrb[0].mxu0
  %162 = vmatprep.mubr.f32.mxu0 0.0
  %163 = vmatmul.mubr.f32.gmra.mrb[0].mxu0 %v54
  %v164 = vpop.f32.mrb[0].mxu0
  %v165 = vadd.f32 0.0, %v164
  %v166 = vpop.f32.mrb[0].mxu0
  %167 = vmatprep.mubr.f32.mxu0 0.0
  %168 = vmatmul.mubr.f32.gmra.mrb[0].mxu0 %v55
  %v169 = vpop.f32.mrb[0].mxu0
  %v170 = vadd.f32 0.0, %v169
  %v171 = vpop.f32.mrb[0].mxu0
  %172 = vmatprep.mubr.f32.mxu0 0.0
  %173 = vmatmul.mubr.f32.gmra.mrb[0].mxu0 %v56
  %v174 = vpop.f32.mrb[0].mxu0
  %v175 = vadd.f32 0.0, %v174
  %v176 = vpop.f32.mrb[0].mxu0
  %177 = vmatprep.mubr.f32.mxu0 0.0
  %178 = vmatmul.mubr.f32.gmra.mrb[0].mxu0 %v57
  %v179 = vpop.f32.mrb[0].mxu0
  %v180 = vadd.f32 0.0, %v179
  %v181 = vpop.f32.mrb[0].mxu0
  %182 = vmatprep.mubr.f32.mxu0 0.0
  %183 = vmatmul.mubr.f32.gmra.mrb[0].mxu0 %v58
  %v184 = vpop.f32.mrb[0].mxu0
  %v185 = vadd.f32 0.0, %v184
  %v186 = vpop.f32.mrb[0].mxu0
  %187 = vmatprep.mubr.f32.mxu0 0.0
  %188 = vmatmul.mubr.f32.gmra.mrb[0].mxu0 %v59
  %v189 = vpop.f32.mrb[0].mxu0
  %v190 = vadd.f32 0.0, %v189
  %v191 = vpop.f32.mrb[0].mxu0
  %192 = vmatprep.mubr.f32.mxu0 0.0
  %193 = vmatmul.mubr.f32.gmra.mrb[0].mxu0 %v60
  %v194 = vpop.f32.mrb[0].mxu0
  %v195 = vadd.f32 0.0, %v194
  %v196 = vpop.f32.mrb[0].mxu0
  %197 = vmatprep.mubr.f32.mxu0 0.0
  %198 = vmatmul.mubr.f32.gmra.mrb[0].mxu0 %v61
  %v199 = vpop.f32.mrb[0].mxu0
  %v200 = vadd.f32 0.0, %v199
  %v201 = vpop.f32.mrb[0].mxu0
  %202 = vmatprep.mubr.f32.mxu0 0.0
  %203 = vmatmul.mubr.f32.gmra.mrb[0].mxu0 %v62
  %v204 = vpop.f32.mrb[0].mxu0
  %v205 = vadd.f32 0.0, %v204
  %v206 = vpop.f32.mrb[0].mxu0
  %207 = vmatprep.mubr.f32.mxu0 0.0
  %208 = vmatmul.mubr.f32.gmra.mrb[0].mxu0 %v63
  %v209 = vpop.f32.mrb[0].mxu0
  %v210 = vadd.f32 0.0, %v209
  %v211 = vpop.f32.mrb[0].mxu0
  %212 = vmatprep.mubr.f32.mxu0 0.0
  %213 = vmatmul.mubr.f32.gmra.mrb[0].mxu0 %v64
  %v214 = vpop.f32.mrb[0].mxu0
  %v215 = vadd.f32 0.0, %v214
  %v216 = vpop.f32.mrb[0].mxu0
  %217 = vmatprep.mubr.f32.mxu0 0.0
  %218 = vmatmul.mubr.f32.gmra.mrb[0].mxu0 %v65
  %v219 = vpop.f32.mrb[0].mxu0
  %v220 = vadd.f32 0.0, %v219
  %v221 = vpop.f32.mrb[0].mxu0
  %222 = vmatprep.mubr.f32.mxu0 0.0
  %223 = vmatmul.mubr.f32.gmra.mrb[0].mxu0 %v66
  %v224 = vpop.f32.mrb[0].mxu0
  %v225 = vadd.f32 0.0, %v224
  %v226 = vpop.f32.mrb[0].mxu0
  %227 = vdwg.mxu0
  %vm228 = vcmask 39936
  %229 = vst.msk [vmem:[%s3] sm:$0xff] %vm228, %v150
  %230 = vst.msk [vmem:[%s3 + $0x8] sm:$0xff] %vm228, %v155
  %231 = vst.msk [vmem:[%s3 + $0x10] sm:$0xff] %vm228, %v160
  %232 = vst.msk [vmem:[%s3 + $0x18] sm:$0xff] %vm228, %v165
  %233 = vst.msk [vmem:[%s3 + $0x20] sm:$0xff] %vm228, %v170
  %234 = vst.msk [vmem:[%s3 + $0x28] sm:$0xff] %vm228, %v175
  %235 = vst.msk [vmem:[%s3 + $0x30] sm:$0xff] %vm228, %v180
  %236 = vst.msk [vmem:[%s3 + $0x38] sm:$0xff] %vm228, %v185
  %237 = vst.msk [vmem:[%s3 + $0x40] sm:$0xff] %vm228, %v190
  %238 = vst.msk [vmem:[%s3 + $0x48] sm:$0xff] %vm228, %v195
  %239 = vst.msk [vmem:[%s3 + $0x50] sm:$0xff] %vm228, %v200
  %240 = vst.msk [vmem:[%s3 + $0x58] sm:$0xff] %vm228, %v205
  %241 = vst.msk [vmem:[%s3 + $0x60] sm:$0xff] %vm228, %v210
  %242 = vst.msk [vmem:[%s3 + $0x68] sm:$0xff] %vm228, %v215
  %243 = vst.msk [vmem:[%s3 + $0x70] sm:$0xff] %vm228, %v220
  %244 = vst.msk [vmem:[%s3 + $0x78] sm:$0xff] %vm228, %v225
  // Predicated region
  $region14: #{_matnet_forward.12} parent=0 // pred_check
    _
  $region15: #{_matnet_forward.12} parent=0 // pred_check_branch
    %246 = sbr.rel (0) target = $region17
  $region16: #{_matnet_forward.12} parent=0 // pred_region
    _
  $region17: #{_matnet_forward.12} parent=0 // pred_fallthru
    _
  // Predicated region
  $region18: #{_matnet_forward.12} parent=0 // pred_check
    _
  $region19: #{_matnet_forward.12} parent=0 // pred_check_branch
    %248 = sbr.rel (0) target = $region21
  $region20: #{_matnet_forward.12} parent=0 // pred_region
    _
  $region21: #{_matnet_forward.12} parent=0 // pred_fallthru
    _

// kernel: custom-call.88
$region0: #{custom-call.88}
  %s0 = inlined_call_operand.vmem [shape: f32[10,5], index: 0, kind: input, shape index: {}]
  %s1 = inlined_call_operand.vmem [shape: f32[10,5], index: 1, kind: output, shape index: {0}]
  %s2 = inlined_call_operand.vmem [shape: f32[5], index: 2, kind: output, shape index: {1}]
  %3 = xla_tuple %s1, %s2
  $region1: #{custom-call.88} parent=0
    #allocation0 [shape = 'u8[8192]{0}', space=vmem, size = 0x2000, scoped, tag = 'operand span for operand 0']
    #allocation1 [shape = 'u8[8192]{0}', space=vmem, size = 0x2000, scoped, tag = 'operand span for operand 1']
    #allocation2 [shape = 'u8[4096]{0}', space=vmem, size = 0x1000, scoped, tag = 'operand span for operand 2']
    #allocation3 [shape = 'u8[512]{0}', space=vmem, size = 0x400, scoped, tag = 'packed  for operand 2']
    #allocation4 [shape = 'f32[10,128]{1,0}', space=vmem, size = 0x2000, scoped, tag = 'scratch for Householder reflectors']
    // Predicated region
    $region2: #{custom-call.88} parent=1 // pred_check
      _
    $region3: #{custom-call.88} parent=1 // pred_check_branch
      %5 = sbr.rel (0) target = $region5
    $region4: #{custom-call.88} parent=1 // pred_region
      // Predicated region
      $region6: #{custom-call.88} parent=4 // pred_check
        _
      $region7: #{custom-call.88} parent=4 // pred_check_branch
        %7 = sbr.rel (0) target = $region9
      $region8: #{custom-call.88} parent=4 // pred_region
        // Predicated region
        $region21: #{custom-call.88} parent=8 // pred_check
          _
        $region22: #{custom-call.88} parent=8 // pred_check_branch
          %24 = sbr.rel (0) target = $region24
        $region23: #{custom-call.88} parent=8 // pred_region
          loop: start=0, step=1, limit=1
          $region25: #{custom-call.88} parent=23 // loop_pre_header
            _
          $region26: #{custom-call.88} parent=23 // loop_header
            %s26 = sphi 0, %s30
            %p27 = scmp.ge.s32.totalorder %s26, 1
            %s31 = sphi %s0, %s0
            %s32 = sphi [#allocation0], [#allocation0]
          $region27: #{custom-call.88} parent=23 // loop_header_branch
            %29 = sbr.rel (%p27) target = $region31
          $region28: #{custom-call.88} parent=23 // loop_body
            %v33 = vld [vmem:[%s31] sm:$0xff]
            %34 = vst [vmem:[%s32] sm:$0xff] %v33
            %v35 = vld [vmem:[%s31 + $0x8] sm:$0xff]
            %36 = vst [vmem:[%s32 + $0x8] sm:$0xff] %v35
          $region29: #{custom-call.88} parent=23 // loop_footer
            %s30 = sadd.s32 1, %s26
          $region30: #{custom-call.88} parent=23 // loop_footer_branch
            %25 = sbr.rel target = $region26
          $region31: #{custom-call.88} parent=23 // loop_exit
            _
        $region24: #{custom-call.88} parent=8 // pred_fallthru
          _
        // Predicated region
        $region32: #{custom-call.88} parent=8 // pred_check
          _
        $region33: #{custom-call.88} parent=8 // pred_check_branch
          %38 = sbr.rel target = $region35
        $region34: #{custom-call.88} parent=8 // pred_region
          _
        $region35: #{custom-call.88} parent=8 // pred_fallthru
          _
      $region9: #{custom-call.88} parent=4 // pred_fallthru
        _
      // Predicated region
      $region10: #{custom-call.88} parent=4 // pred_check
        _
      $region11: #{custom-call.88} parent=4 // pred_check_branch
        %9 = sbr.rel target = $region13
      $region12: #{custom-call.88} parent=4 // pred_region
        loop: start=0, step=1, limit=1
        $region14: #{custom-call.88} parent=12 // loop_pre_header
          _
        $region15: #{custom-call.88} parent=12 // loop_header
          %s12 = sphi 0, %s16
          %p13 = scmp.ge.s32.totalorder %s12, 1
          %s17 = sphi %s0, %s0
          %s18 = sphi [#allocation0], [#allocation0]
        $region16: #{custom-call.88} parent=12 // loop_header_branch
          %15 = sbr.rel (%p13) target = $region20
        $region17: #{custom-call.88} parent=12 // loop_body
          %v19 = vld [vmem:[%s17] sm:$0xff]
          %20 = vst [vmem:[%s18] sm:$0xff] %v19
          %v21 = vld [vmem:[%s17 + $0x8] sm:$0xff]
          %22 = vst [vmem:[%s18 + $0x8] sm:$0xff] %v21
        $region18: #{custom-call.88} parent=12 // loop_footer
          %s16 = sadd.s32 1, %s12
        $region19: #{custom-call.88} parent=12 // loop_footer_branch
          %11 = sbr.rel target = $region15
        $region20: #{custom-call.88} parent=12 // loop_exit
          _
      $region13: #{custom-call.88} parent=4 // pred_fallthru
        _
    $region5: #{custom-call.88} parent=1 // pred_fallthru
      _
    %39 = vnop
    %v40 = vld [vmem:[#allocation0] sm:$0xff]
    %41 = vst [vmem:[#allocation1] sm:$0xff] %v40
    %s42 = scalar_lea.vmem [#allocation1], 8
    %s43 = scalar_lea.vmem [#allocation0], 8
    %v44 = vld [vmem:[%s43] sm:$0xff]
    %45 = vst [vmem:[%s42] sm:$0xff] %v44
    %46 = vst [vmem:[#allocation2] sm:$0x1] 0.0
    loop: start=0, step=1, limit=5
    $region36: #{custom-call.88} parent=1 // loop_pre_header
      _
    $region37: #{custom-call.88} parent=1 // loop_header
      %s48 = sphi 0, %s52
      %p49 = scmp.ge.s32.totalorder %s48, 5
    $region38: #{custom-call.88} parent=1 // loop_header_branch
      %51 = sbr.rel (%p49) target = $region42
    $region39: #{custom-call.88} parent=1 // loop_body
      %v53 = vld [vmem:[#allocation1] sm:$0xff]
      %v54 = vlaneseq
      %v55 = vshrl.u32 %v54, 7
      %v57 = vstv %s48
      %vm58 = vcmp.gt.s32.totalorder %v55, %v57
      %v59 = vsel %vm58, %v53, 0.0
      %v60 = vmul.f32 %v59, %v59
      %s61 = scalar_lea.vmem [#allocation1], 8
      %v62 = vld [vmem:[%s61] sm:$0xff]
      %v63 = vlaneseq
      %v64 = vshrl.u32 %v63, 7
      %v65 = vadd.s32 %v64, 8
      %v66 = vstv %s48
      %vm67 = vcmp.gt.s32.totalorder %v65, %v66
      %vm68 = vcmp.lt.s32.totalorder %v65, 10
      %vm69 = vmand %vm67, %vm68
      %v70 = vsel %vm69, %v62, 0.0
      %v71 = vmul.f32 %v70, %v70
      %v72 = vadd.f32 %v60, %v71
      %v73 = vrot.slane %v72, 4
      %v74 = vadd.f32 %v72, %v73
      %v75 = vrot.slane %v74, 2
      %v76 = vadd.f32 %v74, %v75
      %v77 = vrot.slane %v76, 1
      %v78 = vadd.f32 %v76, %v77
      %v79 = vrsqrt.pop %v78
      %v80 = vmul.f32 %v78, %v79
      %vm81 = vcmp.eq.f32.partialorder %v78, inf
      %v82 = vsel %vm81, %v78, %v80
      %vm83 = vcmp.eq.f32.partialorder %v78, 0.0
      %v84 = vand.u32 %v78, 2147483648
      %v85 = vsel %vm83, %v84, %v82
      %vm86 = vcmp.eq.f32.partialorder %v78, 0.0
      %s87 = sshrl.u32 %s48, 3
      %s88 = sand.u32 %s48, 7
      %s89 = smul.addr %s87, 8
      %s90 = sadd.s32 %s88, %s89
      %s91 = scalar_lea.vmem [#allocation1], %s90
      %v92 = vld [vmem:[%s91] ss:$0 sm:$0xff]
      %v93 = vand.u32 2147483647, %v92
      %v94 = vmax.f32 %v93, 0.0
      %v95 = vand.u32 2147483647, %v85
      %v96 = vmax.f32 %v94, %v95
      %v97 = vrcp.pop %v96
      %v98 = vmul.f32 %v93, %v97
      %v99 = vmul.f32 %v98, %v98
      %v100 = vrcp.pop %v96
      %v101 = vmul.f32 0.0, %v100
      %v102 = vmul.f32 %v101, %v101
      %v103 = vadd.f32 %v99, %v102
      %v104 = vrcp.pop %v96
      %v105 = vmul.f32 %v95, %v104
      %v106 = vmul.f32 %v105, %v105
      %v107 = vadd.f32 %v103, %v106
      %vm108 = vcmp.eq.f32.partialorder %v96, 0.0
      %v109 = vrsqrt.pop %v107
      %v110 = vmul.f32 %v107, %v109
      %vm111 = vcmp.eq.f32.partialorder %v107, inf
      %v112 = vsel %vm111, %v107, %v110
      %vm113 = vcmp.eq.f32.partialorder %v107, 0.0
      %v114 = vand.u32 %v107, 2147483648
      %v115 = vsel %vm113, %v114, %v112
      %v116 = vmul.f32 %v96, %v115
      %v117 = vsel %vm108, 0.0, %v116
      %vm118 = vcmp.lt.f32.partialorder %v92, 0.0
      %v119 = vxor.u32 %v117, 2147483648
      %v120 = vsel %vm118, %v117, %v119
      %v121 = vsub.f32 %v120, %v92
      %v122 = vrcp.pop %v120
      %v123 = vmul.f32 %v121, %v122
      %v124 = vsel %vm86, %v92, %v120
      %v125 = vsel %vm86, 0.0, %v123
      %v126 = vsub.f32 %v92, %v124
      %s127 = smov [#allocation1]
      %v128 = vlaneseq
      %v129 = vshrl.u32 %v128, 7
      %v130 = vmov %v129
      %v131 = vld [vmem:[%s127] sm:$0xff]
      %v133 = vstv %s48
      %vm134 = vcmp.gt.s32.totalorder %v130, %v133
      %v135 = vsel %vm134, %v131, 0.0
      %v136 = vrcp.pop %v126
      %v137 = vmul.f32 %v135, %v136
      %v138 = vsel %vm86, 0.0, %v137
      %v139 = vstv %s48
      %v140 = vlaneseq
      %v141 = vand.u32 %v140, 127
      %vm142 = vcmp.eq.s32.totalorder %v141, %v139
      %v143 = vsel %vm142, %v138, 0.0
      %144 = vadd.xlane.f32.xlu0 %v143
      %v145 = vpop.xlane.xlu0 %144
      %146 = vst [vmem:[#allocation4] sm:$0xff] %v145
      %s147 = scalar_lea.vmem %s127, 8
      %v148 = vld [vmem:[%s147] sm:$0xff]
      %v149 = vadd.s32 %v130, 8
      %v150 = vstv %s48
      %vm151 = vcmp.gt.s32.totalorder %v149, %v150
      %vm152 = vcmp.lt.s32.totalorder %v149, 10
      %vm153 = vmand %vm151, %vm152
      %v154 = vsel %vm153, %v148, 0.0
      %v155 = vrcp.pop %v126
      %v156 = vmul.f32 %v154, %v155
      %v157 = vsel %vm86, 0.0, %v156
      %v158 = vstv %s48
      %v159 = vlaneseq
      %v160 = vand.u32 %v159, 127
      %vm161 = vcmp.eq.s32.totalorder %v160, %v158
      %v162 = vsel %vm161, %v157, 0.0
      %163 = vadd.xlane.f32.xlu0 %v162
      %v164 = vpop.xlane.xlu0 %163
      %s165 = scalar_lea.vmem [#allocation4], 8
      %166 = vst [vmem:[%s165] sm:$0xff] %v164
      %s167 = scalar_lea.vmem [#allocation4], %s48
      %168 = vst [vmem:[%s167] sm:$0x1] 1.0
      %v169 = vstv %s48
      %v170 = vlaneseq
      %v171 = vand.u32 %v170, 127
      %vm172 = vcmp.eq.s32.totalorder %v171, %v169
      %v173 = vsel %vm172, %v125, 0.0
      %174 = vadd.xlane.f32.xlu0 %v173
      %v175 = vpop.xlane.xlu0 %174
      %v176 = vstv %s48
      %v177 = vlaneseq
      %v178 = vand.u32 %v177, 127
      %vm179 = vcmp.eq.s32.totalorder %v178, %v176
      %v180 = vld [vmem:[#allocation2] ss:$0 sm:$0xff]
      %v181 = vsel %vm179, %v175, %v180
      %182 = vst [vmem:[#allocation2] sm:$0x1] %v181
      %s183 = smov [#allocation1]
      %s184 = smov [#allocation4]
      %v185 = vlaneseq
      %v186 = vshrl.u32 %v185, 7
      %v187 = vmov %v186
      %v189 = vld [vmem:[%s184] sm:$0xff]
      %v190 = vld [vmem:[%s183] sm:$0xff]
      %v191 = vmul.f32 %v189, %v190
      %v192 = vadd.s32 %v187, 8
      %s193 = scalar_lea.vmem %s184, 8
      %v194 = vld [vmem:[%s193] sm:$0xff]
      %s195 = scalar_lea.vmem %s183, 8
      %v196 = vld [vmem:[%s195] sm:$0xff]
      %v197 = vmul.f32 %v194, %v196
      %vm198 = vcmp.lt.s32.totalorder %v192, 10
      %v199 = vsel %vm198, %v197, 0.0
      %v200 = vadd.f32 %v191, %v199
      %v201 = vrot.slane %v200, 4
      %v202 = vadd.f32 %v200, %v201
      %v203 = vrot.slane %v202, 2
      %v204 = vadd.f32 %v202, %v203
      %v205 = vrot.slane %v204, 1
      %v206 = vadd.f32 %v204, %v205
      %s207 = smov %s183
      %s208 = smov %s184
      %v209 = vlaneseq
      %v210 = vshrl.u32 %v209, 7
      %v211 = vmov %v210
      %v212 = vmul.f32 %v206, %v175
      %v214 = vlaneseq
      %v215 = vand.u32 %v214, 127
      %v216 = vld [vmem:[%s208] sm:$0xff]
      %v217 = vmul.f32 %v216, %v212
      %v218 = vld [vmem:[%s207] sm:$0xff]
      %v219 = vstv %s48
      %vm220 = vcmp.gt.s32.totalorder %v215, %v219
      %v221 = vsub.f32 %v218, %v217
      %v222 = vsel %vm220, %v221, %v218
      %v223 = vstv %s48
      %v224 = vlaneseq
      %v225 = vand.u32 %v224, 127
      %vm226 = vcmp.eq.s32.totalorder %v225, %v223
      %v227 = vstv %s48
      %vm228 = vcmp.ge.s32.totalorder %v211, %v227
      %vm229 = vmand %vm226, %vm228
      %v230 = vsel %vm229, %v216, %v222
      %231 = vst [vmem:[%s207] sm:$0xff] %v230
      %v232 = vadd.s32 %v211, 8
      %v233 = vlaneseq
      %v234 = vand.u32 %v233, 127
      %s235 = scalar_lea.vmem %s208, 8
      %v236 = vld [vmem:[%s235] sm:$0xff]
      %v237 = vmul.f32 %v236, %v212
      %s238 = scalar_lea.vmem %s207, 8
      %v239 = vld [vmem:[%s238] sm:$0xff]
      %v240 = vstv %s48
      %vm241 = vcmp.gt.s32.totalorder %v234, %v240
      %v242 = vsub.f32 %v239, %v237
      %v243 = vsel %vm241, %v242, %v239
      %v244 = vstv %s48
      %v245 = vlaneseq
      %v246 = vand.u32 %v245, 127
      %vm247 = vcmp.eq.s32.totalorder %v246, %v244
      %v248 = vstv %s48
      %vm249 = vcmp.ge.s32.totalorder %v232, %v248
      %vm250 = vmand %vm247, %vm249
      %v251 = vsel %vm250, %v236, %v243
      %252 = vst [vmem:[%s238] sm:$0xff] %v251
      %s253 = scalar_lea.vmem %s207, %s48
      %v254 = vld [vmem:[%s253] ss:$0 sm:$0xff]
      %v255 = vstv %s48
      %v256 = vlaneseq
      %v257 = vand.u32 %v256, 127
      %vm258 = vcmp.eq.s32.totalorder %v257, %v255
      %v259 = vsel %vm258, %v124, %v254
      %260 = vst [vmem:[%s253] sm:$0x1] %v259
    $region40: #{custom-call.88} parent=1 // loop_footer
      %s52 = sadd.s32 1, %s48
    $region41: #{custom-call.88} parent=1 // loop_footer_branch
      %47 = sbr.rel target = $region37
    $region42: #{custom-call.88} parent=1 // loop_exit
      _
    %s262 = sshllo.u32 0, 1
    %v264 = vld [vmem:[#allocation2] sm:%s262]
    %s265 = sshllo.u32 0, 1
    %266 = vst [vmem:[#allocation3] sm:%s265] %v264
    // Predicated region
    $region43: #{custom-call.88} parent=1 // pred_check
      _
    $region44: #{custom-call.88} parent=1 // pred_check_branch
      %268 = sbr.rel (0) target = $region46
    $region45: #{custom-call.88} parent=1 // pred_region
      // Predicated region
      $region47: #{custom-call.88} parent=45 // pred_check
        _
      $region48: #{custom-call.88} parent=45 // pred_check_branch
        %270 = sbr.rel (0) target = $region50
      $region49: #{custom-call.88} parent=45 // pred_region
        // Predicated region
        $region62: #{custom-call.88} parent=49 // pred_check
          _
        $region63: #{custom-call.88} parent=49 // pred_check_branch
          %287 = sbr.rel (0) target = $region65
        $region64: #{custom-call.88} parent=49 // pred_region
          loop: start=0, step=1, limit=1
          $region66: #{custom-call.88} parent=64 // loop_pre_header
            _
          $region67: #{custom-call.88} parent=64 // loop_header
            %s289 = sphi 0, %s293
            %p290 = scmp.ge.s32.totalorder %s289, 1
            %s294 = sphi [#allocation1], [#allocation1]
            %s295 = sphi %s1, %s1
          $region68: #{custom-call.88} parent=64 // loop_header_branch
            %292 = sbr.rel (%p290) target = $region72
          $region69: #{custom-call.88} parent=64 // loop_body
            %v296 = vld [vmem:[%s294] sm:$0xff]
            %297 = vst [vmem:[%s295] sm:$0xff] %v296
            %v298 = vld [vmem:[%s294 + $0x8] sm:$0xff]
            %299 = vst [vmem:[%s295 + $0x8] sm:$0xff] %v298
          $region70: #{custom-call.88} parent=64 // loop_footer
            %s293 = sadd.s32 1, %s289
          $region71: #{custom-call.88} parent=64 // loop_footer_branch
            %288 = sbr.rel target = $region67
          $region72: #{custom-call.88} parent=64 // loop_exit
            _
        $region65: #{custom-call.88} parent=49 // pred_fallthru
          _
        // Predicated region
        $region73: #{custom-call.88} parent=49 // pred_check
          _
        $region74: #{custom-call.88} parent=49 // pred_check_branch
          %301 = sbr.rel target = $region76
        $region75: #{custom-call.88} parent=49 // pred_region
          _
        $region76: #{custom-call.88} parent=49 // pred_fallthru
          _
      $region50: #{custom-call.88} parent=45 // pred_fallthru
        _
      // Predicated region
      $region51: #{custom-call.88} parent=45 // pred_check
        _
      $region52: #{custom-call.88} parent=45 // pred_check_branch
        %272 = sbr.rel target = $region54
      $region53: #{custom-call.88} parent=45 // pred_region
        loop: start=0, step=1, limit=1
        $region55: #{custom-call.88} parent=53 // loop_pre_header
          _
        $region56: #{custom-call.88} parent=53 // loop_header
          %s275 = sphi 0, %s279
          %p276 = scmp.ge.s32.totalorder %s275, 1
          %s280 = sphi [#allocation1], [#allocation1]
          %s281 = sphi %s1, %s1
        $region57: #{custom-call.88} parent=53 // loop_header_branch
          %278 = sbr.rel (%p276) target = $region61
        $region58: #{custom-call.88} parent=53 // loop_body
          %v282 = vld [vmem:[%s280] sm:$0xff]
          %283 = vst [vmem:[%s281] sm:$0xff] %v282
          %v284 = vld [vmem:[%s280 + $0x8] sm:$0xff]
          %285 = vst [vmem:[%s281 + $0x8] sm:$0xff] %v284
        $region59: #{custom-call.88} parent=53 // loop_footer
          %s279 = sadd.s32 1, %s275
        $region60: #{custom-call.88} parent=53 // loop_footer_branch
          %274 = sbr.rel target = $region56
        $region61: #{custom-call.88} parent=53 // loop_exit
          _
      $region54: #{custom-call.88} parent=45 // pred_fallthru
        _
    $region46: #{custom-call.88} parent=1 // pred_fallthru
      _
    %302 = vnop
    // Predicated region
    $region77: #{custom-call.88} parent=1 // pred_check
      _
    $region78: #{custom-call.88} parent=1 // pred_check_branch
      %304 = sbr.rel (0) target = $region80
    $region79: #{custom-call.88} parent=1 // pred_region
      // Predicated region
      $region81: #{custom-call.88} parent=79 // pred_check
        _
      $region82: #{custom-call.88} parent=79 // pred_check_branch
        %306 = sbr.rel (0) target = $region84
      $region83: #{custom-call.88} parent=79 // pred_region
        // Predicated region
        $region85: #{custom-call.88} parent=83 // pred_check
          _
        $region86: #{custom-call.88} parent=83 // pred_check_branch
          %308 = sbr.rel target = $region88
        $region87: #{custom-call.88} parent=83 // pred_region
          // Predicated region
          $region100: #{custom-call.88} parent=87 // pred_check
            _
          $region101: #{custom-call.88} parent=87 // pred_check_branch
            %323 = sbr.rel (0) target = $region103
          $region102: #{custom-call.88} parent=87 // pred_region
            loop: start=0, step=1, limit=1
            $region104: #{custom-call.88} parent=102 // loop_pre_header
              _
            $region105: #{custom-call.88} parent=102 // loop_header
              %s326 = sphi 0, %s330
              %p327 = scmp.ge.s32.totalorder %s326, 1
              %s331 = sphi [#allocation3], [#allocation3]
              %s332 = sphi %s2, %s2
            $region106: #{custom-call.88} parent=102 // loop_header_branch
              %329 = sbr.rel (%p327) target = $region110
            $region107: #{custom-call.88} parent=102 // loop_body
              %v333 = vld [vmem:[%s331] sm:$0x1]
              %334 = vst [vmem:[%s332] sm:$0x1] %v333
            $region108: #{custom-call.88} parent=102 // loop_footer
              %s330 = sadd.s32 1, %s326
            $region109: #{custom-call.88} parent=102 // loop_footer_branch
              %325 = sbr.rel target = $region105
            $region110: #{custom-call.88} parent=102 // loop_exit
              _
          $region103: #{custom-call.88} parent=87 // pred_fallthru
            _
        $region88: #{custom-call.88} parent=83 // pred_fallthru
          _
        // Predicated region
        $region89: #{custom-call.88} parent=83 // pred_check
          _
        $region90: #{custom-call.88} parent=83 // pred_check_branch
          %310 = sbr.rel (0) target = $region92
        $region91: #{custom-call.88} parent=83 // pred_region
          loop: start=0, step=1, limit=1
          $region93: #{custom-call.88} parent=91 // loop_pre_header
            _
          $region94: #{custom-call.88} parent=91 // loop_header
            %s313 = sphi 0, %s317
            %p314 = scmp.ge.s32.totalorder %s313, 1
            %s318 = sphi [#allocation3], [#allocation3]
            %s319 = sphi %s2, %s2
          $region95: #{custom-call.88} parent=91 // loop_header_branch
            %316 = sbr.rel (%p314) target = $region99
          $region96: #{custom-call.88} parent=91 // loop_body
            %v320 = vld [vmem:[%s318] sm:$0x1]
            %321 = vst [vmem:[%s319] sm:$0x1] %v320
          $region97: #{custom-call.88} parent=91 // loop_footer
            %s317 = sadd.s32 1, %s313
          $region98: #{custom-call.88} parent=91 // loop_footer_branch
            %312 = sbr.rel target = $region94
          $region99: #{custom-call.88} parent=91 // loop_exit
            _
        $region92: #{custom-call.88} parent=83 // pred_fallthru
          _
      $region84: #{custom-call.88} parent=79 // pred_fallthru
        _
      %335 = vnop
    $region80: #{custom-call.88} parent=1 // pred_fallthru
      _
    // Predicated region
    $region111: #{custom-call.88} parent=1 // pred_check
      _
    $region112: #{custom-call.88} parent=1 // pred_check_branch
      %337 = sbr.rel (0) target = $region114
    $region113: #{custom-call.88} parent=1 // pred_region
      _
    $region114: #{custom-call.88} parent=1 // pred_fallthru
      _

// kernel: _matnet_forward.13
$region0: #{_matnet_forward.13}
  #allocation0 [shape = 'u32[]', space=smem, size = 0x4, offset = 0x4, fixed_abs, tag = 'smem constant byte address 0x4 - core index']
  #allocation1 [shape = 'u32[144,128]{1,0:T(1,128)}', space=vmem, size = 0x12000, scoped, tag = 'internal scratch']
  #allocation2 [shape = 'f32[1]{0:T(128)S(6)}', space=smem, size = 0x200, scoped, tag = 'scoped memory for _matnet_forward.13']
  %s0 = inlined_call_operand.<no memory space> [shape: f32[1], index: 0, kind: input, shape index: {}]
  %s1 = inlined_call_operand.vmem [shape: f32[128,128], index: 1, kind: input, shape index: {}]
  %s2 = inlined_call_operand.vmem [shape: f32[128,5], index: 2, kind: input, shape index: {}]
  %s3 = inlined_call_operand.vmem [shape: f32[128,5], index: 3, kind: output, shape index: {}]
  %s4 = sld [smem:[#allocation0]]
  $region22: #{_matnet_forward.13} parent=0
    _
  %s6 = ssub.s32 1, %s4
  %s7 = scalar_select 0, %s6, %s4
  %8 = sst [smem:[#allocation2]] %s0
  // Predicated region
  $region2: #{_matnet_forward.13} parent=0 // pred_check
    _
  $region3: #{_matnet_forward.13} parent=0 // pred_check_branch
    %10 = sbr.rel (0) target = $region5
  $region4: #{_matnet_forward.13} parent=0 // pred_region
    _
  $region5: #{_matnet_forward.13} parent=0 // pred_fallthru
    _
  // Predicated region
  $region6: #{_matnet_forward.13} parent=0 // pred_check
    _
  $region7: #{_matnet_forward.13} parent=0 // pred_check_branch
    %12 = sbr.rel (0) target = $region9
  $region8: #{_matnet_forward.13} parent=0 // pred_region
    _
  $region9: #{_matnet_forward.13} parent=0 // pred_fallthru
    _
  // Predicated region
  $region10: #{_matnet_forward.13} parent=0 // pred_check
    _
  $region11: #{_matnet_forward.13} parent=0 // pred_check_branch
    %14 = sbr.rel (0) target = $region13
  $region12: #{_matnet_forward.13} parent=0 // pred_region
    _
  $region13: #{_matnet_forward.13} parent=0 // pred_fallthru
    _
  %v15 = vld [vmem:[%s1] sm:$0xff]
  %v16 = vld [vmem:[%s1 + $0x8] sm:$0xff]
  %v17 = vld [vmem:[%s1 + $0x10] sm:$0xff]
  %v18 = vld [vmem:[%s1 + $0x18] sm:$0xff]
  %v19 = vld [vmem:[%s1 + $0x20] sm:$0xff]
  %v20 = vld [vmem:[%s1 + $0x28] sm:$0xff]
  %v21 = vld [vmem:[%s1 + $0x30] sm:$0xff]
  %v22 = vld [vmem:[%s1 + $0x38] sm:$0xff]
  %v23 = vld [vmem:[%s1 + $0x40] sm:$0xff]
  %v24 = vld [vmem:[%s1 + $0x48] sm:$0xff]
  %v25 = vld [vmem:[%s1 + $0x50] sm:$0xff]
  %v26 = vld [vmem:[%s1 + $0x58] sm:$0xff]
  %v27 = vld [vmem:[%s1 + $0x60] sm:$0xff]
  %v28 = vld [vmem:[%s1 + $0x68] sm:$0xff]
  %v29 = vld [vmem:[%s1 + $0x70] sm:$0xff]
  %v30 = vld [vmem:[%s1 + $0x78] sm:$0xff]
  %s31 = sld [smem:[#allocation2]]
  %s32 = ssub.f32 0.0, %s31
  %v33 = vstv %s32
  %v34 = vmax.f32 %v15, %v33
  %v35 = vmax.f32 %v16, %v33
  %v36 = vmax.f32 %v17, %v33
  %v37 = vmax.f32 %v18, %v33
  %v38 = vmax.f32 %v19, %v33
  %v39 = vmax.f32 %v20, %v33
  %v40 = vmax.f32 %v21, %v33
  %v41 = vmax.f32 %v22, %v33
  %v42 = vmax.f32 %v23, %v33
  %v43 = vmax.f32 %v24, %v33
  %v44 = vmax.f32 %v25, %v33
  %v45 = vmax.f32 %v26, %v33
  %v46 = vmax.f32 %v27, %v33
  %v47 = vmax.f32 %v28, %v33
  %v48 = vmax.f32 %v29, %v33
  %v49 = vmax.f32 %v30, %v33
  %v50 = vstv %s31
  %v51 = vmin.f32 %v34, %v50
  %v52 = vmin.f32 %v35, %v50
  %v53 = vmin.f32 %v36, %v50
  %v54 = vmin.f32 %v37, %v50
  %v55 = vmin.f32 %v38, %v50
  %v56 = vmin.f32 %v39, %v50
  %v57 = vmin.f32 %v40, %v50
  %v58 = vmin.f32 %v41, %v50
  %v59 = vmin.f32 %v42, %v50
  %v60 = vmin.f32 %v43, %v50
  %v61 = vmin.f32 %v44, %v50
  %v62 = vmin.f32 %v45, %v50
  %v63 = vmin.f32 %v46, %v50
  %v64 = vmin.f32 %v47, %v50
  %v65 = vmin.f32 %v48, %v50
  %v66 = vmin.f32 %v49, %v50
  %v67 = vld [vmem:[%s2] sm:$0xff]
  %v68 = vld [vmem:[%s2 + $0x8] sm:$0xff]
  %v69 = vld [vmem:[%s2 + $0x10] sm:$0xff]
  %v70 = vld [vmem:[%s2 + $0x18] sm:$0xff]
  %v71 = vld [vmem:[%s2 + $0x20] sm:$0xff]
  %v72 = vld [vmem:[%s2 + $0x28] sm:$0xff]
  %v73 = vld [vmem:[%s2 + $0x30] sm:$0xff]
  %v74 = vld [vmem:[%s2 + $0x38] sm:$0xff]
  %v75 = vld [vmem:[%s2 + $0x40] sm:$0xff]
  %v76 = vld [vmem:[%s2 + $0x48] sm:$0xff]
  %v77 = vld [vmem:[%s2 + $0x50] sm:$0xff]
  %v78 = vld [vmem:[%s2 + $0x58] sm:$0xff]
  %v79 = vld [vmem:[%s2 + $0x60] sm:$0xff]
  %v80 = vld [vmem:[%s2 + $0x68] sm:$0xff]
  %v81 = vld [vmem:[%s2 + $0x70] sm:$0xff]
  %v82 = vld [vmem:[%s2 + $0x78] sm:$0xff]
  %83 = vxpose.xlu0.b32.start [1/16] %v51, 128
  %84 = vxpose.xlu0.b32.cont [2/16] %v52, 128
  %85 = vxpose.xlu0.b32.cont [3/16] %v53, 128
  %86 = vxpose.xlu0.b32.cont [4/16] %v54, 128
  %87 = vxpose.xlu0.b32.cont [5/16] %v55, 128
  %88 = vxpose.xlu0.b32.cont [6/16] %v56, 128
  %89 = vxpose.xlu0.b32.cont [7/16] %v57, 128
  %90 = vxpose.xlu0.b32.cont [8/16] %v58, 128
  %91 = vxpose.xlu0.b32.cont [9/16] %v59, 128
  %92 = vxpose.xlu0.b32.cont [10/16] %v60, 128
  %93 = vxpose.xlu0.b32.cont [11/16] %v61, 128
  %94 = vxpose.xlu0.b32.cont [12/16] %v62, 128
  %95 = vxpose.xlu0.b32.cont [13/16] %v63, 128
  %96 = vxpose.xlu0.b32.cont [14/16] %v64, 128
  %97 = vxpose.xlu0.b32.cont [15/16] %v65, 128
  %98 = vxpose.xlu0.b32.end [16/16] %v66, 128
  %v99 = vpop.trf.xlu0
  %v100 = vpop.trf.xlu0
  %v101 = vpop.trf.xlu0
  %v102 = vpop.trf.xlu0
  %v103 = vpop.trf.xlu0
  %v104 = vpop.trf.xlu0
  %v105 = vpop.trf.xlu0
  %v106 = vpop.trf.xlu0
  %v107 = vpop.trf.xlu0
  %v108 = vpop.trf.xlu0
  %v109 = vpop.trf.xlu0
  %v110 = vpop.trf.xlu0
  %v111 = vpop.trf.xlu0
  %v112 = vpop.trf.xlu0
  %v113 = vpop.trf.xlu0
  %v114 = vpop.trf.xlu0
  %115 = vmatprep.subr.mxu0 0.0
  %116 = vmatpush1.msra.mxu0 %v67
  %117 = vmatprep.subr.mxu0 0.0
  %118 = vmatpush1.msra.mxu0 %v68
  %119 = vmatprep.subr.mxu0 0.0
  %120 = vmatpush1.msra.mxu0 %v69
  %121 = vmatprep.subr.mxu0 0.0
  %122 = vmatpush1.msra.mxu0 %v70
  %123 = vmatprep.subr.mxu0 0.0
  %124 = vmatpush1.msra.mxu0 %v71
  %125 = vmatprep.subr.mxu0 0.0
  %126 = vmatpush1.msra.mxu0 %v72
  %127 = vmatprep.subr.mxu0 0.0
  %128 = vmatpush1.msra.mxu0 %v73
  %129 = vmatprep.subr.mxu0 0.0
  %130 = vmatpush1.msra.mxu0 %v74
  %131 = vmatprep.subr.mxu0 0.0
  %132 = vmatpush1.msra.mxu0 %v75
  %133 = vmatprep.subr.mxu0 0.0
  %134 = vmatpush1.msra.mxu0 %v76
  %135 = vmatprep.subr.mxu0 0.0
  %136 = vmatpush1.msra.mxu0 %v77
  %137 = vmatprep.subr.mxu0 0.0
  %138 = vmatpush1.msra.mxu0 %v78
  %139 = vmatprep.subr.mxu0 0.0
  %140 = vmatpush1.msra.mxu0 %v79
  %141 = vmatprep.subr.mxu0 0.0
  %142 = vmatpush1.msra.mxu0 %v80
  %143 = vmatprep.subr.mxu0 0.0
  %144 = vmatpush1.msra.mxu0 %v81
  %145 = vmatprep.subr.mxu0 0.0
  %146 = vmatpush1.msra.mxu0 %v82
  %147 = vmatprep.subr.mxu0 0.0
  %148 = vmatpush1.msra.mxu0 0.0
  %149 = vmatprep.subr.mxu0 0.0
  %150 = vmatpush1.msra.mxu0 0.0
  %151 = vmatprep.subr.mxu0 0.0
  %152 = vmatpush1.msra.mxu0 0.0
  %153 = vmatprep.subr.mxu0 0.0
  %154 = vmatpush1.msra.mxu0 0.0
  %155 = vmatprep.subr.mxu0 0.0
  %156 = vmatpush1.msra.mxu0 0.0
  %157 = vmatprep.subr.mxu0 0.0
  %158 = vmatpush1.msra.mxu0 0.0
  %159 = vmatprep.subr.mxu0 0.0
  %160 = vmatpush1.msra.mxu0 0.0
  %161 = vmatprep.subr.mxu0 0.0
  %162 = vmatpush1.msra.mxu0 0.0
  %163 = vmatprep.subr.mxu0 0.0
  %164 = vmatpush1.msra.mxu0 0.0
  %165 = vmatprep.subr.mxu0 0.0
  %166 = vmatpush1.msra.mxu0 0.0
  %167 = vmatprep.subr.mxu0 0.0
  %168 = vmatpush1.msra.mxu0 0.0
  %169 = vmatprep.subr.mxu0 0.0
  %170 = vmatpush1.msra.mxu0 0.0
  %171 = vmatprep.subr.mxu0 0.0
  %172 = vmatpush1.msra.mxu0 0.0
  %173 = vmatprep.subr.mxu0 0.0
  %174 = vmatpush1.msra.mxu0 0.0
  %175 = vmatprep.subr.mxu0 0.0
  %176 = vmatpush1.msra.mxu0 0.0
  %177 = vmatprep.subr.mxu0 0.0
  %178 = vmatpush1.msra.mxu0 0.0
  %179 = vmatprep.mubr.f32.mxu0 0.0
  %180 = vmatmul.mubr.f32.gmra.mrb[0].mxu0 %v99
  %v181 = vpop.f32.mrb[0].mxu0
  %v182 = vadd.f32 0.0, %v181
  %v183 = vpop.f32.mrb[0].mxu0
  %184 = vmatprep.mubr.f32.mxu0 0.0
  %185 = vmatmul.mubr.f32.gmra.mrb[0].mxu0 %v100
  %v186 = vpop.f32.mrb[0].mxu0
  %v187 = vadd.f32 0.0, %v186
  %v188 = vpop.f32.mrb[0].mxu0
  %189 = vmatprep.mubr.f32.mxu0 0.0
  %190 = vmatmul.mubr.f32.gmra.mrb[0].mxu0 %v101
  %v191 = vpop.f32.mrb[0].mxu0
  %v192 = vadd.f32 0.0, %v191
  %v193 = vpop.f32.mrb[0].mxu0
  %194 = vmatprep.mubr.f32.mxu0 0.0
  %195 = vmatmul.mubr.f32.gmra.mrb[0].mxu0 %v102
  %v196 = vpop.f32.mrb[0].mxu0
  %v197 = vadd.f32 0.0, %v196
  %v198 = vpop.f32.mrb[0].mxu0
  %199 = vmatprep.mubr.f32.mxu0 0.0
  %200 = vmatmul.mubr.f32.gmra.mrb[0].mxu0 %v103
  %v201 = vpop.f32.mrb[0].mxu0
  %v202 = vadd.f32 0.0, %v201
  %v203 = vpop.f32.mrb[0].mxu0
  %204 = vmatprep.mubr.f32.mxu0 0.0
  %205 = vmatmul.mubr.f32.gmra.mrb[0].mxu0 %v104
  %v206 = vpop.f32.mrb[0].mxu0
  %v207 = vadd.f32 0.0, %v206
  %v208 = vpop.f32.mrb[0].mxu0
  %209 = vmatprep.mubr.f32.mxu0 0.0
  %210 = vmatmul.mubr.f32.gmra.mrb[0].mxu0 %v105
  %v211 = vpop.f32.mrb[0].mxu0
  %v212 = vadd.f32 0.0, %v211
  %v213 = vpop.f32.mrb[0].mxu0
  %214 = vmatprep.mubr.f32.mxu0 0.0
  %215 = vmatmul.mubr.f32.gmra.mrb[0].mxu0 %v106
  %v216 = vpop.f32.mrb[0].mxu0
  %v217 = vadd.f32 0.0, %v216
  %v218 = vpop.f32.mrb[0].mxu0
  %219 = vmatprep.mubr.f32.mxu0 0.0
  %220 = vmatmul.mubr.f32.gmra.mrb[0].mxu0 %v107
  %v221 = vpop.f32.mrb[0].mxu0
  %v222 = vadd.f32 0.0, %v221
  %v223 = vpop.f32.mrb[0].mxu0
  %224 = vmatprep.mubr.f32.mxu0 0.0
  %225 = vmatmul.mubr.f32.gmra.mrb[0].mxu0 %v108
  %v226 = vpop.f32.mrb[0].mxu0
  %v227 = vadd.f32 0.0, %v226
  %v228 = vpop.f32.mrb[0].mxu0
  %229 = vmatprep.mubr.f32.mxu0 0.0
  %230 = vmatmul.mubr.f32.gmra.mrb[0].mxu0 %v109
  %v231 = vpop.f32.mrb[0].mxu0
  %v232 = vadd.f32 0.0, %v231
  %v233 = vpop.f32.mrb[0].mxu0
  %234 = vmatprep.mubr.f32.mxu0 0.0
  %235 = vmatmul.mubr.f32.gmra.mrb[0].mxu0 %v110
  %v236 = vpop.f32.mrb[0].mxu0
  %v237 = vadd.f32 0.0, %v236
  %v238 = vpop.f32.mrb[0].mxu0
  %239 = vmatprep.mubr.f32.mxu0 0.0
  %240 = vmatmul.mubr.f32.gmra.mrb[0].mxu0 %v111
  %v241 = vpop.f32.mrb[0].mxu0
  %v242 = vadd.f32 0.0, %v241
  %v243 = vpop.f32.mrb[0].mxu0
  %244 = vmatprep.mubr.f32.mxu0 0.0
  %245 = vmatmul.mubr.f32.gmra.mrb[0].mxu0 %v112
  %v246 = vpop.f32.mrb[0].mxu0
  %v247 = vadd.f32 0.0, %v246
  %v248 = vpop.f32.mrb[0].mxu0
  %249 = vmatprep.mubr.f32.mxu0 0.0
  %250 = vmatmul.mubr.f32.gmra.mrb[0].mxu0 %v113
  %v251 = vpop.f32.mrb[0].mxu0
  %v252 = vadd.f32 0.0, %v251
  %v253 = vpop.f32.mrb[0].mxu0
  %254 = vmatprep.mubr.f32.mxu0 0.0
  %255 = vmatmul.mubr.f32.gmra.mrb[0].mxu0 %v114
  %v256 = vpop.f32.mrb[0].mxu0
  %v257 = vadd.f32 0.0, %v256
  %v258 = vpop.f32.mrb[0].mxu0
  %259 = vdwg.mxu0
  %vm260 = vcmask 39936
  %261 = vst.msk [vmem:[%s3] sm:$0xff] %vm260, %v182
  %262 = vst.msk [vmem:[%s3 + $0x8] sm:$0xff] %vm260, %v187
  %263 = vst.msk [vmem:[%s3 + $0x10] sm:$0xff] %vm260, %v192
  %264 = vst.msk [vmem:[%s3 + $0x18] sm:$0xff] %vm260, %v197
  %265 = vst.msk [vmem:[%s3 + $0x20] sm:$0xff] %vm260, %v202
  %266 = vst.msk [vmem:[%s3 + $0x28] sm:$0xff] %vm260, %v207
  %267 = vst.msk [vmem:[%s3 + $0x30] sm:$0xff] %vm260, %v212
  %268 = vst.msk [vmem:[%s3 + $0x38] sm:$0xff] %vm260, %v217
  %269 = vst.msk [vmem:[%s3 + $0x40] sm:$0xff] %vm260, %v222
  %270 = vst.msk [vmem:[%s3 + $0x48] sm:$0xff] %vm260, %v227
  %271 = vst.msk [vmem:[%s3 + $0x50] sm:$0xff] %vm260, %v232
  %272 = vst.msk [vmem:[%s3 + $0x58] sm:$0xff] %vm260, %v237
  %273 = vst.msk [vmem:[%s3 + $0x60] sm:$0xff] %vm260, %v242
  %274 = vst.msk [vmem:[%s3 + $0x68] sm:$0xff] %vm260, %v247
  %275 = vst.msk [vmem:[%s3 + $0x70] sm:$0xff] %vm260, %v252
  %276 = vst.msk [vmem:[%s3 + $0x78] sm:$0xff] %vm260, %v257
  // Predicated region
  $region14: #{_matnet_forward.13} parent=0 // pred_check
    _
  $region15: #{_matnet_forward.13} parent=0 // pred_check_branch
    %278 = sbr.rel (0) target = $region17
  $region16: #{_matnet_forward.13} parent=0 // pred_region
    _
  $region17: #{_matnet_forward.13} parent=0 // pred_fallthru
    _
  // Predicated region
  $region18: #{_matnet_forward.13} parent=0 // pred_check
    _
  $region19: #{_matnet_forward.13} parent=0 // pred_check_branch
    %280 = sbr.rel (0) target = $region21
  $region20: #{_matnet_forward.13} parent=0 // pred_region
    _
  $region21: #{_matnet_forward.13} parent=0 // pred_fallthru
    _

// kernel: custom-call.86
$region0: #{custom-call.86}
  %s0 = inlined_call_operand.vmem [shape: f32[5,5], index: 0, kind: input, shape index: {}]
  %s1 = inlined_call_operand.vmem [shape: f32[5,5], index: 1, kind: output, shape index: {}]
  $region1: #{custom-call.86} parent=0
    #allocation0 [shape = 'u8[4096]{0}', space=vmem, size = 0x1000, scoped, tag = 'operand span for operand 0']
    #allocation1 [shape = 'u8[4096]{0}', space=vmem, size = 0x1000, scoped, tag = 'operand span for operand 1']
    // Predicated region
    $region2: #{custom-call.86} parent=1 // pred_check
      _
    $region3: #{custom-call.86} parent=1 // pred_check_branch
      %3 = sbr.rel (0) target = $region5
    $region4: #{custom-call.86} parent=1 // pred_region
      // Predicated region
      $region6: #{custom-call.86} parent=4 // pred_check
        _
      $region7: #{custom-call.86} parent=4 // pred_check_branch
        %5 = sbr.rel (0) target = $region9
      $region8: #{custom-call.86} parent=4 // pred_region
        // Predicated region
        $region21: #{custom-call.86} parent=8 // pred_check
          _
        $region22: #{custom-call.86} parent=8 // pred_check_branch
          %20 = sbr.rel (0) target = $region24
        $region23: #{custom-call.86} parent=8 // pred_region
          loop: start=0, step=1, limit=1
          $region25: #{custom-call.86} parent=23 // loop_pre_header
            _
          $region26: #{custom-call.86} parent=23 // loop_header
            %s22 = sphi 0, %s26
            %p23 = scmp.ge.s32.totalorder %s22, 1
            %s27 = sphi %s0, %s0
            %s28 = sphi [#allocation0], [#allocation0]
          $region27: #{custom-call.86} parent=23 // loop_header_branch
            %25 = sbr.rel (%p23) target = $region31
          $region28: #{custom-call.86} parent=23 // loop_body
            %v29 = vld [vmem:[%s27] sm:$0xff]
            %30 = vst [vmem:[%s28] sm:$0xff] %v29
          $region29: #{custom-call.86} parent=23 // loop_footer
            %s26 = sadd.s32 1, %s22
          $region30: #{custom-call.86} parent=23 // loop_footer_branch
            %21 = sbr.rel target = $region26
          $region31: #{custom-call.86} parent=23 // loop_exit
            _
        $region24: #{custom-call.86} parent=8 // pred_fallthru
          _
        // Predicated region
        $region32: #{custom-call.86} parent=8 // pred_check
          _
        $region33: #{custom-call.86} parent=8 // pred_check_branch
          %32 = sbr.rel target = $region35
        $region34: #{custom-call.86} parent=8 // pred_region
          _
        $region35: #{custom-call.86} parent=8 // pred_fallthru
          _
      $region9: #{custom-call.86} parent=4 // pred_fallthru
        _
      // Predicated region
      $region10: #{custom-call.86} parent=4 // pred_check
        _
      $region11: #{custom-call.86} parent=4 // pred_check_branch
        %7 = sbr.rel target = $region13
      $region12: #{custom-call.86} parent=4 // pred_region
        loop: start=0, step=1, limit=1
        $region14: #{custom-call.86} parent=12 // loop_pre_header
          _
        $region15: #{custom-call.86} parent=12 // loop_header
          %s10 = sphi 0, %s14
          %p11 = scmp.ge.s32.totalorder %s10, 1
          %s15 = sphi %s0, %s0
          %s16 = sphi [#allocation0], [#allocation0]
        $region16: #{custom-call.86} parent=12 // loop_header_branch
          %13 = sbr.rel (%p11) target = $region20
        $region17: #{custom-call.86} parent=12 // loop_body
          %v17 = vld [vmem:[%s15] sm:$0xff]
          %18 = vst [vmem:[%s16] sm:$0xff] %v17
        $region18: #{custom-call.86} parent=12 // loop_footer
          %s14 = sadd.s32 1, %s10
        $region19: #{custom-call.86} parent=12 // loop_footer_branch
          %9 = sbr.rel target = $region15
        $region20: #{custom-call.86} parent=12 // loop_exit
          _
      $region13: #{custom-call.86} parent=4 // pred_fallthru
        _
    $region5: #{custom-call.86} parent=1 // pred_fallthru
      _
    %33 = vnop
    %34 = vst [vmem:[#allocation1] sm:$0xff] 0.0
    %vm35 = vcmask 7168
    %v36 = vld [vmem:[#allocation1] ss:$0 sm:$0xff]
    %v37 = vld [vmem:[#allocation0] ss:$0 sm:$0xff]
    %v38 = vmul.f32 %v36, %v36
    %39 = vadd.xlane.f32.xlu0 %v38
    %v40 = vpop.xlane.xlu0 %39
    %v41 = vsub.f32 %v37, %v40
    %v42 = vrsqrt.pop %v41
    %v43 = vld [vmem:[#allocation0] sm:$0xff]
    %v44 = vld [vmem:[#allocation1] sm:$0xff]
    %v45 = vmul.f32 %v44, %v36
    %46 = vadd.xlane.f32.xlu0 %v45
    %v47 = vpop.xlane.xlu0 %46
    %v48 = vsub.f32 %v43, %v47
    %v49 = vmul.f32 %v48, %v42
    %v50 = vsel %vm35, %v49, 0.0
    %v51 = vadd.f32 %v44, %v50
    %52 = vst [vmem:[#allocation1] sm:$0xff] %v51
    %vm53 = vcmask 15368
    %s54 = scalar_lea.vmem [#allocation1], 1
    %v55 = vld [vmem:[%s54] ss:$0 sm:$0xff]
    %s56 = scalar_lea.vmem [#allocation0], 1
    %v57 = vld [vmem:[%s56] ss:$0 sm:$0xff]
    %v58 = vmul.f32 %v55, %v55
    %59 = vadd.xlane.f32.xlu0 %v58
    %v60 = vpop.xlane.xlu0 %59
    %v61 = vsub.f32 %v57, %v60
    %v62 = vrsqrt.pop %v61
    %v63 = vld [vmem:[#allocation0] sm:$0xff]
    %v64 = vld [vmem:[#allocation1] sm:$0xff]
    %v65 = vmul.f32 %v64, %v55
    %66 = vadd.xlane.f32.xlu0 %v65
    %v67 = vpop.xlane.xlu0 %66
    %v68 = vsub.f32 %v63, %v67
    %v69 = vmul.f32 %v68, %v62
    %vm70 = vcmask 1047553
    %vm71 = vmand %vm53, %vm70
    %v72 = vsel %vm71, %v69, 0.0
    %v73 = vadd.f32 %v64, %v72
    %74 = vst [vmem:[#allocation1] sm:$0xff] %v73
    %vm75 = vcmask 23568
    %s76 = scalar_lea.vmem [#allocation1], 2
    %v77 = vld [vmem:[%s76] ss:$0 sm:$0xff]
    %s78 = scalar_lea.vmem [#allocation0], 2
    %v79 = vld [vmem:[%s78] ss:$0 sm:$0xff]
    %v80 = vmul.f32 %v77, %v77
    %81 = vadd.xlane.f32.xlu0 %v80
    %v82 = vpop.xlane.xlu0 %81
    %v83 = vsub.f32 %v79, %v82
    %v84 = vrsqrt.pop %v83
    %v85 = vld [vmem:[#allocation0] sm:$0xff]
    %v86 = vld [vmem:[#allocation1] sm:$0xff]
    %v87 = vmul.f32 %v86, %v77
    %88 = vadd.xlane.f32.xlu0 %v87
    %v89 = vpop.xlane.xlu0 %88
    %v90 = vsub.f32 %v85, %v89
    %v91 = vmul.f32 %v90, %v84
    %vm92 = vcmask 1047554
    %vm93 = vmand %vm75, %vm92
    %v94 = vsel %vm93, %v91, 0.0
    %v95 = vadd.f32 %v86, %v94
    %96 = vst [vmem:[#allocation1] sm:$0xff] %v95
    %vm97 = vcmask 31768
    %s98 = scalar_lea.vmem [#allocation1], 3
    %v99 = vld [vmem:[%s98] ss:$0 sm:$0xff]
    %s100 = scalar_lea.vmem [#allocation0], 3
    %v101 = vld [vmem:[%s100] ss:$0 sm:$0xff]
    %v102 = vmul.f32 %v99, %v99
    %103 = vadd.xlane.f32.xlu0 %v102
    %v104 = vpop.xlane.xlu0 %103
    %v105 = vsub.f32 %v101, %v104
    %v106 = vrsqrt.pop %v105
    %v107 = vld [vmem:[#allocation0] sm:$0xff]
    %v108 = vld [vmem:[#allocation1] sm:$0xff]
    %v109 = vmul.f32 %v108, %v99
    %110 = vadd.xlane.f32.xlu0 %v109
    %v111 = vpop.xlane.xlu0 %110
    %v112 = vsub.f32 %v107, %v111
    %v113 = vmul.f32 %v112, %v106
    %vm114 = vcmask 1047555
    %vm115 = vmand %vm97, %vm114
    %v116 = vsel %vm115, %v113, 0.0
    %v117 = vadd.f32 %v108, %v116
    %118 = vst [vmem:[#allocation1] sm:$0xff] %v117
    %vm119 = vcmask 39968
    %s120 = scalar_lea.vmem [#allocation1], 4
    %v121 = vld [vmem:[%s120] ss:$0 sm:$0xff]
    %s122 = scalar_lea.vmem [#allocation0], 4
    %v123 = vld [vmem:[%s122] ss:$0 sm:$0xff]
    %v124 = vmul.f32 %v121, %v121
    %125 = vadd.xlane.f32.xlu0 %v124
    %v126 = vpop.xlane.xlu0 %125
    %v127 = vsub.f32 %v123, %v126
    %v128 = vrsqrt.pop %v127
    %v129 = vld [vmem:[#allocation0] sm:$0xff]
    %v130 = vld [vmem:[#allocation1] sm:$0xff]
    %v131 = vmul.f32 %v130, %v121
    %132 = vadd.xlane.f32.xlu0 %v131
    %v133 = vpop.xlane.xlu0 %132
    %v134 = vsub.f32 %v129, %v133
    %v135 = vmul.f32 %v134, %v128
    %vm136 = vcmask 1047556
    %vm137 = vmand %vm119, %vm136
    %v138 = vsel %vm137, %v135, 0.0
    %v139 = vadd.f32 %v130, %v138
    %140 = vst [vmem:[#allocation1] sm:$0xff] %v139
    // Predicated region
    $region36: #{custom-call.86} parent=1 // pred_check
      _
    $region37: #{custom-call.86} parent=1 // pred_check_branch
      %142 = sbr.rel (0) target = $region39
    $region38: #{custom-call.86} parent=1 // pred_region
      // Predicated region
      $region40: #{custom-call.86} parent=38 // pred_check
        _
      $region41: #{custom-call.86} parent=38 // pred_check_branch
        %144 = sbr.rel (0) target = $region43
      $region42: #{custom-call.86} parent=38 // pred_region
        // Predicated region
        $region55: #{custom-call.86} parent=42 // pred_check
          _
        $region56: #{custom-call.86} parent=42 // pred_check_branch
          %159 = sbr.rel (0) target = $region58
        $region57: #{custom-call.86} parent=42 // pred_region
          loop: start=0, step=1, limit=1
          $region59: #{custom-call.86} parent=57 // loop_pre_header
            _
          $region60: #{custom-call.86} parent=57 // loop_header
            %s161 = sphi 0, %s165
            %p162 = scmp.ge.s32.totalorder %s161, 1
            %s166 = sphi [#allocation1], [#allocation1]
            %s167 = sphi %s1, %s1
          $region61: #{custom-call.86} parent=57 // loop_header_branch
            %164 = sbr.rel (%p162) target = $region65
          $region62: #{custom-call.86} parent=57 // loop_body
            %v168 = vld [vmem:[%s166] sm:$0xff]
            %169 = vst [vmem:[%s167] sm:$0xff] %v168
          $region63: #{custom-call.86} parent=57 // loop_footer
            %s165 = sadd.s32 1, %s161
          $region64: #{custom-call.86} parent=57 // loop_footer_branch
            %160 = sbr.rel target = $region60
          $region65: #{custom-call.86} parent=57 // loop_exit
            _
        $region58: #{custom-call.86} parent=42 // pred_fallthru
          _
        // Predicated region
        $region66: #{custom-call.86} parent=42 // pred_check
          _
        $region67: #{custom-call.86} parent=42 // pred_check_branch
          %171 = sbr.rel target = $region69
        $region68: #{custom-call.86} parent=42 // pred_region
          _
        $region69: #{custom-call.86} parent=42 // pred_fallthru
          _
      $region43: #{custom-call.86} parent=38 // pred_fallthru
        _
      // Predicated region
      $region44: #{custom-call.86} parent=38 // pred_check
        _
      $region45: #{custom-call.86} parent=38 // pred_check_branch
        %146 = sbr.rel target = $region47
      $region46: #{custom-call.86} parent=38 // pred_region
        loop: start=0, step=1, limit=1
        $region48: #{custom-call.86} parent=46 // loop_pre_header
          _
        $region49: #{custom-call.86} parent=46 // loop_header
          %s149 = sphi 0, %s153
          %p150 = scmp.ge.s32.totalorder %s149, 1
          %s154 = sphi [#allocation1], [#allocation1]
          %s155 = sphi %s1, %s1
        $region50: #{custom-call.86} parent=46 // loop_header_branch
          %152 = sbr.rel (%p150) target = $region54
        $region51: #{custom-call.86} parent=46 // loop_body
          %v156 = vld [vmem:[%s154] sm:$0xff]
          %157 = vst [vmem:[%s155] sm:$0xff] %v156
        $region52: #{custom-call.86} parent=46 // loop_footer
          %s153 = sadd.s32 1, %s149
        $region53: #{custom-call.86} parent=46 // loop_footer_branch
          %148 = sbr.rel target = $region49
        $region54: #{custom-call.86} parent=46 // loop_exit
          _
      $region47: #{custom-call.86} parent=38 // pred_fallthru
        _
    $region39: #{custom-call.86} parent=1 // pred_fallthru
      _
    %172 = vnop

// kernel: custom-call.87
$region0: #{custom-call.87}
  %s0 = inlined_call_operand.vmem [shape: f32[1,5,5], index: 0, kind: input, shape index: {}]
  %s1 = inlined_call_operand.vmem [shape: f32[1,5,5], index: 1, kind: output, shape index: {}]
  $region1: #{custom-call.87} parent=0
    #allocation0 [shape = 'u8[4096]{0}', space=vmem, size = 0x1000, scoped, tag = 'operand span for operand 0']
    #allocation1 [shape = 'u8[4096]{0}', space=vmem, size = 0x1000, scoped, tag = 'operand span for operand 1']
    #allocation2 [shape = 'f32[5,5]{1,0}', space=vmem, size = 0x1000, scoped, tag = 'rescaled input a']
    // Predicated region
    $region2: #{custom-call.87} parent=1 // pred_check
      _
    $region3: #{custom-call.87} parent=1 // pred_check_branch
      %3 = sbr.rel (0) target = $region5
    $region4: #{custom-call.87} parent=1 // pred_region
      // Predicated region
      $region6: #{custom-call.87} parent=4 // pred_check
        _
      $region7: #{custom-call.87} parent=4 // pred_check_branch
        %5 = sbr.rel (0) target = $region9
      $region8: #{custom-call.87} parent=4 // pred_region
        // Predicated region
        $region21: #{custom-call.87} parent=8 // pred_check
          _
        $region22: #{custom-call.87} parent=8 // pred_check_branch
          %20 = sbr.rel (0) target = $region24
        $region23: #{custom-call.87} parent=8 // pred_region
          loop: start=0, step=1, limit=1
          $region25: #{custom-call.87} parent=23 // loop_pre_header
            _
          $region26: #{custom-call.87} parent=23 // loop_header
            %s22 = sphi 0, %s26
            %p23 = scmp.ge.s32.totalorder %s22, 1
            %s27 = sphi %s0, %s0
            %s28 = sphi [#allocation0], [#allocation0]
          $region27: #{custom-call.87} parent=23 // loop_header_branch
            %25 = sbr.rel (%p23) target = $region31
          $region28: #{custom-call.87} parent=23 // loop_body
            %v29 = vld [vmem:[%s27] sm:$0xff]
            %30 = vst [vmem:[%s28] sm:$0xff] %v29
          $region29: #{custom-call.87} parent=23 // loop_footer
            %s26 = sadd.s32 1, %s22
          $region30: #{custom-call.87} parent=23 // loop_footer_branch
            %21 = sbr.rel target = $region26
          $region31: #{custom-call.87} parent=23 // loop_exit
            _
        $region24: #{custom-call.87} parent=8 // pred_fallthru
          _
        // Predicated region
        $region32: #{custom-call.87} parent=8 // pred_check
          _
        $region33: #{custom-call.87} parent=8 // pred_check_branch
          %32 = sbr.rel target = $region35
        $region34: #{custom-call.87} parent=8 // pred_region
          _
        $region35: #{custom-call.87} parent=8 // pred_fallthru
          _
      $region9: #{custom-call.87} parent=4 // pred_fallthru
        _
      // Predicated region
      $region10: #{custom-call.87} parent=4 // pred_check
        _
      $region11: #{custom-call.87} parent=4 // pred_check_branch
        %7 = sbr.rel target = $region13
      $region12: #{custom-call.87} parent=4 // pred_region
        loop: start=0, step=1, limit=1
        $region14: #{custom-call.87} parent=12 // loop_pre_header
          _
        $region15: #{custom-call.87} parent=12 // loop_header
          %s10 = sphi 0, %s14
          %p11 = scmp.ge.s32.totalorder %s10, 1
          %s15 = sphi %s0, %s0
          %s16 = sphi [#allocation0], [#allocation0]
        $region16: #{custom-call.87} parent=12 // loop_header_branch
          %13 = sbr.rel (%p11) target = $region20
        $region17: #{custom-call.87} parent=12 // loop_body
          %v17 = vld [vmem:[%s15] sm:$0xff]
          %18 = vst [vmem:[%s16] sm:$0xff] %v17
        $region18: #{custom-call.87} parent=12 // loop_footer
          %s14 = sadd.s32 1, %s10
        $region19: #{custom-call.87} parent=12 // loop_footer_branch
          %9 = sbr.rel target = $region15
        $region20: #{custom-call.87} parent=12 // loop_exit
          _
      $region13: #{custom-call.87} parent=4 // pred_fallthru
        _
    $region5: #{custom-call.87} parent=1 // pred_fallthru
      _
    %33 = vnop
    %v34 = vlaneseq
    %v35 = vand.u32 %v34, 127
    %vm36 = vcmp.lt.s32.totalorder %v35, 5
    %v37 = vlaneseq
    %v38 = vshrl.u32 %v37, 7
    %vm40 = vcmp.eq.s32.totalorder %v38, %v35
    %v41 = vld [vmem:[#allocation0] sm:$0xff]
    %v42 = vsel %vm40, %v41, 0.0
    %43 = vadd.xlane.f32.xlu0 %v42
    %v44 = vpop.xlane.xlu0 %43
    %vm45 = vcmp.ge.s32.totalorder %v38, %v35
    %vm46 = vmand %vm45, %vm36
    %v47 = vsel %vm46, %v41, 0.0
    %v48 = vrcp.pop %v44
    %v49 = vmul.f32 %v47, %v48
    %50 = vst [vmem:[#allocation2] sm:$0xff] %v49
    %v51 = vlaneseq
    %v52 = vand.u32 %v51, 127
    %v53 = vlaneseq
    %v54 = vshrl.u32 %v53, 7
    %vm56 = vcmp.eq.s32.totalorder %v52, %v54
    %v57 = vlaneseq
    %v58 = vand.u32 %v57, 127
    %vm59 = vcmp.eq.s32.totalorder %v58, 0
    %v60 = vsel %vm59, 1.0, -1.0
    %v61 = vsel %vm56, %v60, 0.0
    %s62 = scalar_lea.vmem [#allocation2], 1
    %v63 = vld [vmem:[%s62] ss:$0 sm:$0xff]
    %v64 = vxor.u32 %v63, 2147483648
    %v65 = vlaneseq
    %v66 = vand.u32 %v65, 127
    %vm67 = vcmp.eq.s32.totalorder %v66, 1
    %v68 = vmul.f32 %v64, %v61
    %69 = vadd.xlane.f32.xlu0 %v68
    %v70 = vpop.xlane.xlu0 %69
    %v71 = vsel %vm67, %v70, %v61
    %s72 = scalar_lea.vmem [#allocation2], 2
    %v73 = vld [vmem:[%s72] ss:$0 sm:$0xff]
    %v74 = vxor.u32 %v73, 2147483648
    %v75 = vlaneseq
    %v76 = vand.u32 %v75, 127
    %vm77 = vcmp.eq.s32.totalorder %v76, 2
    %v78 = vmul.f32 %v74, %v71
    %79 = vadd.xlane.f32.xlu0 %v78
    %v80 = vpop.xlane.xlu0 %79
    %v81 = vsel %vm77, %v80, %v71
    %s82 = scalar_lea.vmem [#allocation2], 3
    %v83 = vld [vmem:[%s82] ss:$0 sm:$0xff]
    %v84 = vxor.u32 %v83, 2147483648
    %v85 = vlaneseq
    %v86 = vand.u32 %v85, 127
    %vm87 = vcmp.eq.s32.totalorder %v86, 3
    %v88 = vmul.f32 %v84, %v81
    %89 = vadd.xlane.f32.xlu0 %v88
    %v90 = vpop.xlane.xlu0 %89
    %v91 = vsel %vm87, %v90, %v81
    %s92 = scalar_lea.vmem [#allocation2], 4
    %v93 = vld [vmem:[%s92] ss:$0 sm:$0xff]
    %v94 = vxor.u32 %v93, 2147483648
    %v95 = vlaneseq
    %v96 = vand.u32 %v95, 127
    %vm97 = vcmp.eq.s32.totalorder %v96, 4
    %v98 = vmul.f32 %v94, %v91
    %99 = vadd.xlane.f32.xlu0 %v98
    %v100 = vpop.xlane.xlu0 %99
    %v101 = vsel %vm97, %v100, %v91
    %v102 = vrcp.pop %v44
    %v103 = vmul.f32 %v101, %v102
    %vm104 = vweird.f32 %v44
    %v105 = vsel %vm104, %v101, %v103
    %106 = vst [vmem:[#allocation1] sm:$0xff] %v105
    // Predicated region
    $region36: #{custom-call.87} parent=1 // pred_check
      _
    $region37: #{custom-call.87} parent=1 // pred_check_branch
      %108 = sbr.rel (0) target = $region39
    $region38: #{custom-call.87} parent=1 // pred_region
      // Predicated region
      $region40: #{custom-call.87} parent=38 // pred_check
        _
      $region41: #{custom-call.87} parent=38 // pred_check_branch
        %110 = sbr.rel (0) target = $region43
      $region42: #{custom-call.87} parent=38 // pred_region
        // Predicated region
        $region55: #{custom-call.87} parent=42 // pred_check
          _
        $region56: #{custom-call.87} parent=42 // pred_check_branch
          %125 = sbr.rel (0) target = $region58
        $region57: #{custom-call.87} parent=42 // pred_region
          loop: start=0, step=1, limit=1
          $region59: #{custom-call.87} parent=57 // loop_pre_header
            _
          $region60: #{custom-call.87} parent=57 // loop_header
            %s127 = sphi 0, %s131
            %p128 = scmp.ge.s32.totalorder %s127, 1
            %s132 = sphi [#allocation1], [#allocation1]
            %s133 = sphi %s1, %s1
          $region61: #{custom-call.87} parent=57 // loop_header_branch
            %130 = sbr.rel (%p128) target = $region65
          $region62: #{custom-call.87} parent=57 // loop_body
            %v134 = vld [vmem:[%s132] sm:$0xff]
            %135 = vst [vmem:[%s133] sm:$0xff] %v134
          $region63: #{custom-call.87} parent=57 // loop_footer
            %s131 = sadd.s32 1, %s127
          $region64: #{custom-call.87} parent=57 // loop_footer_branch
            %126 = sbr.rel target = $region60
          $region65: #{custom-call.87} parent=57 // loop_exit
            _
        $region58: #{custom-call.87} parent=42 // pred_fallthru
          _
        // Predicated region
        $region66: #{custom-call.87} parent=42 // pred_check
          _
        $region67: #{custom-call.87} parent=42 // pred_check_branch
          %137 = sbr.rel target = $region69
        $region68: #{custom-call.87} parent=42 // pred_region
          _
        $region69: #{custom-call.87} parent=42 // pred_fallthru
          _
      $region43: #{custom-call.87} parent=38 // pred_fallthru
        _
      // Predicated region
      $region44: #{custom-call.87} parent=38 // pred_check
        _
      $region45: #{custom-call.87} parent=38 // pred_check_branch
        %112 = sbr.rel target = $region47
      $region46: #{custom-call.87} parent=38 // pred_region
        loop: start=0, step=1, limit=1
        $region48: #{custom-call.87} parent=46 // loop_pre_header
          _
        $region49: #{custom-call.87} parent=46 // loop_header
          %s115 = sphi 0, %s119
          %p116 = scmp.ge.s32.totalorder %s115, 1
          %s120 = sphi [#allocation1], [#allocation1]
          %s121 = sphi %s1, %s1
        $region50: #{custom-call.87} parent=46 // loop_header_branch
          %118 = sbr.rel (%p116) target = $region54
        $region51: #{custom-call.87} parent=46 // loop_body
          %v122 = vld [vmem:[%s120] sm:$0xff]
          %123 = vst [vmem:[%s121] sm:$0xff] %v122
        $region52: #{custom-call.87} parent=46 // loop_footer
          %s119 = sadd.s32 1, %s115
        $region53: #{custom-call.87} parent=46 // loop_footer_branch
          %114 = sbr.rel target = $region49
        $region54: #{custom-call.87} parent=46 // loop_exit
          _
      $region47: #{custom-call.87} parent=38 // pred_fallthru
        _
    $region39: #{custom-call.87} parent=1 // pred_fallthru
      _
    %138 = vnop

// kernel: custom-call.25
$region0: #{custom-call.25}
  %s0 = inlined_call_operand.vmem [shape: f32[3,3], index: 0, kind: input, shape index: {}]
  %s1 = inlined_call_operand.vmem [shape: f32[3,3], index: 1, kind: input, shape index: {}]
  %s2 = inlined_call_operand.vmem [shape: f32[3,3], index: 2, kind: input, shape index: {}]
  %s3 = inlined_call_operand.vmem [shape: f32[3,3], index: 3, kind: input, shape index: {}]
  %s4 = inlined_call_operand.vmem [shape: f32[3], index: 4, kind: output, shape index: {0}]
  %s5 = inlined_call_operand.vmem [shape: f32[3], index: 5, kind: output, shape index: {1}]
  %s6 = inlined_call_operand.vmem [shape: f32[3,3], index: 6, kind: output, shape index: {2}]
  %s7 = inlined_call_operand.vmem [shape: f32[3,3], index: 7, kind: output, shape index: {3}]
  %s8 = inlined_call_operand.vmem [shape: f32[3,3], index: 8, kind: output, shape index: {4}]
  %s9 = inlined_call_operand.vmem [shape: f32[3,3], index: 9, kind: output, shape index: {5}]
  %10 = xla_tuple %s4, %s5, %s6, %s7, %s8, %s9
  $region1: #{custom-call.25} parent=0
    #allocation0 [shape = 'u8[4096]{0}', space=vmem, size = 0x1000, scoped, tag = 'operand span for operand 0']
    #allocation1 [shape = 'u8[2048]{0}', space=vmem, size = 0x800, scoped, tag = 'packed  for operand 0']
    #allocation2 [shape = 'u8[4096]{0}', space=vmem, size = 0x1000, scoped, tag = 'operand span for operand 1']
    #allocation3 [shape = 'u8[2048]{0}', space=vmem, size = 0x800, scoped, tag = 'packed  for operand 1']
    #allocation4 [shape = 'u8[4096]{0}', space=vmem, size = 0x1000, scoped, tag = 'operand span for operand 2']
    #allocation5 [shape = 'u8[2048]{0}', space=vmem, size = 0x800, scoped, tag = 'packed  for operand 2']
    #allocation6 [shape = 'u8[4096]{0}', space=vmem, size = 0x1000, scoped, tag = 'operand span for operand 3']
    #allocation7 [shape = 'u8[2048]{0}', space=vmem, size = 0x800, scoped, tag = 'packed  for operand 3']
    #allocation8 [shape = 'u8[4096]{0}', space=vmem, size = 0x1000, scoped, tag = 'operand span for operand 4']
    #allocation9 [shape = 'u8[512]{0}', space=vmem, size = 0x400, scoped, tag = 'packed  for operand 4']
    #allocation10 [shape = 'u8[4096]{0}', space=vmem, size = 0x1000, scoped, tag = 'operand span for operand 5']
    #allocation11 [shape = 'u8[512]{0}', space=vmem, size = 0x400, scoped, tag = 'packed  for operand 5']
    #allocation12 [shape = 'u8[4096]{0}', space=vmem, size = 0x1000, scoped, tag = 'operand span for operand 6']
    #allocation13 [shape = 'u8[2048]{0}', space=vmem, size = 0x800, scoped, tag = 'packed  for operand 6']
    #allocation14 [shape = 'u8[4096]{0}', space=vmem, size = 0x1000, scoped, tag = 'operand span for operand 7']
    #allocation15 [shape = 'u8[2048]{0}', space=vmem, size = 0x800, scoped, tag = 'packed  for operand 7']
    #allocation16 [shape = 'u8[4096]{0}', space=vmem, size = 0x1000, scoped, tag = 'operand span for operand 8']
    #allocation17 [shape = 'u8[2048]{0}', space=vmem, size = 0x800, scoped, tag = 'packed  for operand 8']
    #allocation18 [shape = 'u8[4096]{0}', space=vmem, size = 0x1000, scoped, tag = 'operand span for operand 9']
    #allocation19 [shape = 'u8[2048]{0}', space=vmem, size = 0x800, scoped, tag = 'packed  for operand 9']
    #allocation20 [shape = 'f32[3,3]{1,0}', space=vmem, size = 0x1000, scoped, tag = 'a top-left matrix']
    #allocation21 [shape = 'f32[3,3]{1,0}', space=vmem, size = 0x1000, scoped, tag = 'a top-right matrix']
    #allocation22 [shape = 'f32[3,3]{1,0}', space=vmem, size = 0x1000, scoped, tag = 'a bottom-left matrix']
    #allocation23 [shape = 'f32[3,3]{1,0}', space=vmem, size = 0x1000, scoped, tag = 'a bottom-right matrix']
    %p12 = scmp.gt.s32.totalorder 4, 0
    // Predicated region
    $region2: #{custom-call.25} parent=1 // pred_check
      %p13 = pneg %p12
    $region3: #{custom-call.25} parent=1 // pred_check_branch
      %15 = sbr.rel (%p13) target = $region5
    $region4: #{custom-call.25} parent=1 // pred_region
      %s16 = sshra.s32 4, 3
      %p17 = scmp.gt.s32.totalorder %s16, 0
      // Predicated region
      $region6: #{custom-call.25} parent=4 // pred_check
        %p18 = pneg %p17
      $region7: #{custom-call.25} parent=4 // pred_check_branch
        %20 = sbr.rel (%p18) target = $region9
      $region8: #{custom-call.25} parent=4 // pred_region
        %s21 = ssub.s32 %s16, 1
        %s22 = smul.u32 %s21, 128
        %s23 = sshra.s32 %s22, 4
        %s24 = scalar_lea.vmem %s0, %s23
        %v25 = vld [vmem:[%s0] sm:$0xff]
        // While loop
        $region10: #{custom-call.25} parent=8 // loop_pre_header
          _
        $region11: #{custom-call.25} parent=8 // loop_header
          %s26 = sphi %s0, %s48
          %s27 = sphi [#allocation1], %s49
          %v28 = vphi %v25, %v50
          %s29 = ssub.s32 %s24, 64
          %p30 = scmp.gt.s32.totalorder %s26, %s29
        $region12: #{custom-call.25} parent=8 // loop_header_branch
          %32 = sbr.rel (%p30) target = $region16
        $region13: #{custom-call.25} parent=8 // loop_body
          %33 = vst [vmem:[%s27] sm:$0xff] %v28
          %v34 = vld [vmem:[%s26 + $0x8] sm:$0xff]
          %35 = vst [vmem:[%s27 + $0x8] sm:$0xff] %v34
          %v36 = vld [vmem:[%s26 + $0x10] sm:$0xff]
          %37 = vst [vmem:[%s27 + $0x10] sm:$0xff] %v36
          %v38 = vld [vmem:[%s26 + $0x18] sm:$0xff]
          %39 = vst [vmem:[%s27 + $0x18] sm:$0xff] %v38
          %v40 = vld [vmem:[%s26 + $0x20] sm:$0xff]
          %41 = vst [vmem:[%s27 + $0x20] sm:$0xff] %v40
          %v42 = vld [vmem:[%s26 + $0x28] sm:$0xff]
          %43 = vst [vmem:[%s27 + $0x28] sm:$0xff] %v42
          %v44 = vld [vmem:[%s26 + $0x30] sm:$0xff]
          %45 = vst [vmem:[%s27 + $0x30] sm:$0xff] %v44
          %v46 = vld [vmem:[%s26 + $0x38] sm:$0xff]
          %47 = vst [vmem:[%s27 + $0x38] sm:$0xff] %v46
        $region14: #{custom-call.25} parent=8 // loop_footer
          %s48 = scalar_lea.vmem %s26, 64
          %s49 = scalar_lea.vmem %s27, 64
          %v50 = vld [vmem:[%s26 + $0x40] sm:$0xff]
        $region15: #{custom-call.25} parent=8 // loop_footer_branch
          %51 = sbr.rel target = $region11
        $region16: #{custom-call.25} parent=8 // loop_exit
          _
        // While loop
        $region17: #{custom-call.25} parent=8 // loop_pre_header
          _
        $region18: #{custom-call.25} parent=8 // loop_header
          %s52 = sphi %s26, %s60
          %s53 = sphi %s27, %s61
          %v54 = vphi %v28, %v54
          %p55 = scmp.gt.s32.totalorder %s52, %s24
        $region19: #{custom-call.25} parent=8 // loop_header_branch
          %57 = sbr.rel (%p55) target = $region23
        $region20: #{custom-call.25} parent=8 // loop_body
          %v58 = vld [vmem:[%s52] sm:$0xff]
          %59 = vst [vmem:[%s53] sm:$0xff] %v58
        $region21: #{custom-call.25} parent=8 // loop_footer
          %s60 = scalar_lea.vmem %s52, 8
          %s61 = scalar_lea.vmem %s53, 8
        $region22: #{custom-call.25} parent=8 // loop_footer_branch
          %62 = sbr.rel target = $region18
        $region23: #{custom-call.25} parent=8 // loop_exit
          _
      $region9: #{custom-call.25} parent=4 // pred_fallthru
        _
      %s63 = sand.u32 4, 7
      %s64 = sshllo.u32 0, %s63
      %s65 = smul.u32 %s16, 128
      %s66 = sshra.s32 %s65, 4
      %s67 = scalar_lea.vmem [#allocation1], %s66
      %s68 = smul.u32 %s16, 128
      %s69 = sshra.s32 %s68, 4
      %s70 = scalar_lea.vmem %s0, %s69
      %v71 = vld [vmem:[%s70] sm:%s64]
      %72 = vst [vmem:[%s67] sm:%s64] %v71
    $region5: #{custom-call.25} parent=1 // pred_fallthru
      _
    %p74 = scmp.gt.s32.totalorder 4, 0
    // Predicated region
    $region24: #{custom-call.25} parent=1 // pred_check
      %p75 = pneg %p74
    $region25: #{custom-call.25} parent=1 // pred_check_branch
      %77 = sbr.rel (%p75) target = $region27
    $region26: #{custom-call.25} parent=1 // pred_region
      %s78 = sshra.s32 4, 3
      %p79 = scmp.gt.s32.totalorder %s78, 0
      // Predicated region
      $region28: #{custom-call.25} parent=26 // pred_check
        %p80 = pneg %p79
      $region29: #{custom-call.25} parent=26 // pred_check_branch
        %82 = sbr.rel (%p80) target = $region31
      $region30: #{custom-call.25} parent=26 // pred_region
        %s83 = ssub.s32 %s78, 1
        %s84 = smul.u32 %s83, 128
        %s85 = sshra.s32 %s84, 4
        %s86 = scalar_lea.vmem %s1, %s85
        %v87 = vld [vmem:[%s1] sm:$0xff]
        // While loop
        $region32: #{custom-call.25} parent=30 // loop_pre_header
          _
        $region33: #{custom-call.25} parent=30 // loop_header
          %s88 = sphi %s1, %s110
          %s89 = sphi [#allocation3], %s111
          %v90 = vphi %v87, %v112
          %s91 = ssub.s32 %s86, 64
          %p92 = scmp.gt.s32.totalorder %s88, %s91
        $region34: #{custom-call.25} parent=30 // loop_header_branch
          %94 = sbr.rel (%p92) target = $region38
        $region35: #{custom-call.25} parent=30 // loop_body
          %95 = vst [vmem:[%s89] sm:$0xff] %v90
          %v96 = vld [vmem:[%s88 + $0x8] sm:$0xff]
          %97 = vst [vmem:[%s89 + $0x8] sm:$0xff] %v96
          %v98 = vld [vmem:[%s88 + $0x10] sm:$0xff]
          %99 = vst [vmem:[%s89 + $0x10] sm:$0xff] %v98
          %v100 = vld [vmem:[%s88 + $0x18] sm:$0xff]
          %101 = vst [vmem:[%s89 + $0x18] sm:$0xff] %v100
          %v102 = vld [vmem:[%s88 + $0x20] sm:$0xff]
          %103 = vst [vmem:[%s89 + $0x20] sm:$0xff] %v102
          %v104 = vld [vmem:[%s88 + $0x28] sm:$0xff]
          %105 = vst [vmem:[%s89 + $0x28] sm:$0xff] %v104
          %v106 = vld [vmem:[%s88 + $0x30] sm:$0xff]
          %107 = vst [vmem:[%s89 + $0x30] sm:$0xff] %v106
          %v108 = vld [vmem:[%s88 + $0x38] sm:$0xff]
          %109 = vst [vmem:[%s89 + $0x38] sm:$0xff] %v108
        $region36: #{custom-call.25} parent=30 // loop_footer
          %s110 = scalar_lea.vmem %s88, 64
          %s111 = scalar_lea.vmem %s89, 64
          %v112 = vld [vmem:[%s88 + $0x40] sm:$0xff]
        $region37: #{custom-call.25} parent=30 // loop_footer_branch
          %113 = sbr.rel target = $region33
        $region38: #{custom-call.25} parent=30 // loop_exit
          _
        // While loop
        $region39: #{custom-call.25} parent=30 // loop_pre_header
          _
        $region40: #{custom-call.25} parent=30 // loop_header
          %s114 = sphi %s88, %s122
          %s115 = sphi %s89, %s123
          %v116 = vphi %v90, %v116
          %p117 = scmp.gt.s32.totalorder %s114, %s86
        $region41: #{custom-call.25} parent=30 // loop_header_branch
          %119 = sbr.rel (%p117) target = $region45
        $region42: #{custom-call.25} parent=30 // loop_body
          %v120 = vld [vmem:[%s114] sm:$0xff]
          %121 = vst [vmem:[%s115] sm:$0xff] %v120
        $region43: #{custom-call.25} parent=30 // loop_footer
          %s122 = scalar_lea.vmem %s114, 8
          %s123 = scalar_lea.vmem %s115, 8
        $region44: #{custom-call.25} parent=30 // loop_footer_branch
          %124 = sbr.rel target = $region40
        $region45: #{custom-call.25} parent=30 // loop_exit
          _
      $region31: #{custom-call.25} parent=26 // pred_fallthru
        _
      %s125 = sand.u32 4, 7
      %s126 = sshllo.u32 0, %s125
      %s127 = smul.u32 %s78, 128
      %s128 = sshra.s32 %s127, 4
      %s129 = scalar_lea.vmem [#allocation3], %s128
      %s130 = smul.u32 %s78, 128
      %s131 = sshra.s32 %s130, 4
      %s132 = scalar_lea.vmem %s1, %s131
      %v133 = vld [vmem:[%s132] sm:%s126]
      %134 = vst [vmem:[%s129] sm:%s126] %v133
    $region27: #{custom-call.25} parent=1 // pred_fallthru
      _
    %p136 = scmp.gt.s32.totalorder 4, 0
    // Predicated region
    $region46: #{custom-call.25} parent=1 // pred_check
      %p137 = pneg %p136
    $region47: #{custom-call.25} parent=1 // pred_check_branch
      %139 = sbr.rel (%p137) target = $region49
    $region48: #{custom-call.25} parent=1 // pred_region
      %s140 = sshra.s32 4, 3
      %p141 = scmp.gt.s32.totalorder %s140, 0
      // Predicated region
      $region50: #{custom-call.25} parent=48 // pred_check
        %p142 = pneg %p141
      $region51: #{custom-call.25} parent=48 // pred_check_branch
        %144 = sbr.rel (%p142) target = $region53
      $region52: #{custom-call.25} parent=48 // pred_region
        %s145 = ssub.s32 %s140, 1
        %s146 = smul.u32 %s145, 128
        %s147 = sshra.s32 %s146, 4
        %s148 = scalar_lea.vmem %s2, %s147
        %v149 = vld [vmem:[%s2] sm:$0xff]
        // While loop
        $region54: #{custom-call.25} parent=52 // loop_pre_header
          _
        $region55: #{custom-call.25} parent=52 // loop_header
          %s150 = sphi %s2, %s172
          %s151 = sphi [#allocation5], %s173
          %v152 = vphi %v149, %v174
          %s153 = ssub.s32 %s148, 64
          %p154 = scmp.gt.s32.totalorder %s150, %s153
        $region56: #{custom-call.25} parent=52 // loop_header_branch
          %156 = sbr.rel (%p154) target = $region60
        $region57: #{custom-call.25} parent=52 // loop_body
          %157 = vst [vmem:[%s151] sm:$0xff] %v152
          %v158 = vld [vmem:[%s150 + $0x8] sm:$0xff]
          %159 = vst [vmem:[%s151 + $0x8] sm:$0xff] %v158
          %v160 = vld [vmem:[%s150 + $0x10] sm:$0xff]
          %161 = vst [vmem:[%s151 + $0x10] sm:$0xff] %v160
          %v162 = vld [vmem:[%s150 + $0x18] sm:$0xff]
          %163 = vst [vmem:[%s151 + $0x18] sm:$0xff] %v162
          %v164 = vld [vmem:[%s150 + $0x20] sm:$0xff]
          %165 = vst [vmem:[%s151 + $0x20] sm:$0xff] %v164
          %v166 = vld [vmem:[%s150 + $0x28] sm:$0xff]
          %167 = vst [vmem:[%s151 + $0x28] sm:$0xff] %v166
          %v168 = vld [vmem:[%s150 + $0x30] sm:$0xff]
          %169 = vst [vmem:[%s151 + $0x30] sm:$0xff] %v168
          %v170 = vld [vmem:[%s150 + $0x38] sm:$0xff]
          %171 = vst [vmem:[%s151 + $0x38] sm:$0xff] %v170
        $region58: #{custom-call.25} parent=52 // loop_footer
          %s172 = scalar_lea.vmem %s150, 64
          %s173 = scalar_lea.vmem %s151, 64
          %v174 = vld [vmem:[%s150 + $0x40] sm:$0xff]
        $region59: #{custom-call.25} parent=52 // loop_footer_branch
          %175 = sbr.rel target = $region55
        $region60: #{custom-call.25} parent=52 // loop_exit
          _
        // While loop
        $region61: #{custom-call.25} parent=52 // loop_pre_header
          _
        $region62: #{custom-call.25} parent=52 // loop_header
          %s176 = sphi %s150, %s184
          %s177 = sphi %s151, %s185
          %v178 = vphi %v152, %v178
          %p179 = scmp.gt.s32.totalorder %s176, %s148
        $region63: #{custom-call.25} parent=52 // loop_header_branch
          %181 = sbr.rel (%p179) target = $region67
        $region64: #{custom-call.25} parent=52 // loop_body
          %v182 = vld [vmem:[%s176] sm:$0xff]
          %183 = vst [vmem:[%s177] sm:$0xff] %v182
        $region65: #{custom-call.25} parent=52 // loop_footer
          %s184 = scalar_lea.vmem %s176, 8
          %s185 = scalar_lea.vmem %s177, 8
        $region66: #{custom-call.25} parent=52 // loop_footer_branch
          %186 = sbr.rel target = $region62
        $region67: #{custom-call.25} parent=52 // loop_exit
          _
      $region53: #{custom-call.25} parent=48 // pred_fallthru
        _
      %s187 = sand.u32 4, 7
      %s188 = sshllo.u32 0, %s187
      %s189 = smul.u32 %s140, 128
      %s190 = sshra.s32 %s189, 4
      %s191 = scalar_lea.vmem [#allocation5], %s190
      %s192 = smul.u32 %s140, 128
      %s193 = sshra.s32 %s192, 4
      %s194 = scalar_lea.vmem %s2, %s193
      %v195 = vld [vmem:[%s194] sm:%s188]
      %196 = vst [vmem:[%s191] sm:%s188] %v195
    $region49: #{custom-call.25} parent=1 // pred_fallthru
      _
    %p198 = scmp.gt.s32.totalorder 4, 0
    // Predicated region
    $region68: #{custom-call.25} parent=1 // pred_check
      %p199 = pneg %p198
    $region69: #{custom-call.25} parent=1 // pred_check_branch
      %201 = sbr.rel (%p199) target = $region71
    $region70: #{custom-call.25} parent=1 // pred_region
      %s202 = sshra.s32 4, 3
      %p203 = scmp.gt.s32.totalorder %s202, 0
      // Predicated region
      $region72: #{custom-call.25} parent=70 // pred_check
        %p204 = pneg %p203
      $region73: #{custom-call.25} parent=70 // pred_check_branch
        %206 = sbr.rel (%p204) target = $region75
      $region74: #{custom-call.25} parent=70 // pred_region
        %s207 = ssub.s32 %s202, 1
        %s208 = smul.u32 %s207, 128
        %s209 = sshra.s32 %s208, 4
        %s210 = scalar_lea.vmem %s3, %s209
        %v211 = vld [vmem:[%s3] sm:$0xff]
        // While loop
        $region76: #{custom-call.25} parent=74 // loop_pre_header
          _
        $region77: #{custom-call.25} parent=74 // loop_header
          %s212 = sphi %s3, %s234
          %s213 = sphi [#allocation7], %s235
          %v214 = vphi %v211, %v236
          %s215 = ssub.s32 %s210, 64
          %p216 = scmp.gt.s32.totalorder %s212, %s215
        $region78: #{custom-call.25} parent=74 // loop_header_branch
          %218 = sbr.rel (%p216) target = $region82
        $region79: #{custom-call.25} parent=74 // loop_body
          %219 = vst [vmem:[%s213] sm:$0xff] %v214
          %v220 = vld [vmem:[%s212 + $0x8] sm:$0xff]
          %221 = vst [vmem:[%s213 + $0x8] sm:$0xff] %v220
          %v222 = vld [vmem:[%s212 + $0x10] sm:$0xff]
          %223 = vst [vmem:[%s213 + $0x10] sm:$0xff] %v222
          %v224 = vld [vmem:[%s212 + $0x18] sm:$0xff]
          %225 = vst [vmem:[%s213 + $0x18] sm:$0xff] %v224
          %v226 = vld [vmem:[%s212 + $0x20] sm:$0xff]
          %227 = vst [vmem:[%s213 + $0x20] sm:$0xff] %v226
          %v228 = vld [vmem:[%s212 + $0x28] sm:$0xff]
          %229 = vst [vmem:[%s213 + $0x28] sm:$0xff] %v228
          %v230 = vld [vmem:[%s212 + $0x30] sm:$0xff]
          %231 = vst [vmem:[%s213 + $0x30] sm:$0xff] %v230
          %v232 = vld [vmem:[%s212 + $0x38] sm:$0xff]
          %233 = vst [vmem:[%s213 + $0x38] sm:$0xff] %v232
        $region80: #{custom-call.25} parent=74 // loop_footer
          %s234 = scalar_lea.vmem %s212, 64
          %s235 = scalar_lea.vmem %s213, 64
          %v236 = vld [vmem:[%s212 + $0x40] sm:$0xff]
        $region81: #{custom-call.25} parent=74 // loop_footer_branch
          %237 = sbr.rel target = $region77
        $region82: #{custom-call.25} parent=74 // loop_exit
          _
        // While loop
        $region83: #{custom-call.25} parent=74 // loop_pre_header
          _
        $region84: #{custom-call.25} parent=74 // loop_header
          %s238 = sphi %s212, %s246
          %s239 = sphi %s213, %s247
          %v240 = vphi %v214, %v240
          %p241 = scmp.gt.s32.totalorder %s238, %s210
        $region85: #{custom-call.25} parent=74 // loop_header_branch
          %243 = sbr.rel (%p241) target = $region89
        $region86: #{custom-call.25} parent=74 // loop_body
          %v244 = vld [vmem:[%s238] sm:$0xff]
          %245 = vst [vmem:[%s239] sm:$0xff] %v244
        $region87: #{custom-call.25} parent=74 // loop_footer
          %s246 = scalar_lea.vmem %s238, 8
          %s247 = scalar_lea.vmem %s239, 8
        $region88: #{custom-call.25} parent=74 // loop_footer_branch
          %248 = sbr.rel target = $region84
        $region89: #{custom-call.25} parent=74 // loop_exit
          _
      $region75: #{custom-call.25} parent=70 // pred_fallthru
        _
      %s249 = sand.u32 4, 7
      %s250 = sshllo.u32 0, %s249
      %s251 = smul.u32 %s202, 128
      %s252 = sshra.s32 %s251, 4
      %s253 = scalar_lea.vmem [#allocation7], %s252
      %s254 = smul.u32 %s202, 128
      %s255 = sshra.s32 %s254, 4
      %s256 = scalar_lea.vmem %s3, %s255
      %v257 = vld [vmem:[%s256] sm:%s250]
      %258 = vst [vmem:[%s253] sm:%s250] %v257
    $region71: #{custom-call.25} parent=1 // pred_fallthru
      _
    %s260 = sshllo.u32 0, 4
    %v261 = vld [vmem:[#allocation1] sm:%s260]
    %262 = vst [vmem:[#allocation0] sm:%s260] %v261
    %s264 = sshllo.u32 0, 4
    %v265 = vld [vmem:[#allocation3] sm:%s264]
    %266 = vst [vmem:[#allocation2] sm:%s264] %v265
    %s268 = sshllo.u32 0, 4
    %v269 = vld [vmem:[#allocation5] sm:%s268]
    %270 = vst [vmem:[#allocation4] sm:%s268] %v269
    %s272 = sshllo.u32 0, 4
    %v273 = vld [vmem:[#allocation7] sm:%s272]
    %274 = vst [vmem:[#allocation6] sm:%s272] %v273
    %s275 = smov [#allocation20]
    %v276 = vld [vmem:[#allocation0] sm:$0xff]
    %277 = vst [vmem:[%s275] sm:$0xff] %v276
    %s278 = smov [#allocation21]
    %v279 = vld [vmem:[#allocation2] sm:$0xff]
    %280 = vst [vmem:[%s278] sm:$0xff] %v279
    %s281 = smov [#allocation22]
    %v282 = vld [vmem:[#allocation4] sm:$0xff]
    %283 = vst [vmem:[%s281] sm:$0xff] %v282
    %s284 = smov [#allocation23]
    %v285 = vld [vmem:[#allocation6] sm:$0xff]
    %286 = vst [vmem:[%s284] sm:$0xff] %v285
    %287 = vst [vmem:[#allocation12] sm:$0xff] 0.0
    %288 = vst [vmem:[#allocation14] sm:$0xff] 0.0
    %289 = vst [vmem:[#allocation16] sm:$0xff] 0.0
    %290 = vst [vmem:[#allocation18] sm:$0xff] 0.0
    %s291 = smov [#allocation12]
    %v292 = vlaneseq
    %v293 = vand.u32 %v292, 127
    %v294 = vmov %v293
    %v295 = vlaneseq
    %v296 = vshrl.u32 %v295, 7
    %v297 = vmov %v296
    %v298 = vld [vmem:[%s291] sm:$0x7]
    %vm301 = vcmp.eq.s32.totalorder %v297, %v294
    %v302 = vsel %vm301, 1.0, %v298
    %303 = vst [vmem:[%s291] sm:$0x7] %v302
    %s304 = smov [#allocation18]
    %v305 = vlaneseq
    %v306 = vand.u32 %v305, 127
    %v307 = vmov %v306
    %v308 = vlaneseq
    %v309 = vshrl.u32 %v308, 7
    %v310 = vmov %v309
    %v311 = vld [vmem:[%s304] sm:$0x7]
    %vm314 = vcmp.eq.s32.totalorder %v310, %v307
    %v315 = vsel %vm314, 1.0, %v311
    %316 = vst [vmem:[%s304] sm:$0x7] %v315
    // While loop
    $region90: #{custom-call.25} parent=1 // loop_pre_header
      _
    $region91: #{custom-call.25} parent=1 // loop_header
      %s318 = sphi 0, %s860
      %v319 = vlaneseq
      %v320 = vand.u32 %v319, 127
      %v321 = vmov %v320
      %v322 = vlaneseq
      %v323 = vshrl.u32 %v322, 7
      %v324 = vmov %v323
      %s325 = smov [#allocation20]
      %v326 = vlaneseq
      %v327 = vand.u32 %v326, 127
      %vm328 = vcmp.ge.s32.totalorder %v327, 0
      %vm329 = vcmp.lt.s32.totalorder %v327, 3
      %vm330 = vmand %vm328, %vm329
      %v331 = vld [vmem:[%s325] sm:$0x7]
      %v332 = vsel %vm330, %v331, 0.0
      %v333 = vmul.f32 %v332, %v332
      %vm336 = vcmp.eq.s32.totalorder %v324, %v321
      %v337 = vsel %vm336, 0.0, %v333
      %v338 = vlaneseq
      %v339 = vand.u32 %v338, 127
      %v340 = vmov %v339
      %v341 = vlaneseq
      %v342 = vshrl.u32 %v341, 7
      %v343 = vmov %v342
      %s344 = smov [#allocation21]
      %v345 = vlaneseq
      %v346 = vand.u32 %v345, 127
      %vm347 = vcmp.ge.s32.totalorder %v346, 0
      %vm348 = vcmp.lt.s32.totalorder %v346, 3
      %vm349 = vmand %vm347, %vm348
      %v350 = vld [vmem:[%s344] sm:$0x7]
      %v351 = vsel %vm349, %v350, 0.0
      %v352 = vmul.f32 %v351, %v351
      %v353 = vadd.f32 %v337, %v352
      %v354 = vadd.f32 %v333, %v352
      %v355 = vlaneseq
      %v356 = vand.u32 %v355, 127
      %v357 = vmov %v356
      %v358 = vlaneseq
      %v359 = vshrl.u32 %v358, 7
      %v360 = vmov %v359
      %s361 = smov [#allocation22]
      %v362 = vlaneseq
      %v363 = vand.u32 %v362, 127
      %vm364 = vcmp.ge.s32.totalorder %v363, 0
      %vm365 = vcmp.lt.s32.totalorder %v363, 3
      %vm366 = vmand %vm364, %vm365
      %v367 = vld [vmem:[%s361] sm:$0x7]
      %v368 = vsel %vm366, %v367, 0.0
      %v369 = vmul.f32 %v368, %v368
      %v370 = vadd.f32 %v353, %v369
      %v371 = vadd.f32 %v354, %v369
      %v372 = vlaneseq
      %v373 = vand.u32 %v372, 127
      %v374 = vmov %v373
      %v375 = vlaneseq
      %v376 = vshrl.u32 %v375, 7
      %v377 = vmov %v376
      %s378 = smov [#allocation23]
      %v379 = vlaneseq
      %v380 = vand.u32 %v379, 127
      %vm381 = vcmp.ge.s32.totalorder %v380, 0
      %vm382 = vcmp.lt.s32.totalorder %v380, 3
      %vm383 = vmand %vm381, %vm382
      %v384 = vld [vmem:[%s378] sm:$0x7]
      %v385 = vsel %vm383, %v384, 0.0
      %v386 = vmul.f32 %v385, %v385
      %vm389 = vcmp.eq.s32.totalorder %v377, %v374
      %v390 = vsel %vm389, 0.0, %v386
      %v391 = vadd.f32 %v370, %v390
      %v392 = vadd.f32 %v371, %v386
      %393 = vadd.xlane.f32.xlu0 %v392
      %v394 = vpop.xlane.xlu0 %393
      %v395 = vrot.slane %v394, 4
      %v396 = vadd.f32 %v394, %v395
      %v397 = vrot.slane %v396, 2
      %v398 = vadd.f32 %v396, %v397
      %v399 = vrot.slane %v398, 1
      %v400 = vadd.f32 %v398, %v399
      %401 = vadd.xlane.f32.xlu0 %v391
      %v402 = vpop.xlane.xlu0 %401
      %v403 = vrot.slane %v402, 4
      %v404 = vadd.f32 %v402, %v403
      %v405 = vrot.slane %v404, 2
      %v406 = vadd.f32 %v404, %v405
      %v407 = vrot.slane %v406, 1
      %v408 = vadd.f32 %v406, %v407
      %s409 = vtos %v408
      %s410 = vtos %v400
      %s411 = smul.f32 1e-10, %s410
      %p412 = scmp.le.f32.partialorder %s409, %s411
      %p413 = scmp.ge.s32.totalorder %s318, 15
      %p414 = por %p412, %p413
    $region92: #{custom-call.25} parent=1 // loop_header_branch
      %862 = sbr.rel (%p414) target = $region96
    $region93: #{custom-call.25} parent=1 // loop_body
      loop: start=0, step=1, limit=5
      $region97: #{custom-call.25} parent=93 // loop_pre_header
        _
      $region98: #{custom-call.25} parent=93 // loop_header
        %s416 = sphi 0, %s420
        %p417 = scmp.ge.s32.totalorder %s416, 5
      $region99: #{custom-call.25} parent=93 // loop_header_branch
        %419 = sbr.rel (%p417) target = $region103
      $region100: #{custom-call.25} parent=93 // loop_body
        #allocation24 [shape = 'f32[1024]{0}', space=vmem, size = 0x1000, scoped, tag = 'a_tl_diag vmem']
        #allocation25 [shape = 'f32[1024]{0}', space=vmem, size = 0x1000, scoped, tag = 'a_tr_diag vmem']
        #allocation26 [shape = 'f32[1024]{0}', space=vmem, size = 0x1000, scoped, tag = 'a_br_diag vmem']
        #allocation27 [shape = 'f32[1024]{0}', space=vmem, size = 0x1000, scoped, tag = 'rt1 vmem']
        #allocation28 [shape = 'f32[1024]{0}', space=vmem, size = 0x1000, scoped, tag = 'rt2 vmem']
        #allocation29 [shape = 'f32[1024]{0}', space=vmem, size = 0x1000, scoped, tag = 'c vmem']
        #allocation30 [shape = 'f32[1024]{0}', space=vmem, size = 0x1000, scoped, tag = 's vmem']
        #allocation31 [shape = 'f32[4096]{0}', space=vmem, size = 0x4000, scoped, tag = 'c broadcast']
        #allocation32 [shape = 'f32[4096]{0}', space=vmem, size = 0x4000, scoped, tag = 's broadcast']
        %s421 = smov [#allocation20]
        %s422 = smov [#allocation24]
        %v423 = vlaneseq
        %v424 = vand.u32 %v423, 127
        %v425 = vmov %v424
        %v426 = vlaneseq
        %v427 = vshrl.u32 %v426, 7
        %v428 = vmov %v427
        %v429 = vld [vmem:[%s421] sm:$0x7]
        %vm432 = vcmp.eq.s32.totalorder %v428, %v425
        %v433 = vsel %vm432, %v429, 0.0
        %v434 = vrot.slane %v433, 4
        %v435 = vadd.f32 %v433, %v434
        %v436 = vrot.slane %v435, 2
        %v437 = vadd.f32 %v435, %v436
        %v438 = vrot.slane %v437, 1
        %v439 = vadd.f32 %v437, %v438
        %440 = vst [vmem:[%s422] sm:$0x1] %v439
        %s441 = smov [#allocation21]
        %s442 = smov [#allocation25]
        %v443 = vlaneseq
        %v444 = vand.u32 %v443, 127
        %v445 = vmov %v444
        %v446 = vlaneseq
        %v447 = vshrl.u32 %v446, 7
        %v448 = vmov %v447
        %v449 = vld [vmem:[%s441] sm:$0x7]
        %vm452 = vcmp.eq.s32.totalorder %v448, %v445
        %v453 = vsel %vm452, %v449, 0.0
        %v454 = vrot.slane %v453, 4
        %v455 = vadd.f32 %v453, %v454
        %v456 = vrot.slane %v455, 2
        %v457 = vadd.f32 %v455, %v456
        %v458 = vrot.slane %v457, 1
        %v459 = vadd.f32 %v457, %v458
        %460 = vst [vmem:[%s442] sm:$0x1] %v459
        %s461 = smov [#allocation23]
        %s462 = smov [#allocation26]
        %v463 = vlaneseq
        %v464 = vand.u32 %v463, 127
        %v465 = vmov %v464
        %v466 = vlaneseq
        %v467 = vshrl.u32 %v466, 7
        %v468 = vmov %v467
        %v469 = vld [vmem:[%s461] sm:$0x7]
        %vm472 = vcmp.eq.s32.totalorder %v468, %v465
        %v473 = vsel %vm472, %v469, 0.0
        %v474 = vrot.slane %v473, 4
        %v475 = vadd.f32 %v473, %v474
        %v476 = vrot.slane %v475, 2
        %v477 = vadd.f32 %v475, %v476
        %v478 = vrot.slane %v477, 1
        %v479 = vadd.f32 %v477, %v478
        %480 = vst [vmem:[%s462] sm:$0x1] %v479
        %s481 = smov [#allocation29]
        %s482 = smov [#allocation30]
        %s483 = smov [#allocation24]
        %v484 = vld [vmem:[%s483] sm:$0xff]
        %s485 = smov [#allocation25]
        %v486 = vld [vmem:[%s485] sm:$0xff]
        %s487 = smov [#allocation26]
        %v488 = vld [vmem:[%s487] sm:$0xff]
        %v489 = vsub.f32 %v488, %v484
        %v490 = vmul.f32 2.0, %v486
        %v491 = vrcp.pop %v490
        %v492 = vmul.f32 %v489, %v491
        %vm493 = vcmp.ge.f32.partialorder %v492, 0.0
        %v494 = vmul.f32 %v492, %v492
        %v495 = vadd.f32 1.0, %v494
        %v496 = vrsqrt.pop %v495
        %v497 = vmul.f32 %v495, %v496
        %vm498 = vcmp.eq.f32.partialorder %v495, inf
        %v499 = vsel %vm498, %v495, %v497
        %vm500 = vcmp.eq.f32.partialorder %v495, 0.0
        %v501 = vand.u32 %v495, 2147483648
        %v502 = vsel %vm500, %v501, %v499
        %v503 = vxor.u32 %v502, 2147483648
        %v504 = vsel %vm493, %v502, %v503
        %v505 = vadd.f32 %v492, %v504
        %v506 = vrcp.pop %v505
        %v507 = vand.u32 2147483647, %v484
        %v508 = vand.u32 2147483647, %v486
        %v509 = vand.u32 2147483647, %v488
        %v510 = vmin.f32 %v507, %v509
        %v511 = vmul.f32 1.1920929e-08, %v510
        %vm512 = vcmp.le.f32.partialorder %v508, %v511
        %v513 = vsel %vm512, 0.0, %v506
        %v514 = vmul.f32 %v513, %v513
        %v515 = vadd.f32 1.0, %v514
        %v516 = vrsqrt.pop %v515
        %v517 = vmul.f32 %v513, %v516
        %v518 = vmul.f32 %v513, %v486
        %v519 = vsub.f32 %v484, %v518
        %v520 = vmul.f32 %v513, %v486
        %v521 = vadd.f32 %v488, %v520
        %s522 = smov [#allocation27]
        %523 = vst [vmem:[%s522] sm:$0xff] %v519
        %s524 = smov [#allocation28]
        %525 = vst [vmem:[%s524] sm:$0xff] %v521
        %s526 = smov %s481
        %527 = vst [vmem:[%s526] sm:$0xff] %v516
        %s528 = smov %s482
        %529 = vst [vmem:[%s528] sm:$0xff] %v517
        %s530 = smov [#allocation29]
        %v531 = vld [vmem:[%s530] ss:$0 sm:$0xff]
        %v532 = vlaneseq
        %v533 = vand.u32 %v532, 127
        %v534 = vmov %v533
        %v535 = vlaneseq
        %v536 = vshrl.u32 %v535, 7
        %v537 = vmov %v536
        %vm539 = vcmp.eq.s32.totalorder %v537, %v534
        %v540 = vsel %vm539, %v531, 0.0
        %541 = vadd.xlane.f32.xlu0 %v540
        %v542 = vpop.xlane.xlu0 %541
        %s543 = smov [#allocation31]
        %544 = vst [vmem:[%s543] sm:$0xff] %v542
        %s545 = smov [#allocation30]
        %v546 = vld [vmem:[%s545] ss:$0 sm:$0xff]
        %v547 = vlaneseq
        %v548 = vand.u32 %v547, 127
        %v549 = vmov %v548
        %v550 = vlaneseq
        %v551 = vshrl.u32 %v550, 7
        %v552 = vmov %v551
        %vm554 = vcmp.eq.s32.totalorder %v552, %v549
        %v555 = vsel %vm554, %v546, 0.0
        %556 = vadd.xlane.f32.xlu0 %v555
        %v557 = vpop.xlane.xlu0 %556
        %s558 = smov [#allocation32]
        %559 = vst [vmem:[%s558] sm:$0xff] %v557
        %s560 = smov [#allocation31]
        %v561 = vld [vmem:[%s560] sm:$0xff]
        %s562 = smov [#allocation32]
        %v563 = vld [vmem:[%s562] sm:$0xff]
        %s564 = smov [#allocation20]
        %s565 = smov [#allocation21]
        %s566 = smov [#allocation22]
        %s567 = smov [#allocation23]
        %v568 = vld [vmem:[%s564] sm:$0x7]
        %v569 = vld [vmem:[%s565] sm:$0x7]
        %v570 = vld [vmem:[%s566] sm:$0x7]
        %v571 = vld [vmem:[%s567] sm:$0x7]
        %v572 = vmul.f32 %v561, %v568
        %v573 = vmul.f32 %v563, %v570
        %v574 = vsub.f32 %v572, %v573
        %v575 = vmul.f32 %v561, %v569
        %v576 = vmul.f32 %v563, %v571
        %v577 = vsub.f32 %v575, %v576
        %v578 = vmul.f32 %v563, %v568
        %v579 = vmul.f32 %v561, %v570
        %v580 = vadd.f32 %v578, %v579
        %v581 = vmul.f32 %v563, %v569
        %v582 = vmul.f32 %v561, %v571
        %v583 = vadd.f32 %v581, %v582
        %584 = vst [vmem:[%s564] sm:$0x7] %v574
        %585 = vst [vmem:[%s565] sm:$0x7] %v577
        %586 = vst [vmem:[%s566] sm:$0x7] %v580
        %587 = vst [vmem:[%s567] sm:$0x7] %v583
        %s588 = smov [#allocation29]
        %v589 = vld [vmem:[%s588] ss:$0 sm:$0xff]
        %s590 = smov [#allocation30]
        %v591 = vld [vmem:[%s590] ss:$0 sm:$0xff]
        %s592 = smov [#allocation20]
        %s593 = smov [#allocation21]
        %s594 = smov [#allocation22]
        %s595 = smov [#allocation23]
        %v596 = vld [vmem:[%s592] sm:$0x7]
        %v597 = vld [vmem:[%s593] sm:$0x7]
        %v598 = vld [vmem:[%s594] sm:$0x7]
        %v599 = vld [vmem:[%s595] sm:$0x7]
        %v600 = vmul.f32 %v589, %v596
        %v601 = vmul.f32 %v591, %v597
        %v602 = vsub.f32 %v600, %v601
        %v603 = vmul.f32 %v591, %v596
        %v604 = vmul.f32 %v589, %v597
        %v605 = vadd.f32 %v603, %v604
        %v606 = vmul.f32 %v589, %v598
        %v607 = vmul.f32 %v591, %v599
        %v608 = vsub.f32 %v606, %v607
        %v609 = vmul.f32 %v591, %v598
        %v610 = vmul.f32 %v589, %v599
        %v611 = vadd.f32 %v609, %v610
        %612 = vst [vmem:[%s592] sm:$0x7] %v602
        %613 = vst [vmem:[%s593] sm:$0x7] %v605
        %614 = vst [vmem:[%s594] sm:$0x7] %v608
        %615 = vst [vmem:[%s595] sm:$0x7] %v611
        %s616 = smov [#allocation20]
        %s617 = smov [#allocation27]
        %v618 = vlaneseq
        %v619 = vand.u32 %v618, 127
        %v620 = vmov %v619
        %v621 = vlaneseq
        %v622 = vshrl.u32 %v621, 7
        %v623 = vmov %v622
        %v624 = vld [vmem:[%s617] ss:$0 sm:$0xff]
        %v625 = vld [vmem:[%s616] sm:$0x7]
        %vm628 = vcmp.eq.s32.totalorder %v623, %v620
        %v629 = vsel %vm628, %v624, %v625
        %630 = vst [vmem:[%s616] sm:$0x7] %v629
        %s631 = smov [#allocation21]
        %v632 = vlaneseq
        %v633 = vand.u32 %v632, 127
        %v634 = vmov %v633
        %v635 = vlaneseq
        %v636 = vshrl.u32 %v635, 7
        %v637 = vmov %v636
        %v638 = vld [vmem:[%s631] sm:$0x7]
        %vm641 = vcmp.eq.s32.totalorder %v637, %v634
        %v642 = vsel %vm641, 0.0, %v638
        %643 = vst [vmem:[%s631] sm:$0x7] %v642
        %s644 = smov [#allocation22]
        %v645 = vlaneseq
        %v646 = vand.u32 %v645, 127
        %v647 = vmov %v646
        %v648 = vlaneseq
        %v649 = vshrl.u32 %v648, 7
        %v650 = vmov %v649
        %v651 = vld [vmem:[%s644] sm:$0x7]
        %vm654 = vcmp.eq.s32.totalorder %v650, %v647
        %v655 = vsel %vm654, 0.0, %v651
        %656 = vst [vmem:[%s644] sm:$0x7] %v655
        %s657 = smov [#allocation23]
        %s658 = smov [#allocation28]
        %v659 = vlaneseq
        %v660 = vand.u32 %v659, 127
        %v661 = vmov %v660
        %v662 = vlaneseq
        %v663 = vshrl.u32 %v662, 7
        %v664 = vmov %v663
        %v665 = vld [vmem:[%s658] ss:$0 sm:$0xff]
        %v666 = vld [vmem:[%s657] sm:$0x7]
        %vm669 = vcmp.eq.s32.totalorder %v664, %v661
        %v670 = vsel %vm669, %v665, %v666
        %671 = vst [vmem:[%s657] sm:$0x7] %v670
        %s672 = smov [#allocation20]
        %s673 = smov [#allocation21]
        %v674 = vld [vmem:[%s673] sm:$0x7]
        %675 = vrot.lane.b32.xlu0 %v674, 1
        %v676 = vpop.permute.xlu0 %675
        %v677 = vld [vmem:[%s672] sm:$0x7]
        %v678 = vld [vmem:[%s672] sm:$0x7]
        %679 = vrot.lane.b32.xlu0 %v678, 1
        %v680 = vpop.permute.xlu0 %679
        %v681 = vlaneseq
        %v682 = vand.u32 %v681, 127
        %vm683 = vcmp.eq.s32.totalorder %v682, 0
        %v684 = vsel %vm683, %v678, %v680
        %v685 = vlaneseq
        %v686 = vand.u32 %v685, 127
        %vm687 = vcmp.eq.s32.totalorder %v686, 1
        %v688 = vsel %vm687, %v676, %v684
        %v689 = vlaneseq
        %v690 = vand.u32 %v689, 127
        %vm691 = vcmp.ge.s32.totalorder %v690, 0
        %vm692 = vcmp.lt.s32.totalorder %v690, 3
        %vm693 = vmand %vm691, %vm692
        %v694 = vsel %vm693, %v688, 0.0
        %v695 = vld [vmem:[%s673] sm:$0x7]
        %696 = vrot.lane.b32.xlu0 %v695, 127
        %v697 = vpop.permute.xlu0 %696
        %v698 = vlaneseq
        %v699 = vand.u32 %v698, 127
        %vm700 = vcmp.eq.s32.totalorder %v699, 2
        %v701 = vsel %vm700, %v677, %v697
        %702 = vst [vmem:[%s672] sm:$0x7] %v694
        %703 = vst [vmem:[%s673] sm:$0x7] %v701
        %s704 = smov [#allocation22]
        %s705 = smov [#allocation23]
        %v706 = vld [vmem:[%s705] sm:$0x7]
        %707 = vrot.lane.b32.xlu0 %v706, 1
        %v708 = vpop.permute.xlu0 %707
        %v709 = vld [vmem:[%s704] sm:$0x7]
        %v710 = vld [vmem:[%s704] sm:$0x7]
        %711 = vrot.lane.b32.xlu0 %v710, 1
        %v712 = vpop.permute.xlu0 %711
        %v713 = vlaneseq
        %v714 = vand.u32 %v713, 127
        %vm715 = vcmp.eq.s32.totalorder %v714, 0
        %v716 = vsel %vm715, %v710, %v712
        %v717 = vlaneseq
        %v718 = vand.u32 %v717, 127
        %vm719 = vcmp.eq.s32.totalorder %v718, 1
        %v720 = vsel %vm719, %v708, %v716
        %v721 = vlaneseq
        %v722 = vand.u32 %v721, 127
        %vm723 = vcmp.ge.s32.totalorder %v722, 0
        %vm724 = vcmp.lt.s32.totalorder %v722, 3
        %vm725 = vmand %vm723, %vm724
        %v726 = vsel %vm725, %v720, 0.0
        %v727 = vld [vmem:[%s705] sm:$0x7]
        %728 = vrot.lane.b32.xlu0 %v727, 127
        %v729 = vpop.permute.xlu0 %728
        %v730 = vlaneseq
        %v731 = vand.u32 %v730, 127
        %vm732 = vcmp.eq.s32.totalorder %v731, 2
        %v733 = vsel %vm732, %v709, %v729
        %734 = vst [vmem:[%s704] sm:$0x7] %v726
        %735 = vst [vmem:[%s705] sm:$0x7] %v733
        %s736 = smov [#allocation20]
        %s737 = smov [#allocation22]
        %v738 = vld [vmem:[%s736] ss:$0 sm:$0xff]
        %s740 = scalar_lea.vmem %s736, 4294967295
        %v741 = vld [vmem:[%s740] sm:$0x6]
        %v742 = vlaneseq
        %v743 = vshrl.u32 %v742, 7
        %vm744 = vcmp.eq.s32.totalorder %v743, 0
        %v745 = vsel %vm744, %v738, %v741
        %s746 = scalar_lea.vmem %s736, 2
        %v747 = vld [vmem:[%s746] ss:$0 sm:$0xff]
        %748 = vst [vmem:[%s736] sm:$0x7] %v745
        %v749 = vld [vmem:[%s737] ss:$0 sm:$0xff]
        %s750 = scalar_lea.vmem %s736, 1
        %751 = vst [vmem:[%s750] sm:$0x1] %v749
        %s752 = scalar_lea.vmem %s737, 1
        %v753 = vld [vmem:[%s752] sm:$0x3]
        %v754 = vlaneseq
        %v755 = vshrl.u32 %v754, 7
        %vm756 = vcmp.eq.s32.totalorder %v755, 2
        %v757 = vsel %vm756, %v747, %v753
        %v758 = vld [vmem:[%s737] ss:$0 sm:$0xff]
        %759 = vst [vmem:[%s737] sm:$0x7] %v757
        %s760 = smov [#allocation21]
        %s761 = smov [#allocation23]
        %v762 = vld [vmem:[%s760] ss:$0 sm:$0xff]
        %s764 = scalar_lea.vmem %s760, 4294967295
        %v765 = vld [vmem:[%s764] sm:$0x6]
        %v766 = vlaneseq
        %v767 = vshrl.u32 %v766, 7
        %vm768 = vcmp.eq.s32.totalorder %v767, 0
        %v769 = vsel %vm768, %v762, %v765
        %s770 = scalar_lea.vmem %s760, 2
        %v771 = vld [vmem:[%s770] ss:$0 sm:$0xff]
        %772 = vst [vmem:[%s760] sm:$0x7] %v769
        %v773 = vld [vmem:[%s761] ss:$0 sm:$0xff]
        %s774 = scalar_lea.vmem %s760, 1
        %775 = vst [vmem:[%s774] sm:$0x1] %v773
        %s776 = scalar_lea.vmem %s761, 1
        %v777 = vld [vmem:[%s776] sm:$0x3]
        %v778 = vlaneseq
        %v779 = vshrl.u32 %v778, 7
        %vm780 = vcmp.eq.s32.totalorder %v779, 2
        %v781 = vsel %vm780, %v771, %v777
        %v782 = vld [vmem:[%s761] ss:$0 sm:$0xff]
        %783 = vst [vmem:[%s761] sm:$0x7] %v781
        %s784 = smov [#allocation31]
        %v785 = vld [vmem:[%s784] sm:$0xff]
        %s786 = smov [#allocation32]
        %v787 = vld [vmem:[%s786] sm:$0xff]
        %s788 = smov [#allocation12]
        %s789 = smov [#allocation14]
        %s790 = smov [#allocation16]
        %s791 = smov [#allocation18]
        %v792 = vld [vmem:[%s788] sm:$0x7]
        %v793 = vld [vmem:[%s789] sm:$0x7]
        %v794 = vld [vmem:[%s790] sm:$0x7]
        %v795 = vld [vmem:[%s791] sm:$0x7]
        %v796 = vmul.f32 %v785, %v792
        %v797 = vmul.f32 %v787, %v794
        %v798 = vsub.f32 %v796, %v797
        %v799 = vmul.f32 %v785, %v793
        %v800 = vmul.f32 %v787, %v795
        %v801 = vsub.f32 %v799, %v800
        %v802 = vmul.f32 %v787, %v792
        %v803 = vmul.f32 %v785, %v794
        %v804 = vadd.f32 %v802, %v803
        %v805 = vmul.f32 %v787, %v793
        %v806 = vmul.f32 %v785, %v795
        %v807 = vadd.f32 %v805, %v806
        %808 = vst [vmem:[%s788] sm:$0x7] %v798
        %809 = vst [vmem:[%s789] sm:$0x7] %v801
        %810 = vst [vmem:[%s790] sm:$0x7] %v804
        %811 = vst [vmem:[%s791] sm:$0x7] %v807
        %s812 = smov [#allocation12]
        %s813 = smov [#allocation16]
        %v814 = vld [vmem:[%s812] ss:$0 sm:$0xff]
        %s816 = scalar_lea.vmem %s812, 4294967295
        %v817 = vld [vmem:[%s816] sm:$0x6]
        %v818 = vlaneseq
        %v819 = vshrl.u32 %v818, 7
        %vm820 = vcmp.eq.s32.totalorder %v819, 0
        %v821 = vsel %vm820, %v814, %v817
        %s822 = scalar_lea.vmem %s812, 2
        %v823 = vld [vmem:[%s822] ss:$0 sm:$0xff]
        %824 = vst [vmem:[%s812] sm:$0x7] %v821
        %v825 = vld [vmem:[%s813] ss:$0 sm:$0xff]
        %s826 = scalar_lea.vmem %s812, 1
        %827 = vst [vmem:[%s826] sm:$0x1] %v825
        %s828 = scalar_lea.vmem %s813, 1
        %v829 = vld [vmem:[%s828] sm:$0x3]
        %v830 = vlaneseq
        %v831 = vshrl.u32 %v830, 7
        %vm832 = vcmp.eq.s32.totalorder %v831, 2
        %v833 = vsel %vm832, %v823, %v829
        %v834 = vld [vmem:[%s813] ss:$0 sm:$0xff]
        %835 = vst [vmem:[%s813] sm:$0x7] %v833
        %s836 = smov [#allocation14]
        %s837 = smov [#allocation18]
        %v838 = vld [vmem:[%s836] ss:$0 sm:$0xff]
        %s840 = scalar_lea.vmem %s836, 4294967295
        %v841 = vld [vmem:[%s840] sm:$0x6]
        %v842 = vlaneseq
        %v843 = vshrl.u32 %v842, 7
        %vm844 = vcmp.eq.s32.totalorder %v843, 0
        %v845 = vsel %vm844, %v838, %v841
        %s846 = scalar_lea.vmem %s836, 2
        %v847 = vld [vmem:[%s846] ss:$0 sm:$0xff]
        %848 = vst [vmem:[%s836] sm:$0x7] %v845
        %v849 = vld [vmem:[%s837] ss:$0 sm:$0xff]
        %s850 = scalar_lea.vmem %s836, 1
        %851 = vst [vmem:[%s850] sm:$0x1] %v849
        %s852 = scalar_lea.vmem %s837, 1
        %v853 = vld [vmem:[%s852] sm:$0x3]
        %v854 = vlaneseq
        %v855 = vshrl.u32 %v854, 7
        %vm856 = vcmp.eq.s32.totalorder %v855, 2
        %v857 = vsel %vm856, %v847, %v853
        %v858 = vld [vmem:[%s837] ss:$0 sm:$0xff]
        %859 = vst [vmem:[%s837] sm:$0x7] %v857
      $region101: #{custom-call.25} parent=93 // loop_footer
        %s420 = sadd.s32 1, %s416
      $region102: #{custom-call.25} parent=93 // loop_footer_branch
        %415 = sbr.rel target = $region98
      $region103: #{custom-call.25} parent=93 // loop_exit
        _
      %s860 = sadd.s32 %s318, 1
    $region94: #{custom-call.25} parent=1 // loop_footer
      _
    $region95: #{custom-call.25} parent=1 // loop_footer_branch
      %317 = sbr.rel target = $region91
    $region96: #{custom-call.25} parent=1 // loop_exit
      _
    %s863 = smov [#allocation20]
    %s864 = smov [#allocation8]
    %v865 = vlaneseq
    %v866 = vand.u32 %v865, 127
    %v867 = vmov %v866
    %v868 = vlaneseq
    %v869 = vshrl.u32 %v868, 7
    %v870 = vmov %v869
    %v871 = vld [vmem:[%s863] sm:$0x7]
    %vm874 = vcmp.eq.s32.totalorder %v870, %v867
    %v875 = vsel %vm874, %v871, 0.0
    %v876 = vrot.slane %v875, 4
    %v877 = vadd.f32 %v875, %v876
    %v878 = vrot.slane %v877, 2
    %v879 = vadd.f32 %v877, %v878
    %v880 = vrot.slane %v879, 1
    %v881 = vadd.f32 %v879, %v880
    %882 = vst [vmem:[%s864] sm:$0x1] %v881
    %s883 = smov [#allocation23]
    %s884 = smov [#allocation10]
    %v885 = vlaneseq
    %v886 = vand.u32 %v885, 127
    %v887 = vmov %v886
    %v888 = vlaneseq
    %v889 = vshrl.u32 %v888, 7
    %v890 = vmov %v889
    %v891 = vld [vmem:[%s883] sm:$0x7]
    %vm894 = vcmp.eq.s32.totalorder %v890, %v887
    %v895 = vsel %vm894, %v891, 0.0
    %v896 = vrot.slane %v895, 4
    %v897 = vadd.f32 %v895, %v896
    %v898 = vrot.slane %v897, 2
    %v899 = vadd.f32 %v897, %v898
    %v900 = vrot.slane %v899, 1
    %v901 = vadd.f32 %v899, %v900
    %902 = vst [vmem:[%s884] sm:$0x1] %v901
    %s904 = sshllo.u32 0, 1
    %v906 = vld [vmem:[#allocation8] sm:%s904]
    %s907 = sshllo.u32 0, 1
    %908 = vst [vmem:[#allocation9] sm:%s907] %v906
    %s910 = sshllo.u32 0, 1
    %v912 = vld [vmem:[#allocation10] sm:%s910]
    %s913 = sshllo.u32 0, 1
    %914 = vst [vmem:[#allocation11] sm:%s913] %v912
    %s916 = sshllo.u32 0, 4
    %v918 = vld [vmem:[#allocation12] sm:%s916]
    %s919 = sshllo.u32 0, 4
    %920 = vst [vmem:[#allocation13] sm:%s919] %v918
    %s922 = sshllo.u32 0, 4
    %v924 = vld [vmem:[#allocation14] sm:%s922]
    %s925 = sshllo.u32 0, 4
    %926 = vst [vmem:[#allocation15] sm:%s925] %v924
    %s928 = sshllo.u32 0, 4
    %v930 = vld [vmem:[#allocation16] sm:%s928]
    %s931 = sshllo.u32 0, 4
    %932 = vst [vmem:[#allocation17] sm:%s931] %v930
    %s934 = sshllo.u32 0, 4
    %v936 = vld [vmem:[#allocation18] sm:%s934]
    %s937 = sshllo.u32 0, 4
    %938 = vst [vmem:[#allocation19] sm:%s937] %v936
    // Predicated region
    $region104: #{custom-call.25} parent=1 // pred_check
      _
    $region105: #{custom-call.25} parent=1 // pred_check_branch
      %940 = sbr.rel (0) target = $region107
    $region106: #{custom-call.25} parent=1 // pred_region
      %p942 = scmp.gt.s32.totalorder 1, 0
      // Predicated region
      $region108: #{custom-call.25} parent=106 // pred_check
        %p943 = pneg %p942
      $region109: #{custom-call.25} parent=106 // pred_check_branch
        %945 = sbr.rel (%p943) target = $region111
      $region110: #{custom-call.25} parent=106 // pred_region
        %s946 = sshra.s32 1, 3
        %p947 = scmp.gt.s32.totalorder %s946, 0
        // Predicated region
        $region112: #{custom-call.25} parent=110 // pred_check
          %p948 = pneg %p947
        $region113: #{custom-call.25} parent=110 // pred_check_branch
          %950 = sbr.rel (%p948) target = $region115
        $region114: #{custom-call.25} parent=110 // pred_region
          %s951 = ssub.s32 %s946, 1
          %s952 = smul.u32 %s951, 128
          %s953 = sshra.s32 %s952, 4
          %s954 = scalar_lea.vmem [#allocation9], %s953
          %v955 = vld [vmem:[#allocation9] sm:$0xff]
          // While loop
          $region116: #{custom-call.25} parent=114 // loop_pre_header
            _
          $region117: #{custom-call.25} parent=114 // loop_header
            %s956 = sphi [#allocation9], %s978
            %s957 = sphi %s4, %s979
            %v958 = vphi %v955, %v980
            %s959 = ssub.s32 %s954, 64
            %p960 = scmp.gt.s32.totalorder %s956, %s959
          $region118: #{custom-call.25} parent=114 // loop_header_branch
            %962 = sbr.rel (%p960) target = $region122
          $region119: #{custom-call.25} parent=114 // loop_body
            %963 = vst [vmem:[%s957] sm:$0xff] %v958
            %v964 = vld [vmem:[%s956 + $0x8] sm:$0xff]
            %965 = vst [vmem:[%s957 + $0x8] sm:$0xff] %v964
            %v966 = vld [vmem:[%s956 + $0x10] sm:$0xff]
            %967 = vst [vmem:[%s957 + $0x10] sm:$0xff] %v966
            %v968 = vld [vmem:[%s956 + $0x18] sm:$0xff]
            %969 = vst [vmem:[%s957 + $0x18] sm:$0xff] %v968
            %v970 = vld [vmem:[%s956 + $0x20] sm:$0xff]
            %971 = vst [vmem:[%s957 + $0x20] sm:$0xff] %v970
            %v972 = vld [vmem:[%s956 + $0x28] sm:$0xff]
            %973 = vst [vmem:[%s957 + $0x28] sm:$0xff] %v972
            %v974 = vld [vmem:[%s956 + $0x30] sm:$0xff]
            %975 = vst [vmem:[%s957 + $0x30] sm:$0xff] %v974
            %v976 = vld [vmem:[%s956 + $0x38] sm:$0xff]
            %977 = vst [vmem:[%s957 + $0x38] sm:$0xff] %v976
          $region120: #{custom-call.25} parent=114 // loop_footer
            %s978 = scalar_lea.vmem %s956, 64
            %s979 = scalar_lea.vmem %s957, 64
            %v980 = vld [vmem:[%s956 + $0x40] sm:$0xff]
          $region121: #{custom-call.25} parent=114 // loop_footer_branch
            %981 = sbr.rel target = $region117
          $region122: #{custom-call.25} parent=114 // loop_exit
            _
          // While loop
          $region123: #{custom-call.25} parent=114 // loop_pre_header
            _
          $region124: #{custom-call.25} parent=114 // loop_header
            %s982 = sphi %s956, %s990
            %s983 = sphi %s957, %s991
            %v984 = vphi %v958, %v984
            %p985 = scmp.gt.s32.totalorder %s982, %s954
          $region125: #{custom-call.25} parent=114 // loop_header_branch
            %987 = sbr.rel (%p985) target = $region129
          $region126: #{custom-call.25} parent=114 // loop_body
            %v988 = vld [vmem:[%s982] sm:$0xff]
            %989 = vst [vmem:[%s983] sm:$0xff] %v988
          $region127: #{custom-call.25} parent=114 // loop_footer
            %s990 = scalar_lea.vmem %s982, 8
            %s991 = scalar_lea.vmem %s983, 8
          $region128: #{custom-call.25} parent=114 // loop_footer_branch
            %992 = sbr.rel target = $region124
          $region129: #{custom-call.25} parent=114 // loop_exit
            _
        $region115: #{custom-call.25} parent=110 // pred_fallthru
          _
        %s993 = sand.u32 1, 7
        %s994 = sshllo.u32 0, %s993
        %s995 = smul.u32 %s946, 128
        %s996 = sshra.s32 %s995, 4
        %s997 = scalar_lea.vmem %s4, %s996
        %s998 = smul.u32 %s946, 128
        %s999 = sshra.s32 %s998, 4
        %s1000 = scalar_lea.vmem [#allocation9], %s999
        %v1001 = vld [vmem:[%s1000] sm:%s994]
        %1002 = vst [vmem:[%s997] sm:%s994] %v1001
      $region111: #{custom-call.25} parent=106 // pred_fallthru
        _
    $region107: #{custom-call.25} parent=1 // pred_fallthru
      _
    // Predicated region
    $region130: #{custom-call.25} parent=1 // pred_check
      _
    $region131: #{custom-call.25} parent=1 // pred_check_branch
      %1004 = sbr.rel (0) target = $region133
    $region132: #{custom-call.25} parent=1 // pred_region
      %p1006 = scmp.gt.s32.totalorder 1, 0
      // Predicated region
      $region134: #{custom-call.25} parent=132 // pred_check
        %p1007 = pneg %p1006
      $region135: #{custom-call.25} parent=132 // pred_check_branch
        %1009 = sbr.rel (%p1007) target = $region137
      $region136: #{custom-call.25} parent=132 // pred_region
        %s1010 = sshra.s32 1, 3
        %p1011 = scmp.gt.s32.totalorder %s1010, 0
        // Predicated region
        $region138: #{custom-call.25} parent=136 // pred_check
          %p1012 = pneg %p1011
        $region139: #{custom-call.25} parent=136 // pred_check_branch
          %1014 = sbr.rel (%p1012) target = $region141
        $region140: #{custom-call.25} parent=136 // pred_region
          %s1015 = ssub.s32 %s1010, 1
          %s1016 = smul.u32 %s1015, 128
          %s1017 = sshra.s32 %s1016, 4
          %s1018 = scalar_lea.vmem [#allocation11], %s1017
          %v1019 = vld [vmem:[#allocation11] sm:$0xff]
          // While loop
          $region142: #{custom-call.25} parent=140 // loop_pre_header
            _
          $region143: #{custom-call.25} parent=140 // loop_header
            %s1020 = sphi [#allocation11], %s1042
            %s1021 = sphi %s5, %s1043
            %v1022 = vphi %v1019, %v1044
            %s1023 = ssub.s32 %s1018, 64
            %p1024 = scmp.gt.s32.totalorder %s1020, %s1023
          $region144: #{custom-call.25} parent=140 // loop_header_branch
            %1026 = sbr.rel (%p1024) target = $region148
          $region145: #{custom-call.25} parent=140 // loop_body
            %1027 = vst [vmem:[%s1021] sm:$0xff] %v1022
            %v1028 = vld [vmem:[%s1020 + $0x8] sm:$0xff]
            %1029 = vst [vmem:[%s1021 + $0x8] sm:$0xff] %v1028
            %v1030 = vld [vmem:[%s1020 + $0x10] sm:$0xff]
            %1031 = vst [vmem:[%s1021 + $0x10] sm:$0xff] %v1030
            %v1032 = vld [vmem:[%s1020 + $0x18] sm:$0xff]
            %1033 = vst [vmem:[%s1021 + $0x18] sm:$0xff] %v1032
            %v1034 = vld [vmem:[%s1020 + $0x20] sm:$0xff]
            %1035 = vst [vmem:[%s1021 + $0x20] sm:$0xff] %v1034
            %v1036 = vld [vmem:[%s1020 + $0x28] sm:$0xff]
            %1037 = vst [vmem:[%s1021 + $0x28] sm:$0xff] %v1036
            %v1038 = vld [vmem:[%s1020 + $0x30] sm:$0xff]
            %1039 = vst [vmem:[%s1021 + $0x30] sm:$0xff] %v1038
            %v1040 = vld [vmem:[%s1020 + $0x38] sm:$0xff]
            %1041 = vst [vmem:[%s1021 + $0x38] sm:$0xff] %v1040
          $region146: #{custom-call.25} parent=140 // loop_footer
            %s1042 = scalar_lea.vmem %s1020, 64
            %s1043 = scalar_lea.vmem %s1021, 64
            %v1044 = vld [vmem:[%s1020 + $0x40] sm:$0xff]
          $region147: #{custom-call.25} parent=140 // loop_footer_branch
            %1045 = sbr.rel target = $region143
          $region148: #{custom-call.25} parent=140 // loop_exit
            _
          // While loop
          $region149: #{custom-call.25} parent=140 // loop_pre_header
            _
          $region150: #{custom-call.25} parent=140 // loop_header
            %s1046 = sphi %s1020, %s1054
            %s1047 = sphi %s1021, %s1055
            %v1048 = vphi %v1022, %v1048
            %p1049 = scmp.gt.s32.totalorder %s1046, %s1018
          $region151: #{custom-call.25} parent=140 // loop_header_branch
            %1051 = sbr.rel (%p1049) target = $region155
          $region152: #{custom-call.25} parent=140 // loop_body
            %v1052 = vld [vmem:[%s1046] sm:$0xff]
            %1053 = vst [vmem:[%s1047] sm:$0xff] %v1052
          $region153: #{custom-call.25} parent=140 // loop_footer
            %s1054 = scalar_lea.vmem %s1046, 8
            %s1055 = scalar_lea.vmem %s1047, 8
          $region154: #{custom-call.25} parent=140 // loop_footer_branch
            %1056 = sbr.rel target = $region150
          $region155: #{custom-call.25} parent=140 // loop_exit
            _
        $region141: #{custom-call.25} parent=136 // pred_fallthru
          _
        %s1057 = sand.u32 1, 7
        %s1058 = sshllo.u32 0, %s1057
        %s1059 = smul.u32 %s1010, 128
        %s1060 = sshra.s32 %s1059, 4
        %s1061 = scalar_lea.vmem %s5, %s1060
        %s1062 = smul.u32 %s1010, 128
        %s1063 = sshra.s32 %s1062, 4
        %s1064 = scalar_lea.vmem [#allocation11], %s1063
        %v1065 = vld [vmem:[%s1064] sm:%s1058]
        %1066 = vst [vmem:[%s1061] sm:%s1058] %v1065
      $region137: #{custom-call.25} parent=132 // pred_fallthru
        _
    $region133: #{custom-call.25} parent=1 // pred_fallthru
      _
    %p1068 = scmp.gt.s32.totalorder 4, 0
    // Predicated region
    $region156: #{custom-call.25} parent=1 // pred_check
      %p1069 = pneg %p1068
    $region157: #{custom-call.25} parent=1 // pred_check_branch
      %1071 = sbr.rel (%p1069) target = $region159
    $region158: #{custom-call.25} parent=1 // pred_region
      %s1072 = sshra.s32 4, 3
      %p1073 = scmp.gt.s32.totalorder %s1072, 0
      // Predicated region
      $region160: #{custom-call.25} parent=158 // pred_check
        %p1074 = pneg %p1073
      $region161: #{custom-call.25} parent=158 // pred_check_branch
        %1076 = sbr.rel (%p1074) target = $region163
      $region162: #{custom-call.25} parent=158 // pred_region
        %s1077 = ssub.s32 %s1072, 1
        %s1078 = smul.u32 %s1077, 128
        %s1079 = sshra.s32 %s1078, 4
        %s1080 = scalar_lea.vmem [#allocation13], %s1079
        %v1081 = vld [vmem:[#allocation13] sm:$0xff]
        // While loop
        $region164: #{custom-call.25} parent=162 // loop_pre_header
          _
        $region165: #{custom-call.25} parent=162 // loop_header
          %s1082 = sphi [#allocation13], %s1104
          %s1083 = sphi %s6, %s1105
          %v1084 = vphi %v1081, %v1106
          %s1085 = ssub.s32 %s1080, 64
          %p1086 = scmp.gt.s32.totalorder %s1082, %s1085
        $region166: #{custom-call.25} parent=162 // loop_header_branch
          %1088 = sbr.rel (%p1086) target = $region170
        $region167: #{custom-call.25} parent=162 // loop_body
          %1089 = vst [vmem:[%s1083] sm:$0xff] %v1084
          %v1090 = vld [vmem:[%s1082 + $0x8] sm:$0xff]
          %1091 = vst [vmem:[%s1083 + $0x8] sm:$0xff] %v1090
          %v1092 = vld [vmem:[%s1082 + $0x10] sm:$0xff]
          %1093 = vst [vmem:[%s1083 + $0x10] sm:$0xff] %v1092
          %v1094 = vld [vmem:[%s1082 + $0x18] sm:$0xff]
          %1095 = vst [vmem:[%s1083 + $0x18] sm:$0xff] %v1094
          %v1096 = vld [vmem:[%s1082 + $0x20] sm:$0xff]
          %1097 = vst [vmem:[%s1083 + $0x20] sm:$0xff] %v1096
          %v1098 = vld [vmem:[%s1082 + $0x28] sm:$0xff]
          %1099 = vst [vmem:[%s1083 + $0x28] sm:$0xff] %v1098
          %v1100 = vld [vmem:[%s1082 + $0x30] sm:$0xff]
          %1101 = vst [vmem:[%s1083 + $0x30] sm:$0xff] %v1100
          %v1102 = vld [vmem:[%s1082 + $0x38] sm:$0xff]
          %1103 = vst [vmem:[%s1083 + $0x38] sm:$0xff] %v1102
        $region168: #{custom-call.25} parent=162 // loop_footer
          %s1104 = scalar_lea.vmem %s1082, 64
          %s1105 = scalar_lea.vmem %s1083, 64
          %v1106 = vld [vmem:[%s1082 + $0x40] sm:$0xff]
        $region169: #{custom-call.25} parent=162 // loop_footer_branch
          %1107 = sbr.rel target = $region165
        $region170: #{custom-call.25} parent=162 // loop_exit
          _
        // While loop
        $region171: #{custom-call.25} parent=162 // loop_pre_header
          _
        $region172: #{custom-call.25} parent=162 // loop_header
          %s1108 = sphi %s1082, %s1116
          %s1109 = sphi %s1083, %s1117
          %v1110 = vphi %v1084, %v1110
          %p1111 = scmp.gt.s32.totalorder %s1108, %s1080
        $region173: #{custom-call.25} parent=162 // loop_header_branch
          %1113 = sbr.rel (%p1111) target = $region177
        $region174: #{custom-call.25} parent=162 // loop_body
          %v1114 = vld [vmem:[%s1108] sm:$0xff]
          %1115 = vst [vmem:[%s1109] sm:$0xff] %v1114
        $region175: #{custom-call.25} parent=162 // loop_footer
          %s1116 = scalar_lea.vmem %s1108, 8
          %s1117 = scalar_lea.vmem %s1109, 8
        $region176: #{custom-call.25} parent=162 // loop_footer_branch
          %1118 = sbr.rel target = $region172
        $region177: #{custom-call.25} parent=162 // loop_exit
          _
      $region163: #{custom-call.25} parent=158 // pred_fallthru
        _
      %s1119 = sand.u32 4, 7
      %s1120 = sshllo.u32 0, %s1119
      %s1121 = smul.u32 %s1072, 128
      %s1122 = sshra.s32 %s1121, 4
      %s1123 = scalar_lea.vmem %s6, %s1122
      %s1124 = smul.u32 %s1072, 128
      %s1125 = sshra.s32 %s1124, 4
      %s1126 = scalar_lea.vmem [#allocation13], %s1125
      %v1127 = vld [vmem:[%s1126] sm:%s1120]
      %1128 = vst [vmem:[%s1123] sm:%s1120] %v1127
    $region159: #{custom-call.25} parent=1 // pred_fallthru
      _
    %p1130 = scmp.gt.s32.totalorder 4, 0
    // Predicated region
    $region178: #{custom-call.25} parent=1 // pred_check
      %p1131 = pneg %p1130
    $region179: #{custom-call.25} parent=1 // pred_check_branch
      %1133 = sbr.rel (%p1131) target = $region181
    $region180: #{custom-call.25} parent=1 // pred_region
      %s1134 = sshra.s32 4, 3
      %p1135 = scmp.gt.s32.totalorder %s1134, 0
      // Predicated region
      $region182: #{custom-call.25} parent=180 // pred_check
        %p1136 = pneg %p1135
      $region183: #{custom-call.25} parent=180 // pred_check_branch
        %1138 = sbr.rel (%p1136) target = $region185
      $region184: #{custom-call.25} parent=180 // pred_region
        %s1139 = ssub.s32 %s1134, 1
        %s1140 = smul.u32 %s1139, 128
        %s1141 = sshra.s32 %s1140, 4
        %s1142 = scalar_lea.vmem [#allocation15], %s1141
        %v1143 = vld [vmem:[#allocation15] sm:$0xff]
        // While loop
        $region186: #{custom-call.25} parent=184 // loop_pre_header
          _
        $region187: #{custom-call.25} parent=184 // loop_header
          %s1144 = sphi [#allocation15], %s1166
          %s1145 = sphi %s7, %s1167
          %v1146 = vphi %v1143, %v1168
          %s1147 = ssub.s32 %s1142, 64
          %p1148 = scmp.gt.s32.totalorder %s1144, %s1147
        $region188: #{custom-call.25} parent=184 // loop_header_branch
          %1150 = sbr.rel (%p1148) target = $region192
        $region189: #{custom-call.25} parent=184 // loop_body
          %1151 = vst [vmem:[%s1145] sm:$0xff] %v1146
          %v1152 = vld [vmem:[%s1144 + $0x8] sm:$0xff]
          %1153 = vst [vmem:[%s1145 + $0x8] sm:$0xff] %v1152
          %v1154 = vld [vmem:[%s1144 + $0x10] sm:$0xff]
          %1155 = vst [vmem:[%s1145 + $0x10] sm:$0xff] %v1154
          %v1156 = vld [vmem:[%s1144 + $0x18] sm:$0xff]
          %1157 = vst [vmem:[%s1145 + $0x18] sm:$0xff] %v1156
          %v1158 = vld [vmem:[%s1144 + $0x20] sm:$0xff]
          %1159 = vst [vmem:[%s1145 + $0x20] sm:$0xff] %v1158
          %v1160 = vld [vmem:[%s1144 + $0x28] sm:$0xff]
          %1161 = vst [vmem:[%s1145 + $0x28] sm:$0xff] %v1160
          %v1162 = vld [vmem:[%s1144 + $0x30] sm:$0xff]
          %1163 = vst [vmem:[%s1145 + $0x30] sm:$0xff] %v1162
          %v1164 = vld [vmem:[%s1144 + $0x38] sm:$0xff]
          %1165 = vst [vmem:[%s1145 + $0x38] sm:$0xff] %v1164
        $region190: #{custom-call.25} parent=184 // loop_footer
          %s1166 = scalar_lea.vmem %s1144, 64
          %s1167 = scalar_lea.vmem %s1145, 64
          %v1168 = vld [vmem:[%s1144 + $0x40] sm:$0xff]
        $region191: #{custom-call.25} parent=184 // loop_footer_branch
          %1169 = sbr.rel target = $region187
        $region192: #{custom-call.25} parent=184 // loop_exit
          _
        // While loop
        $region193: #{custom-call.25} parent=184 // loop_pre_header
          _
        $region194: #{custom-call.25} parent=184 // loop_header
          %s1170 = sphi %s1144, %s1178
          %s1171 = sphi %s1145, %s1179
          %v1172 = vphi %v1146, %v1172
          %p1173 = scmp.gt.s32.totalorder %s1170, %s1142
        $region195: #{custom-call.25} parent=184 // loop_header_branch
          %1175 = sbr.rel (%p1173) target = $region199
        $region196: #{custom-call.25} parent=184 // loop_body
          %v1176 = vld [vmem:[%s1170] sm:$0xff]
          %1177 = vst [vmem:[%s1171] sm:$0xff] %v1176
        $region197: #{custom-call.25} parent=184 // loop_footer
          %s1178 = scalar_lea.vmem %s1170, 8
          %s1179 = scalar_lea.vmem %s1171, 8
        $region198: #{custom-call.25} parent=184 // loop_footer_branch
          %1180 = sbr.rel target = $region194
        $region199: #{custom-call.25} parent=184 // loop_exit
          _
      $region185: #{custom-call.25} parent=180 // pred_fallthru
        _
      %s1181 = sand.u32 4, 7
      %s1182 = sshllo.u32 0, %s1181
      %s1183 = smul.u32 %s1134, 128
      %s1184 = sshra.s32 %s1183, 4
      %s1185 = scalar_lea.vmem %s7, %s1184
      %s1186 = smul.u32 %s1134, 128
      %s1187 = sshra.s32 %s1186, 4
      %s1188 = scalar_lea.vmem [#allocation15], %s1187
      %v1189 = vld [vmem:[%s1188] sm:%s1182]
      %1190 = vst [vmem:[%s1185] sm:%s1182] %v1189
    $region181: #{custom-call.25} parent=1 // pred_fallthru
      _
    %p1192 = scmp.gt.s32.totalorder 4, 0
    // Predicated region
    $region200: #{custom-call.25} parent=1 // pred_check
      %p1193 = pneg %p1192
    $region201: #{custom-call.25} parent=1 // pred_check_branch
      %1195 = sbr.rel (%p1193) target = $region203
    $region202: #{custom-call.25} parent=1 // pred_region
      %s1196 = sshra.s32 4, 3
      %p1197 = scmp.gt.s32.totalorder %s1196, 0
      // Predicated region
      $region204: #{custom-call.25} parent=202 // pred_check
        %p1198 = pneg %p1197
      $region205: #{custom-call.25} parent=202 // pred_check_branch
        %1200 = sbr.rel (%p1198) target = $region207
      $region206: #{custom-call.25} parent=202 // pred_region
        %s1201 = ssub.s32 %s1196, 1
        %s1202 = smul.u32 %s1201, 128
        %s1203 = sshra.s32 %s1202, 4
        %s1204 = scalar_lea.vmem [#allocation17], %s1203
        %v1205 = vld [vmem:[#allocation17] sm:$0xff]
        // While loop
        $region208: #{custom-call.25} parent=206 // loop_pre_header
          _
        $region209: #{custom-call.25} parent=206 // loop_header
          %s1206 = sphi [#allocation17], %s1228
          %s1207 = sphi %s8, %s1229
          %v1208 = vphi %v1205, %v1230
          %s1209 = ssub.s32 %s1204, 64
          %p1210 = scmp.gt.s32.totalorder %s1206, %s1209
        $region210: #{custom-call.25} parent=206 // loop_header_branch
          %1212 = sbr.rel (%p1210) target = $region214
        $region211: #{custom-call.25} parent=206 // loop_body
          %1213 = vst [vmem:[%s1207] sm:$0xff] %v1208
          %v1214 = vld [vmem:[%s1206 + $0x8] sm:$0xff]
          %1215 = vst [vmem:[%s1207 + $0x8] sm:$0xff] %v1214
          %v1216 = vld [vmem:[%s1206 + $0x10] sm:$0xff]
          %1217 = vst [vmem:[%s1207 + $0x10] sm:$0xff] %v1216
          %v1218 = vld [vmem:[%s1206 + $0x18] sm:$0xff]
          %1219 = vst [vmem:[%s1207 + $0x18] sm:$0xff] %v1218
          %v1220 = vld [vmem:[%s1206 + $0x20] sm:$0xff]
          %1221 = vst [vmem:[%s1207 + $0x20] sm:$0xff] %v1220
          %v1222 = vld [vmem:[%s1206 + $0x28] sm:$0xff]
          %1223 = vst [vmem:[%s1207 + $0x28] sm:$0xff] %v1222
          %v1224 = vld [vmem:[%s1206 + $0x30] sm:$0xff]
          %1225 = vst [vmem:[%s1207 + $0x30] sm:$0xff] %v1224
          %v1226 = vld [vmem:[%s1206 + $0x38] sm:$0xff]
          %1227 = vst [vmem:[%s1207 + $0x38] sm:$0xff] %v1226
        $region212: #{custom-call.25} parent=206 // loop_footer
          %s1228 = scalar_lea.vmem %s1206, 64
          %s1229 = scalar_lea.vmem %s1207, 64
          %v1230 = vld [vmem:[%s1206 + $0x40] sm:$0xff]
        $region213: #{custom-call.25} parent=206 // loop_footer_branch
          %1231 = sbr.rel target = $region209
        $region214: #{custom-call.25} parent=206 // loop_exit
          _
        // While loop
        $region215: #{custom-call.25} parent=206 // loop_pre_header
          _
        $region216: #{custom-call.25} parent=206 // loop_header
          %s1232 = sphi %s1206, %s1240
          %s1233 = sphi %s1207, %s1241
          %v1234 = vphi %v1208, %v1234
          %p1235 = scmp.gt.s32.totalorder %s1232, %s1204
        $region217: #{custom-call.25} parent=206 // loop_header_branch
          %1237 = sbr.rel (%p1235) target = $region221
        $region218: #{custom-call.25} parent=206 // loop_body
          %v1238 = vld [vmem:[%s1232] sm:$0xff]
          %1239 = vst [vmem:[%s1233] sm:$0xff] %v1238
        $region219: #{custom-call.25} parent=206 // loop_footer
          %s1240 = scalar_lea.vmem %s1232, 8
          %s1241 = scalar_lea.vmem %s1233, 8
        $region220: #{custom-call.25} parent=206 // loop_footer_branch
          %1242 = sbr.rel target = $region216
        $region221: #{custom-call.25} parent=206 // loop_exit
          _
      $region207: #{custom-call.25} parent=202 // pred_fallthru
        _
      %s1243 = sand.u32 4, 7
      %s1244 = sshllo.u32 0, %s1243
      %s1245 = smul.u32 %s1196, 128
      %s1246 = sshra.s32 %s1245, 4
      %s1247 = scalar_lea.vmem %s8, %s1246
      %s1248 = smul.u32 %s1196, 128
      %s1249 = sshra.s32 %s1248, 4
      %s1250 = scalar_lea.vmem [#allocation17], %s1249
      %v1251 = vld [vmem:[%s1250] sm:%s1244]
      %1252 = vst [vmem:[%s1247] sm:%s1244] %v1251
    $region203: #{custom-call.25} parent=1 // pred_fallthru
      _
    %p1254 = scmp.gt.s32.totalorder 4, 0
    // Predicated region
    $region222: #{custom-call.25} parent=1 // pred_check
      %p1255 = pneg %p1254
    $region223: #{custom-call.25} parent=1 // pred_check_branch
      %1257 = sbr.rel (%p1255) target = $region225
    $region224: #{custom-call.25} parent=1 // pred_region
      %s1258 = sshra.s32 4, 3
      %p1259 = scmp.gt.s32.totalorder %s1258, 0
      // Predicated region
      $region226: #{custom-call.25} parent=224 // pred_check
        %p1260 = pneg %p1259
      $region227: #{custom-call.25} parent=224 // pred_check_branch
        %1262 = sbr.rel (%p1260) target = $region229
      $region228: #{custom-call.25} parent=224 // pred_region
        %s1263 = ssub.s32 %s1258, 1
        %s1264 = smul.u32 %s1263, 128
        %s1265 = sshra.s32 %s1264, 4
        %s1266 = scalar_lea.vmem [#allocation19], %s1265
        %v1267 = vld [vmem:[#allocation19] sm:$0xff]
        // While loop
        $region230: #{custom-call.25} parent=228 // loop_pre_header
          _
        $region231: #{custom-call.25} parent=228 // loop_header
          %s1268 = sphi [#allocation19], %s1290
          %s1269 = sphi %s9, %s1291
          %v1270 = vphi %v1267, %v1292
          %s1271 = ssub.s32 %s1266, 64
          %p1272 = scmp.gt.s32.totalorder %s1268, %s1271
        $region232: #{custom-call.25} parent=228 // loop_header_branch
          %1274 = sbr.rel (%p1272) target = $region236
        $region233: #{custom-call.25} parent=228 // loop_body
          %1275 = vst [vmem:[%s1269] sm:$0xff] %v1270
          %v1276 = vld [vmem:[%s1268 + $0x8] sm:$0xff]
          %1277 = vst [vmem:[%s1269 + $0x8] sm:$0xff] %v1276
          %v1278 = vld [vmem:[%s1268 + $0x10] sm:$0xff]
          %1279 = vst [vmem:[%s1269 + $0x10] sm:$0xff] %v1278
          %v1280 = vld [vmem:[%s1268 + $0x18] sm:$0xff]
          %1281 = vst [vmem:[%s1269 + $0x18] sm:$0xff] %v1280
          %v1282 = vld [vmem:[%s1268 + $0x20] sm:$0xff]
          %1283 = vst [vmem:[%s1269 + $0x20] sm:$0xff] %v1282
          %v1284 = vld [vmem:[%s1268 + $0x28] sm:$0xff]
          %1285 = vst [vmem:[%s1269 + $0x28] sm:$0xff] %v1284
          %v1286 = vld [vmem:[%s1268 + $0x30] sm:$0xff]
          %1287 = vst [vmem:[%s1269 + $0x30] sm:$0xff] %v1286
          %v1288 = vld [vmem:[%s1268 + $0x38] sm:$0xff]
          %1289 = vst [vmem:[%s1269 + $0x38] sm:$0xff] %v1288
        $region234: #{custom-call.25} parent=228 // loop_footer
          %s1290 = scalar_lea.vmem %s1268, 64
          %s1291 = scalar_lea.vmem %s1269, 64
          %v1292 = vld [vmem:[%s1268 + $0x40] sm:$0xff]
        $region235: #{custom-call.25} parent=228 // loop_footer_branch
          %1293 = sbr.rel target = $region231
        $region236: #{custom-call.25} parent=228 // loop_exit
          _
        // While loop
        $region237: #{custom-call.25} parent=228 // loop_pre_header
          _
        $region238: #{custom-call.25} parent=228 // loop_header
          %s1294 = sphi %s1268, %s1302
          %s1295 = sphi %s1269, %s1303
          %v1296 = vphi %v1270, %v1296
          %p1297 = scmp.gt.s32.totalorder %s1294, %s1266
        $region239: #{custom-call.25} parent=228 // loop_header_branch
          %1299 = sbr.rel (%p1297) target = $region243
        $region240: #{custom-call.25} parent=228 // loop_body
          %v1300 = vld [vmem:[%s1294] sm:$0xff]
          %1301 = vst [vmem:[%s1295] sm:$0xff] %v1300
        $region241: #{custom-call.25} parent=228 // loop_footer
          %s1302 = scalar_lea.vmem %s1294, 8
          %s1303 = scalar_lea.vmem %s1295, 8
        $region242: #{custom-call.25} parent=228 // loop_footer_branch
          %1304 = sbr.rel target = $region238
        $region243: #{custom-call.25} parent=228 // loop_exit
          _
      $region229: #{custom-call.25} parent=224 // pred_fallthru
        _
      %s1305 = sand.u32 4, 7
      %s1306 = sshllo.u32 0, %s1305
      %s1307 = smul.u32 %s1258, 128
      %s1308 = sshra.s32 %s1307, 4
      %s1309 = scalar_lea.vmem %s9, %s1308
      %s1310 = smul.u32 %s1258, 128
      %s1311 = sshra.s32 %s1310, 4
      %s1312 = scalar_lea.vmem [#allocation19], %s1311
      %v1313 = vld [vmem:[%s1312] sm:%s1306]
      %1314 = vst [vmem:[%s1309] sm:%s1306] %v1313
    $region225: #{custom-call.25} parent=1 // pred_fallthru
      _
    // Predicated region
    $region244: #{custom-call.25} parent=1 // pred_check
      _
    $region245: #{custom-call.25} parent=1 // pred_check_branch
      %1316 = sbr.rel (0) target = $region247
    $region246: #{custom-call.25} parent=1 // pred_region
      _
    $region247: #{custom-call.25} parent=1 // pred_fallthru
      _
    // Predicated region
    $region248: #{custom-call.25} parent=1 // pred_check
      _
    $region249: #{custom-call.25} parent=1 // pred_check_branch
      %1318 = sbr.rel (0) target = $region251
    $region250: #{custom-call.25} parent=1 // pred_region
      _
    $region251: #{custom-call.25} parent=1 // pred_fallthru
      _

// kernel: reverse
$region0: #{reverse}
  %s0 = inlined_call_operand.vmem [shape: f32[5], index: 0, kind: input, shape index: {}]
  %s1 = inlined_call_operand.vmem [shape: f32[5], index: 1, kind: output, shape index: {}]
  %v2 = vlaneseq
  %v3 = vsub.s32 4, %v2
  %4 = vset.pattern.permute.xlu0 %v3
  $region1: #{reverse} parent=0
    #allocation0 [shape = 'u8[8192]{0}', space=vmem, size = 0x2000, scoped, tag = 'operand span for operand 0']
    #allocation1 [shape = 'u8[1024]{0}', space=vmem, size = 0x400, scoped, tag = 'packed  for operand 0']
    #allocation2 [shape = 'u8[4096]{0}', space=vmem, size = 0x1000, scoped, tag = 'operand span for operand 1']
    #allocation3 [shape = 'u8[512]{0}', space=vmem, size = 0x400, scoped, tag = 'packed  for operand 1']
    %s5 = scalar_lea.vmem [#allocation1], 1
    // Predicated region
    $region2: #{reverse} parent=1 // pred_check
      _
    $region3: #{reverse} parent=1 // pred_check_branch
      %7 = sbr.rel (0) target = $region5
    $region4: #{reverse} parent=1 // pred_region
      // Predicated region
      $region6: #{reverse} parent=4 // pred_check
        _
      $region7: #{reverse} parent=4 // pred_check_branch
        %9 = sbr.rel target = $region9
      $region8: #{reverse} parent=4 // pred_region
        // Predicated region
        $region21: #{reverse} parent=8 // pred_check
          _
        $region22: #{reverse} parent=8 // pred_check_branch
          %24 = sbr.rel (0) target = $region24
        $region23: #{reverse} parent=8 // pred_region
          loop: start=0, step=1, limit=1
          $region25: #{reverse} parent=23 // loop_pre_header
            _
          $region26: #{reverse} parent=23 // loop_header
            %s27 = sphi 0, %s31
            %p28 = scmp.ge.s32.totalorder %s27, 1
            %s32 = sphi %s0, %s0
            %s33 = sphi %s5, %s5
          $region27: #{reverse} parent=23 // loop_header_branch
            %30 = sbr.rel (%p28) target = $region31
          $region28: #{reverse} parent=23 // loop_body
            %v34 = vld [vmem:[%s32] sm:$0x1]
            %35 = vst [vmem:[%s33] sm:$0x1] %v34
          $region29: #{reverse} parent=23 // loop_footer
            %s31 = sadd.s32 1, %s27
          $region30: #{reverse} parent=23 // loop_footer_branch
            %26 = sbr.rel target = $region26
          $region31: #{reverse} parent=23 // loop_exit
            _
        $region24: #{reverse} parent=8 // pred_fallthru
          _
      $region9: #{reverse} parent=4 // pred_fallthru
        _
      // Predicated region
      $region10: #{reverse} parent=4 // pred_check
        _
      $region11: #{reverse} parent=4 // pred_check_branch
        %11 = sbr.rel (0) target = $region13
      $region12: #{reverse} parent=4 // pred_region
        loop: start=0, step=1, limit=1
        $region14: #{reverse} parent=12 // loop_pre_header
          _
        $region15: #{reverse} parent=12 // loop_header
          %s14 = sphi 0, %s18
          %p15 = scmp.ge.s32.totalorder %s14, 1
          %s19 = sphi %s0, %s0
          %s20 = sphi %s5, %s5
        $region16: #{reverse} parent=12 // loop_header_branch
          %17 = sbr.rel (%p15) target = $region20
        $region17: #{reverse} parent=12 // loop_body
          %v21 = vld [vmem:[%s19] sm:$0x1]
          %22 = vst [vmem:[%s20] sm:$0x1] %v21
        $region18: #{reverse} parent=12 // loop_footer
          %s18 = sadd.s32 1, %s14
        $region19: #{reverse} parent=12 // loop_footer_branch
          %13 = sbr.rel target = $region15
        $region20: #{reverse} parent=12 // loop_exit
          _
      $region13: #{reverse} parent=4 // pred_fallthru
        _
    $region5: #{reverse} parent=1 // pred_fallthru
      _
    %36 = vnop
    %s38 = sshllo.u32 0, 1
    %s39 = scalar_lea.vmem [#allocation1], 1
    %v40 = vld [vmem:[%s39] sm:%s38]
    %s41 = scalar_lea.vmem [#allocation0], 8
    %42 = vst [vmem:[%s41] sm:%s38] %v40
    %v43 = vld [vmem:[#allocation1] sm:%s38]
    %44 = vst [vmem:[#allocation0] sm:%s38] %v43
    %s45 = scalar_lea.vmem [#allocation0], 7
    %v46 = vld [vmem:[%s45] ss:$-1 sm:$0xff]
    %v47 = vrot.slane %v46, 7
    %48 = vperm.xlu0 %4, %v47
    %v49 = vpop.permute.xlu0 %48
    %50 = vst [vmem:[#allocation2] sm:$0xff] %v49
    %s51 = scalar_lea.vmem [#allocation0], 8
    %s52 = scalar_lea.vmem %s51, 7 [#allocation0]
    %v53 = vld [vmem:[%s52] ss:$-1 sm:$0xff]
    %v54 = vrot.slane %v53, 7
    %55 = vperm.xlu0 %4, %v54
    %v56 = vpop.permute.xlu0 %55
    %v57 = vlaneseq
    %v58 = vshrl.u32 %v57, 7
    %vm59 = vcmp.lt.s32.totalorder %v58, 1
    %60 = vst.msk [vmem:[#allocation2] sm:$0xff] %vm59, %v56
    %s62 = sshllo.u32 0, 1
    %v64 = vld [vmem:[#allocation2] sm:%s62]
    %s65 = sshllo.u32 0, 1
    %66 = vst [vmem:[#allocation3] sm:%s65] %v64
    // Predicated region
    $region32: #{reverse} parent=1 // pred_check
      _
    $region33: #{reverse} parent=1 // pred_check_branch
      %68 = sbr.rel (0) target = $region35
    $region34: #{reverse} parent=1 // pred_region
      // Predicated region
      $region36: #{reverse} parent=34 // pred_check
        _
      $region37: #{reverse} parent=34 // pred_check_branch
        %70 = sbr.rel target = $region39
      $region38: #{reverse} parent=34 // pred_region
        // Predicated region
        $region51: #{reverse} parent=38 // pred_check
          _
        $region52: #{reverse} parent=38 // pred_check_branch
          %85 = sbr.rel (0) target = $region54
        $region53: #{reverse} parent=38 // pred_region
          loop: start=0, step=1, limit=1
          $region55: #{reverse} parent=53 // loop_pre_header
            _
          $region56: #{reverse} parent=53 // loop_header
            %s88 = sphi 0, %s92
            %p89 = scmp.ge.s32.totalorder %s88, 1
            %s93 = sphi [#allocation3], [#allocation3]
            %s94 = sphi %s1, %s1
          $region57: #{reverse} parent=53 // loop_header_branch
            %91 = sbr.rel (%p89) target = $region61
          $region58: #{reverse} parent=53 // loop_body
            %v95 = vld [vmem:[%s93] sm:$0x1]
            %96 = vst [vmem:[%s94] sm:$0x1] %v95
          $region59: #{reverse} parent=53 // loop_footer
            %s92 = sadd.s32 1, %s88
          $region60: #{reverse} parent=53 // loop_footer_branch
            %87 = sbr.rel target = $region56
          $region61: #{reverse} parent=53 // loop_exit
            _
        $region54: #{reverse} parent=38 // pred_fallthru
          _
      $region39: #{reverse} parent=34 // pred_fallthru
        _
      // Predicated region
      $region40: #{reverse} parent=34 // pred_check
        _
      $region41: #{reverse} parent=34 // pred_check_branch
        %72 = sbr.rel (0) target = $region43
      $region42: #{reverse} parent=34 // pred_region
        loop: start=0, step=1, limit=1
        $region44: #{reverse} parent=42 // loop_pre_header
          _
        $region45: #{reverse} parent=42 // loop_header
          %s75 = sphi 0, %s79
          %p76 = scmp.ge.s32.totalorder %s75, 1
          %s80 = sphi [#allocation3], [#allocation3]
          %s81 = sphi %s1, %s1
        $region46: #{reverse} parent=42 // loop_header_branch
          %78 = sbr.rel (%p76) target = $region50
        $region47: #{reverse} parent=42 // loop_body
          %v82 = vld [vmem:[%s80] sm:$0x1]
          %83 = vst [vmem:[%s81] sm:$0x1] %v82
        $region48: #{reverse} parent=42 // loop_footer
          %s79 = sadd.s32 1, %s75
        $region49: #{reverse} parent=42 // loop_footer_branch
          %74 = sbr.rel target = $region45
        $region50: #{reverse} parent=42 // loop_exit
          _
      $region43: #{reverse} parent=34 // pred_fallthru
        _
    $region35: #{reverse} parent=1 // pred_fallthru
      _
    %97 = vnop

// kernel: custom-call.19
$region0: #{custom-call.19}
  %s0 = inlined_call_operand.vmem [shape: f32[5,5], index: 0, kind: input, shape index: {}]
  %s1 = inlined_call_operand.vmem [shape: f32[5,5], index: 1, kind: output, shape index: {0}]
  %s2 = inlined_call_operand.vmem [shape: f32[5], index: 2, kind: output, shape index: {1}]
  %3 = xla_tuple %s1, %s2
  $region1: #{custom-call.19} parent=0
    #allocation0 [shape = 'u8[4096]{0}', space=vmem, size = 0x1000, scoped, tag = 'operand span for operand 0']
    #allocation1 [shape = 'u8[4096]{0}', space=vmem, size = 0x1000, scoped, tag = 'operand span for operand 1']
    #allocation2 [shape = 'u8[4096]{0}', space=vmem, size = 0x1000, scoped, tag = 'operand span for operand 2']
    #allocation3 [shape = 'u8[512]{0}', space=vmem, size = 0x400, scoped, tag = 'packed  for operand 2']
    #allocation4 [shape = 'f32[5,128]{1,0}', space=vmem, size = 0x1000, scoped, tag = 'scratch for Householder reflectors']
    // Predicated region
    $region2: #{custom-call.19} parent=1 // pred_check
      _
    $region3: #{custom-call.19} parent=1 // pred_check_branch
      %5 = sbr.rel (0) target = $region5
    $region4: #{custom-call.19} parent=1 // pred_region
      // Predicated region
      $region6: #{custom-call.19} parent=4 // pred_check
        _
      $region7: #{custom-call.19} parent=4 // pred_check_branch
        %7 = sbr.rel (0) target = $region9
      $region8: #{custom-call.19} parent=4 // pred_region
        // Predicated region
        $region21: #{custom-call.19} parent=8 // pred_check
          _
        $region22: #{custom-call.19} parent=8 // pred_check_branch
          %22 = sbr.rel (0) target = $region24
        $region23: #{custom-call.19} parent=8 // pred_region
          loop: start=0, step=1, limit=1
          $region25: #{custom-call.19} parent=23 // loop_pre_header
            _
          $region26: #{custom-call.19} parent=23 // loop_header
            %s24 = sphi 0, %s28
            %p25 = scmp.ge.s32.totalorder %s24, 1
            %s29 = sphi %s0, %s0
            %s30 = sphi [#allocation0], [#allocation0]
          $region27: #{custom-call.19} parent=23 // loop_header_branch
            %27 = sbr.rel (%p25) target = $region31
          $region28: #{custom-call.19} parent=23 // loop_body
            %v31 = vld [vmem:[%s29] sm:$0xff]
            %32 = vst [vmem:[%s30] sm:$0xff] %v31
          $region29: #{custom-call.19} parent=23 // loop_footer
            %s28 = sadd.s32 1, %s24
          $region30: #{custom-call.19} parent=23 // loop_footer_branch
            %23 = sbr.rel target = $region26
          $region31: #{custom-call.19} parent=23 // loop_exit
            _
        $region24: #{custom-call.19} parent=8 // pred_fallthru
          _
        // Predicated region
        $region32: #{custom-call.19} parent=8 // pred_check
          _
        $region33: #{custom-call.19} parent=8 // pred_check_branch
          %34 = sbr.rel target = $region35
        $region34: #{custom-call.19} parent=8 // pred_region
          _
        $region35: #{custom-call.19} parent=8 // pred_fallthru
          _
      $region9: #{custom-call.19} parent=4 // pred_fallthru
        _
      // Predicated region
      $region10: #{custom-call.19} parent=4 // pred_check
        _
      $region11: #{custom-call.19} parent=4 // pred_check_branch
        %9 = sbr.rel target = $region13
      $region12: #{custom-call.19} parent=4 // pred_region
        loop: start=0, step=1, limit=1
        $region14: #{custom-call.19} parent=12 // loop_pre_header
          _
        $region15: #{custom-call.19} parent=12 // loop_header
          %s12 = sphi 0, %s16
          %p13 = scmp.ge.s32.totalorder %s12, 1
          %s17 = sphi %s0, %s0
          %s18 = sphi [#allocation0], [#allocation0]
        $region16: #{custom-call.19} parent=12 // loop_header_branch
          %15 = sbr.rel (%p13) target = $region20
        $region17: #{custom-call.19} parent=12 // loop_body
          %v19 = vld [vmem:[%s17] sm:$0xff]
          %20 = vst [vmem:[%s18] sm:$0xff] %v19
        $region18: #{custom-call.19} parent=12 // loop_footer
          %s16 = sadd.s32 1, %s12
        $region19: #{custom-call.19} parent=12 // loop_footer_branch
          %11 = sbr.rel target = $region15
        $region20: #{custom-call.19} parent=12 // loop_exit
          _
      $region13: #{custom-call.19} parent=4 // pred_fallthru
        _
    $region5: #{custom-call.19} parent=1 // pred_fallthru
      _
    %35 = vnop
    %v36 = vld [vmem:[#allocation0] sm:$0xff]
    %37 = vst [vmem:[#allocation1] sm:$0xff] %v36
    %38 = vst [vmem:[#allocation2] sm:$0x1] 0.0
    loop: start=0, step=1, limit=5
    $region36: #{custom-call.19} parent=1 // loop_pre_header
      _
    $region37: #{custom-call.19} parent=1 // loop_header
      %s40 = sphi 0, %s44
      %p41 = scmp.ge.s32.totalorder %s40, 5
    $region38: #{custom-call.19} parent=1 // loop_header_branch
      %43 = sbr.rel (%p41) target = $region42
    $region39: #{custom-call.19} parent=1 // loop_body
      %v45 = vld [vmem:[#allocation1] sm:$0xff]
      %v46 = vlaneseq
      %v47 = vshrl.u32 %v46, 7
      %v49 = vstv %s40
      %vm50 = vcmp.gt.s32.totalorder %v47, %v49
      %vm51 = vcmp.lt.s32.totalorder %v47, 5
      %vm52 = vmand %vm50, %vm51
      %v53 = vsel %vm52, %v45, 0.0
      %v54 = vmul.f32 %v53, %v53
      %v55 = vrot.slane %v54, 4
      %v56 = vadd.f32 %v54, %v55
      %v57 = vrot.slane %v56, 2
      %v58 = vadd.f32 %v56, %v57
      %v59 = vrot.slane %v58, 1
      %v60 = vadd.f32 %v58, %v59
      %v61 = vrsqrt.pop %v60
      %v62 = vmul.f32 %v60, %v61
      %vm63 = vcmp.eq.f32.partialorder %v60, inf
      %v64 = vsel %vm63, %v60, %v62
      %vm65 = vcmp.eq.f32.partialorder %v60, 0.0
      %v66 = vand.u32 %v60, 2147483648
      %v67 = vsel %vm65, %v66, %v64
      %vm68 = vcmp.eq.f32.partialorder %v60, 0.0
      %s69 = sshrl.u32 %s40, 3
      %s70 = sand.u32 %s40, 7
      %s71 = smul.addr %s69, 8
      %s72 = sadd.s32 %s70, %s71
      %s73 = scalar_lea.vmem [#allocation1], %s72
      %v74 = vld [vmem:[%s73] ss:$0 sm:$0xff]
      %v75 = vand.u32 2147483647, %v74
      %v76 = vmax.f32 %v75, 0.0
      %v77 = vand.u32 2147483647, %v67
      %v78 = vmax.f32 %v76, %v77
      %v79 = vrcp.pop %v78
      %v80 = vmul.f32 %v75, %v79
      %v81 = vmul.f32 %v80, %v80
      %v82 = vrcp.pop %v78
      %v83 = vmul.f32 0.0, %v82
      %v84 = vmul.f32 %v83, %v83
      %v85 = vadd.f32 %v81, %v84
      %v86 = vrcp.pop %v78
      %v87 = vmul.f32 %v77, %v86
      %v88 = vmul.f32 %v87, %v87
      %v89 = vadd.f32 %v85, %v88
      %vm90 = vcmp.eq.f32.partialorder %v78, 0.0
      %v91 = vrsqrt.pop %v89
      %v92 = vmul.f32 %v89, %v91
      %vm93 = vcmp.eq.f32.partialorder %v89, inf
      %v94 = vsel %vm93, %v89, %v92
      %vm95 = vcmp.eq.f32.partialorder %v89, 0.0
      %v96 = vand.u32 %v89, 2147483648
      %v97 = vsel %vm95, %v96, %v94
      %v98 = vmul.f32 %v78, %v97
      %v99 = vsel %vm90, 0.0, %v98
      %vm100 = vcmp.lt.f32.partialorder %v74, 0.0
      %v101 = vxor.u32 %v99, 2147483648
      %v102 = vsel %vm100, %v99, %v101
      %v103 = vsub.f32 %v102, %v74
      %v104 = vrcp.pop %v102
      %v105 = vmul.f32 %v103, %v104
      %v106 = vsel %vm68, %v74, %v102
      %v107 = vsel %vm68, 0.0, %v105
      %v108 = vsub.f32 %v74, %v106
      %s109 = smov [#allocation1]
      %v110 = vlaneseq
      %v111 = vshrl.u32 %v110, 7
      %v112 = vmov %v111
      %v113 = vld [vmem:[%s109] sm:$0xff]
      %v115 = vstv %s40
      %vm116 = vcmp.gt.s32.totalorder %v112, %v115
      %vm117 = vcmp.lt.s32.totalorder %v112, 5
      %vm118 = vmand %vm116, %vm117
      %v119 = vsel %vm118, %v113, 0.0
      %v120 = vrcp.pop %v108
      %v121 = vmul.f32 %v119, %v120
      %v122 = vsel %vm68, 0.0, %v121
      %v123 = vstv %s40
      %v124 = vlaneseq
      %v125 = vand.u32 %v124, 127
      %vm126 = vcmp.eq.s32.totalorder %v125, %v123
      %v127 = vsel %vm126, %v122, 0.0
      %128 = vadd.xlane.f32.xlu0 %v127
      %v129 = vpop.xlane.xlu0 %128
      %130 = vst [vmem:[#allocation4] sm:$0xff] %v129
      %s131 = scalar_lea.vmem [#allocation4], %s40
      %132 = vst [vmem:[%s131] sm:$0x1] 1.0
      %v133 = vstv %s40
      %v134 = vlaneseq
      %v135 = vand.u32 %v134, 127
      %vm136 = vcmp.eq.s32.totalorder %v135, %v133
      %v137 = vsel %vm136, %v107, 0.0
      %138 = vadd.xlane.f32.xlu0 %v137
      %v139 = vpop.xlane.xlu0 %138
      %v140 = vstv %s40
      %v141 = vlaneseq
      %v142 = vand.u32 %v141, 127
      %vm143 = vcmp.eq.s32.totalorder %v142, %v140
      %v144 = vld [vmem:[#allocation2] ss:$0 sm:$0xff]
      %v145 = vsel %vm143, %v139, %v144
      %146 = vst [vmem:[#allocation2] sm:$0x1] %v145
      %s147 = smov [#allocation1]
      %s148 = smov [#allocation4]
      %v149 = vlaneseq
      %v150 = vshrl.u32 %v149, 7
      %v151 = vmov %v150
      %v153 = vld [vmem:[%s148] sm:$0xff]
      %v154 = vld [vmem:[%s147] sm:$0xff]
      %v155 = vmul.f32 %v153, %v154
      %vm156 = vcmp.lt.s32.totalorder %v151, 5
      %v157 = vsel %vm156, %v155, 0.0
      %v158 = vrot.slane %v157, 4
      %v159 = vadd.f32 %v157, %v158
      %v160 = vrot.slane %v159, 2
      %v161 = vadd.f32 %v159, %v160
      %v162 = vrot.slane %v161, 1
      %v163 = vadd.f32 %v161, %v162
      %s164 = smov %s147
      %s165 = smov %s148
      %v166 = vlaneseq
      %v167 = vshrl.u32 %v166, 7
      %v168 = vmov %v167
      %v169 = vmul.f32 %v163, %v139
      %v171 = vlaneseq
      %v172 = vand.u32 %v171, 127
      %v173 = vld [vmem:[%s165] sm:$0xff]
      %v174 = vmul.f32 %v173, %v169
      %v175 = vld [vmem:[%s164] sm:$0xff]
      %v176 = vstv %s40
      %vm177 = vcmp.gt.s32.totalorder %v172, %v176
      %v178 = vsub.f32 %v175, %v174
      %v179 = vsel %vm177, %v178, %v175
      %v180 = vstv %s40
      %v181 = vlaneseq
      %v182 = vand.u32 %v181, 127
      %vm183 = vcmp.eq.s32.totalorder %v182, %v180
      %v184 = vstv %s40
      %vm185 = vcmp.ge.s32.totalorder %v168, %v184
      %vm186 = vmand %vm183, %vm185
      %v187 = vsel %vm186, %v173, %v179
      %188 = vst [vmem:[%s164] sm:$0xff] %v187
      %s189 = scalar_lea.vmem %s164, %s40
      %v190 = vld [vmem:[%s189] ss:$0 sm:$0xff]
      %v191 = vstv %s40
      %v192 = vlaneseq
      %v193 = vand.u32 %v192, 127
      %vm194 = vcmp.eq.s32.totalorder %v193, %v191
      %v195 = vsel %vm194, %v106, %v190
      %196 = vst [vmem:[%s189] sm:$0x1] %v195
    $region40: #{custom-call.19} parent=1 // loop_footer
      %s44 = sadd.s32 1, %s40
    $region41: #{custom-call.19} parent=1 // loop_footer_branch
      %39 = sbr.rel target = $region37
    $region42: #{custom-call.19} parent=1 // loop_exit
      _
    %s198 = sshllo.u32 0, 1
    %v200 = vld [vmem:[#allocation2] sm:%s198]
    %s201 = sshllo.u32 0, 1
    %202 = vst [vmem:[#allocation3] sm:%s201] %v200
    // Predicated region
    $region43: #{custom-call.19} parent=1 // pred_check
      _
    $region44: #{custom-call.19} parent=1 // pred_check_branch
      %204 = sbr.rel (0) target = $region46
    $region45: #{custom-call.19} parent=1 // pred_region
      // Predicated region
      $region47: #{custom-call.19} parent=45 // pred_check
        _
      $region48: #{custom-call.19} parent=45 // pred_check_branch
        %206 = sbr.rel (0) target = $region50
      $region49: #{custom-call.19} parent=45 // pred_region
        // Predicated region
        $region62: #{custom-call.19} parent=49 // pred_check
          _
        $region63: #{custom-call.19} parent=49 // pred_check_branch
          %221 = sbr.rel (0) target = $region65
        $region64: #{custom-call.19} parent=49 // pred_region
          loop: start=0, step=1, limit=1
          $region66: #{custom-call.19} parent=64 // loop_pre_header
            _
          $region67: #{custom-call.19} parent=64 // loop_header
            %s223 = sphi 0, %s227
            %p224 = scmp.ge.s32.totalorder %s223, 1
            %s228 = sphi [#allocation1], [#allocation1]
            %s229 = sphi %s1, %s1
          $region68: #{custom-call.19} parent=64 // loop_header_branch
            %226 = sbr.rel (%p224) target = $region72
          $region69: #{custom-call.19} parent=64 // loop_body
            %v230 = vld [vmem:[%s228] sm:$0xff]
            %231 = vst [vmem:[%s229] sm:$0xff] %v230
          $region70: #{custom-call.19} parent=64 // loop_footer
            %s227 = sadd.s32 1, %s223
          $region71: #{custom-call.19} parent=64 // loop_footer_branch
            %222 = sbr.rel target = $region67
          $region72: #{custom-call.19} parent=64 // loop_exit
            _
        $region65: #{custom-call.19} parent=49 // pred_fallthru
          _
        // Predicated region
        $region73: #{custom-call.19} parent=49 // pred_check
          _
        $region74: #{custom-call.19} parent=49 // pred_check_branch
          %233 = sbr.rel target = $region76
        $region75: #{custom-call.19} parent=49 // pred_region
          _
        $region76: #{custom-call.19} parent=49 // pred_fallthru
          _
      $region50: #{custom-call.19} parent=45 // pred_fallthru
        _
      // Predicated region
      $region51: #{custom-call.19} parent=45 // pred_check
        _
      $region52: #{custom-call.19} parent=45 // pred_check_branch
        %208 = sbr.rel target = $region54
      $region53: #{custom-call.19} parent=45 // pred_region
        loop: start=0, step=1, limit=1
        $region55: #{custom-call.19} parent=53 // loop_pre_header
          _
        $region56: #{custom-call.19} parent=53 // loop_header
          %s211 = sphi 0, %s215
          %p212 = scmp.ge.s32.totalorder %s211, 1
          %s216 = sphi [#allocation1], [#allocation1]
          %s217 = sphi %s1, %s1
        $region57: #{custom-call.19} parent=53 // loop_header_branch
          %214 = sbr.rel (%p212) target = $region61
        $region58: #{custom-call.19} parent=53 // loop_body
          %v218 = vld [vmem:[%s216] sm:$0xff]
          %219 = vst [vmem:[%s217] sm:$0xff] %v218
        $region59: #{custom-call.19} parent=53 // loop_footer
          %s215 = sadd.s32 1, %s211
        $region60: #{custom-call.19} parent=53 // loop_footer_branch
          %210 = sbr.rel target = $region56
        $region61: #{custom-call.19} parent=53 // loop_exit
          _
      $region54: #{custom-call.19} parent=45 // pred_fallthru
        _
    $region46: #{custom-call.19} parent=1 // pred_fallthru
      _
    %234 = vnop
    // Predicated region
    $region77: #{custom-call.19} parent=1 // pred_check
      _
    $region78: #{custom-call.19} parent=1 // pred_check_branch
      %236 = sbr.rel (0) target = $region80
    $region79: #{custom-call.19} parent=1 // pred_region
      // Predicated region
      $region81: #{custom-call.19} parent=79 // pred_check
        _
      $region82: #{custom-call.19} parent=79 // pred_check_branch
        %238 = sbr.rel (0) target = $region84
      $region83: #{custom-call.19} parent=79 // pred_region
        // Predicated region
        $region85: #{custom-call.19} parent=83 // pred_check
          _
        $region86: #{custom-call.19} parent=83 // pred_check_branch
          %240 = sbr.rel target = $region88
        $region87: #{custom-call.19} parent=83 // pred_region
          // Predicated region
          $region100: #{custom-call.19} parent=87 // pred_check
            _
          $region101: #{custom-call.19} parent=87 // pred_check_branch
            %255 = sbr.rel (0) target = $region103
          $region102: #{custom-call.19} parent=87 // pred_region
            loop: start=0, step=1, limit=1
            $region104: #{custom-call.19} parent=102 // loop_pre_header
              _
            $region105: #{custom-call.19} parent=102 // loop_header
              %s258 = sphi 0, %s262
              %p259 = scmp.ge.s32.totalorder %s258, 1
              %s263 = sphi [#allocation3], [#allocation3]
              %s264 = sphi %s2, %s2
            $region106: #{custom-call.19} parent=102 // loop_header_branch
              %261 = sbr.rel (%p259) target = $region110
            $region107: #{custom-call.19} parent=102 // loop_body
              %v265 = vld [vmem:[%s263] sm:$0x1]
              %266 = vst [vmem:[%s264] sm:$0x1] %v265
            $region108: #{custom-call.19} parent=102 // loop_footer
              %s262 = sadd.s32 1, %s258
            $region109: #{custom-call.19} parent=102 // loop_footer_branch
              %257 = sbr.rel target = $region105
            $region110: #{custom-call.19} parent=102 // loop_exit
              _
          $region103: #{custom-call.19} parent=87 // pred_fallthru
            _
        $region88: #{custom-call.19} parent=83 // pred_fallthru
          _
        // Predicated region
        $region89: #{custom-call.19} parent=83 // pred_check
          _
        $region90: #{custom-call.19} parent=83 // pred_check_branch
          %242 = sbr.rel (0) target = $region92
        $region91: #{custom-call.19} parent=83 // pred_region
          loop: start=0, step=1, limit=1
          $region93: #{custom-call.19} parent=91 // loop_pre_header
            _
          $region94: #{custom-call.19} parent=91 // loop_header
            %s245 = sphi 0, %s249
            %p246 = scmp.ge.s32.totalorder %s245, 1
            %s250 = sphi [#allocation3], [#allocation3]
            %s251 = sphi %s2, %s2
          $region95: #{custom-call.19} parent=91 // loop_header_branch
            %248 = sbr.rel (%p246) target = $region99
          $region96: #{custom-call.19} parent=91 // loop_body
            %v252 = vld [vmem:[%s250] sm:$0x1]
            %253 = vst [vmem:[%s251] sm:$0x1] %v252
          $region97: #{custom-call.19} parent=91 // loop_footer
            %s249 = sadd.s32 1, %s245
          $region98: #{custom-call.19} parent=91 // loop_footer_branch
            %244 = sbr.rel target = $region94
          $region99: #{custom-call.19} parent=91 // loop_exit
            _
        $region92: #{custom-call.19} parent=83 // pred_fallthru
          _
      $region84: #{custom-call.19} parent=79 // pred_fallthru
        _
      %267 = vnop
    $region80: #{custom-call.19} parent=1 // pred_fallthru
      _
    // Predicated region
    $region111: #{custom-call.19} parent=1 // pred_check
      _
    $region112: #{custom-call.19} parent=1 // pred_check_branch
      %269 = sbr.rel (0) target = $region114
    $region113: #{custom-call.19} parent=1 // pred_region
      _
    $region114: #{custom-call.19} parent=1 // pred_fallthru
      _

// kernel: _matnet_forward.22
$region0: #{_matnet_forward.22}
  #allocation0 [shape = 'u32[]', space=smem, size = 0x4, offset = 0x4, fixed_abs, tag = 'smem constant byte address 0x4 - core index']
  #allocation1 [shape = 'u32[144,128]{1,0:T(1,128)}', space=vmem, size = 0x12000, scoped, tag = 'internal scratch']
  %s0 = inlined_call_operand.vmem [shape: f32[128,5], index: 0, kind: input, shape index: {}]
  %s1 = inlined_call_operand.vmem [shape: f32[5,5], index: 1, kind: input, shape index: {}]
  %s2 = inlined_call_operand.vmem [shape: f32[128,5], index: 2, kind: output, shape index: {}]
  %s3 = sld [smem:[#allocation0]]
  $region18: #{_matnet_forward.22} parent=0
    _
  %s5 = ssub.s32 1, %s3
  %s6 = scalar_select 0, %s5, %s3
  // Predicated region
  $region2: #{_matnet_forward.22} parent=0 // pred_check
    _
  $region3: #{_matnet_forward.22} parent=0 // pred_check_branch
    %8 = sbr.rel (0) target = $region5
  $region4: #{_matnet_forward.22} parent=0 // pred_region
    _
  $region5: #{_matnet_forward.22} parent=0 // pred_fallthru
    _
  // Predicated region
  $region6: #{_matnet_forward.22} parent=0 // pred_check
    _
  $region7: #{_matnet_forward.22} parent=0 // pred_check_branch
    %10 = sbr.rel (0) target = $region9
  $region8: #{_matnet_forward.22} parent=0 // pred_region
    _
  $region9: #{_matnet_forward.22} parent=0 // pred_fallthru
    _
  %v11 = vld [vmem:[%s0] sm:$0xff]
  %v12 = vld [vmem:[%s0 + $0x8] sm:$0xff]
  %v13 = vld [vmem:[%s0 + $0x10] sm:$0xff]
  %v14 = vld [vmem:[%s0 + $0x18] sm:$0xff]
  %v15 = vld [vmem:[%s0 + $0x20] sm:$0xff]
  %v16 = vld [vmem:[%s0 + $0x28] sm:$0xff]
  %v17 = vld [vmem:[%s0 + $0x30] sm:$0xff]
  %v18 = vld [vmem:[%s0 + $0x38] sm:$0xff]
  %v19 = vld [vmem:[%s0 + $0x40] sm:$0xff]
  %v20 = vld [vmem:[%s0 + $0x48] sm:$0xff]
  %v21 = vld [vmem:[%s0 + $0x50] sm:$0xff]
  %v22 = vld [vmem:[%s0 + $0x58] sm:$0xff]
  %v23 = vld [vmem:[%s0 + $0x60] sm:$0xff]
  %v24 = vld [vmem:[%s0 + $0x68] sm:$0xff]
  %v25 = vld [vmem:[%s0 + $0x70] sm:$0xff]
  %v26 = vld [vmem:[%s0 + $0x78] sm:$0xff]
  %v27 = vld [vmem:[%s1] sm:$0x1f]
  %vm28 = vcmask 39936
  %v30 = vsel %vm28, %v11, 0
  %v33 = vsel %vm28, %v12, 0
  %v36 = vsel %vm28, %v13, 0
  %v39 = vsel %vm28, %v14, 0
  %v42 = vsel %vm28, %v15, 0
  %v45 = vsel %vm28, %v16, 0
  %v48 = vsel %vm28, %v17, 0
  %v51 = vsel %vm28, %v18, 0
  %v54 = vsel %vm28, %v19, 0
  %v57 = vsel %vm28, %v20, 0
  %v60 = vsel %vm28, %v21, 0
  %v63 = vsel %vm28, %v22, 0
  %v66 = vsel %vm28, %v23, 0
  %v69 = vsel %vm28, %v24, 0
  %v72 = vsel %vm28, %v25, 0
  %v75 = vsel %vm28, %v26, 0
  %v78 = vsel %vm28, %v27, 0
  %80 = vmatprep.subr.mxu0 0.0
  %81 = vmatpush1.xpose.msra.mxu0 %v78
  %82 = vmatprep.subr.mxu0 0.0
  %83 = vmatpush1.xpose.msra.mxu0 0.0
  %84 = vmatprep.subr.mxu0 0.0
  %85 = vmatpush1.xpose.msra.mxu0 0.0
  %86 = vmatprep.subr.mxu0 0.0
  %87 = vmatpush1.xpose.msra.mxu0 0.0
  %88 = vmatprep.subr.mxu0 0.0
  %89 = vmatpush1.xpose.msra.mxu0 0.0
  %90 = vmatprep.subr.mxu0 0.0
  %91 = vmatpush1.xpose.msra.mxu0 0.0
  %92 = vmatprep.subr.mxu0 0.0
  %93 = vmatpush1.xpose.msra.mxu0 0.0
  %94 = vmatprep.subr.mxu0 0.0
  %95 = vmatpush1.xpose.msra.mxu0 0.0
  %96 = vmatprep.subr.mxu0 0.0
  %97 = vmatpush1.xpose.msra.mxu0 0.0
  %98 = vmatprep.subr.mxu0 0.0
  %99 = vmatpush1.xpose.msra.mxu0 0.0
  %100 = vmatprep.subr.mxu0 0.0
  %101 = vmatpush1.xpose.msra.mxu0 0.0
  %102 = vmatprep.subr.mxu0 0.0
  %103 = vmatpush1.xpose.msra.mxu0 0.0
  %104 = vmatprep.subr.mxu0 0.0
  %105 = vmatpush1.xpose.msra.mxu0 0.0
  %106 = vmatprep.subr.mxu0 0.0
  %107 = vmatpush1.xpose.msra.mxu0 0.0
  %108 = vmatprep.subr.mxu0 0.0
  %109 = vmatpush1.xpose.msra.mxu0 0.0
  %110 = vmatprep.subr.mxu0 0.0
  %111 = vmatpush1.xpose.msra.mxu0 0.0
  %112 = vmatprep.subr.mxu0 0.0
  %113 = vmatpush1.xpose.msra.mxu0 0.0
  %114 = vmatprep.subr.mxu0 0.0
  %115 = vmatpush1.xpose.msra.mxu0 0.0
  %116 = vmatprep.subr.mxu0 0.0
  %117 = vmatpush1.xpose.msra.mxu0 0.0
  %118 = vmatprep.subr.mxu0 0.0
  %119 = vmatpush1.xpose.msra.mxu0 0.0
  %120 = vmatprep.subr.mxu0 0.0
  %121 = vmatpush1.xpose.msra.mxu0 0.0
  %122 = vmatprep.subr.mxu0 0.0
  %123 = vmatpush1.xpose.msra.mxu0 0.0
  %124 = vmatprep.subr.mxu0 0.0
  %125 = vmatpush1.xpose.msra.mxu0 0.0
  %126 = vmatprep.subr.mxu0 0.0
  %127 = vmatpush1.xpose.msra.mxu0 0.0
  %128 = vmatprep.subr.mxu0 0.0
  %129 = vmatpush1.xpose.msra.mxu0 0.0
  %130 = vmatprep.subr.mxu0 0.0
  %131 = vmatpush1.xpose.msra.mxu0 0.0
  %132 = vmatprep.subr.mxu0 0.0
  %133 = vmatpush1.xpose.msra.mxu0 0.0
  %134 = vmatprep.subr.mxu0 0.0
  %135 = vmatpush1.xpose.msra.mxu0 0.0
  %136 = vmatprep.subr.mxu0 0.0
  %137 = vmatpush1.xpose.msra.mxu0 0.0
  %138 = vmatprep.subr.mxu0 0.0
  %139 = vmatpush1.xpose.msra.mxu0 0.0
  %140 = vmatprep.subr.mxu0 0.0
  %141 = vmatpush1.xpose.msra.mxu0 0.0
  %142 = vmatprep.subr.mxu0 0.0
  %143 = vmatpush1.xpose.msra.mxu0 0.0
  %144 = vmatprep.mubr.f32.mxu0 0.0
  %145 = vmatmul.mubr.f32.gmra.mrb[0].mxu0 %v30
  %v146 = vpop.f32.mrb[0].mxu0
  %v147 = vadd.f32 0.0, %v146
  %v148 = vpop.f32.mrb[0].mxu0
  %149 = vmatprep.mubr.f32.mxu0 0.0
  %150 = vmatmul.mubr.f32.gmra.mrb[0].mxu0 %v33
  %v151 = vpop.f32.mrb[0].mxu0
  %v152 = vadd.f32 0.0, %v151
  %v153 = vpop.f32.mrb[0].mxu0
  %154 = vmatprep.mubr.f32.mxu0 0.0
  %155 = vmatmul.mubr.f32.gmra.mrb[0].mxu0 %v36
  %v156 = vpop.f32.mrb[0].mxu0
  %v157 = vadd.f32 0.0, %v156
  %v158 = vpop.f32.mrb[0].mxu0
  %159 = vmatprep.mubr.f32.mxu0 0.0
  %160 = vmatmul.mubr.f32.gmra.mrb[0].mxu0 %v39
  %v161 = vpop.f32.mrb[0].mxu0
  %v162 = vadd.f32 0.0, %v161
  %v163 = vpop.f32.mrb[0].mxu0
  %164 = vmatprep.mubr.f32.mxu0 0.0
  %165 = vmatmul.mubr.f32.gmra.mrb[0].mxu0 %v42
  %v166 = vpop.f32.mrb[0].mxu0
  %v167 = vadd.f32 0.0, %v166
  %v168 = vpop.f32.mrb[0].mxu0
  %169 = vmatprep.mubr.f32.mxu0 0.0
  %170 = vmatmul.mubr.f32.gmra.mrb[0].mxu0 %v45
  %v171 = vpop.f32.mrb[0].mxu0
  %v172 = vadd.f32 0.0, %v171
  %v173 = vpop.f32.mrb[0].mxu0
  %174 = vmatprep.mubr.f32.mxu0 0.0
  %175 = vmatmul.mubr.f32.gmra.mrb[0].mxu0 %v48
  %v176 = vpop.f32.mrb[0].mxu0
  %v177 = vadd.f32 0.0, %v176
  %v178 = vpop.f32.mrb[0].mxu0
  %179 = vmatprep.mubr.f32.mxu0 0.0
  %180 = vmatmul.mubr.f32.gmra.mrb[0].mxu0 %v51
  %v181 = vpop.f32.mrb[0].mxu0
  %v182 = vadd.f32 0.0, %v181
  %v183 = vpop.f32.mrb[0].mxu0
  %184 = vmatprep.mubr.f32.mxu0 0.0
  %185 = vmatmul.mubr.f32.gmra.mrb[0].mxu0 %v54
  %v186 = vpop.f32.mrb[0].mxu0
  %v187 = vadd.f32 0.0, %v186
  %v188 = vpop.f32.mrb[0].mxu0
  %189 = vmatprep.mubr.f32.mxu0 0.0
  %190 = vmatmul.mubr.f32.gmra.mrb[0].mxu0 %v57
  %v191 = vpop.f32.mrb[0].mxu0
  %v192 = vadd.f32 0.0, %v191
  %v193 = vpop.f32.mrb[0].mxu0
  %194 = vmatprep.mubr.f32.mxu0 0.0
  %195 = vmatmul.mubr.f32.gmra.mrb[0].mxu0 %v60
  %v196 = vpop.f32.mrb[0].mxu0
  %v197 = vadd.f32 0.0, %v196
  %v198 = vpop.f32.mrb[0].mxu0
  %199 = vmatprep.mubr.f32.mxu0 0.0
  %200 = vmatmul.mubr.f32.gmra.mrb[0].mxu0 %v63
  %v201 = vpop.f32.mrb[0].mxu0
  %v202 = vadd.f32 0.0, %v201
  %v203 = vpop.f32.mrb[0].mxu0
  %204 = vmatprep.mubr.f32.mxu0 0.0
  %205 = vmatmul.mubr.f32.gmra.mrb[0].mxu0 %v66
  %v206 = vpop.f32.mrb[0].mxu0
  %v207 = vadd.f32 0.0, %v206
  %v208 = vpop.f32.mrb[0].mxu0
  %209 = vmatprep.mubr.f32.mxu0 0.0
  %210 = vmatmul.mubr.f32.gmra.mrb[0].mxu0 %v69
  %v211 = vpop.f32.mrb[0].mxu0
  %v212 = vadd.f32 0.0, %v211
  %v213 = vpop.f32.mrb[0].mxu0
  %214 = vmatprep.mubr.f32.mxu0 0.0
  %215 = vmatmul.mubr.f32.gmra.mrb[0].mxu0 %v72
  %v216 = vpop.f32.mrb[0].mxu0
  %v217 = vadd.f32 0.0, %v216
  %v218 = vpop.f32.mrb[0].mxu0
  %219 = vmatprep.mubr.f32.mxu0 0.0
  %220 = vmatmul.mubr.f32.gmra.mrb[0].mxu0 %v75
  %v221 = vpop.f32.mrb[0].mxu0
  %v222 = vadd.f32 0.0, %v221
  %v223 = vpop.f32.mrb[0].mxu0
  %224 = vdwg.mxu0
  %225 = vst.msk [vmem:[%s2] sm:$0xff] %vm28, %v147
  %226 = vst.msk [vmem:[%s2 + $0x8] sm:$0xff] %vm28, %v152
  %227 = vst.msk [vmem:[%s2 + $0x10] sm:$0xff] %vm28, %v157
  %228 = vst.msk [vmem:[%s2 + $0x18] sm:$0xff] %vm28, %v162
  %229 = vst.msk [vmem:[%s2 + $0x20] sm:$0xff] %vm28, %v167
  %230 = vst.msk [vmem:[%s2 + $0x28] sm:$0xff] %vm28, %v172
  %231 = vst.msk [vmem:[%s2 + $0x30] sm:$0xff] %vm28, %v177
  %232 = vst.msk [vmem:[%s2 + $0x38] sm:$0xff] %vm28, %v182
  %233 = vst.msk [vmem:[%s2 + $0x40] sm:$0xff] %vm28, %v187
  %234 = vst.msk [vmem:[%s2 + $0x48] sm:$0xff] %vm28, %v192
  %235 = vst.msk [vmem:[%s2 + $0x50] sm:$0xff] %vm28, %v197
  %236 = vst.msk [vmem:[%s2 + $0x58] sm:$0xff] %vm28, %v202
  %237 = vst.msk [vmem:[%s2 + $0x60] sm:$0xff] %vm28, %v207
  %238 = vst.msk [vmem:[%s2 + $0x68] sm:$0xff] %vm28, %v212
  %239 = vst.msk [vmem:[%s2 + $0x70] sm:$0xff] %vm28, %v217
  %240 = vst.msk [vmem:[%s2 + $0x78] sm:$0xff] %vm28, %v222
  // Predicated region
  $region10: #{_matnet_forward.22} parent=0 // pred_check
    _
  $region11: #{_matnet_forward.22} parent=0 // pred_check_branch
    %242 = sbr.rel (0) target = $region13
  $region12: #{_matnet_forward.22} parent=0 // pred_region
    _
  $region13: #{_matnet_forward.22} parent=0 // pred_fallthru
    _
  // Predicated region
  $region14: #{_matnet_forward.22} parent=0 // pred_check
    _
  $region15: #{_matnet_forward.22} parent=0 // pred_check_branch
    %244 = sbr.rel (0) target = $region17
  $region16: #{_matnet_forward.22} parent=0 // pred_region
    _
  $region17: #{_matnet_forward.22} parent=0 // pred_fallthru
    _

// kernel: _matnet_forward.23
$region0: #{_matnet_forward.23}
  #allocation0 [shape = 'u32[]', space=smem, size = 0x4, offset = 0x4, fixed_abs, tag = 'smem constant byte address 0x4 - core index']
  #allocation1 [shape = 'u32[144,128]{1,0:T(1,128)}', space=vmem, size = 0x12000, scoped, tag = 'internal scratch']
  #allocation2 [shape = 'f32[128,5]{1,0:T(8,128)}', space=vmem, size = 0x10000, scoped, tag = 'scratch operand']
  #allocation3 [shape = 'f32[128,5]{1,0:T(8,128)}', space=vmem, size = 0x10000, scoped, tag = 'scratch operand']
  %s0 = inlined_call_operand.vmem [shape: f32[15], index: 0, kind: input, shape index: {}]
  %s1 = inlined_call_operand.vmem [shape: f32[15], index: 1, kind: input, shape index: {}]
  %s2 = inlined_call_operand.vmem [shape: f32[128,128], index: 2, kind: input, shape index: {}]
  %s3 = inlined_call_operand.vmem [shape: f32[128,128], index: 3, kind: input, shape index: {}]
  %s4 = inlined_call_operand.vmem [shape: f32[128,5], index: 4, kind: input, shape index: {}]
  %s5 = inlined_call_operand.vmem [shape: f32[128,5], index: 5, kind: input, shape index: {}]
  %s6 = inlined_call_operand.hbm [shape: f32[1,1], index: 6, kind: output, shape index: {}]
  %s7 = sld [smem:[#allocation0]]
  $region73: #{_matnet_forward.23} parent=0
    _
  %s9 = ssub.s32 1, %s7
  %s10 = scalar_select 0, %s9, %s7
  $region1: #{_matnet_forward.23} parent=0
    #allocation4 [shape = 'u8[512]{0}', space=smem, size = 0x200, scoped, tag = 'input window, operand 0, single buffered']
    #allocation5 [shape = 's32[2]{0}', space=sflag, size = 0x8, scoped, tag = 'scoped memory for _matnet_forward.23']
    #allocation6 [shape = 's32[2]{0}', space=sflag, size = 0x8, scoped, tag = 'scoped memory for _matnet_forward.23']
    #allocation7 [shape = 'u8[512]{0}', space=smem, size = 0x200, scoped, tag = 'input window, operand 1, single buffered']
    #allocation8 [shape = 's32[1]{0}', space=sflag, size = 0x4, scoped, tag = 'scoped memory for _matnet_forward.23']
    #allocation9 [shape = 'u8[512]{0}', space=vmem, size = 0x400, scoped, tag = 'output window, operand 0, single buffered']
    %11 = vsyncpa [#allocation6], 0
    %12 = vsyncpa [#allocation8], 0
    %13 = vsyncpa [#allocation5], 0
    loop: start=0, step=1, limit=16
    $region2: #{_matnet_forward.23} parent=1 // loop_pre_header
      _
    $region3: #{_matnet_forward.23} parent=1 // loop_header
      %s15 = sphi 0, %s19
      %p16 = scmp.ge.s32.totalorder %s15, 16
      %s23 = sphi 0, %s23
      %s25 = sphi 0, %s23
      %s26 = sphi 0, %s25
      %s40 = sphi 0, %s26
      %s44 = sphi 0, %s44
      %s46 = sphi 0, %s44
      %s47 = sphi 0, %s46
      %s61 = sphi 0, %s47
      %s65 = sphi 0, %s65
      %s67 = sphi 0, %s65
      %s68 = sphi 0, %s67
      %s82 = sphi 0, %s68
      %s86 = sphi 0, %s86
      %s88 = sphi 0, %s86
      %s89 = sphi 0, %s88
      %s103 = sphi 0, %s89
      %s107 = sphi 0, %s107
      %s109 = sphi 0, %s107
      %s110 = sphi 0, %s109
      %s124 = sphi 0, %s110
      %s128 = sphi 0, %s128
      %s130 = sphi 0, %s128
      %s131 = sphi 0, %s130
      %s145 = sphi 0, %s131
      %s149 = sphi 0, %s149
      %s151 = sphi 0, %s149
      %s152 = sphi 0, %s151
      %s166 = sphi 0, %s152
    $region4: #{_matnet_forward.23} parent=1 // loop_header_branch
      %18 = sbr.rel (%p16) target = $region8
    $region5: #{_matnet_forward.23} parent=1 // loop_body
      %s20 = ssub.s32 %s15, 1
      %s21 = ssub.s32 %s15, 2
      %s22 = sadd.s32 %s15, 1
      %s24 = sadd.s32 %s23, 1
      %p27 = scmp.eq.s32.totalorder %s15, 13
      %p28 = scmp.ne.s32.totalorder %s23, %s25
      %p29 = scmp.eq.s32.totalorder %s15, 0
      %p30 = por %p28, %p29
      %p31 = scmp.ne.s32.totalorder %s23, %s25
      %p32 = scmp.eq.s32.totalorder %s20, 13
      %p33 = por %p31, %p32
      %p34 = scmp.ne.s32.totalorder %s25, %s26
      %p35 = scmp.eq.s32.totalorder %s20, 0
      %p36 = por %p34, %p35
      %p37 = scmp.ne.s32.totalorder %s25, %s26
      %p38 = scmp.eq.s32.totalorder %s21, 13
      %p39 = por %p37, %p38
      %p41 = scmp.ne.s32.totalorder %s26, %s40
      %p42 = scmp.eq.s32.totalorder %s21, 0
      %p43 = por %p41, %p42
      %s45 = sadd.s32 %s44, 1
      %p48 = scmp.eq.s32.totalorder %s15, 13
      %p49 = scmp.ne.s32.totalorder %s44, %s46
      %p50 = scmp.eq.s32.totalorder %s15, 0
      %p51 = por %p49, %p50
      %p52 = scmp.ne.s32.totalorder %s44, %s46
      %p53 = scmp.eq.s32.totalorder %s20, 13
      %p54 = por %p52, %p53
      %p55 = scmp.ne.s32.totalorder %s46, %s47
      %p56 = scmp.eq.s32.totalorder %s20, 0
      %p57 = por %p55, %p56
      %p58 = scmp.ne.s32.totalorder %s46, %s47
      %p59 = scmp.eq.s32.totalorder %s21, 13
      %p60 = por %p58, %p59
      %p62 = scmp.ne.s32.totalorder %s47, %s61
      %p63 = scmp.eq.s32.totalorder %s21, 0
      %p64 = por %p62, %p63
      %s66 = sadd.s32 %s65, 1
      %p69 = scmp.eq.s32.totalorder %s15, 13
      %p70 = scmp.ne.s32.totalorder %s65, %s67
      %p71 = scmp.eq.s32.totalorder %s15, 0
      %p72 = por %p70, %p71
      %p73 = scmp.ne.s32.totalorder %s65, %s67
      %p74 = scmp.eq.s32.totalorder %s20, 13
      %p75 = por %p73, %p74
      %p76 = scmp.ne.s32.totalorder %s67, %s68
      %p77 = scmp.eq.s32.totalorder %s20, 0
      %p78 = por %p76, %p77
      %p79 = scmp.ne.s32.totalorder %s67, %s68
      %p80 = scmp.eq.s32.totalorder %s21, 13
      %p81 = por %p79, %p80
      %p83 = scmp.ne.s32.totalorder %s68, %s82
      %p84 = scmp.eq.s32.totalorder %s21, 0
      %p85 = por %p83, %p84
      %s87 = sadd.s32 %s86, 1
      %p90 = scmp.eq.s32.totalorder %s15, 13
      %p91 = scmp.ne.s32.totalorder %s86, %s88
      %p92 = scmp.eq.s32.totalorder %s15, 0
      %p93 = por %p91, %p92
      %p94 = scmp.ne.s32.totalorder %s86, %s88
      %p95 = scmp.eq.s32.totalorder %s20, 13
      %p96 = por %p94, %p95
      %p97 = scmp.ne.s32.totalorder %s88, %s89
      %p98 = scmp.eq.s32.totalorder %s20, 0
      %p99 = por %p97, %p98
      %p100 = scmp.ne.s32.totalorder %s88, %s89
      %p101 = scmp.eq.s32.totalorder %s21, 13
      %p102 = por %p100, %p101
      %p104 = scmp.ne.s32.totalorder %s89, %s103
      %p105 = scmp.eq.s32.totalorder %s21, 0
      %p106 = por %p104, %p105
      %s108 = sadd.s32 %s107, 1
      %p111 = scmp.eq.s32.totalorder %s15, 13
      %p112 = scmp.ne.s32.totalorder %s107, %s109
      %p113 = scmp.eq.s32.totalorder %s15, 0
      %p114 = por %p112, %p113
      %p115 = scmp.ne.s32.totalorder %s107, %s109
      %p116 = scmp.eq.s32.totalorder %s20, 13
      %p117 = por %p115, %p116
      %p118 = scmp.ne.s32.totalorder %s109, %s110
      %p119 = scmp.eq.s32.totalorder %s20, 0
      %p120 = por %p118, %p119
      %p121 = scmp.ne.s32.totalorder %s109, %s110
      %p122 = scmp.eq.s32.totalorder %s21, 13
      %p123 = por %p121, %p122
      %p125 = scmp.ne.s32.totalorder %s110, %s124
      %p126 = scmp.eq.s32.totalorder %s21, 0
      %p127 = por %p125, %p126
      %s129 = sadd.s32 %s128, 1
      %p132 = scmp.eq.s32.totalorder %s15, 13
      %p133 = scmp.ne.s32.totalorder %s128, %s130
      %p134 = scmp.eq.s32.totalorder %s15, 0
      %p135 = por %p133, %p134
      %p136 = scmp.ne.s32.totalorder %s128, %s130
      %p137 = scmp.eq.s32.totalorder %s20, 13
      %p138 = por %p136, %p137
      %p139 = scmp.ne.s32.totalorder %s130, %s131
      %p140 = scmp.eq.s32.totalorder %s20, 0
      %p141 = por %p139, %p140
      %p142 = scmp.ne.s32.totalorder %s130, %s131
      %p143 = scmp.eq.s32.totalorder %s21, 13
      %p144 = por %p142, %p143
      %p146 = scmp.ne.s32.totalorder %s131, %s145
      %p147 = scmp.eq.s32.totalorder %s21, 0
      %p148 = por %p146, %p147
      %s150 = sadd.s32 %s149, 1
      %p153 = scmp.eq.s32.totalorder %s15, 13
      %p154 = scmp.ne.s32.totalorder %s149, %s151
      %p155 = scmp.eq.s32.totalorder %s15, 0
      %p156 = por %p154, %p155
      %p157 = scmp.ne.s32.totalorder %s149, %s151
      %p158 = scmp.eq.s32.totalorder %s20, 13
      %p159 = por %p157, %p158
      %p160 = scmp.ne.s32.totalorder %s151, %s152
      %p161 = scmp.eq.s32.totalorder %s20, 0
      %p162 = por %p160, %p161
      %p163 = scmp.ne.s32.totalorder %s151, %s152
      %p164 = scmp.eq.s32.totalorder %s21, 13
      %p165 = por %p163, %p164
      %p167 = scmp.ne.s32.totalorder %s152, %s166
      %p168 = scmp.eq.s32.totalorder %s21, 0
      %p169 = por %p167, %p168
      %p170 = scmp.le.s32.totalorder 1, %s15
      %p171 = scmp.lt.s32.totalorder %s15, 15
      %p172 = pnand %p170, %p171
      %p173 = pneg %p172
      // Predicated region
      $region9: #{_matnet_forward.23} parent=5 // pred_check
        _
      $region10: #{_matnet_forward.23} parent=5 // pred_check_branch
        %175 = sbr.rel (%p172) target = $region12
      $region11: #{_matnet_forward.23} parent=5 // pred_region
        %s176 = ssub.s32 %s15, 1
        // Predicated region
        $region13: #{_matnet_forward.23} parent=11 // pred_check
          %p177 = pneg %p36
        $region14: #{_matnet_forward.23} parent=11 // pred_check_branch
          %179 = sbr.rel (%p177) target = $region16
        $region15: #{_matnet_forward.23} parent=11 // pred_region
          %s181 = ssub.s32 16, 16
          %182 = vsyncadd [#allocation6], %s181
          %s184 = sshll.u32 %s0, 4
          %s185 = int_to_ptr.vmem [resolvable:$true] %s184
          %187 = dma.vmem_to_smem %s185, 16, [#allocation4], [#allocation6]
        $region16: #{_matnet_forward.23} parent=11 // pred_fallthru
          _
        // Predicated region
        $region17: #{_matnet_forward.23} parent=11 // pred_check
          %p188 = pneg %p57
        $region18: #{_matnet_forward.23} parent=11 // pred_check_branch
          %190 = sbr.rel (%p188) target = $region20
        $region19: #{_matnet_forward.23} parent=11 // pred_region
          %s192 = ssub.s32 16, 16
          %193 = vsyncadd [#allocation8], %s192
          %s195 = sshll.u32 %s1, 4
          %s196 = int_to_ptr.vmem [resolvable:$true] %s195
          %198 = dma.vmem_to_smem %s196, 16, [#allocation7], [#allocation8]
        $region20: #{_matnet_forward.23} parent=11 // pred_fallthru
          _
        // Predicated region
        $region21: #{_matnet_forward.23} parent=11 // pred_check
          %p199 = pneg %p78
        $region22: #{_matnet_forward.23} parent=11 // pred_check_branch
          %201 = sbr.rel (%p199) target = $region24
        $region23: #{_matnet_forward.23} parent=11 // pred_region
          _
        $region24: #{_matnet_forward.23} parent=11 // pred_fallthru
          _
        // Predicated region
        $region25: #{_matnet_forward.23} parent=11 // pred_check
          %p202 = pneg %p99
        $region26: #{_matnet_forward.23} parent=11 // pred_check_branch
          %204 = sbr.rel (%p202) target = $region28
        $region27: #{_matnet_forward.23} parent=11 // pred_region
          _
        $region28: #{_matnet_forward.23} parent=11 // pred_fallthru
          _
        // Predicated region
        $region29: #{_matnet_forward.23} parent=11 // pred_check
          %p205 = pneg %p120
        $region30: #{_matnet_forward.23} parent=11 // pred_check_branch
          %207 = sbr.rel (%p205) target = $region32
        $region31: #{_matnet_forward.23} parent=11 // pred_region
          _
        $region32: #{_matnet_forward.23} parent=11 // pred_fallthru
          _
        // Predicated region
        $region33: #{_matnet_forward.23} parent=11 // pred_check
          %p208 = pneg %p141
        $region34: #{_matnet_forward.23} parent=11 // pred_check_branch
          %210 = sbr.rel (%p208) target = $region36
        $region35: #{_matnet_forward.23} parent=11 // pred_region
          _
        $region36: #{_matnet_forward.23} parent=11 // pred_fallthru
          _
      $region12: #{_matnet_forward.23} parent=5 // pred_fallthru
        _
      %p211 = scmp.lt.s32.totalorder %s15, 14
      // Predicated region
      $region37: #{_matnet_forward.23} parent=5 // pred_check
        %p212 = pneg %p211
      $region38: #{_matnet_forward.23} parent=5 // pred_check_branch
        %214 = sbr.rel (%p212) target = $region40
      $region39: #{_matnet_forward.23} parent=5 // pred_region
        _
      $region40: #{_matnet_forward.23} parent=5 // pred_fallthru
        _
      %p215 = scmp.le.s32.totalorder 1, %s15
      %p216 = scmp.lt.s32.totalorder %s15, 15
      %p217 = pnand %p215, %p216
      %p218 = pneg %p217
      // Predicated region
      $region41: #{_matnet_forward.23} parent=5 // pred_check
        _
      $region42: #{_matnet_forward.23} parent=5 // pred_check_branch
        %220 = sbr.rel (%p217) target = $region44
      $region43: #{_matnet_forward.23} parent=5 // pred_region
        %s221 = ssub.s32 %s15, 1
        // Predicated region
        $region45: #{_matnet_forward.23} parent=43 // pred_check
          %p222 = pneg %p36
        $region46: #{_matnet_forward.23} parent=43 // pred_check_branch
          %224 = sbr.rel (%p222) target = $region48
        $region47: #{_matnet_forward.23} parent=43 // pred_region
          %225 = dma.done [#allocation6], 16
        $region48: #{_matnet_forward.23} parent=43 // pred_fallthru
          _
        // Predicated region
        $region49: #{_matnet_forward.23} parent=43 // pred_check
          %p226 = pneg %p57
        $region50: #{_matnet_forward.23} parent=43 // pred_check_branch
          %228 = sbr.rel (%p226) target = $region52
        $region51: #{_matnet_forward.23} parent=43 // pred_region
          %229 = dma.done [#allocation8], 16
        $region52: #{_matnet_forward.23} parent=43 // pred_fallthru
          _
        %230 = sfence
        %p231 = pneg %p36
        %p232 = pneg %p33
        %p233 = pneg %p57
        %p234 = pneg %p54
        %p235 = pneg %p78
        %p236 = pneg %p75
        %p237 = pneg %p99
        %p238 = pneg %p96
        %p239 = pneg %p120
        %p240 = pneg %p117
        %p241 = pneg %p141
        %p242 = pneg %p138
        %p243 = pneg %p162
        %p244 = pneg %p159
        %s245 = sadd.s32 %s20, 1
        %p246 = scmp.eq.s32.totalorder %s20, 0
        // Predicated region
        $region53: #{_matnet_forward.23} parent=43 // pred_check
          %p247 = pneg %p246
        $region54: #{_matnet_forward.23} parent=43 // pred_check_branch
          %249 = sbr.rel (%p247) target = $region56
        $region55: #{_matnet_forward.23} parent=43 // pred_region
          %v250 = vld [vmem:[%s4] sm:$0xff]
          %v251 = vld [vmem:[%s4 + $0x8] sm:$0xff]
          %v252 = vld [vmem:[%s4 + $0x10] sm:$0xff]
          %v253 = vld [vmem:[%s4 + $0x18] sm:$0xff]
          %v254 = vld [vmem:[%s4 + $0x20] sm:$0xff]
          %v255 = vld [vmem:[%s4 + $0x28] sm:$0xff]
          %v256 = vld [vmem:[%s4 + $0x30] sm:$0xff]
          %v257 = vld [vmem:[%s4 + $0x38] sm:$0xff]
          %v258 = vld [vmem:[%s4 + $0x40] sm:$0xff]
          %v259 = vld [vmem:[%s4 + $0x48] sm:$0xff]
          %v260 = vld [vmem:[%s4 + $0x50] sm:$0xff]
          %v261 = vld [vmem:[%s4 + $0x58] sm:$0xff]
          %v262 = vld [vmem:[%s4 + $0x60] sm:$0xff]
          %v263 = vld [vmem:[%s4 + $0x68] sm:$0xff]
          %v264 = vld [vmem:[%s4 + $0x70] sm:$0xff]
          %v265 = vld [vmem:[%s4 + $0x78] sm:$0xff]
          %vm266 = vcmask 39936
          %267 = vst.msk [vmem:[#allocation2] sm:$0xff] %vm266, %v250
          %268 = vst.msk [vmem:[#allocation2 + $0x8] sm:$0xff] %vm266, %v251
          %269 = vst.msk [vmem:[#allocation2 + $0x10] sm:$0xff] %vm266, %v252
          %270 = vst.msk [vmem:[#allocation2 + $0x18] sm:$0xff] %vm266, %v253
          %271 = vst.msk [vmem:[#allocation2 + $0x20] sm:$0xff] %vm266, %v254
          %272 = vst.msk [vmem:[#allocation2 + $0x28] sm:$0xff] %vm266, %v255
          %273 = vst.msk [vmem:[#allocation2 + $0x30] sm:$0xff] %vm266, %v256
          %274 = vst.msk [vmem:[#allocation2 + $0x38] sm:$0xff] %vm266, %v257
          %275 = vst.msk [vmem:[#allocation2 + $0x40] sm:$0xff] %vm266, %v258
          %276 = vst.msk [vmem:[#allocation2 + $0x48] sm:$0xff] %vm266, %v259
          %277 = vst.msk [vmem:[#allocation2 + $0x50] sm:$0xff] %vm266, %v260
          %278 = vst.msk [vmem:[#allocation2 + $0x58] sm:$0xff] %vm266, %v261
          %279 = vst.msk [vmem:[#allocation2 + $0x60] sm:$0xff] %vm266, %v262
          %280 = vst.msk [vmem:[#allocation2 + $0x68] sm:$0xff] %vm266, %v263
          %281 = vst.msk [vmem:[#allocation2 + $0x70] sm:$0xff] %vm266, %v264
          %282 = vst.msk [vmem:[#allocation2 + $0x78] sm:$0xff] %vm266, %v265
          %v283 = vld [vmem:[%s5] sm:$0xff]
          %v284 = vld [vmem:[%s5 + $0x8] sm:$0xff]
          %v285 = vld [vmem:[%s5 + $0x10] sm:$0xff]
          %v286 = vld [vmem:[%s5 + $0x18] sm:$0xff]
          %v287 = vld [vmem:[%s5 + $0x20] sm:$0xff]
          %v288 = vld [vmem:[%s5 + $0x28] sm:$0xff]
          %v289 = vld [vmem:[%s5 + $0x30] sm:$0xff]
          %v290 = vld [vmem:[%s5 + $0x38] sm:$0xff]
          %v291 = vld [vmem:[%s5 + $0x40] sm:$0xff]
          %v292 = vld [vmem:[%s5 + $0x48] sm:$0xff]
          %v293 = vld [vmem:[%s5 + $0x50] sm:$0xff]
          %v294 = vld [vmem:[%s5 + $0x58] sm:$0xff]
          %v295 = vld [vmem:[%s5 + $0x60] sm:$0xff]
          %v296 = vld [vmem:[%s5 + $0x68] sm:$0xff]
          %v297 = vld [vmem:[%s5 + $0x70] sm:$0xff]
          %v298 = vld [vmem:[%s5 + $0x78] sm:$0xff]
          %299 = vst.msk [vmem:[#allocation3] sm:$0xff] %vm266, %v283
          %300 = vst.msk [vmem:[#allocation3 + $0x8] sm:$0xff] %vm266, %v284
          %301 = vst.msk [vmem:[#allocation3 + $0x10] sm:$0xff] %vm266, %v285
          %302 = vst.msk [vmem:[#allocation3 + $0x18] sm:$0xff] %vm266, %v286
          %303 = vst.msk [vmem:[#allocation3 + $0x20] sm:$0xff] %vm266, %v287
          %304 = vst.msk [vmem:[#allocation3 + $0x28] sm:$0xff] %vm266, %v288
          %305 = vst.msk [vmem:[#allocation3 + $0x30] sm:$0xff] %vm266, %v289
          %306 = vst.msk [vmem:[#allocation3 + $0x38] sm:$0xff] %vm266, %v290
          %307 = vst.msk [vmem:[#allocation3 + $0x40] sm:$0xff] %vm266, %v291
          %308 = vst.msk [vmem:[#allocation3 + $0x48] sm:$0xff] %vm266, %v292
          %309 = vst.msk [vmem:[#allocation3 + $0x50] sm:$0xff] %vm266, %v293
          %310 = vst.msk [vmem:[#allocation3 + $0x58] sm:$0xff] %vm266, %v294
          %311 = vst.msk [vmem:[#allocation3 + $0x60] sm:$0xff] %vm266, %v295
          %312 = vst.msk [vmem:[#allocation3 + $0x68] sm:$0xff] %vm266, %v296
          %313 = vst.msk [vmem:[#allocation3 + $0x70] sm:$0xff] %vm266, %v297
          %314 = vst.msk [vmem:[#allocation3 + $0x78] sm:$0xff] %vm266, %v298
        $region56: #{_matnet_forward.23} parent=43 // pred_fallthru
          _
        %s315 = sld [smem:[#allocation4 + %s245]]
        %s316 = sld [smem:[#allocation7 + %s245]]
        %v317 = vld [vmem:[%s2] sm:$0xff]
        %v318 = vld [vmem:[%s2 + $0x8] sm:$0xff]
        %v319 = vld [vmem:[%s2 + $0x10] sm:$0xff]
        %v320 = vld [vmem:[%s2 + $0x18] sm:$0xff]
        %v321 = vld [vmem:[%s2 + $0x20] sm:$0xff]
        %v322 = vld [vmem:[%s2 + $0x28] sm:$0xff]
        %v323 = vld [vmem:[%s2 + $0x30] sm:$0xff]
        %v324 = vld [vmem:[%s2 + $0x38] sm:$0xff]
        %v325 = vld [vmem:[%s2 + $0x40] sm:$0xff]
        %v326 = vld [vmem:[%s2 + $0x48] sm:$0xff]
        %v327 = vld [vmem:[%s2 + $0x50] sm:$0xff]
        %v328 = vld [vmem:[%s2 + $0x58] sm:$0xff]
        %v329 = vld [vmem:[%s2 + $0x60] sm:$0xff]
        %v330 = vld [vmem:[%s2 + $0x68] sm:$0xff]
        %v331 = vld [vmem:[%s2 + $0x70] sm:$0xff]
        %v332 = vld [vmem:[%s2 + $0x78] sm:$0xff]
        %v333 = vld [vmem:[#allocation2] sm:$0xff]
        %v334 = vld [vmem:[#allocation2 + $0x8] sm:$0xff]
        %v335 = vld [vmem:[#allocation2 + $0x10] sm:$0xff]
        %v336 = vld [vmem:[#allocation2 + $0x18] sm:$0xff]
        %v337 = vld [vmem:[#allocation2 + $0x20] sm:$0xff]
        %v338 = vld [vmem:[#allocation2 + $0x28] sm:$0xff]
        %v339 = vld [vmem:[#allocation2 + $0x30] sm:$0xff]
        %v340 = vld [vmem:[#allocation2 + $0x38] sm:$0xff]
        %v341 = vld [vmem:[#allocation2 + $0x40] sm:$0xff]
        %v342 = vld [vmem:[#allocation2 + $0x48] sm:$0xff]
        %v343 = vld [vmem:[#allocation2 + $0x50] sm:$0xff]
        %v344 = vld [vmem:[#allocation2 + $0x58] sm:$0xff]
        %v345 = vld [vmem:[#allocation2 + $0x60] sm:$0xff]
        %v346 = vld [vmem:[#allocation2 + $0x68] sm:$0xff]
        %v347 = vld [vmem:[#allocation2 + $0x70] sm:$0xff]
        %v348 = vld [vmem:[#allocation2 + $0x78] sm:$0xff]
        %v349 = vld [vmem:[#allocation3] sm:$0xff]
        %v350 = vld [vmem:[#allocation3 + $0x8] sm:$0xff]
        %v351 = vld [vmem:[#allocation3 + $0x10] sm:$0xff]
        %v352 = vld [vmem:[#allocation3 + $0x18] sm:$0xff]
        %v353 = vld [vmem:[#allocation3 + $0x20] sm:$0xff]
        %v354 = vld [vmem:[#allocation3 + $0x28] sm:$0xff]
        %v355 = vld [vmem:[#allocation3 + $0x30] sm:$0xff]
        %v356 = vld [vmem:[#allocation3 + $0x38] sm:$0xff]
        %v357 = vld [vmem:[#allocation3 + $0x40] sm:$0xff]
        %v358 = vld [vmem:[#allocation3 + $0x48] sm:$0xff]
        %v359 = vld [vmem:[#allocation3 + $0x50] sm:$0xff]
        %v360 = vld [vmem:[#allocation3 + $0x58] sm:$0xff]
        %v361 = vld [vmem:[#allocation3 + $0x60] sm:$0xff]
        %v362 = vld [vmem:[#allocation3 + $0x68] sm:$0xff]
        %v363 = vld [vmem:[#allocation3 + $0x70] sm:$0xff]
        %v364 = vld [vmem:[#allocation3 + $0x78] sm:$0xff]
        %vm365 = vcmask 39936
        %v367 = vsel %vm365, %v333, 0
        %v370 = vsel %vm365, %v334, 0
        %v373 = vsel %vm365, %v335, 0
        %v376 = vsel %vm365, %v336, 0
        %v379 = vsel %vm365, %v337, 0
        %v382 = vsel %vm365, %v338, 0
        %v385 = vsel %vm365, %v339, 0
        %v388 = vsel %vm365, %v340, 0
        %v391 = vsel %vm365, %v341, 0
        %v394 = vsel %vm365, %v342, 0
        %v397 = vsel %vm365, %v343, 0
        %v400 = vsel %vm365, %v344, 0
        %v403 = vsel %vm365, %v345, 0
        %v406 = vsel %vm365, %v346, 0
        %v409 = vsel %vm365, %v347, 0
        %v412 = vsel %vm365, %v348, 0
        %v415 = vsel %vm365, %v349, 0
        %v418 = vsel %vm365, %v350, 0
        %v421 = vsel %vm365, %v351, 0
        %v424 = vsel %vm365, %v352, 0
        %v427 = vsel %vm365, %v353, 0
        %v430 = vsel %vm365, %v354, 0
        %v433 = vsel %vm365, %v355, 0
        %v436 = vsel %vm365, %v356, 0
        %v439 = vsel %vm365, %v357, 0
        %v442 = vsel %vm365, %v358, 0
        %v445 = vsel %vm365, %v359, 0
        %v448 = vsel %vm365, %v360, 0
        %v451 = vsel %vm365, %v361, 0
        %v454 = vsel %vm365, %v362, 0
        %v457 = vsel %vm365, %v363, 0
        %v460 = vsel %vm365, %v364, 0
        %462 = vmatprep.subr.mxu0 0.0
        %463 = vmatpush1.xpose.msra.mxu0 %v415
        %464 = vmatprep.subr.mxu0 0.0
        %465 = vmatpush1.xpose.msra.mxu0 %v418
        %466 = vmatprep.subr.mxu0 0.0
        %467 = vmatpush1.xpose.msra.mxu0 %v421
        %468 = vmatprep.subr.mxu0 0.0
        %469 = vmatpush1.xpose.msra.mxu0 %v424
        %470 = vmatprep.subr.mxu0 0.0
        %471 = vmatpush1.xpose.msra.mxu0 %v427
        %472 = vmatprep.subr.mxu0 0.0
        %473 = vmatpush1.xpose.msra.mxu0 %v430
        %474 = vmatprep.subr.mxu0 0.0
        %475 = vmatpush1.xpose.msra.mxu0 %v433
        %476 = vmatprep.subr.mxu0 0.0
        %477 = vmatpush1.xpose.msra.mxu0 %v436
        %478 = vmatprep.subr.mxu0 0.0
        %479 = vmatpush1.xpose.msra.mxu0 %v439
        %480 = vmatprep.subr.mxu0 0.0
        %481 = vmatpush1.xpose.msra.mxu0 %v442
        %482 = vmatprep.subr.mxu0 0.0
        %483 = vmatpush1.xpose.msra.mxu0 %v445
        %484 = vmatprep.subr.mxu0 0.0
        %485 = vmatpush1.xpose.msra.mxu0 %v448
        %486 = vmatprep.subr.mxu0 0.0
        %487 = vmatpush1.xpose.msra.mxu0 %v451
        %488 = vmatprep.subr.mxu0 0.0
        %489 = vmatpush1.xpose.msra.mxu0 %v454
        %490 = vmatprep.subr.mxu0 0.0
        %491 = vmatpush1.xpose.msra.mxu0 %v457
        %492 = vmatprep.subr.mxu0 0.0
        %493 = vmatpush1.xpose.msra.mxu0 %v460
        %494 = vmatprep.subr.mxu0 0.0
        %495 = vmatpush1.xpose.msra.mxu0 0.0
        %496 = vmatprep.subr.mxu0 0.0
        %497 = vmatpush1.xpose.msra.mxu0 0.0
        %498 = vmatprep.subr.mxu0 0.0
        %499 = vmatpush1.xpose.msra.mxu0 0.0
        %500 = vmatprep.subr.mxu0 0.0
        %501 = vmatpush1.xpose.msra.mxu0 0.0
        %502 = vmatprep.subr.mxu0 0.0
        %503 = vmatpush1.xpose.msra.mxu0 0.0
        %504 = vmatprep.subr.mxu0 0.0
        %505 = vmatpush1.xpose.msra.mxu0 0.0
        %506 = vmatprep.subr.mxu0 0.0
        %507 = vmatpush1.xpose.msra.mxu0 0.0
        %508 = vmatprep.subr.mxu0 0.0
        %509 = vmatpush1.xpose.msra.mxu0 0.0
        %510 = vmatprep.subr.mxu0 0.0
        %511 = vmatpush1.xpose.msra.mxu0 0.0
        %512 = vmatprep.subr.mxu0 0.0
        %513 = vmatpush1.xpose.msra.mxu0 0.0
        %514 = vmatprep.subr.mxu0 0.0
        %515 = vmatpush1.xpose.msra.mxu0 0.0
        %516 = vmatprep.subr.mxu0 0.0
        %517 = vmatpush1.xpose.msra.mxu0 0.0
        %518 = vmatprep.subr.mxu0 0.0
        %519 = vmatpush1.xpose.msra.mxu0 0.0
        %520 = vmatprep.subr.mxu0 0.0
        %521 = vmatpush1.xpose.msra.mxu0 0.0
        %522 = vmatprep.subr.mxu0 0.0
        %523 = vmatpush1.xpose.msra.mxu0 0.0
        %524 = vmatprep.subr.mxu0 0.0
        %525 = vmatpush1.xpose.msra.mxu0 0.0
        %526 = vmatprep.mubr.f32.mxu0 0.0
        %527 = vmatmul.mubr.f32.gmra.mrb[0].mxu0 %v367
        %v528 = vpop.f32.mrb[0].mxu0
        %v529 = vadd.f32 0.0, %v528
        %v530 = vpop.f32.mrb[0].mxu0
        %531 = vmatprep.mubr.f32.mxu0 0.0
        %532 = vmatmul.mubr.f32.gmra.mrb[0].mxu0 %v370
        %v533 = vpop.f32.mrb[0].mxu0
        %v534 = vadd.f32 0.0, %v533
        %v535 = vpop.f32.mrb[0].mxu0
        %536 = vmatprep.mubr.f32.mxu0 0.0
        %537 = vmatmul.mubr.f32.gmra.mrb[0].mxu0 %v373
        %v538 = vpop.f32.mrb[0].mxu0
        %v539 = vadd.f32 0.0, %v538
        %v540 = vpop.f32.mrb[0].mxu0
        %541 = vmatprep.mubr.f32.mxu0 0.0
        %542 = vmatmul.mubr.f32.gmra.mrb[0].mxu0 %v376
        %v543 = vpop.f32.mrb[0].mxu0
        %v544 = vadd.f32 0.0, %v543
        %v545 = vpop.f32.mrb[0].mxu0
        %546 = vmatprep.mubr.f32.mxu0 0.0
        %547 = vmatmul.mubr.f32.gmra.mrb[0].mxu0 %v379
        %v548 = vpop.f32.mrb[0].mxu0
        %v549 = vadd.f32 0.0, %v548
        %v550 = vpop.f32.mrb[0].mxu0
        %551 = vmatprep.mubr.f32.mxu0 0.0
        %552 = vmatmul.mubr.f32.gmra.mrb[0].mxu0 %v382
        %v553 = vpop.f32.mrb[0].mxu0
        %v554 = vadd.f32 0.0, %v553
        %v555 = vpop.f32.mrb[0].mxu0
        %556 = vmatprep.mubr.f32.mxu0 0.0
        %557 = vmatmul.mubr.f32.gmra.mrb[0].mxu0 %v385
        %v558 = vpop.f32.mrb[0].mxu0
        %v559 = vadd.f32 0.0, %v558
        %v560 = vpop.f32.mrb[0].mxu0
        %561 = vmatprep.mubr.f32.mxu0 0.0
        %562 = vmatmul.mubr.f32.gmra.mrb[0].mxu0 %v388
        %v563 = vpop.f32.mrb[0].mxu0
        %v564 = vadd.f32 0.0, %v563
        %v565 = vpop.f32.mrb[0].mxu0
        %566 = vmatprep.mubr.f32.mxu0 0.0
        %567 = vmatmul.mubr.f32.gmra.mrb[0].mxu0 %v391
        %v568 = vpop.f32.mrb[0].mxu0
        %v569 = vadd.f32 0.0, %v568
        %v570 = vpop.f32.mrb[0].mxu0
        %571 = vmatprep.mubr.f32.mxu0 0.0
        %572 = vmatmul.mubr.f32.gmra.mrb[0].mxu0 %v394
        %v573 = vpop.f32.mrb[0].mxu0
        %v574 = vadd.f32 0.0, %v573
        %v575 = vpop.f32.mrb[0].mxu0
        %576 = vmatprep.mubr.f32.mxu0 0.0
        %577 = vmatmul.mubr.f32.gmra.mrb[0].mxu0 %v397
        %v578 = vpop.f32.mrb[0].mxu0
        %v579 = vadd.f32 0.0, %v578
        %v580 = vpop.f32.mrb[0].mxu0
        %581 = vmatprep.mubr.f32.mxu0 0.0
        %582 = vmatmul.mubr.f32.gmra.mrb[0].mxu0 %v400
        %v583 = vpop.f32.mrb[0].mxu0
        %v584 = vadd.f32 0.0, %v583
        %v585 = vpop.f32.mrb[0].mxu0
        %586 = vmatprep.mubr.f32.mxu0 0.0
        %587 = vmatmul.mubr.f32.gmra.mrb[0].mxu0 %v403
        %v588 = vpop.f32.mrb[0].mxu0
        %v589 = vadd.f32 0.0, %v588
        %v590 = vpop.f32.mrb[0].mxu0
        %591 = vmatprep.mubr.f32.mxu0 0.0
        %592 = vmatmul.mubr.f32.gmra.mrb[0].mxu0 %v406
        %v593 = vpop.f32.mrb[0].mxu0
        %v594 = vadd.f32 0.0, %v593
        %v595 = vpop.f32.mrb[0].mxu0
        %596 = vmatprep.mubr.f32.mxu0 0.0
        %597 = vmatmul.mubr.f32.gmra.mrb[0].mxu0 %v409
        %v598 = vpop.f32.mrb[0].mxu0
        %v599 = vadd.f32 0.0, %v598
        %v600 = vpop.f32.mrb[0].mxu0
        %601 = vmatprep.mubr.f32.mxu0 0.0
        %602 = vmatmul.mubr.f32.gmra.mrb[0].mxu0 %v412
        %v603 = vpop.f32.mrb[0].mxu0
        %v604 = vadd.f32 0.0, %v603
        %v605 = vpop.f32.mrb[0].mxu0
        %606 = vdwg.mxu0
        %v607 = vsub.f32 %v317, %v529
        %v608 = vsub.f32 %v318, %v534
        %v609 = vsub.f32 %v319, %v539
        %v610 = vsub.f32 %v320, %v544
        %v611 = vsub.f32 %v321, %v549
        %v612 = vsub.f32 %v322, %v554
        %v613 = vsub.f32 %v323, %v559
        %v614 = vsub.f32 %v324, %v564
        %v615 = vsub.f32 %v325, %v569
        %v616 = vsub.f32 %v326, %v574
        %v617 = vsub.f32 %v327, %v579
        %v618 = vsub.f32 %v328, %v584
        %v619 = vsub.f32 %v329, %v589
        %v620 = vsub.f32 %v330, %v594
        %v621 = vsub.f32 %v331, %v599
        %v622 = vsub.f32 %v332, %v604
        %s623 = ssub.f32 0.0, %s315
        %v624 = vstv %s623
        %v625 = vmax.f32 %v607, %v624
        %v626 = vmax.f32 %v608, %v624
        %v627 = vmax.f32 %v609, %v624
        %v628 = vmax.f32 %v610, %v624
        %v629 = vmax.f32 %v611, %v624
        %v630 = vmax.f32 %v612, %v624
        %v631 = vmax.f32 %v613, %v624
        %v632 = vmax.f32 %v614, %v624
        %v633 = vmax.f32 %v615, %v624
        %v634 = vmax.f32 %v616, %v624
        %v635 = vmax.f32 %v617, %v624
        %v636 = vmax.f32 %v618, %v624
        %v637 = vmax.f32 %v619, %v624
        %v638 = vmax.f32 %v620, %v624
        %v639 = vmax.f32 %v621, %v624
        %v640 = vmax.f32 %v622, %v624
        %v641 = vstv %s315
        %v642 = vmin.f32 %v625, %v641
        %v643 = vmin.f32 %v626, %v641
        %v644 = vmin.f32 %v627, %v641
        %v645 = vmin.f32 %v628, %v641
        %v646 = vmin.f32 %v629, %v641
        %v647 = vmin.f32 %v630, %v641
        %v648 = vmin.f32 %v631, %v641
        %v649 = vmin.f32 %v632, %v641
        %v650 = vmin.f32 %v633, %v641
        %v651 = vmin.f32 %v634, %v641
        %v652 = vmin.f32 %v635, %v641
        %v653 = vmin.f32 %v636, %v641
        %v654 = vmin.f32 %v637, %v641
        %v655 = vmin.f32 %v638, %v641
        %v656 = vmin.f32 %v639, %v641
        %v657 = vmin.f32 %v640, %v641
        %658 = vmatprep.subr.mxu0 0.0
        %659 = vmatpush1.msra.mxu0 %v349
        %660 = vmatprep.subr.mxu0 0.0
        %661 = vmatpush1.msra.mxu0 %v350
        %662 = vmatprep.subr.mxu0 0.0
        %663 = vmatpush1.msra.mxu0 %v351
        %664 = vmatprep.subr.mxu0 0.0
        %665 = vmatpush1.msra.mxu0 %v352
        %666 = vmatprep.subr.mxu0 0.0
        %667 = vmatpush1.msra.mxu0 %v353
        %668 = vmatprep.subr.mxu0 0.0
        %669 = vmatpush1.msra.mxu0 %v354
        %670 = vmatprep.subr.mxu0 0.0
        %671 = vmatpush1.msra.mxu0 %v355
        %672 = vmatprep.subr.mxu0 0.0
        %673 = vmatpush1.msra.mxu0 %v356
        %674 = vmatprep.subr.mxu0 0.0
        %675 = vmatpush1.msra.mxu0 %v357
        %676 = vmatprep.subr.mxu0 0.0
        %677 = vmatpush1.msra.mxu0 %v358
        %678 = vmatprep.subr.mxu0 0.0
        %679 = vmatpush1.msra.mxu0 %v359
        %680 = vmatprep.subr.mxu0 0.0
        %681 = vmatpush1.msra.mxu0 %v360
        %682 = vmatprep.subr.mxu0 0.0
        %683 = vmatpush1.msra.mxu0 %v361
        %684 = vmatprep.subr.mxu0 0.0
        %685 = vmatpush1.msra.mxu0 %v362
        %686 = vmatprep.subr.mxu0 0.0
        %687 = vmatpush1.msra.mxu0 %v363
        %688 = vmatprep.subr.mxu0 0.0
        %689 = vmatpush1.msra.mxu0 %v364
        %690 = vmatprep.subr.mxu0 0.0
        %691 = vmatpush1.msra.mxu0 0.0
        %692 = vmatprep.subr.mxu0 0.0
        %693 = vmatpush1.msra.mxu0 0.0
        %694 = vmatprep.subr.mxu0 0.0
        %695 = vmatpush1.msra.mxu0 0.0
        %696 = vmatprep.subr.mxu0 0.0
        %697 = vmatpush1.msra.mxu0 0.0
        %698 = vmatprep.subr.mxu0 0.0
        %699 = vmatpush1.msra.mxu0 0.0
        %700 = vmatprep.subr.mxu0 0.0
        %701 = vmatpush1.msra.mxu0 0.0
        %702 = vmatprep.subr.mxu0 0.0
        %703 = vmatpush1.msra.mxu0 0.0
        %704 = vmatprep.subr.mxu0 0.0
        %705 = vmatpush1.msra.mxu0 0.0
        %706 = vmatprep.subr.mxu0 0.0
        %707 = vmatpush1.msra.mxu0 0.0
        %708 = vmatprep.subr.mxu0 0.0
        %709 = vmatpush1.msra.mxu0 0.0
        %710 = vmatprep.subr.mxu0 0.0
        %711 = vmatpush1.msra.mxu0 0.0
        %712 = vmatprep.subr.mxu0 0.0
        %713 = vmatpush1.msra.mxu0 0.0
        %714 = vmatprep.subr.mxu0 0.0
        %715 = vmatpush1.msra.mxu0 0.0
        %716 = vmatprep.subr.mxu0 0.0
        %717 = vmatpush1.msra.mxu0 0.0
        %718 = vmatprep.subr.mxu0 0.0
        %719 = vmatpush1.msra.mxu0 0.0
        %720 = vmatprep.subr.mxu0 0.0
        %721 = vmatpush1.msra.mxu0 0.0
        %722 = vmatprep.mubr.f32.mxu0 0.0
        %723 = vmatmul.mubr.f32.gmra.mrb[0].mxu0 %v642
        %v724 = vpop.f32.mrb[0].mxu0
        %v725 = vadd.f32 0.0, %v724
        %v726 = vpop.f32.mrb[0].mxu0
        %727 = vmatprep.mubr.f32.mxu0 0.0
        %728 = vmatmul.mubr.f32.gmra.mrb[0].mxu0 %v643
        %v729 = vpop.f32.mrb[0].mxu0
        %v730 = vadd.f32 0.0, %v729
        %v731 = vpop.f32.mrb[0].mxu0
        %732 = vmatprep.mubr.f32.mxu0 0.0
        %733 = vmatmul.mubr.f32.gmra.mrb[0].mxu0 %v644
        %v734 = vpop.f32.mrb[0].mxu0
        %v735 = vadd.f32 0.0, %v734
        %v736 = vpop.f32.mrb[0].mxu0
        %737 = vmatprep.mubr.f32.mxu0 0.0
        %738 = vmatmul.mubr.f32.gmra.mrb[0].mxu0 %v645
        %v739 = vpop.f32.mrb[0].mxu0
        %v740 = vadd.f32 0.0, %v739
        %v741 = vpop.f32.mrb[0].mxu0
        %742 = vmatprep.mubr.f32.mxu0 0.0
        %743 = vmatmul.mubr.f32.gmra.mrb[0].mxu0 %v646
        %v744 = vpop.f32.mrb[0].mxu0
        %v745 = vadd.f32 0.0, %v744
        %v746 = vpop.f32.mrb[0].mxu0
        %747 = vmatprep.mubr.f32.mxu0 0.0
        %748 = vmatmul.mubr.f32.gmra.mrb[0].mxu0 %v647
        %v749 = vpop.f32.mrb[0].mxu0
        %v750 = vadd.f32 0.0, %v749
        %v751 = vpop.f32.mrb[0].mxu0
        %752 = vmatprep.mubr.f32.mxu0 0.0
        %753 = vmatmul.mubr.f32.gmra.mrb[0].mxu0 %v648
        %v754 = vpop.f32.mrb[0].mxu0
        %v755 = vadd.f32 0.0, %v754
        %v756 = vpop.f32.mrb[0].mxu0
        %757 = vmatprep.mubr.f32.mxu0 0.0
        %758 = vmatmul.mubr.f32.gmra.mrb[0].mxu0 %v649
        %v759 = vpop.f32.mrb[0].mxu0
        %v760 = vadd.f32 0.0, %v759
        %v761 = vpop.f32.mrb[0].mxu0
        %762 = vmatprep.mubr.f32.mxu0 0.0
        %763 = vmatmul.mubr.f32.gmra.mrb[0].mxu0 %v650
        %v764 = vpop.f32.mrb[0].mxu0
        %v765 = vadd.f32 0.0, %v764
        %v766 = vpop.f32.mrb[0].mxu0
        %767 = vmatprep.mubr.f32.mxu0 0.0
        %768 = vmatmul.mubr.f32.gmra.mrb[0].mxu0 %v651
        %v769 = vpop.f32.mrb[0].mxu0
        %v770 = vadd.f32 0.0, %v769
        %v771 = vpop.f32.mrb[0].mxu0
        %772 = vmatprep.mubr.f32.mxu0 0.0
        %773 = vmatmul.mubr.f32.gmra.mrb[0].mxu0 %v652
        %v774 = vpop.f32.mrb[0].mxu0
        %v775 = vadd.f32 0.0, %v774
        %v776 = vpop.f32.mrb[0].mxu0
        %777 = vmatprep.mubr.f32.mxu0 0.0
        %778 = vmatmul.mubr.f32.gmra.mrb[0].mxu0 %v653
        %v779 = vpop.f32.mrb[0].mxu0
        %v780 = vadd.f32 0.0, %v779
        %v781 = vpop.f32.mrb[0].mxu0
        %782 = vmatprep.mubr.f32.mxu0 0.0
        %783 = vmatmul.mubr.f32.gmra.mrb[0].mxu0 %v654
        %v784 = vpop.f32.mrb[0].mxu0
        %v785 = vadd.f32 0.0, %v784
        %v786 = vpop.f32.mrb[0].mxu0
        %787 = vmatprep.mubr.f32.mxu0 0.0
        %788 = vmatmul.mubr.f32.gmra.mrb[0].mxu0 %v655
        %v789 = vpop.f32.mrb[0].mxu0
        %v790 = vadd.f32 0.0, %v789
        %v791 = vpop.f32.mrb[0].mxu0
        %792 = vmatprep.mubr.f32.mxu0 0.0
        %793 = vmatmul.mubr.f32.gmra.mrb[0].mxu0 %v656
        %v794 = vpop.f32.mrb[0].mxu0
        %v795 = vadd.f32 0.0, %v794
        %v796 = vpop.f32.mrb[0].mxu0
        %797 = vmatprep.mubr.f32.mxu0 0.0
        %798 = vmatmul.mubr.f32.gmra.mrb[0].mxu0 %v657
        %v799 = vpop.f32.mrb[0].mxu0
        %v800 = vadd.f32 0.0, %v799
        %v801 = vpop.f32.mrb[0].mxu0
        %802 = vdwg.mxu0
        %803 = vxpose.xlu0.b32.start [1/16] %v642, 128
        %804 = vxpose.xlu0.b32.cont [2/16] %v643, 128
        %805 = vxpose.xlu0.b32.cont [3/16] %v644, 128
        %806 = vxpose.xlu0.b32.cont [4/16] %v645, 128
        %807 = vxpose.xlu0.b32.cont [5/16] %v646, 128
        %808 = vxpose.xlu0.b32.cont [6/16] %v647, 128
        %809 = vxpose.xlu0.b32.cont [7/16] %v648, 128
        %810 = vxpose.xlu0.b32.cont [8/16] %v649, 128
        %811 = vxpose.xlu0.b32.cont [9/16] %v650, 128
        %812 = vxpose.xlu0.b32.cont [10/16] %v651, 128
        %813 = vxpose.xlu0.b32.cont [11/16] %v652, 128
        %814 = vxpose.xlu0.b32.cont [12/16] %v653, 128
        %815 = vxpose.xlu0.b32.cont [13/16] %v654, 128
        %816 = vxpose.xlu0.b32.cont [14/16] %v655, 128
        %817 = vxpose.xlu0.b32.cont [15/16] %v656, 128
        %818 = vxpose.xlu0.b32.end [16/16] %v657, 128
        %v819 = vpop.trf.xlu0
        %v820 = vpop.trf.xlu0
        %v821 = vpop.trf.xlu0
        %v822 = vpop.trf.xlu0
        %v823 = vpop.trf.xlu0
        %v824 = vpop.trf.xlu0
        %v825 = vpop.trf.xlu0
        %v826 = vpop.trf.xlu0
        %v827 = vpop.trf.xlu0
        %v828 = vpop.trf.xlu0
        %v829 = vpop.trf.xlu0
        %v830 = vpop.trf.xlu0
        %v831 = vpop.trf.xlu0
        %v832 = vpop.trf.xlu0
        %v833 = vpop.trf.xlu0
        %v834 = vpop.trf.xlu0
        %835 = vmatprep.subr.mxu0 0.0
        %836 = vmatpush1.msra.mxu0 %v333
        %837 = vmatprep.subr.mxu0 0.0
        %838 = vmatpush1.msra.mxu0 %v334
        %839 = vmatprep.subr.mxu0 0.0
        %840 = vmatpush1.msra.mxu0 %v335
        %841 = vmatprep.subr.mxu0 0.0
        %842 = vmatpush1.msra.mxu0 %v336
        %843 = vmatprep.subr.mxu0 0.0
        %844 = vmatpush1.msra.mxu0 %v337
        %845 = vmatprep.subr.mxu0 0.0
        %846 = vmatpush1.msra.mxu0 %v338
        %847 = vmatprep.subr.mxu0 0.0
        %848 = vmatpush1.msra.mxu0 %v339
        %849 = vmatprep.subr.mxu0 0.0
        %850 = vmatpush1.msra.mxu0 %v340
        %851 = vmatprep.subr.mxu0 0.0
        %852 = vmatpush1.msra.mxu0 %v341
        %853 = vmatprep.subr.mxu0 0.0
        %854 = vmatpush1.msra.mxu0 %v342
        %855 = vmatprep.subr.mxu0 0.0
        %856 = vmatpush1.msra.mxu0 %v343
        %857 = vmatprep.subr.mxu0 0.0
        %858 = vmatpush1.msra.mxu0 %v344
        %859 = vmatprep.subr.mxu0 0.0
        %860 = vmatpush1.msra.mxu0 %v345
        %861 = vmatprep.subr.mxu0 0.0
        %862 = vmatpush1.msra.mxu0 %v346
        %863 = vmatprep.subr.mxu0 0.0
        %864 = vmatpush1.msra.mxu0 %v347
        %865 = vmatprep.subr.mxu0 0.0
        %866 = vmatpush1.msra.mxu0 %v348
        %867 = vmatprep.subr.mxu0 0.0
        %868 = vmatpush1.msra.mxu0 0.0
        %869 = vmatprep.subr.mxu0 0.0
        %870 = vmatpush1.msra.mxu0 0.0
        %871 = vmatprep.subr.mxu0 0.0
        %872 = vmatpush1.msra.mxu0 0.0
        %873 = vmatprep.subr.mxu0 0.0
        %874 = vmatpush1.msra.mxu0 0.0
        %875 = vmatprep.subr.mxu0 0.0
        %876 = vmatpush1.msra.mxu0 0.0
        %877 = vmatprep.subr.mxu0 0.0
        %878 = vmatpush1.msra.mxu0 0.0
        %879 = vmatprep.subr.mxu0 0.0
        %880 = vmatpush1.msra.mxu0 0.0
        %881 = vmatprep.subr.mxu0 0.0
        %882 = vmatpush1.msra.mxu0 0.0
        %883 = vmatprep.subr.mxu0 0.0
        %884 = vmatpush1.msra.mxu0 0.0
        %885 = vmatprep.subr.mxu0 0.0
        %886 = vmatpush1.msra.mxu0 0.0
        %887 = vmatprep.subr.mxu0 0.0
        %888 = vmatpush1.msra.mxu0 0.0
        %889 = vmatprep.subr.mxu0 0.0
        %890 = vmatpush1.msra.mxu0 0.0
        %891 = vmatprep.subr.mxu0 0.0
        %892 = vmatpush1.msra.mxu0 0.0
        %893 = vmatprep.subr.mxu0 0.0
        %894 = vmatpush1.msra.mxu0 0.0
        %895 = vmatprep.subr.mxu0 0.0
        %896 = vmatpush1.msra.mxu0 0.0
        %897 = vmatprep.subr.mxu0 0.0
        %898 = vmatpush1.msra.mxu0 0.0
        %899 = vmatprep.mubr.f32.mxu0 0.0
        %900 = vmatmul.mubr.f32.gmra.mrb[0].mxu0 %v819
        %v901 = vpop.f32.mrb[0].mxu0
        %v902 = vadd.f32 0.0, %v901
        %v903 = vpop.f32.mrb[0].mxu0
        %904 = vmatprep.mubr.f32.mxu0 0.0
        %905 = vmatmul.mubr.f32.gmra.mrb[0].mxu0 %v820
        %v906 = vpop.f32.mrb[0].mxu0
        %v907 = vadd.f32 0.0, %v906
        %v908 = vpop.f32.mrb[0].mxu0
        %909 = vmatprep.mubr.f32.mxu0 0.0
        %910 = vmatmul.mubr.f32.gmra.mrb[0].mxu0 %v821
        %v911 = vpop.f32.mrb[0].mxu0
        %v912 = vadd.f32 0.0, %v911
        %v913 = vpop.f32.mrb[0].mxu0
        %914 = vmatprep.mubr.f32.mxu0 0.0
        %915 = vmatmul.mubr.f32.gmra.mrb[0].mxu0 %v822
        %v916 = vpop.f32.mrb[0].mxu0
        %v917 = vadd.f32 0.0, %v916
        %v918 = vpop.f32.mrb[0].mxu0
        %919 = vmatprep.mubr.f32.mxu0 0.0
        %920 = vmatmul.mubr.f32.gmra.mrb[0].mxu0 %v823
        %v921 = vpop.f32.mrb[0].mxu0
        %v922 = vadd.f32 0.0, %v921
        %v923 = vpop.f32.mrb[0].mxu0
        %924 = vmatprep.mubr.f32.mxu0 0.0
        %925 = vmatmul.mubr.f32.gmra.mrb[0].mxu0 %v824
        %v926 = vpop.f32.mrb[0].mxu0
        %v927 = vadd.f32 0.0, %v926
        %v928 = vpop.f32.mrb[0].mxu0
        %929 = vmatprep.mubr.f32.mxu0 0.0
        %930 = vmatmul.mubr.f32.gmra.mrb[0].mxu0 %v825
        %v931 = vpop.f32.mrb[0].mxu0
        %v932 = vadd.f32 0.0, %v931
        %v933 = vpop.f32.mrb[0].mxu0
        %934 = vmatprep.mubr.f32.mxu0 0.0
        %935 = vmatmul.mubr.f32.gmra.mrb[0].mxu0 %v826
        %v936 = vpop.f32.mrb[0].mxu0
        %v937 = vadd.f32 0.0, %v936
        %v938 = vpop.f32.mrb[0].mxu0
        %939 = vmatprep.mubr.f32.mxu0 0.0
        %940 = vmatmul.mubr.f32.gmra.mrb[0].mxu0 %v827
        %v941 = vpop.f32.mrb[0].mxu0
        %v942 = vadd.f32 0.0, %v941
        %v943 = vpop.f32.mrb[0].mxu0
        %944 = vmatprep.mubr.f32.mxu0 0.0
        %945 = vmatmul.mubr.f32.gmra.mrb[0].mxu0 %v828
        %v946 = vpop.f32.mrb[0].mxu0
        %v947 = vadd.f32 0.0, %v946
        %v948 = vpop.f32.mrb[0].mxu0
        %949 = vmatprep.mubr.f32.mxu0 0.0
        %950 = vmatmul.mubr.f32.gmra.mrb[0].mxu0 %v829
        %v951 = vpop.f32.mrb[0].mxu0
        %v952 = vadd.f32 0.0, %v951
        %v953 = vpop.f32.mrb[0].mxu0
        %954 = vmatprep.mubr.f32.mxu0 0.0
        %955 = vmatmul.mubr.f32.gmra.mrb[0].mxu0 %v830
        %v956 = vpop.f32.mrb[0].mxu0
        %v957 = vadd.f32 0.0, %v956
        %v958 = vpop.f32.mrb[0].mxu0
        %959 = vmatprep.mubr.f32.mxu0 0.0
        %960 = vmatmul.mubr.f32.gmra.mrb[0].mxu0 %v831
        %v961 = vpop.f32.mrb[0].mxu0
        %v962 = vadd.f32 0.0, %v961
        %v963 = vpop.f32.mrb[0].mxu0
        %964 = vmatprep.mubr.f32.mxu0 0.0
        %965 = vmatmul.mubr.f32.gmra.mrb[0].mxu0 %v832
        %v966 = vpop.f32.mrb[0].mxu0
        %v967 = vadd.f32 0.0, %v966
        %v968 = vpop.f32.mrb[0].mxu0
        %969 = vmatprep.mubr.f32.mxu0 0.0
        %970 = vmatmul.mubr.f32.gmra.mrb[0].mxu0 %v833
        %v971 = vpop.f32.mrb[0].mxu0
        %v972 = vadd.f32 0.0, %v971
        %v973 = vpop.f32.mrb[0].mxu0
        %974 = vmatprep.mubr.f32.mxu0 0.0
        %975 = vmatmul.mubr.f32.gmra.mrb[0].mxu0 %v834
        %v976 = vpop.f32.mrb[0].mxu0
        %v977 = vadd.f32 0.0, %v976
        %v978 = vpop.f32.mrb[0].mxu0
        %979 = vdwg.mxu0
        %980 = vxpose.xlu0.b32.start [1/16] %v349, 128
        %981 = vxpose.xlu0.b32.cont [2/16] %v350, 128
        %982 = vxpose.xlu0.b32.cont [3/16] %v351, 128
        %983 = vxpose.xlu0.b32.cont [4/16] %v352, 128
        %984 = vxpose.xlu0.b32.cont [5/16] %v353, 128
        %985 = vxpose.xlu0.b32.cont [6/16] %v354, 128
        %986 = vxpose.xlu0.b32.cont [7/16] %v355, 128
        %987 = vxpose.xlu0.b32.cont [8/16] %v356, 128
        %988 = vxpose.xlu0.b32.cont [9/16] %v357, 128
        %989 = vxpose.xlu0.b32.cont [10/16] %v358, 128
        %990 = vxpose.xlu0.b32.cont [11/16] %v359, 128
        %991 = vxpose.xlu0.b32.cont [12/16] %v360, 128
        %992 = vxpose.xlu0.b32.cont [13/16] %v361, 128
        %993 = vxpose.xlu0.b32.cont [14/16] %v362, 128
        %994 = vxpose.xlu0.b32.cont [15/16] %v363, 128
        %995 = vxpose.xlu0.b32.end [16/16] %v364, 128
        %v996 = vpop.trf.xlu0
        %v997 = vpop.trf.xlu0
        %v998 = vpop.trf.xlu0
        %v999 = vpop.trf.xlu0
        %v1000 = vpop.trf.xlu0
        %v1001 = vpop.trf.xlu0
        %v1002 = vpop.trf.xlu0
        %v1003 = vpop.trf.xlu0
        %v1004 = vpop.trf.xlu0
        %v1005 = vpop.trf.xlu0
        %v1006 = vpop.trf.xlu0
        %v1007 = vpop.trf.xlu0
        %v1008 = vpop.trf.xlu0
        %v1009 = vpop.trf.xlu0
        %v1010 = vpop.trf.xlu0
        %v1011 = vpop.trf.xlu0
        %1012 = vmatprep.subr.mxu0 0.0
        %1013 = vmatpush1.msra.mxu0 %v349
        %1014 = vmatprep.subr.mxu0 0.0
        %1015 = vmatpush1.msra.mxu0 %v350
        %1016 = vmatprep.subr.mxu0 0.0
        %1017 = vmatpush1.msra.mxu0 %v351
        %1018 = vmatprep.subr.mxu0 0.0
        %1019 = vmatpush1.msra.mxu0 %v352
        %1020 = vmatprep.subr.mxu0 0.0
        %1021 = vmatpush1.msra.mxu0 %v353
        %1022 = vmatprep.subr.mxu0 0.0
        %1023 = vmatpush1.msra.mxu0 %v354
        %1024 = vmatprep.subr.mxu0 0.0
        %1025 = vmatpush1.msra.mxu0 %v355
        %1026 = vmatprep.subr.mxu0 0.0
        %1027 = vmatpush1.msra.mxu0 %v356
        %1028 = vmatprep.subr.mxu0 0.0
        %1029 = vmatpush1.msra.mxu0 %v357
        %1030 = vmatprep.subr.mxu0 0.0
        %1031 = vmatpush1.msra.mxu0 %v358
        %1032 = vmatprep.subr.mxu0 0.0
        %1033 = vmatpush1.msra.mxu0 %v359
        %1034 = vmatprep.subr.mxu0 0.0
        %1035 = vmatpush1.msra.mxu0 %v360
        %1036 = vmatprep.subr.mxu0 0.0
        %1037 = vmatpush1.msra.mxu0 %v361
        %1038 = vmatprep.subr.mxu0 0.0
        %1039 = vmatpush1.msra.mxu0 %v362
        %1040 = vmatprep.subr.mxu0 0.0
        %1041 = vmatpush1.msra.mxu0 %v363
        %1042 = vmatprep.subr.mxu0 0.0
        %1043 = vmatpush1.msra.mxu0 %v364
        %1044 = vmatprep.subr.mxu0 0.0
        %1045 = vmatpush1.msra.mxu0 0.0
        %1046 = vmatprep.subr.mxu0 0.0
        %1047 = vmatpush1.msra.mxu0 0.0
        %1048 = vmatprep.subr.mxu0 0.0
        %1049 = vmatpush1.msra.mxu0 0.0
        %1050 = vmatprep.subr.mxu0 0.0
        %1051 = vmatpush1.msra.mxu0 0.0
        %1052 = vmatprep.subr.mxu0 0.0
        %1053 = vmatpush1.msra.mxu0 0.0
        %1054 = vmatprep.subr.mxu0 0.0
        %1055 = vmatpush1.msra.mxu0 0.0
        %1056 = vmatprep.subr.mxu0 0.0
        %1057 = vmatpush1.msra.mxu0 0.0
        %1058 = vmatprep.subr.mxu0 0.0
        %1059 = vmatpush1.msra.mxu0 0.0
        %1060 = vmatprep.subr.mxu0 0.0
        %1061 = vmatpush1.msra.mxu0 0.0
        %1062 = vmatprep.subr.mxu0 0.0
        %1063 = vmatpush1.msra.mxu0 0.0
        %1064 = vmatprep.subr.mxu0 0.0
        %1065 = vmatpush1.msra.mxu0 0.0
        %1066 = vmatprep.subr.mxu0 0.0
        %1067 = vmatpush1.msra.mxu0 0.0
        %1068 = vmatprep.subr.mxu0 0.0
        %1069 = vmatpush1.msra.mxu0 0.0
        %1070 = vmatprep.subr.mxu0 0.0
        %1071 = vmatpush1.msra.mxu0 0.0
        %1072 = vmatprep.subr.mxu0 0.0
        %1073 = vmatpush1.msra.mxu0 0.0
        %1074 = vmatprep.subr.mxu0 0.0
        %1075 = vmatpush1.msra.mxu0 0.0
        %1076 = vmatprep.mubr.f32.mxu0 0.0
        %1077 = vmatmul.mubr.f32.gmra.mrb[0].mxu0 %v996
        %v1078 = vpop.f32.mrb[0].mxu0
        %v1079 = vadd.f32 0.0, %v1078
        %v1080 = vpop.f32.mrb[0].mxu0
        %1081 = vdwg.mxu0
        %1082 = vxpose.xlu0.b32.start [1/16] %v333, 128
        %1083 = vxpose.xlu0.b32.cont [2/16] %v334, 128
        %1084 = vxpose.xlu0.b32.cont [3/16] %v335, 128
        %1085 = vxpose.xlu0.b32.cont [4/16] %v336, 128
        %1086 = vxpose.xlu0.b32.cont [5/16] %v337, 128
        %1087 = vxpose.xlu0.b32.cont [6/16] %v338, 128
        %1088 = vxpose.xlu0.b32.cont [7/16] %v339, 128
        %1089 = vxpose.xlu0.b32.cont [8/16] %v340, 128
        %1090 = vxpose.xlu0.b32.cont [9/16] %v341, 128
        %1091 = vxpose.xlu0.b32.cont [10/16] %v342, 128
        %1092 = vxpose.xlu0.b32.cont [11/16] %v343, 128
        %1093 = vxpose.xlu0.b32.cont [12/16] %v344, 128
        %1094 = vxpose.xlu0.b32.cont [13/16] %v345, 128
        %1095 = vxpose.xlu0.b32.cont [14/16] %v346, 128
        %1096 = vxpose.xlu0.b32.cont [15/16] %v347, 128
        %1097 = vxpose.xlu0.b32.end [16/16] %v348, 128
        %v1098 = vpop.trf.xlu0
        %v1099 = vpop.trf.xlu0
        %v1100 = vpop.trf.xlu0
        %v1101 = vpop.trf.xlu0
        %v1102 = vpop.trf.xlu0
        %v1103 = vpop.trf.xlu0
        %v1104 = vpop.trf.xlu0
        %v1105 = vpop.trf.xlu0
        %v1106 = vpop.trf.xlu0
        %v1107 = vpop.trf.xlu0
        %v1108 = vpop.trf.xlu0
        %v1109 = vpop.trf.xlu0
        %v1110 = vpop.trf.xlu0
        %v1111 = vpop.trf.xlu0
        %v1112 = vpop.trf.xlu0
        %v1113 = vpop.trf.xlu0
        %1114 = vmatprep.subr.mxu0 0.0
        %1115 = vmatpush1.msra.mxu0 %v333
        %1116 = vmatprep.subr.mxu0 0.0
        %1117 = vmatpush1.msra.mxu0 %v334
        %1118 = vmatprep.subr.mxu0 0.0
        %1119 = vmatpush1.msra.mxu0 %v335
        %1120 = vmatprep.subr.mxu0 0.0
        %1121 = vmatpush1.msra.mxu0 %v336
        %1122 = vmatprep.subr.mxu0 0.0
        %1123 = vmatpush1.msra.mxu0 %v337
        %1124 = vmatprep.subr.mxu0 0.0
        %1125 = vmatpush1.msra.mxu0 %v338
        %1126 = vmatprep.subr.mxu0 0.0
        %1127 = vmatpush1.msra.mxu0 %v339
        %1128 = vmatprep.subr.mxu0 0.0
        %1129 = vmatpush1.msra.mxu0 %v340
        %1130 = vmatprep.subr.mxu0 0.0
        %1131 = vmatpush1.msra.mxu0 %v341
        %1132 = vmatprep.subr.mxu0 0.0
        %1133 = vmatpush1.msra.mxu0 %v342
        %1134 = vmatprep.subr.mxu0 0.0
        %1135 = vmatpush1.msra.mxu0 %v343
        %1136 = vmatprep.subr.mxu0 0.0
        %1137 = vmatpush1.msra.mxu0 %v344
        %1138 = vmatprep.subr.mxu0 0.0
        %1139 = vmatpush1.msra.mxu0 %v345
        %1140 = vmatprep.subr.mxu0 0.0
        %1141 = vmatpush1.msra.mxu0 %v346
        %1142 = vmatprep.subr.mxu0 0.0
        %1143 = vmatpush1.msra.mxu0 %v347
        %1144 = vmatprep.subr.mxu0 0.0
        %1145 = vmatpush1.msra.mxu0 %v348
        %1146 = vmatprep.subr.mxu0 0.0
        %1147 = vmatpush1.msra.mxu0 0.0
        %1148 = vmatprep.subr.mxu0 0.0
        %1149 = vmatpush1.msra.mxu0 0.0
        %1150 = vmatprep.subr.mxu0 0.0
        %1151 = vmatpush1.msra.mxu0 0.0
        %1152 = vmatprep.subr.mxu0 0.0
        %1153 = vmatpush1.msra.mxu0 0.0
        %1154 = vmatprep.subr.mxu0 0.0
        %1155 = vmatpush1.msra.mxu0 0.0
        %1156 = vmatprep.subr.mxu0 0.0
        %1157 = vmatpush1.msra.mxu0 0.0
        %1158 = vmatprep.subr.mxu0 0.0
        %1159 = vmatpush1.msra.mxu0 0.0
        %1160 = vmatprep.subr.mxu0 0.0
        %1161 = vmatpush1.msra.mxu0 0.0
        %1162 = vmatprep.subr.mxu0 0.0
        %1163 = vmatpush1.msra.mxu0 0.0
        %1164 = vmatprep.subr.mxu0 0.0
        %1165 = vmatpush1.msra.mxu0 0.0
        %1166 = vmatprep.subr.mxu0 0.0
        %1167 = vmatpush1.msra.mxu0 0.0
        %1168 = vmatprep.subr.mxu0 0.0
        %1169 = vmatpush1.msra.mxu0 0.0
        %1170 = vmatprep.subr.mxu0 0.0
        %1171 = vmatpush1.msra.mxu0 0.0
        %1172 = vmatprep.subr.mxu0 0.0
        %1173 = vmatpush1.msra.mxu0 0.0
        %1174 = vmatprep.subr.mxu0 0.0
        %1175 = vmatpush1.msra.mxu0 0.0
        %1176 = vmatprep.subr.mxu0 0.0
        %1177 = vmatpush1.msra.mxu0 0.0
        %1178 = vmatprep.mubr.f32.mxu0 0.0
        %1179 = vmatmul.mubr.f32.gmra.mrb[0].mxu0 %v1098
        %v1180 = vpop.f32.mrb[0].mxu0
        %v1181 = vadd.f32 0.0, %v1180
        %v1182 = vpop.f32.mrb[0].mxu0
        %1183 = vdwg.mxu0
        %v1184 = vlaneseq
        %v1185 = vshrl.u32 %v1184, 7
        %v1186 = vlaneseq
        %v1187 = vand.u32 %v1186, 127
        %vm1188 = vcmp.eq.s32.totalorder %v1185, %v1187
        %v1189 = vsel %vm1188, 1, 0
        %v1190 = vcvt.s32.f32 %v1189
        %v1191 = vrcp.pop %v1079
        %v1192 = vmul.f32 1.0, %v1191
        %1194 = vset.pattern.permute.xlu0 0
        %1195 = vperm.xlu0 %1194, %v1192
        %v1196 = vpop.permute.xlu0 %1195
        %v1198 = vmul.f32 %v1079, %v1196
        %v1199 = vmul.f32 %v1190, %v1196
        %1201 = vset.pattern.permute.xlu0 0
        %1202 = vperm.xlu0 %1201, %v1079
        %v1203 = vpop.permute.xlu0 %1202
        %v1205 = vlaneseq
        %v1206 = vshrl.u32 %v1205, 7
        %v1207 = vsub.s32 0, %v1206
        %v1208 = vrot.slane %v1198, %v1207
        %v1209 = vmul.f32 %v1203, %v1208
        %v1210 = vsub.f32 %v1079, %v1209
        %v1211 = vlaneseq
        %v1212 = vshrl.u32 %v1211, 7
        %v1213 = vsub.s32 0, %v1212
        %v1214 = vrot.slane %v1199, %v1213
        %v1215 = vmul.f32 %v1203, %v1214
        %v1216 = vsub.f32 %v1190, %v1215
        %vm1217 = vcmp.eq.s32.totalorder %v1185, 0
        %v1218 = vsel %vm1217, %v1208, %v1210
        %v1219 = vsel %vm1217, %v1214, %v1216
        %v1220 = vrcp.pop %v1218
        %v1221 = vmul.f32 1.0, %v1220
        %1223 = vset.pattern.permute.xlu0 1
        %1224 = vperm.xlu0 %1223, %v1221
        %v1225 = vpop.permute.xlu0 %1224
        %v1227 = vmul.f32 %v1218, %v1225
        %v1228 = vmul.f32 %v1219, %v1225
        %1230 = vset.pattern.permute.xlu0 1
        %1231 = vperm.xlu0 %1230, %v1218
        %v1232 = vpop.permute.xlu0 %1231
        %v1234 = vlaneseq
        %v1235 = vshrl.u32 %v1234, 7
        %v1236 = vsub.s32 1, %v1235
        %v1237 = vrot.slane %v1227, %v1236
        %v1238 = vmul.f32 %v1232, %v1237
        %v1239 = vsub.f32 %v1218, %v1238
        %v1240 = vlaneseq
        %v1241 = vshrl.u32 %v1240, 7
        %v1242 = vsub.s32 1, %v1241
        %v1243 = vrot.slane %v1228, %v1242
        %v1244 = vmul.f32 %v1232, %v1243
        %v1245 = vsub.f32 %v1219, %v1244
        %vm1246 = vcmp.eq.s32.totalorder %v1185, 1
        %v1247 = vsel %vm1246, %v1237, %v1239
        %v1248 = vsel %vm1246, %v1243, %v1245
        %v1249 = vrcp.pop %v1247
        %v1250 = vmul.f32 1.0, %v1249
        %1252 = vset.pattern.permute.xlu0 2
        %1253 = vperm.xlu0 %1252, %v1250
        %v1254 = vpop.permute.xlu0 %1253
        %v1256 = vmul.f32 %v1247, %v1254
        %v1257 = vmul.f32 %v1248, %v1254
        %1259 = vset.pattern.permute.xlu0 2
        %1260 = vperm.xlu0 %1259, %v1247
        %v1261 = vpop.permute.xlu0 %1260
        %v1263 = vlaneseq
        %v1264 = vshrl.u32 %v1263, 7
        %v1265 = vsub.s32 2, %v1264
        %v1266 = vrot.slane %v1256, %v1265
        %v1267 = vmul.f32 %v1261, %v1266
        %v1268 = vsub.f32 %v1247, %v1267
        %v1269 = vlaneseq
        %v1270 = vshrl.u32 %v1269, 7
        %v1271 = vsub.s32 2, %v1270
        %v1272 = vrot.slane %v1257, %v1271
        %v1273 = vmul.f32 %v1261, %v1272
        %v1274 = vsub.f32 %v1248, %v1273
        %vm1275 = vcmp.eq.s32.totalorder %v1185, 2
        %v1276 = vsel %vm1275, %v1266, %v1268
        %v1277 = vsel %vm1275, %v1272, %v1274
        %v1278 = vrcp.pop %v1276
        %v1279 = vmul.f32 1.0, %v1278
        %1281 = vset.pattern.permute.xlu0 3
        %1282 = vperm.xlu0 %1281, %v1279
        %v1283 = vpop.permute.xlu0 %1282
        %v1285 = vmul.f32 %v1276, %v1283
        %v1286 = vmul.f32 %v1277, %v1283
        %1288 = vset.pattern.permute.xlu0 3
        %1289 = vperm.xlu0 %1288, %v1276
        %v1290 = vpop.permute.xlu0 %1289
        %v1292 = vlaneseq
        %v1293 = vshrl.u32 %v1292, 7
        %v1294 = vsub.s32 3, %v1293
        %v1295 = vrot.slane %v1285, %v1294
        %v1296 = vmul.f32 %v1290, %v1295
        %v1297 = vsub.f32 %v1276, %v1296
        %v1298 = vlaneseq
        %v1299 = vshrl.u32 %v1298, 7
        %v1300 = vsub.s32 3, %v1299
        %v1301 = vrot.slane %v1286, %v1300
        %v1302 = vmul.f32 %v1290, %v1301
        %v1303 = vsub.f32 %v1277, %v1302
        %vm1304 = vcmp.eq.s32.totalorder %v1185, 3
        %v1305 = vsel %vm1304, %v1295, %v1297
        %v1306 = vsel %vm1304, %v1301, %v1303
        %v1307 = vrcp.pop %v1305
        %v1308 = vmul.f32 1.0, %v1307
        %1310 = vset.pattern.permute.xlu0 4
        %1311 = vperm.xlu0 %1310, %v1308
        %v1312 = vpop.permute.xlu0 %1311
        %v1314 = vmul.f32 %v1306, %v1312
        %1316 = vset.pattern.permute.xlu0 4
        %1317 = vperm.xlu0 %1316, %v1305
        %v1318 = vpop.permute.xlu0 %1317
        %v1320 = vlaneseq
        %v1321 = vshrl.u32 %v1320, 7
        %v1322 = vsub.s32 4, %v1321
        %v1323 = vrot.slane %v1314, %v1322
        %v1324 = vmul.f32 %v1318, %v1323
        %v1325 = vsub.f32 %v1306, %v1324
        %vm1326 = vcmp.eq.s32.totalorder %v1185, 4
        %v1327 = vsel %vm1326, %v1323, %v1325
        %v1329 = vsel %vm365, %v725, 0
        %v1332 = vsel %vm365, %v730, 0
        %v1335 = vsel %vm365, %v735, 0
        %v1338 = vsel %vm365, %v740, 0
        %v1341 = vsel %vm365, %v745, 0
        %v1344 = vsel %vm365, %v750, 0
        %v1347 = vsel %vm365, %v755, 0
        %v1350 = vsel %vm365, %v760, 0
        %v1353 = vsel %vm365, %v765, 0
        %v1356 = vsel %vm365, %v770, 0
        %v1359 = vsel %vm365, %v775, 0
        %v1362 = vsel %vm365, %v780, 0
        %v1365 = vsel %vm365, %v785, 0
        %v1368 = vsel %vm365, %v790, 0
        %v1371 = vsel %vm365, %v795, 0
        %v1374 = vsel %vm365, %v800, 0
        %vm1376 = vcmask 1044480
        %v1378 = vsel %vm1376, %v1327, 0
        %1380 = vmatprep.subr.mxu0 0.0
        %1381 = vmatpush1.msra.mxu0 %v1378
        %1382 = vmatprep.subr.mxu0 0.0
        %1383 = vmatpush1.msra.mxu0 0.0
        %1384 = vmatprep.subr.mxu0 0.0
        %1385 = vmatpush1.msra.mxu0 0.0
        %1386 = vmatprep.subr.mxu0 0.0
        %1387 = vmatpush1.msra.mxu0 0.0
        %1388 = vmatprep.subr.mxu0 0.0
        %1389 = vmatpush1.msra.mxu0 0.0
        %1390 = vmatprep.subr.mxu0 0.0
        %1391 = vmatpush1.msra.mxu0 0.0
        %1392 = vmatprep.subr.mxu0 0.0
        %1393 = vmatpush1.msra.mxu0 0.0
        %1394 = vmatprep.subr.mxu0 0.0
        %1395 = vmatpush1.msra.mxu0 0.0
        %1396 = vmatprep.subr.mxu0 0.0
        %1397 = vmatpush1.msra.mxu0 0.0
        %1398 = vmatprep.subr.mxu0 0.0
        %1399 = vmatpush1.msra.mxu0 0.0
        %1400 = vmatprep.subr.mxu0 0.0
        %1401 = vmatpush1.msra.mxu0 0.0
        %1402 = vmatprep.subr.mxu0 0.0
        %1403 = vmatpush1.msra.mxu0 0.0
        %1404 = vmatprep.subr.mxu0 0.0
        %1405 = vmatpush1.msra.mxu0 0.0
        %1406 = vmatprep.subr.mxu0 0.0
        %1407 = vmatpush1.msra.mxu0 0.0
        %1408 = vmatprep.subr.mxu0 0.0
        %1409 = vmatpush1.msra.mxu0 0.0
        %1410 = vmatprep.subr.mxu0 0.0
        %1411 = vmatpush1.msra.mxu0 0.0
        %1412 = vmatprep.subr.mxu0 0.0
        %1413 = vmatpush1.msra.mxu0 0.0
        %1414 = vmatprep.subr.mxu0 0.0
        %1415 = vmatpush1.msra.mxu0 0.0
        %1416 = vmatprep.subr.mxu0 0.0
        %1417 = vmatpush1.msra.mxu0 0.0
        %1418 = vmatprep.subr.mxu0 0.0
        %1419 = vmatpush1.msra.mxu0 0.0
        %1420 = vmatprep.subr.mxu0 0.0
        %1421 = vmatpush1.msra.mxu0 0.0
        %1422 = vmatprep.subr.mxu0 0.0
        %1423 = vmatpush1.msra.mxu0 0.0
        %1424 = vmatprep.subr.mxu0 0.0
        %1425 = vmatpush1.msra.mxu0 0.0
        %1426 = vmatprep.subr.mxu0 0.0
        %1427 = vmatpush1.msra.mxu0 0.0
        %1428 = vmatprep.subr.mxu0 0.0
        %1429 = vmatpush1.msra.mxu0 0.0
        %1430 = vmatprep.subr.mxu0 0.0
        %1431 = vmatpush1.msra.mxu0 0.0
        %1432 = vmatprep.subr.mxu0 0.0
        %1433 = vmatpush1.msra.mxu0 0.0
        %1434 = vmatprep.subr.mxu0 0.0
        %1435 = vmatpush1.msra.mxu0 0.0
        %1436 = vmatprep.subr.mxu0 0.0
        %1437 = vmatpush1.msra.mxu0 0.0
        %1438 = vmatprep.subr.mxu0 0.0
        %1439 = vmatpush1.msra.mxu0 0.0
        %1440 = vmatprep.subr.mxu0 0.0
        %1441 = vmatpush1.msra.mxu0 0.0
        %1442 = vmatprep.subr.mxu0 0.0
        %1443 = vmatpush1.msra.mxu0 0.0
        %1444 = vmatprep.mubr.f32.mxu0 0.0
        %1445 = vmatmul.mubr.f32.gmra.mrb[0].mxu0 %v1329
        %v1446 = vpop.f32.mrb[0].mxu0
        %v1447 = vadd.f32 0.0, %v1446
        %v1448 = vpop.f32.mrb[0].mxu0
        %1449 = vmatprep.mubr.f32.mxu0 0.0
        %1450 = vmatmul.mubr.f32.gmra.mrb[0].mxu0 %v1332
        %v1451 = vpop.f32.mrb[0].mxu0
        %v1452 = vadd.f32 0.0, %v1451
        %v1453 = vpop.f32.mrb[0].mxu0
        %1454 = vmatprep.mubr.f32.mxu0 0.0
        %1455 = vmatmul.mubr.f32.gmra.mrb[0].mxu0 %v1335
        %v1456 = vpop.f32.mrb[0].mxu0
        %v1457 = vadd.f32 0.0, %v1456
        %v1458 = vpop.f32.mrb[0].mxu0
        %1459 = vmatprep.mubr.f32.mxu0 0.0
        %1460 = vmatmul.mubr.f32.gmra.mrb[0].mxu0 %v1338
        %v1461 = vpop.f32.mrb[0].mxu0
        %v1462 = vadd.f32 0.0, %v1461
        %v1463 = vpop.f32.mrb[0].mxu0
        %1464 = vmatprep.mubr.f32.mxu0 0.0
        %1465 = vmatmul.mubr.f32.gmra.mrb[0].mxu0 %v1341
        %v1466 = vpop.f32.mrb[0].mxu0
        %v1467 = vadd.f32 0.0, %v1466
        %v1468 = vpop.f32.mrb[0].mxu0
        %1469 = vmatprep.mubr.f32.mxu0 0.0
        %1470 = vmatmul.mubr.f32.gmra.mrb[0].mxu0 %v1344
        %v1471 = vpop.f32.mrb[0].mxu0
        %v1472 = vadd.f32 0.0, %v1471
        %v1473 = vpop.f32.mrb[0].mxu0
        %1474 = vmatprep.mubr.f32.mxu0 0.0
        %1475 = vmatmul.mubr.f32.gmra.mrb[0].mxu0 %v1347
        %v1476 = vpop.f32.mrb[0].mxu0
        %v1477 = vadd.f32 0.0, %v1476
        %v1478 = vpop.f32.mrb[0].mxu0
        %1479 = vmatprep.mubr.f32.mxu0 0.0
        %1480 = vmatmul.mubr.f32.gmra.mrb[0].mxu0 %v1350
        %v1481 = vpop.f32.mrb[0].mxu0
        %v1482 = vadd.f32 0.0, %v1481
        %v1483 = vpop.f32.mrb[0].mxu0
        %1484 = vmatprep.mubr.f32.mxu0 0.0
        %1485 = vmatmul.mubr.f32.gmra.mrb[0].mxu0 %v1353
        %v1486 = vpop.f32.mrb[0].mxu0
        %v1487 = vadd.f32 0.0, %v1486
        %v1488 = vpop.f32.mrb[0].mxu0
        %1489 = vmatprep.mubr.f32.mxu0 0.0
        %1490 = vmatmul.mubr.f32.gmra.mrb[0].mxu0 %v1356
        %v1491 = vpop.f32.mrb[0].mxu0
        %v1492 = vadd.f32 0.0, %v1491
        %v1493 = vpop.f32.mrb[0].mxu0
        %1494 = vmatprep.mubr.f32.mxu0 0.0
        %1495 = vmatmul.mubr.f32.gmra.mrb[0].mxu0 %v1359
        %v1496 = vpop.f32.mrb[0].mxu0
        %v1497 = vadd.f32 0.0, %v1496
        %v1498 = vpop.f32.mrb[0].mxu0
        %1499 = vmatprep.mubr.f32.mxu0 0.0
        %1500 = vmatmul.mubr.f32.gmra.mrb[0].mxu0 %v1362
        %v1501 = vpop.f32.mrb[0].mxu0
        %v1502 = vadd.f32 0.0, %v1501
        %v1503 = vpop.f32.mrb[0].mxu0
        %1504 = vmatprep.mubr.f32.mxu0 0.0
        %1505 = vmatmul.mubr.f32.gmra.mrb[0].mxu0 %v1365
        %v1506 = vpop.f32.mrb[0].mxu0
        %v1507 = vadd.f32 0.0, %v1506
        %v1508 = vpop.f32.mrb[0].mxu0
        %1509 = vmatprep.mubr.f32.mxu0 0.0
        %1510 = vmatmul.mubr.f32.gmra.mrb[0].mxu0 %v1368
        %v1511 = vpop.f32.mrb[0].mxu0
        %v1512 = vadd.f32 0.0, %v1511
        %v1513 = vpop.f32.mrb[0].mxu0
        %1514 = vmatprep.mubr.f32.mxu0 0.0
        %1515 = vmatmul.mubr.f32.gmra.mrb[0].mxu0 %v1371
        %v1516 = vpop.f32.mrb[0].mxu0
        %v1517 = vadd.f32 0.0, %v1516
        %v1518 = vpop.f32.mrb[0].mxu0
        %1519 = vmatprep.mubr.f32.mxu0 0.0
        %1520 = vmatmul.mubr.f32.gmra.mrb[0].mxu0 %v1374
        %v1521 = vpop.f32.mrb[0].mxu0
        %v1522 = vadd.f32 0.0, %v1521
        %v1523 = vpop.f32.mrb[0].mxu0
        %1524 = vdwg.mxu0
        %v1525 = vstv %s316
        %v1526 = vmul.f32 %v1525, %v1447
        %v1527 = vmul.f32 %v1525, %v1452
        %v1528 = vmul.f32 %v1525, %v1457
        %v1529 = vmul.f32 %v1525, %v1462
        %v1530 = vmul.f32 %v1525, %v1467
        %v1531 = vmul.f32 %v1525, %v1472
        %v1532 = vmul.f32 %v1525, %v1477
        %v1533 = vmul.f32 %v1525, %v1482
        %v1534 = vmul.f32 %v1525, %v1487
        %v1535 = vmul.f32 %v1525, %v1492
        %v1536 = vmul.f32 %v1525, %v1497
        %v1537 = vmul.f32 %v1525, %v1502
        %v1538 = vmul.f32 %v1525, %v1507
        %v1539 = vmul.f32 %v1525, %v1512
        %v1540 = vmul.f32 %v1525, %v1517
        %v1541 = vmul.f32 %v1525, %v1522
        %v1542 = vadd.f32 %v333, %v1526
        %v1543 = vadd.f32 %v334, %v1527
        %v1544 = vadd.f32 %v335, %v1528
        %v1545 = vadd.f32 %v336, %v1529
        %v1546 = vadd.f32 %v337, %v1530
        %v1547 = vadd.f32 %v338, %v1531
        %v1548 = vadd.f32 %v339, %v1532
        %v1549 = vadd.f32 %v340, %v1533
        %v1550 = vadd.f32 %v341, %v1534
        %v1551 = vadd.f32 %v342, %v1535
        %v1552 = vadd.f32 %v343, %v1536
        %v1553 = vadd.f32 %v344, %v1537
        %v1554 = vadd.f32 %v345, %v1538
        %v1555 = vadd.f32 %v346, %v1539
        %v1556 = vadd.f32 %v347, %v1540
        %v1557 = vadd.f32 %v348, %v1541
        %v1558 = vrcp.pop %v1181
        %v1559 = vmul.f32 1.0, %v1558
        %1561 = vset.pattern.permute.xlu0 0
        %1562 = vperm.xlu0 %1561, %v1559
        %v1563 = vpop.permute.xlu0 %1562
        %v1565 = vmul.f32 %v1181, %v1563
        %v1566 = vmul.f32 %v1190, %v1563
        %1568 = vset.pattern.permute.xlu0 0
        %1569 = vperm.xlu0 %1568, %v1181
        %v1570 = vpop.permute.xlu0 %1569
        %v1572 = vlaneseq
        %v1573 = vshrl.u32 %v1572, 7
        %v1574 = vsub.s32 0, %v1573
        %v1575 = vrot.slane %v1565, %v1574
        %v1576 = vmul.f32 %v1570, %v1575
        %v1577 = vsub.f32 %v1181, %v1576
        %v1578 = vlaneseq
        %v1579 = vshrl.u32 %v1578, 7
        %v1580 = vsub.s32 0, %v1579
        %v1581 = vrot.slane %v1566, %v1580
        %v1582 = vmul.f32 %v1570, %v1581
        %v1583 = vsub.f32 %v1190, %v1582
        %v1584 = vsel %vm1217, %v1575, %v1577
        %v1585 = vsel %vm1217, %v1581, %v1583
        %v1586 = vrcp.pop %v1584
        %v1587 = vmul.f32 1.0, %v1586
        %1589 = vset.pattern.permute.xlu0 1
        %1590 = vperm.xlu0 %1589, %v1587
        %v1591 = vpop.permute.xlu0 %1590
        %v1593 = vmul.f32 %v1584, %v1591
        %v1594 = vmul.f32 %v1585, %v1591
        %1596 = vset.pattern.permute.xlu0 1
        %1597 = vperm.xlu0 %1596, %v1584
        %v1598 = vpop.permute.xlu0 %1597
        %v1600 = vlaneseq
        %v1601 = vshrl.u32 %v1600, 7
        %v1602 = vsub.s32 1, %v1601
        %v1603 = vrot.slane %v1593, %v1602
        %v1604 = vmul.f32 %v1598, %v1603
        %v1605 = vsub.f32 %v1584, %v1604
        %v1606 = vlaneseq
        %v1607 = vshrl.u32 %v1606, 7
        %v1608 = vsub.s32 1, %v1607
        %v1609 = vrot.slane %v1594, %v1608
        %v1610 = vmul.f32 %v1598, %v1609
        %v1611 = vsub.f32 %v1585, %v1610
        %v1612 = vsel %vm1246, %v1603, %v1605
        %v1613 = vsel %vm1246, %v1609, %v1611
        %v1614 = vrcp.pop %v1612
        %v1615 = vmul.f32 1.0, %v1614
        %1617 = vset.pattern.permute.xlu0 2
        %1618 = vperm.xlu0 %1617, %v1615
        %v1619 = vpop.permute.xlu0 %1618
        %v1621 = vmul.f32 %v1612, %v1619
        %v1622 = vmul.f32 %v1613, %v1619
        %1624 = vset.pattern.permute.xlu0 2
        %1625 = vperm.xlu0 %1624, %v1612
        %v1626 = vpop.permute.xlu0 %1625
        %v1628 = vlaneseq
        %v1629 = vshrl.u32 %v1628, 7
        %v1630 = vsub.s32 2, %v1629
        %v1631 = vrot.slane %v1621, %v1630
        %v1632 = vmul.f32 %v1626, %v1631
        %v1633 = vsub.f32 %v1612, %v1632
        %v1634 = vlaneseq
        %v1635 = vshrl.u32 %v1634, 7
        %v1636 = vsub.s32 2, %v1635
        %v1637 = vrot.slane %v1622, %v1636
        %v1638 = vmul.f32 %v1626, %v1637
        %v1639 = vsub.f32 %v1613, %v1638
        %v1640 = vsel %vm1275, %v1631, %v1633
        %v1641 = vsel %vm1275, %v1637, %v1639
        %v1642 = vrcp.pop %v1640
        %v1643 = vmul.f32 1.0, %v1642
        %1645 = vset.pattern.permute.xlu0 3
        %1646 = vperm.xlu0 %1645, %v1643
        %v1647 = vpop.permute.xlu0 %1646
        %v1649 = vmul.f32 %v1640, %v1647
        %v1650 = vmul.f32 %v1641, %v1647
        %1652 = vset.pattern.permute.xlu0 3
        %1653 = vperm.xlu0 %1652, %v1640
        %v1654 = vpop.permute.xlu0 %1653
        %v1656 = vlaneseq
        %v1657 = vshrl.u32 %v1656, 7
        %v1658 = vsub.s32 3, %v1657
        %v1659 = vrot.slane %v1649, %v1658
        %v1660 = vmul.f32 %v1654, %v1659
        %v1661 = vsub.f32 %v1640, %v1660
        %v1662 = vlaneseq
        %v1663 = vshrl.u32 %v1662, 7
        %v1664 = vsub.s32 3, %v1663
        %v1665 = vrot.slane %v1650, %v1664
        %v1666 = vmul.f32 %v1654, %v1665
        %v1667 = vsub.f32 %v1641, %v1666
        %v1668 = vsel %vm1304, %v1659, %v1661
        %v1669 = vsel %vm1304, %v1665, %v1667
        %v1670 = vrcp.pop %v1668
        %v1671 = vmul.f32 1.0, %v1670
        %1673 = vset.pattern.permute.xlu0 4
        %1674 = vperm.xlu0 %1673, %v1671
        %v1675 = vpop.permute.xlu0 %1674
        %v1677 = vmul.f32 %v1669, %v1675
        %1679 = vset.pattern.permute.xlu0 4
        %1680 = vperm.xlu0 %1679, %v1668
        %v1681 = vpop.permute.xlu0 %1680
        %v1683 = vlaneseq
        %v1684 = vshrl.u32 %v1683, 7
        %v1685 = vsub.s32 4, %v1684
        %v1686 = vrot.slane %v1677, %v1685
        %v1687 = vmul.f32 %v1681, %v1686
        %v1688 = vsub.f32 %v1669, %v1687
        %v1689 = vsel %vm1326, %v1686, %v1688
        %v1691 = vsel %vm365, %v902, 0
        %v1694 = vsel %vm365, %v907, 0
        %v1697 = vsel %vm365, %v912, 0
        %v1700 = vsel %vm365, %v917, 0
        %v1703 = vsel %vm365, %v922, 0
        %v1706 = vsel %vm365, %v927, 0
        %v1709 = vsel %vm365, %v932, 0
        %v1712 = vsel %vm365, %v937, 0
        %v1715 = vsel %vm365, %v942, 0
        %v1718 = vsel %vm365, %v947, 0
        %v1721 = vsel %vm365, %v952, 0
        %v1724 = vsel %vm365, %v957, 0
        %v1727 = vsel %vm365, %v962, 0
        %v1730 = vsel %vm365, %v967, 0
        %v1733 = vsel %vm365, %v972, 0
        %v1736 = vsel %vm365, %v977, 0
        %v1739 = vsel %vm1376, %v1689, 0
        %1741 = vmatprep.subr.mxu0 0.0
        %1742 = vmatpush1.msra.mxu0 %v1739
        %1743 = vmatprep.subr.mxu0 0.0
        %1744 = vmatpush1.msra.mxu0 0.0
        %1745 = vmatprep.subr.mxu0 0.0
        %1746 = vmatpush1.msra.mxu0 0.0
        %1747 = vmatprep.subr.mxu0 0.0
        %1748 = vmatpush1.msra.mxu0 0.0
        %1749 = vmatprep.subr.mxu0 0.0
        %1750 = vmatpush1.msra.mxu0 0.0
        %1751 = vmatprep.subr.mxu0 0.0
        %1752 = vmatpush1.msra.mxu0 0.0
        %1753 = vmatprep.subr.mxu0 0.0
        %1754 = vmatpush1.msra.mxu0 0.0
        %1755 = vmatprep.subr.mxu0 0.0
        %1756 = vmatpush1.msra.mxu0 0.0
        %1757 = vmatprep.subr.mxu0 0.0
        %1758 = vmatpush1.msra.mxu0 0.0
        %1759 = vmatprep.subr.mxu0 0.0
        %1760 = vmatpush1.msra.mxu0 0.0
        %1761 = vmatprep.subr.mxu0 0.0
        %1762 = vmatpush1.msra.mxu0 0.0
        %1763 = vmatprep.subr.mxu0 0.0
        %1764 = vmatpush1.msra.mxu0 0.0
        %1765 = vmatprep.subr.mxu0 0.0
        %1766 = vmatpush1.msra.mxu0 0.0
        %1767 = vmatprep.subr.mxu0 0.0
        %1768 = vmatpush1.msra.mxu0 0.0
        %1769 = vmatprep.subr.mxu0 0.0
        %1770 = vmatpush1.msra.mxu0 0.0
        %1771 = vmatprep.subr.mxu0 0.0
        %1772 = vmatpush1.msra.mxu0 0.0
        %1773 = vmatprep.subr.mxu0 0.0
        %1774 = vmatpush1.msra.mxu0 0.0
        %1775 = vmatprep.subr.mxu0 0.0
        %1776 = vmatpush1.msra.mxu0 0.0
        %1777 = vmatprep.subr.mxu0 0.0
        %1778 = vmatpush1.msra.mxu0 0.0
        %1779 = vmatprep.subr.mxu0 0.0
        %1780 = vmatpush1.msra.mxu0 0.0
        %1781 = vmatprep.subr.mxu0 0.0
        %1782 = vmatpush1.msra.mxu0 0.0
        %1783 = vmatprep.subr.mxu0 0.0
        %1784 = vmatpush1.msra.mxu0 0.0
        %1785 = vmatprep.subr.mxu0 0.0
        %1786 = vmatpush1.msra.mxu0 0.0
        %1787 = vmatprep.subr.mxu0 0.0
        %1788 = vmatpush1.msra.mxu0 0.0
        %1789 = vmatprep.subr.mxu0 0.0
        %1790 = vmatpush1.msra.mxu0 0.0
        %1791 = vmatprep.subr.mxu0 0.0
        %1792 = vmatpush1.msra.mxu0 0.0
        %1793 = vmatprep.subr.mxu0 0.0
        %1794 = vmatpush1.msra.mxu0 0.0
        %1795 = vmatprep.subr.mxu0 0.0
        %1796 = vmatpush1.msra.mxu0 0.0
        %1797 = vmatprep.subr.mxu0 0.0
        %1798 = vmatpush1.msra.mxu0 0.0
        %1799 = vmatprep.subr.mxu0 0.0
        %1800 = vmatpush1.msra.mxu0 0.0
        %1801 = vmatprep.subr.mxu0 0.0
        %1802 = vmatpush1.msra.mxu0 0.0
        %1803 = vmatprep.subr.mxu0 0.0
        %1804 = vmatpush1.msra.mxu0 0.0
        %1805 = vmatprep.mubr.f32.mxu0 0.0
        %1806 = vmatmul.mubr.f32.gmra.mrb[0].mxu0 %v1691
        %v1807 = vpop.f32.mrb[0].mxu0
        %v1808 = vadd.f32 0.0, %v1807
        %v1809 = vpop.f32.mrb[0].mxu0
        %1810 = vmatprep.mubr.f32.mxu0 0.0
        %1811 = vmatmul.mubr.f32.gmra.mrb[0].mxu0 %v1694
        %v1812 = vpop.f32.mrb[0].mxu0
        %v1813 = vadd.f32 0.0, %v1812
        %v1814 = vpop.f32.mrb[0].mxu0
        %1815 = vmatprep.mubr.f32.mxu0 0.0
        %1816 = vmatmul.mubr.f32.gmra.mrb[0].mxu0 %v1697
        %v1817 = vpop.f32.mrb[0].mxu0
        %v1818 = vadd.f32 0.0, %v1817
        %v1819 = vpop.f32.mrb[0].mxu0
        %1820 = vmatprep.mubr.f32.mxu0 0.0
        %1821 = vmatmul.mubr.f32.gmra.mrb[0].mxu0 %v1700
        %v1822 = vpop.f32.mrb[0].mxu0
        %v1823 = vadd.f32 0.0, %v1822
        %v1824 = vpop.f32.mrb[0].mxu0
        %1825 = vmatprep.mubr.f32.mxu0 0.0
        %1826 = vmatmul.mubr.f32.gmra.mrb[0].mxu0 %v1703
        %v1827 = vpop.f32.mrb[0].mxu0
        %v1828 = vadd.f32 0.0, %v1827
        %v1829 = vpop.f32.mrb[0].mxu0
        %1830 = vmatprep.mubr.f32.mxu0 0.0
        %1831 = vmatmul.mubr.f32.gmra.mrb[0].mxu0 %v1706
        %v1832 = vpop.f32.mrb[0].mxu0
        %v1833 = vadd.f32 0.0, %v1832
        %v1834 = vpop.f32.mrb[0].mxu0
        %1835 = vmatprep.mubr.f32.mxu0 0.0
        %1836 = vmatmul.mubr.f32.gmra.mrb[0].mxu0 %v1709
        %v1837 = vpop.f32.mrb[0].mxu0
        %v1838 = vadd.f32 0.0, %v1837
        %v1839 = vpop.f32.mrb[0].mxu0
        %1840 = vmatprep.mubr.f32.mxu0 0.0
        %1841 = vmatmul.mubr.f32.gmra.mrb[0].mxu0 %v1712
        %v1842 = vpop.f32.mrb[0].mxu0
        %v1843 = vadd.f32 0.0, %v1842
        %v1844 = vpop.f32.mrb[0].mxu0
        %1845 = vmatprep.mubr.f32.mxu0 0.0
        %1846 = vmatmul.mubr.f32.gmra.mrb[0].mxu0 %v1715
        %v1847 = vpop.f32.mrb[0].mxu0
        %v1848 = vadd.f32 0.0, %v1847
        %v1849 = vpop.f32.mrb[0].mxu0
        %1850 = vmatprep.mubr.f32.mxu0 0.0
        %1851 = vmatmul.mubr.f32.gmra.mrb[0].mxu0 %v1718
        %v1852 = vpop.f32.mrb[0].mxu0
        %v1853 = vadd.f32 0.0, %v1852
        %v1854 = vpop.f32.mrb[0].mxu0
        %1855 = vmatprep.mubr.f32.mxu0 0.0
        %1856 = vmatmul.mubr.f32.gmra.mrb[0].mxu0 %v1721
        %v1857 = vpop.f32.mrb[0].mxu0
        %v1858 = vadd.f32 0.0, %v1857
        %v1859 = vpop.f32.mrb[0].mxu0
        %1860 = vmatprep.mubr.f32.mxu0 0.0
        %1861 = vmatmul.mubr.f32.gmra.mrb[0].mxu0 %v1724
        %v1862 = vpop.f32.mrb[0].mxu0
        %v1863 = vadd.f32 0.0, %v1862
        %v1864 = vpop.f32.mrb[0].mxu0
        %1865 = vmatprep.mubr.f32.mxu0 0.0
        %1866 = vmatmul.mubr.f32.gmra.mrb[0].mxu0 %v1727
        %v1867 = vpop.f32.mrb[0].mxu0
        %v1868 = vadd.f32 0.0, %v1867
        %v1869 = vpop.f32.mrb[0].mxu0
        %1870 = vmatprep.mubr.f32.mxu0 0.0
        %1871 = vmatmul.mubr.f32.gmra.mrb[0].mxu0 %v1730
        %v1872 = vpop.f32.mrb[0].mxu0
        %v1873 = vadd.f32 0.0, %v1872
        %v1874 = vpop.f32.mrb[0].mxu0
        %1875 = vmatprep.mubr.f32.mxu0 0.0
        %1876 = vmatmul.mubr.f32.gmra.mrb[0].mxu0 %v1733
        %v1877 = vpop.f32.mrb[0].mxu0
        %v1878 = vadd.f32 0.0, %v1877
        %v1879 = vpop.f32.mrb[0].mxu0
        %1880 = vmatprep.mubr.f32.mxu0 0.0
        %1881 = vmatmul.mubr.f32.gmra.mrb[0].mxu0 %v1736
        %v1882 = vpop.f32.mrb[0].mxu0
        %v1883 = vadd.f32 0.0, %v1882
        %v1884 = vpop.f32.mrb[0].mxu0
        %1885 = vdwg.mxu0
        %v1886 = vmul.f32 %v1525, %v1808
        %v1887 = vmul.f32 %v1525, %v1813
        %v1888 = vmul.f32 %v1525, %v1818
        %v1889 = vmul.f32 %v1525, %v1823
        %v1890 = vmul.f32 %v1525, %v1828
        %v1891 = vmul.f32 %v1525, %v1833
        %v1892 = vmul.f32 %v1525, %v1838
        %v1893 = vmul.f32 %v1525, %v1843
        %v1894 = vmul.f32 %v1525, %v1848
        %v1895 = vmul.f32 %v1525, %v1853
        %v1896 = vmul.f32 %v1525, %v1858
        %v1897 = vmul.f32 %v1525, %v1863
        %v1898 = vmul.f32 %v1525, %v1868
        %v1899 = vmul.f32 %v1525, %v1873
        %v1900 = vmul.f32 %v1525, %v1878
        %v1901 = vmul.f32 %v1525, %v1883
        %v1902 = vadd.f32 %v349, %v1886
        %v1903 = vadd.f32 %v350, %v1887
        %v1904 = vadd.f32 %v351, %v1888
        %v1905 = vadd.f32 %v352, %v1889
        %v1906 = vadd.f32 %v353, %v1890
        %v1907 = vadd.f32 %v354, %v1891
        %v1908 = vadd.f32 %v355, %v1892
        %v1909 = vadd.f32 %v356, %v1893
        %v1910 = vadd.f32 %v357, %v1894
        %v1911 = vadd.f32 %v358, %v1895
        %v1912 = vadd.f32 %v359, %v1896
        %v1913 = vadd.f32 %v360, %v1897
        %v1914 = vadd.f32 %v361, %v1898
        %v1915 = vadd.f32 %v362, %v1899
        %v1916 = vadd.f32 %v363, %v1900
        %v1917 = vadd.f32 %v364, %v1901
        %1918 = vst.msk [vmem:[#allocation2] sm:$0xff] %vm365, %v1542
        %1919 = vst.msk [vmem:[#allocation2 + $0x8] sm:$0xff] %vm365, %v1543
        %1920 = vst.msk [vmem:[#allocation2 + $0x10] sm:$0xff] %vm365, %v1544
        %1921 = vst.msk [vmem:[#allocation2 + $0x18] sm:$0xff] %vm365, %v1545
        %1922 = vst.msk [vmem:[#allocation2 + $0x20] sm:$0xff] %vm365, %v1546
        %1923 = vst.msk [vmem:[#allocation2 + $0x28] sm:$0xff] %vm365, %v1547
        %1924 = vst.msk [vmem:[#allocation2 + $0x30] sm:$0xff] %vm365, %v1548
        %1925 = vst.msk [vmem:[#allocation2 + $0x38] sm:$0xff] %vm365, %v1549
        %1926 = vst.msk [vmem:[#allocation2 + $0x40] sm:$0xff] %vm365, %v1550
        %1927 = vst.msk [vmem:[#allocation2 + $0x48] sm:$0xff] %vm365, %v1551
        %1928 = vst.msk [vmem:[#allocation2 + $0x50] sm:$0xff] %vm365, %v1552
        %1929 = vst.msk [vmem:[#allocation2 + $0x58] sm:$0xff] %vm365, %v1553
        %1930 = vst.msk [vmem:[#allocation2 + $0x60] sm:$0xff] %vm365, %v1554
        %1931 = vst.msk [vmem:[#allocation2 + $0x68] sm:$0xff] %vm365, %v1555
        %1932 = vst.msk [vmem:[#allocation2 + $0x70] sm:$0xff] %vm365, %v1556
        %1933 = vst.msk [vmem:[#allocation2 + $0x78] sm:$0xff] %vm365, %v1557
        %1934 = vst.msk [vmem:[#allocation3] sm:$0xff] %vm365, %v1902
        %1935 = vst.msk [vmem:[#allocation3 + $0x8] sm:$0xff] %vm365, %v1903
        %1936 = vst.msk [vmem:[#allocation3 + $0x10] sm:$0xff] %vm365, %v1904
        %1937 = vst.msk [vmem:[#allocation3 + $0x18] sm:$0xff] %vm365, %v1905
        %1938 = vst.msk [vmem:[#allocation3 + $0x20] sm:$0xff] %vm365, %v1906
        %1939 = vst.msk [vmem:[#allocation3 + $0x28] sm:$0xff] %vm365, %v1907
        %1940 = vst.msk [vmem:[#allocation3 + $0x30] sm:$0xff] %vm365, %v1908
        %1941 = vst.msk [vmem:[#allocation3 + $0x38] sm:$0xff] %vm365, %v1909
        %1942 = vst.msk [vmem:[#allocation3 + $0x40] sm:$0xff] %vm365, %v1910
        %1943 = vst.msk [vmem:[#allocation3 + $0x48] sm:$0xff] %vm365, %v1911
        %1944 = vst.msk [vmem:[#allocation3 + $0x50] sm:$0xff] %vm365, %v1912
        %1945 = vst.msk [vmem:[#allocation3 + $0x58] sm:$0xff] %vm365, %v1913
        %1946 = vst.msk [vmem:[#allocation3 + $0x60] sm:$0xff] %vm365, %v1914
        %1947 = vst.msk [vmem:[#allocation3 + $0x68] sm:$0xff] %vm365, %v1915
        %1948 = vst.msk [vmem:[#allocation3 + $0x70] sm:$0xff] %vm365, %v1916
        %1949 = vst.msk [vmem:[#allocation3 + $0x78] sm:$0xff] %vm365, %v1917
        %p1950 = scmp.eq.s32.totalorder %s20, 13
        // Predicated region
        $region57: #{_matnet_forward.23} parent=43 // pred_check
          %p1951 = pneg %p1950
        $region58: #{_matnet_forward.23} parent=43 // pred_check_branch
          %1953 = sbr.rel (%p1951) target = $region60
        $region59: #{_matnet_forward.23} parent=43 // pred_region
          %v1955 = vsel %vm365, %v1542, 0
          %v1958 = vsel %vm365, %v1543, 0
          %v1961 = vsel %vm365, %v1544, 0
          %v1964 = vsel %vm365, %v1545, 0
          %v1967 = vsel %vm365, %v1546, 0
          %v1970 = vsel %vm365, %v1547, 0
          %v1973 = vsel %vm365, %v1548, 0
          %v1976 = vsel %vm365, %v1549, 0
          %v1979 = vsel %vm365, %v1550, 0
          %v1982 = vsel %vm365, %v1551, 0
          %v1985 = vsel %vm365, %v1552, 0
          %v1988 = vsel %vm365, %v1553, 0
          %v1991 = vsel %vm365, %v1554, 0
          %v1994 = vsel %vm365, %v1555, 0
          %v1997 = vsel %vm365, %v1556, 0
          %v2000 = vsel %vm365, %v1557, 0
          %v2003 = vsel %vm365, %v1902, 0
          %v2006 = vsel %vm365, %v1903, 0
          %v2009 = vsel %vm365, %v1904, 0
          %v2012 = vsel %vm365, %v1905, 0
          %v2015 = vsel %vm365, %v1906, 0
          %v2018 = vsel %vm365, %v1907, 0
          %v2021 = vsel %vm365, %v1908, 0
          %v2024 = vsel %vm365, %v1909, 0
          %v2027 = vsel %vm365, %v1910, 0
          %v2030 = vsel %vm365, %v1911, 0
          %v2033 = vsel %vm365, %v1912, 0
          %v2036 = vsel %vm365, %v1913, 0
          %v2039 = vsel %vm365, %v1914, 0
          %v2042 = vsel %vm365, %v1915, 0
          %v2045 = vsel %vm365, %v1916, 0
          %v2048 = vsel %vm365, %v1917, 0
          %2050 = vmatprep.subr.mxu0 0.0
          %2051 = vmatpush1.xpose.msra.mxu0 %v2003
          %2052 = vmatprep.subr.mxu0 0.0
          %2053 = vmatpush1.xpose.msra.mxu0 %v2006
          %2054 = vmatprep.subr.mxu0 0.0
          %2055 = vmatpush1.xpose.msra.mxu0 %v2009
          %2056 = vmatprep.subr.mxu0 0.0
          %2057 = vmatpush1.xpose.msra.mxu0 %v2012
          %2058 = vmatprep.subr.mxu0 0.0
          %2059 = vmatpush1.xpose.msra.mxu0 %v2015
          %2060 = vmatprep.subr.mxu0 0.0
          %2061 = vmatpush1.xpose.msra.mxu0 %v2018
          %2062 = vmatprep.subr.mxu0 0.0
          %2063 = vmatpush1.xpose.msra.mxu0 %v2021
          %2064 = vmatprep.subr.mxu0 0.0
          %2065 = vmatpush1.xpose.msra.mxu0 %v2024
          %2066 = vmatprep.subr.mxu0 0.0
          %2067 = vmatpush1.xpose.msra.mxu0 %v2027
          %2068 = vmatprep.subr.mxu0 0.0
          %2069 = vmatpush1.xpose.msra.mxu0 %v2030
          %2070 = vmatprep.subr.mxu0 0.0
          %2071 = vmatpush1.xpose.msra.mxu0 %v2033
          %2072 = vmatprep.subr.mxu0 0.0
          %2073 = vmatpush1.xpose.msra.mxu0 %v2036
          %2074 = vmatprep.subr.mxu0 0.0
          %2075 = vmatpush1.xpose.msra.mxu0 %v2039
          %2076 = vmatprep.subr.mxu0 0.0
          %2077 = vmatpush1.xpose.msra.mxu0 %v2042
          %2078 = vmatprep.subr.mxu0 0.0
          %2079 = vmatpush1.xpose.msra.mxu0 %v2045
          %2080 = vmatprep.subr.mxu0 0.0
          %2081 = vmatpush1.xpose.msra.mxu0 %v2048
          %2082 = vmatprep.subr.mxu0 0.0
          %2083 = vmatpush1.xpose.msra.mxu0 0.0
          %2084 = vmatprep.subr.mxu0 0.0
          %2085 = vmatpush1.xpose.msra.mxu0 0.0
          %2086 = vmatprep.subr.mxu0 0.0
          %2087 = vmatpush1.xpose.msra.mxu0 0.0
          %2088 = vmatprep.subr.mxu0 0.0
          %2089 = vmatpush1.xpose.msra.mxu0 0.0
          %2090 = vmatprep.subr.mxu0 0.0
          %2091 = vmatpush1.xpose.msra.mxu0 0.0
          %2092 = vmatprep.subr.mxu0 0.0
          %2093 = vmatpush1.xpose.msra.mxu0 0.0
          %2094 = vmatprep.subr.mxu0 0.0
          %2095 = vmatpush1.xpose.msra.mxu0 0.0
          %2096 = vmatprep.subr.mxu0 0.0
          %2097 = vmatpush1.xpose.msra.mxu0 0.0
          %2098 = vmatprep.subr.mxu0 0.0
          %2099 = vmatpush1.xpose.msra.mxu0 0.0
          %2100 = vmatprep.subr.mxu0 0.0
          %2101 = vmatpush1.xpose.msra.mxu0 0.0
          %2102 = vmatprep.subr.mxu0 0.0
          %2103 = vmatpush1.xpose.msra.mxu0 0.0
          %2104 = vmatprep.subr.mxu0 0.0
          %2105 = vmatpush1.xpose.msra.mxu0 0.0
          %2106 = vmatprep.subr.mxu0 0.0
          %2107 = vmatpush1.xpose.msra.mxu0 0.0
          %2108 = vmatprep.subr.mxu0 0.0
          %2109 = vmatpush1.xpose.msra.mxu0 0.0
          %2110 = vmatprep.subr.mxu0 0.0
          %2111 = vmatpush1.xpose.msra.mxu0 0.0
          %2112 = vmatprep.subr.mxu0 0.0
          %2113 = vmatpush1.xpose.msra.mxu0 0.0
          %2114 = vmatprep.mubr.f32.mxu0 0.0
          %2115 = vmatmul.mubr.f32.gmra.mrb[0].mxu0 %v1955
          %v2116 = vpop.f32.mrb[0].mxu0
          %v2117 = vadd.f32 0.0, %v2116
          %v2118 = vpop.f32.mrb[0].mxu0
          %2119 = vmatprep.mubr.f32.mxu0 0.0
          %2120 = vmatmul.mubr.f32.gmra.mrb[0].mxu0 %v1958
          %v2121 = vpop.f32.mrb[0].mxu0
          %v2122 = vadd.f32 0.0, %v2121
          %v2123 = vpop.f32.mrb[0].mxu0
          %2124 = vmatprep.mubr.f32.mxu0 0.0
          %2125 = vmatmul.mubr.f32.gmra.mrb[0].mxu0 %v1961
          %v2126 = vpop.f32.mrb[0].mxu0
          %v2127 = vadd.f32 0.0, %v2126
          %v2128 = vpop.f32.mrb[0].mxu0
          %2129 = vmatprep.mubr.f32.mxu0 0.0
          %2130 = vmatmul.mubr.f32.gmra.mrb[0].mxu0 %v1964
          %v2131 = vpop.f32.mrb[0].mxu0
          %v2132 = vadd.f32 0.0, %v2131
          %v2133 = vpop.f32.mrb[0].mxu0
          %2134 = vmatprep.mubr.f32.mxu0 0.0
          %2135 = vmatmul.mubr.f32.gmra.mrb[0].mxu0 %v1967
          %v2136 = vpop.f32.mrb[0].mxu0
          %v2137 = vadd.f32 0.0, %v2136
          %v2138 = vpop.f32.mrb[0].mxu0
          %2139 = vmatprep.mubr.f32.mxu0 0.0
          %2140 = vmatmul.mubr.f32.gmra.mrb[0].mxu0 %v1970
          %v2141 = vpop.f32.mrb[0].mxu0
          %v2142 = vadd.f32 0.0, %v2141
          %v2143 = vpop.f32.mrb[0].mxu0
          %2144 = vmatprep.mubr.f32.mxu0 0.0
          %2145 = vmatmul.mubr.f32.gmra.mrb[0].mxu0 %v1973
          %v2146 = vpop.f32.mrb[0].mxu0
          %v2147 = vadd.f32 0.0, %v2146
          %v2148 = vpop.f32.mrb[0].mxu0
          %2149 = vmatprep.mubr.f32.mxu0 0.0
          %2150 = vmatmul.mubr.f32.gmra.mrb[0].mxu0 %v1976
          %v2151 = vpop.f32.mrb[0].mxu0
          %v2152 = vadd.f32 0.0, %v2151
          %v2153 = vpop.f32.mrb[0].mxu0
          %2154 = vmatprep.mubr.f32.mxu0 0.0
          %2155 = vmatmul.mubr.f32.gmra.mrb[0].mxu0 %v1979
          %v2156 = vpop.f32.mrb[0].mxu0
          %v2157 = vadd.f32 0.0, %v2156
          %v2158 = vpop.f32.mrb[0].mxu0
          %2159 = vmatprep.mubr.f32.mxu0 0.0
          %2160 = vmatmul.mubr.f32.gmra.mrb[0].mxu0 %v1982
          %v2161 = vpop.f32.mrb[0].mxu0
          %v2162 = vadd.f32 0.0, %v2161
          %v2163 = vpop.f32.mrb[0].mxu0
          %2164 = vmatprep.mubr.f32.mxu0 0.0
          %2165 = vmatmul.mubr.f32.gmra.mrb[0].mxu0 %v1985
          %v2166 = vpop.f32.mrb[0].mxu0
          %v2167 = vadd.f32 0.0, %v2166
          %v2168 = vpop.f32.mrb[0].mxu0
          %2169 = vmatprep.mubr.f32.mxu0 0.0
          %2170 = vmatmul.mubr.f32.gmra.mrb[0].mxu0 %v1988
          %v2171 = vpop.f32.mrb[0].mxu0
          %v2172 = vadd.f32 0.0, %v2171
          %v2173 = vpop.f32.mrb[0].mxu0
          %2174 = vmatprep.mubr.f32.mxu0 0.0
          %2175 = vmatmul.mubr.f32.gmra.mrb[0].mxu0 %v1991
          %v2176 = vpop.f32.mrb[0].mxu0
          %v2177 = vadd.f32 0.0, %v2176
          %v2178 = vpop.f32.mrb[0].mxu0
          %2179 = vmatprep.mubr.f32.mxu0 0.0
          %2180 = vmatmul.mubr.f32.gmra.mrb[0].mxu0 %v1994
          %v2181 = vpop.f32.mrb[0].mxu0
          %v2182 = vadd.f32 0.0, %v2181
          %v2183 = vpop.f32.mrb[0].mxu0
          %2184 = vmatprep.mubr.f32.mxu0 0.0
          %2185 = vmatmul.mubr.f32.gmra.mrb[0].mxu0 %v1997
          %v2186 = vpop.f32.mrb[0].mxu0
          %v2187 = vadd.f32 0.0, %v2186
          %v2188 = vpop.f32.mrb[0].mxu0
          %2189 = vmatprep.mubr.f32.mxu0 0.0
          %2190 = vmatmul.mubr.f32.gmra.mrb[0].mxu0 %v2000
          %v2191 = vpop.f32.mrb[0].mxu0
          %v2192 = vadd.f32 0.0, %v2191
          %v2193 = vpop.f32.mrb[0].mxu0
          %2194 = vdwg.mxu0
          %v2195 = vld [vmem:[%s3] sm:$0xff]
          %v2196 = vld [vmem:[%s3 + $0x8] sm:$0xff]
          %v2197 = vld [vmem:[%s3 + $0x10] sm:$0xff]
          %v2198 = vld [vmem:[%s3 + $0x18] sm:$0xff]
          %v2199 = vld [vmem:[%s3 + $0x20] sm:$0xff]
          %v2200 = vld [vmem:[%s3 + $0x28] sm:$0xff]
          %v2201 = vld [vmem:[%s3 + $0x30] sm:$0xff]
          %v2202 = vld [vmem:[%s3 + $0x38] sm:$0xff]
          %v2203 = vld [vmem:[%s3 + $0x40] sm:$0xff]
          %v2204 = vld [vmem:[%s3 + $0x48] sm:$0xff]
          %v2205 = vld [vmem:[%s3 + $0x50] sm:$0xff]
          %v2206 = vld [vmem:[%s3 + $0x58] sm:$0xff]
          %v2207 = vld [vmem:[%s3 + $0x60] sm:$0xff]
          %v2208 = vld [vmem:[%s3 + $0x68] sm:$0xff]
          %v2209 = vld [vmem:[%s3 + $0x70] sm:$0xff]
          %v2210 = vld [vmem:[%s3 + $0x78] sm:$0xff]
          %v2211 = vsub.f32 %v2117, %v2195
          %v2212 = vsub.f32 %v2122, %v2196
          %v2213 = vsub.f32 %v2127, %v2197
          %v2214 = vsub.f32 %v2132, %v2198
          %v2215 = vsub.f32 %v2137, %v2199
          %v2216 = vsub.f32 %v2142, %v2200
          %v2217 = vsub.f32 %v2147, %v2201
          %v2218 = vsub.f32 %v2152, %v2202
          %v2219 = vsub.f32 %v2157, %v2203
          %v2220 = vsub.f32 %v2162, %v2204
          %v2221 = vsub.f32 %v2167, %v2205
          %v2222 = vsub.f32 %v2172, %v2206
          %v2223 = vsub.f32 %v2177, %v2207
          %v2224 = vsub.f32 %v2182, %v2208
          %v2225 = vsub.f32 %v2187, %v2209
          %v2226 = vsub.f32 %v2192, %v2210
          %v2227 = vmul.f32 %v2211, %v2211
          %v2228 = vmul.f32 %v2212, %v2212
          %v2229 = vmul.f32 %v2213, %v2213
          %v2230 = vmul.f32 %v2214, %v2214
          %v2231 = vmul.f32 %v2215, %v2215
          %v2232 = vmul.f32 %v2216, %v2216
          %v2233 = vmul.f32 %v2217, %v2217
          %v2234 = vmul.f32 %v2218, %v2218
          %v2235 = vmul.f32 %v2219, %v2219
          %v2236 = vmul.f32 %v2220, %v2220
          %v2237 = vmul.f32 %v2221, %v2221
          %v2238 = vmul.f32 %v2222, %v2222
          %v2239 = vmul.f32 %v2223, %v2223
          %v2240 = vmul.f32 %v2224, %v2224
          %v2241 = vmul.f32 %v2225, %v2225
          %v2242 = vmul.f32 %v2226, %v2226
          %v2243 = vadd.f32 %v2227, %v2228
          %v2244 = vadd.f32 %v2243, %v2229
          %v2245 = vadd.f32 %v2244, %v2230
          %v2246 = vadd.f32 %v2245, %v2231
          %v2247 = vadd.f32 %v2246, %v2232
          %v2248 = vadd.f32 %v2247, %v2233
          %v2249 = vadd.f32 %v2248, %v2234
          %v2250 = vadd.f32 %v2249, %v2235
          %v2251 = vadd.f32 %v2250, %v2236
          %v2252 = vadd.f32 %v2251, %v2237
          %v2253 = vadd.f32 %v2252, %v2238
          %v2254 = vadd.f32 %v2253, %v2239
          %v2255 = vadd.f32 %v2254, %v2240
          %v2256 = vadd.f32 %v2255, %v2241
          %v2257 = vadd.f32 %v2256, %v2242
          %2258 = vadd.xlane.f32.xlu0 %v2257
          %v2259 = vpop.xlane.xlu0 %2258
          %v2260 = vrot.slane %v2259, 4
          %v2261 = vadd.f32 %v2259, %v2260
          %v2262 = vrot.slane %v2261, 2
          %v2263 = vadd.f32 %v2261, %v2262
          %v2264 = vrot.slane %v2263, 1
          %v2265 = vadd.f32 %v2263, %v2264
          %s2266 = vtos %v2265
          %v2267 = vstv %s2266
          %v2268 = vrsqrt.pop %v2267
          %v2269 = vmul.f32 %v2267, %v2268
          %vm2270 = vcmp.eq.f32.partialorder %v2267, inf
          %v2271 = vsel %vm2270, %v2267, %v2269
          %vm2272 = vcmp.eq.f32.partialorder %v2267, 0.0
          %v2273 = vand.u32 %v2267, 2147483648
          %v2274 = vsel %vm2272, %v2273, %v2271
          %vm2275 = vcmask 0
          %2276 = vst.msk [vmem:[#allocation9] sm:$0x1] %vm2275, %v2274
        $region60: #{_matnet_forward.23} parent=43 // pred_fallthru
          _
        // Predicated region
        $region61: #{_matnet_forward.23} parent=43 // pred_check
          %p2277 = pneg %p159
        $region62: #{_matnet_forward.23} parent=43 // pred_check_branch
          %2279 = sbr.rel (%p2277) target = $region64
        $region63: #{_matnet_forward.23} parent=43 // pred_region
          %s2281 = ssub.s32 16, 16
          %2282 = vsyncadd [#allocation5], %s2281
          %s2284 = sshll.u32 [#allocation9], 4
          %s2285 = int_to_ptr.vmem [resolvable:$true] %s2284
          %2287 = dma.vmem_to_hbm [thread:$0]  %s2285, 16, %s6, [#allocation5]
        $region64: #{_matnet_forward.23} parent=43 // pred_fallthru
          _
        // Predicated region
        $region65: #{_matnet_forward.23} parent=43 // pred_check
          %p2288 = pneg %p159
        $region66: #{_matnet_forward.23} parent=43 // pred_check_branch
          %2290 = sbr.rel (%p2288) target = $region68
        $region67: #{_matnet_forward.23} parent=43 // pred_region
          %2291 = dma.done [#allocation5], 16
        $region68: #{_matnet_forward.23} parent=43 // pred_fallthru
          _
      $region44: #{_matnet_forward.23} parent=5 // pred_fallthru
        _
      %p2292 = scmp.le.s32.totalorder 2, %s15
      // Predicated region
      $region69: #{_matnet_forward.23} parent=5 // pred_check
        %p2293 = pneg %p2292
      $region70: #{_matnet_forward.23} parent=5 // pred_check_branch
        %2295 = sbr.rel (%p2293) target = $region72
      $region71: #{_matnet_forward.23} parent=5 // pred_region
        %s2296 = ssub.s32 %s15, 2
      $region72: #{_matnet_forward.23} parent=5 // pred_fallthru
        _
    $region6: #{_matnet_forward.23} parent=1 // loop_footer
      %s19 = sadd.s32 1, %s15
    $region7: #{_matnet_forward.23} parent=1 // loop_footer_branch
      %14 = sbr.rel target = $region3
    $region8: #{_matnet_forward.23} parent=1 // loop_exit
      _
    %2297 = vsyncpa [#allocation5], 1
    %s2298 = scalar_lea.sflag [#allocation5], 1
    %2299 = vsyncpa %s2298, 1
    %2300 = vsyncpa [#allocation6], 1
    %s2301 = scalar_lea.sflag [#allocation6], 1
    %2302 = vsyncpa %s2301, 1
    %2303 = vsyncpa [#allocation8], 1

</llo_original>
